<compile_context>
chip_gen: v7x
topology: tpu7x:2x2x1
jax: 0.10.0
libtpu: 0.0.40
codegen_flags: <defaults>
</compile_context>

<pallas_src>
import functools
import math

import numpy as np
import jax
import jax.numpy as jnp
from jax import lax
from jax.experimental import pallas as pl
from jax.experimental.pallas import tpu as pltpu  # noqa: F401  (TPU backend)


# ----------------------------------------------------------------------------
# helpers
# ----------------------------------------------------------------------------
def _layer_norm_ref(x, gamma, beta, eps=1e-6):
    """Two-pass LayerNorm (matches nn.LayerNorm, used by the JAX reference)."""
    mu = jnp.mean(x, axis=-1, keepdims=True)
    var = jnp.mean((x - mu) ** 2, axis=-1, keepdims=True)
    return (x - mu) * lax.rsqrt(var + eps) * gamma + beta


def _ln(x, gamma, beta, eps=1e-6):
    """One-pass LayerNorm for the kernel: two independent reductions."""
    inv_n = 1.0 / x.shape[-1]
    s1 = jnp.sum(x, axis=-1, keepdims=True)
    s2 = jnp.sum(x * x, axis=-1, keepdims=True)
    mu = s1 * inv_n
    var = s2 * inv_n - mu * mu
    return (x - mu) * lax.rsqrt(var + eps) * gamma + beta


# ----------------------------------------------------------------------------
# Fused decoder kernel (single invocation, everything VMEM-resident)
# ----------------------------------------------------------------------------
def decoder_kernel(x13_ref, posb_ref, enc_ref, tmask_ref, smask_ref,
                   embf_ref, wbe_ref, wqkv_ref, wo_ref, w1_ref, w2_ref, vec_ref,
                   o_ref, *, B, S, S_src, H, d_k, d_v, n_layers, n_amino, Dm, Dff):
    f32, bf16 = jnp.float32, jnp.bfloat16
    BS = B * S
    HK, HV = H * d_k, H * d_v

    vecs = vec_ref[...]                     # (K, max(Dm, Dff)) f32, packed vectors

    def vrow(r, n):                         # (1, n) bias / LN-param row
        return vecs[r:r + 1, :n]

    # ---- embedding (one-hot matmul on the pre-folded table) + linearB + PE ---
    x13 = x13_ref[...]                                              # (BS, 13) f32
    ids = x13[:, 0:1].astype(jnp.int32)                             # (BS, 1)
    extra = x13[:, 1:].astype(bf16)                                 # (BS, 12)
    onehot = (ids == lax.broadcasted_iota(jnp.int32, (BS, n_amino), 1))
    onehot = onehot.astype(f32).astype(bf16)                        # (BS, n_amino)

    y = (jnp.dot(onehot, embf_ref[...], preferred_element_type=f32)
         + jnp.dot(extra, wbe_ref[...], preferred_element_type=f32)
         + posb_ref[...])                   # posb already = pos_table + linearB bias
    x = _ln(y, vrow(0, Dm), vrow(1, Dm))                            # (BS, Dm)

    enc2 = enc_ref[...]                                             # (B*S_src, Dm)
    enc2_bf = enc2.astype(bf16)

    # masked_fill(mask == 0, -1e9)  ==  s * keep + bias  (keep in {0,1}); hoisted
    t_keep = (tmask_ref[...] != 0.0).astype(f32)                    # (B, S, S)
    t_bias = (1.0 - t_keep) * (-1e9)
    s_keep = (smask_ref[...] != 0.0).astype(f32)                    # (B, S, S_src)
    s_bias = (1.0 - s_keep) * (-1e9)

    scale = 1.0 / math.sqrt(d_k)

    def attention(Q2, K2, V2, residual, Sq, Sk, keep, bias, idx):
        Q3 = Q2.reshape(B, Sq, HK)
        K3 = K2.reshape(B, Sk, HK)
        V3 = V2.reshape(B, Sk, HV)
        ctxs = []
        for h in range(H):                  # heads unrolled; B batched in each dot
            Qh = Q3[:, :, h * d_k:(h + 1) * d_k].astype(bf16)
            Kh = K3[:, :, h * d_k:(h + 1) * d_k].astype(bf16)
            Vh = V3[:, :, h * d_v:(h + 1) * d_v].astype(bf16)
            s = jnp.einsum('bqd,bkd->bqk', Qh, Kh,
                           preferred_element_type=f32) * scale      # (B, Sq, Sk)
            s = s * keep + bias
            m = jnp.max(s, axis=-1, keepdims=True)
            e = jnp.exp(s - m)
            p = e * pl.reciprocal(jnp.sum(e, axis=-1, keepdims=True), approx=True)
            ctxs.append(jnp.einsum('bqk,bkd->bqd', p.astype(bf16), Vh,
                                   preferred_element_type=f32))     # (B, Sq, dv)
        # fused output projection: one (B*Sq, H*dv) @ (H*dv, Dm) matmul
        ctx = jnp.concatenate(ctxs, axis=-1).reshape(B * Sq, HV)
        out = jnp.dot(ctx.astype(bf16), wo_ref[idx], preferred_element_type=f32)
        base = 2 + 3 * idx
        out = out + vrow(base, Dm) + residual
        return _ln(out, vrow(base + 1, Dm), vrow(base + 2, Dm))

    for l in range(n_layers):
        # ---- self-attention: fused QKV in a single matmul ---------------------
        idx = 2 * l
        qkv = jnp.dot(x.astype(bf16), wqkv_ref[idx], preferred_element_type=f32)
        x = attention(qkv[:, :HK], qkv[:, HK:2 * HK], qkv[:, 2 * HK:],
                      x, S, S, t_keep, t_bias, idx)

        # ---- encoder-decoder attention: Q from x, fused KV from encoder -------
        idx = 2 * l + 1
        w = wqkv_ref[idx]
        q2 = jnp.dot(x.astype(bf16), w[:, :HK], preferred_element_type=f32)
        kv = jnp.dot(enc2_bf, w[:, HK:], preferred_element_type=f32)
        x = attention(q2, kv[:, :HK], kv[:, HK:], x, S, S_src,
                      s_keep, s_bias, idx)

        # ---- FFN ---------------------------------------------------------------
        fb = 2 + 6 * n_layers + 4 * l
        h1 = jnp.maximum(jnp.dot(x.astype(bf16), w1_ref[l],
                                 preferred_element_type=f32) + vrow(fb, Dff), 0.0)
        y2 = jnp.dot(h1.astype(bf16), w2_ref[l],
                     preferred_element_type=f32) + vrow(fb + 1, Dm)
        x = _ln(y2 + x, vrow(fb + 2, Dm), vrow(fb + 3, Dm))

    o_ref[...] = x


# ----------------------------------------------------------------------------
# Wrapper: folds / packs weights and launches the fused kernel
# ----------------------------------------------------------------------------
def decoder_forward(params, trg_seq, trg_mask, enc_output, src_mask, cfg):
    B, S, dims = trg_seq.shape
    assert dims == 13
    assert S <= params["pos_table"].shape[0]
    Dm, Dff = cfg["d_model"], cfg["d_inner"]
    H, dk, dv, L = cfg["n_head"], cfg["d_k"], cfg["d_v"], cfg["n_layers"]
    d_a = cfg["d_amino_vec"]
    n_amino = cfg["n_amino_feature"]
    S_src = enc_output.shape[1]
    bf16 = jnp.bfloat16

    # activations / data-dependent operands (f32)
    x13 = trg_seq.astype(jnp.float32).reshape(B * S, dims)
    posb = jnp.tile(params["pos_table"][:S], (B, 1)) + params["bB"]   # pos + bias_B
    enc2 = enc_output.astype(jnp.float32).reshape(B * S_src, Dm)

    # weight pre-folds (constants only, no activation pre-scaling)
    embf = (params["emb"] @ params["wB"][:d_a]).astype(bf16)          # (n_amino, Dm)
    wbe = params["wB"][d_a:].astype(bf16)                             # (12, Dm)

    # per-layer stacked weights, attention order [slf_0, enc_0, slf_1, enc_1, ...]
    att = []
    for layer in params["layers"]:
        att.append(layer["slf"])
        att.append(layer["enc"])
    WQKV = jnp.stack([jnp.concatenate([a["wq"], a["wk"], a["wv"]], axis=1)
                      for a in att]).astype(bf16)                     # (2L, Dm, 2HK+HV)
    WO = jnp.stack([a["wo"] for a in att]).astype(bf16)               # (2L, HV, Dm)
    ffn = [layer["ffn"] for layer in params["layers"]]
    W1 = jnp.stack([f["w1"] for f in ffn]).astype(bf16)               # (L, Dm, Dff)
    W2 = jnp.stack([f["w2"] for f in ffn]).astype(bf16)               # (L, Dff, Dm)

    # pack every (1,Dm)/(1,Dff) bias & LayerNorm vector into one f32 array
    Wv = max(Dm, Dff)
    pad = lambda v: jnp.pad(v, ((0, 0), (0, Wv - v.shape[1])))
    rows = [pad(params["ln_g"]), pad(params["ln_b"])]
    for a in att:
        rows += [pad(a["bo"]), pad(a["g"]), pad(a["b"])]
    for f in ffn:
        rows += [pad(f["b1"]), pad(f["b2"]), pad(f["g"]), pad(f["b"])]
    VECS = jnp.concatenate(rows, axis=0).astype(jnp.float32)          # (2+10L, Wv)

    kern = functools.partial(decoder_kernel, B=B, S=S, S_src=S_src, H=H,
                             d_k=dk, d_v=dv, n_layers=L, n_amino=n_amino,
                             Dm=Dm, Dff=Dff)

    out2 = pl.pallas_call(
        kern,
        out_shape=jax.ShapeDtypeStruct((B * S, Dm), jnp.float32),
        # no grid: single invocation, all operands fully resident in VMEM
    )(x13, posb, enc2,
      trg_mask.astype(jnp.float32), src_mask.astype(jnp.float32),
      embf, wbe, WQKV, WO, W1, W2, VECS)
    return out2.reshape(B, S, Dm)


# ----------------------------------------------------------------------------
# Pure-JAX reference (mirrors the PyTorch Decoder, inference mode, f32)
# ----------------------------------------------------------------------------
def decoder_reference(params, trg_seq, trg_mask, enc_output, src_mask, cfg):
    H, dk, dv = cfg["n_head"], cfg["d_k"], cfg["d_v"]
    B, S, _ = trg_seq.shape
    ids = trg_seq[:, :, 0].astype(jnp.int32)
    amino = jnp.take(params["emb"], ids, axis=0)
    fea = jnp.concatenate([amino, trg_seq[:, :, 1:]], axis=2)
    x = fea @ params["wB"] + params["bB"]
    x = x + params["pos_table"][:S][None]
    x = _layer_norm_ref(x, params["ln_g"], params["ln_b"])

    def mha_ref(q, kv, mask, p):
        Bq, Sq, Dm = q.shape
        Sk = kv.shape[1]
        Q = (q @ p["wq"]).reshape(Bq, Sq, H, dk).transpose(0, 2, 1, 3)
        K = (kv @ p["wk"]).reshape(Bq, Sk, H, dk).transpose(0, 2, 1, 3)
        V = (kv @ p["wv"]).reshape(Bq, Sk, H, dv).transpose(0, 2, 1, 3)
        s = jnp.einsum('bhqd,bhkd->bhqk', Q, K) / math.sqrt(dk)
        s = jnp.where(mask[:, None] == 0, -1e9, s)
        a = jax.nn.softmax(s, axis=-1)
        ctx = jnp.einsum('bhqk,bhkd->bhqd', a, V).transpose(0, 2, 1, 3)
        ctx = ctx.reshape(Bq, Sq, H * dv)
        out = ctx @ p["wo"] + p["bo"]
        return _layer_norm_ref(out + q, p["g"], p["b"])

    for layer in params["layers"]:
        x = mha_ref(x, x, trg_mask, layer["slf"])
        x = mha_ref(x, enc_output, src_mask, layer["enc"])
        f = layer["ffn"]
        h = jax.nn.relu(x @ f["w1"] + f["b1"])
        y = h @ f["w2"] + f["b2"]
        x = _layer_norm_ref(y + x, f["g"], f["b"])
    return x


# ----------------------------------------------------------------------------
# Parameter construction (deterministic, synthetic)
# ----------------------------------------------------------------------------
def sinusoid_table(n_position, d_hid):
    pos = np.arange(n_position)[:, None].astype(np.float64)
    hid = np.arange(d_hid)[None, :]
    angle = pos / np.power(10000.0, 2 * (hid // 2) / d_hid)
    table = np.zeros((n_position, d_hid), dtype=np.float64)
    table[:, 0::2] = np.sin(angle[:, 0::2])
    table[:, 1::2] = np.cos(angle[:, 1::2])
    return jnp.asarray(table, dtype=jnp.float32)


def make_params(key, cfg):
    Dm, Dff, H, dk, dv = cfg["d_model"], cfg["d_inner"], cfg["n_head"], cfg["d_k"], cfg["d_v"]
    n_layers = cfg["n_layers"]
    keys = iter(jax.random.split(key, 8 + n_layers * 32))

    def w(shape, scale=0.05):
        return (scale * jax.random.normal(next(keys), shape)).astype(jnp.float32)

    params = {}
    emb = w((cfg["n_amino_feature"], cfg["d_amino_vec"]))
    emb = emb.at[cfg["pad_idx"]].set(0.0)                  # padding_idx row zeroed
    params["emb"] = emb
    params["wB"] = w((20, Dm))
    params["bB"] = w((1, Dm))
    params["ln_g"] = jnp.ones((1, Dm), jnp.float32)
    params["ln_b"] = jnp.zeros((1, Dm), jnp.float32)
    params["pos_table"] = sinusoid_table(512, Dm)

    layers = []
    for _ in range(n_layers):
        layer = {}
        for name in ("slf", "enc"):
            layer[name] = dict(
                wq=w((Dm, H * dk)), wk=w((Dm, H * dk)), wv=w((Dm, H * dv)),
                wo=w((H * dv, Dm)), bo=w((1, Dm)),
                g=jnp.ones((1, Dm), jnp.float32), b=jnp.zeros((1, Dm), jnp.float32),
            )
        layer["ffn"] = dict(
            w1=w((Dm, Dff)), b1=w((1, Dff)), w2=w((Dff, Dm)), b2=w((1, Dm)),
            g=jnp.ones((1, Dm), jnp.float32), b=jnp.zeros((1, Dm), jnp.float32),
        )
        layers.append(layer)
    params["layers"] = layers
    return params


# ----------------------------------------------------------------------------
if __name__ == "__main__":
    cfg = dict(
        n_amino_feature=26, d_amino_vec=8,   # 8 + 12 extra features = 20 -> linearB(20, d_model)
        n_layers=2, n_head=4, d_k=8, d_v=8,
        d_model=32, d_inner=64, pad_idx=0,
    )
    B, S, S_src = 2, 8, 8

    key = jax.random.PRNGKey(0)
    k_par, k_ids, k_feat, k_enc = jax.random.split(key, 4)
    params = make_params(k_par, cfg)

    # trg_seq: (B, S, 13); column 0 = amino-acid type index, columns 1..12 = features
    ids = jax.random.randint(k_ids, (B, S, 1), 0, cfg["n_amino_feature"]).astype(jnp.float32)
    feats = jax.random.normal(k_feat, (B, S, 12), dtype=jnp.float32)
    trg_seq = jnp.concatenate([ids, feats], axis=2)

    enc_output = jax.random.normal(k_enc, (B, S_src, cfg["d_model"]), dtype=jnp.float32)

    # masks: 1 = attend, 0 = masked (matches masked_fill(mask == 0, -1e9))
    causal = jnp.tril(jnp.ones((S, S), jnp.float32))
    trg_mask = jnp.broadcast_to(causal, (B, S, S))
    src_mask = jnp.ones((B, S, S_src), jnp.float32)

    fwd = jax.jit(functools.partial(decoder_forward, cfg=cfg))
    out = jax.block_until_ready(fwd(params, trg_seq, trg_mask, enc_output, src_mask))

    assert out.shape == (B, S, cfg["d_model"])
    assert bool(jnp.all(jnp.isfinite(out)))

    ref = decoder_reference(params, trg_seq, trg_mask, enc_output, src_mask, cfg)
    max_err = float(jnp.max(jnp.abs(out - ref)))
    assert jnp.allclose(out, ref, atol=5e-2, rtol=5e-2), f"max abs err {max_err}"

    print("KERNEL_OK")
</pallas_src>

<mosaic_0001>
module attributes {stable_mosaic.version = 11 : i64} {
  func.func @decoder_kernel(%arg0: memref<16x13xf32, #tpu.memory_space<vmem>>, %arg1: memref<16x32xf32, #tpu.memory_space<vmem>>, %arg2: memref<16x32xf32, #tpu.memory_space<vmem>>, %arg3: memref<2x8x8xf32, #tpu.memory_space<vmem>>, %arg4: memref<2x8x8xf32, #tpu.memory_space<vmem>>, %arg5: memref<26x32xbf16, #tpu.memory_space<vmem>>, %arg6: memref<12x32xbf16, #tpu.memory_space<vmem>>, %arg7: memref<4x32x96xbf16, #tpu.memory_space<vmem>>, %arg8: memref<4x32x32xbf16, #tpu.memory_space<vmem>>, %arg9: memref<2x32x64xbf16, #tpu.memory_space<vmem>>, %arg10: memref<2x64x32xbf16, #tpu.memory_space<vmem>>, %arg11: memref<22x64xf32, #tpu.memory_space<vmem>>, %arg12: memref<16x32xf32, #tpu.memory_space<vmem>>) attributes {dimension_semantics = [], scalar_prefetch = 0 : i64, scratch_operands = 0 : i64, tpu.core_type = #tpu.core_type<tc>} {
    %c0 = arith.constant 0 : index
    %c0_0 = arith.constant 0 : index
    %0 = vector.load %arg11[%c0, %c0_0] : memref<22x64xf32, #tpu.memory_space<vmem>>, vector<22x64xf32>
    %c0_1 = arith.constant 0 : index
    %c0_2 = arith.constant 0 : index
    %1 = vector.load %arg0[%c0_1, %c0_2] : memref<16x13xf32, #tpu.memory_space<vmem>>, vector<16x13xf32>
    %2 = vector.extract_strided_slice %1 {offsets = [0, 0], sizes = [16, 1], strides = [1, 1]} : vector<16x13xf32> to vector<16x1xf32>
    %3 = arith.fptosi %2 : vector<16x1xf32> to vector<16x1xi32>
    %4 = vector.extract_strided_slice %1 {offsets = [0, 1], sizes = [16, 12], strides = [1, 1]} : vector<16x13xf32> to vector<16x12xf32>
    %5 = arith.truncf %4 : vector<16x12xf32> to vector<16x12xbf16>
    %6 = tpu.iota {dimensions = array<i32: 1>} : vector<16x26xi32>
    %7 = vector.broadcast %3 : vector<16x1xi32> to vector<16x26xi32>
    %8 = arith.cmpi eq, %7, %6 : vector<16x26xi32>
    %9 = arith.extui %8 : vector<16x26xi1> to vector<16x26xi32>
    %10 = arith.sitofp %9 : vector<16x26xi32> to vector<16x26xf32>
    %11 = arith.truncf %10 : vector<16x26xf32> to vector<16x26xbf16>
    %c0_3 = arith.constant 0 : index
    %c0_4 = arith.constant 0 : index
    %12 = vector.load %arg5[%c0_3, %c0_4] : memref<26x32xbf16, #tpu.memory_space<vmem>>, vector<26x32xbf16>
    %cst = arith.constant dense<0.000000e+00> : vector<16x32xf32>
    %13 = tpu.matmul %11, %12, %cst {dimension_numbers = #tpu.dot_dimension_numbers<[1], [0], [0], [1], [0, 0, 1, 1], [], []>} : vector<16x26xbf16>, vector<26x32xbf16>, vector<16x32xf32> -> vector<16x32xf32>
    %c0_5 = arith.constant 0 : index
    %c0_6 = arith.constant 0 : index
    %14 = vector.load %arg6[%c0_5, %c0_6] : memref<12x32xbf16, #tpu.memory_space<vmem>>, vector<12x32xbf16>
    %cst_7 = arith.constant dense<0.000000e+00> : vector<16x32xf32>
    %15 = tpu.matmul %5, %14, %cst_7 {dimension_numbers = #tpu.dot_dimension_numbers<[1], [0], [0], [1], [0, 0, 1, 1], [], []>} : vector<16x12xbf16>, vector<12x32xbf16>, vector<16x32xf32> -> vector<16x32xf32>
    %16 = arith.addf %13, %15 : vector<16x32xf32>
    %c0_8 = arith.constant 0 : index
    %c0_9 = arith.constant 0 : index
    %17 = vector.load %arg1[%c0_8, %c0_9] : memref<16x32xf32, #tpu.memory_space<vmem>>, vector<16x32xf32>
    %18 = arith.addf %16, %17 : vector<16x32xf32>
    %19 = vector.extract_strided_slice %0 {offsets = [0, 0], sizes = [1, 32], strides = [1, 1]} : vector<22x64xf32> to vector<1x32xf32>
    %20 = vector.extract_strided_slice %0 {offsets = [1, 0], sizes = [1, 32], strides = [1, 1]} : vector<22x64xf32> to vector<1x32xf32>
    %cst_10 = arith.constant dense<0.000000e+00> : vector<16xf32>
    %21 = vector.multi_reduction <add>, %18, %cst_10 [1] : vector<16x32xf32> to vector<16xf32>
    %22 = vector.shape_cast %21 : vector<16xf32> to vector<16x1xf32>
    %23 = arith.mulf %18, %18 : vector<16x32xf32>
    %cst_11 = arith.constant dense<0.000000e+00> : vector<16xf32>
    %24 = vector.multi_reduction <add>, %23, %cst_11 [1] : vector<16x32xf32> to vector<16xf32>
    %25 = vector.shape_cast %24 : vector<16xf32> to vector<16x1xf32>
    %cst_12 = arith.constant 3.125000e-02 : f32
    %26 = vector.broadcast %cst_12 : f32 to vector<16x1xf32>
    %27 = arith.mulf %22, %26 : vector<16x1xf32>
    %cst_13 = arith.constant 3.125000e-02 : f32
    %28 = vector.broadcast %cst_13 : f32 to vector<16x1xf32>
    %29 = arith.mulf %25, %28 : vector<16x1xf32>
    %30 = arith.mulf %27, %27 : vector<16x1xf32>
    %31 = arith.subf %29, %30 : vector<16x1xf32>
    %32 = vector.broadcast %27 : vector<16x1xf32> to vector<16x32xf32>
    %33 = arith.subf %18, %32 : vector<16x32xf32>
    %cst_14 = arith.constant 9.99999997E-7 : f32
    %34 = vector.broadcast %cst_14 : f32 to vector<16x1xf32>
    %35 = arith.addf %31, %34 : vector<16x1xf32>
    %36 = math.rsqrt %35 : vector<16x1xf32>
    %37 = vector.broadcast %36 : vector<16x1xf32> to vector<16x32xf32>
    %38 = arith.mulf %33, %37 : vector<16x32xf32>
    %39 = vector.broadcast %19 : vector<1x32xf32> to vector<16x32xf32>
    %40 = arith.mulf %38, %39 : vector<16x32xf32>
    %41 = vector.broadcast %20 : vector<1x32xf32> to vector<16x32xf32>
    %42 = arith.addf %40, %41 : vector<16x32xf32>
    %c0_15 = arith.constant 0 : index
    %c0_16 = arith.constant 0 : index
    %43 = vector.load %arg2[%c0_15, %c0_16] : memref<16x32xf32, #tpu.memory_space<vmem>>, vector<16x32xf32>
    %44 = arith.truncf %43 : vector<16x32xf32> to vector<16x32xbf16>
    %c0_17 = arith.constant 0 : index
    %c0_18 = arith.constant 0 : index
    %c0_19 = arith.constant 0 : index
    %45 = vector.load %arg3[%c0_17, %c0_18, %c0_19] : memref<2x8x8xf32, #tpu.memory_space<vmem>>, vector<2x8x8xf32>
    %cst_20 = arith.constant 0.000000e+00 : f32
    %46 = vector.broadcast %cst_20 : f32 to vector<2x8x8xf32>
    %47 = arith.cmpf one, %45, %46 : vector<2x8x8xf32>
    %48 = arith.extui %47 : vector<2x8x8xi1> to vector<2x8x8xi32>
    %49 = arith.sitofp %48 : vector<2x8x8xi32> to vector<2x8x8xf32>
    %cst_21 = arith.constant 1.000000e+00 : f32
    %50 = vector.broadcast %cst_21 : f32 to vector<2x8x8xf32>
    %51 = arith.subf %50, %49 : vector<2x8x8xf32>
    %cst_22 = arith.constant -1.000000e+09 : f32
    %52 = vector.broadcast %cst_22 : f32 to vector<2x8x8xf32>
    %53 = arith.mulf %51, %52 : vector<2x8x8xf32>
    %c0_23 = arith.constant 0 : index
    %c0_24 = arith.constant 0 : index
    %c0_25 = arith.constant 0 : index
    %54 = vector.load %arg4[%c0_23, %c0_24, %c0_25] : memref<2x8x8xf32, #tpu.memory_space<vmem>>, vector<2x8x8xf32>
    %cst_26 = arith.constant 0.000000e+00 : f32
    %55 = vector.broadcast %cst_26 : f32 to vector<2x8x8xf32>
    %56 = arith.cmpf one, %54, %55 : vector<2x8x8xf32>
    %57 = arith.extui %56 : vector<2x8x8xi1> to vector<2x8x8xi32>
    %58 = arith.sitofp %57 : vector<2x8x8xi32> to vector<2x8x8xf32>
    %cst_27 = arith.constant 1.000000e+00 : f32
    %59 = vector.broadcast %cst_27 : f32 to vector<2x8x8xf32>
    %60 = arith.subf %59, %58 : vector<2x8x8xf32>
    %cst_28 = arith.constant -1.000000e+09 : f32
    %61 = vector.broadcast %cst_28 : f32 to vector<2x8x8xf32>
    %62 = arith.mulf %60, %61 : vector<2x8x8xf32>
    %63 = arith.truncf %42 : vector<16x32xf32> to vector<16x32xbf16>
    %c0_29 = arith.constant 0 : index
    %c0_30 = arith.constant 0 : index
    %c0_31 = arith.constant 0 : index
    %64 = vector.load %arg7[%c0_29, %c0_30, %c0_31] : memref<4x32x96xbf16, #tpu.memory_space<vmem>>, vector<1x32x96xbf16>
    %65 = vector.shape_cast %64 : vector<1x32x96xbf16> to vector<32x96xbf16>
    %cst_32 = arith.constant dense<0.000000e+00> : vector<16x96xf32>
    %66 = tpu.matmul %63, %65, %cst_32 {dimension_numbers = #tpu.dot_dimension_numbers<[1], [0], [0], [1], [0, 0, 1, 1], [], []>} : vector<16x32xbf16>, vector<32x96xbf16>, vector<16x96xf32> -> vector<16x96xf32>
    %67 = vector.extract_strided_slice %66 {offsets = [0, 0], sizes = [16, 32], strides = [1, 1]} : vector<16x96xf32> to vector<16x32xf32>
    %68 = vector.extract_strided_slice %66 {offsets = [0, 32], sizes = [16, 32], strides = [1, 1]} : vector<16x96xf32> to vector<16x32xf32>
    %69 = vector.extract_strided_slice %66 {offsets = [0, 64], sizes = [16, 32], strides = [1, 1]} : vector<16x96xf32> to vector<16x32xf32>
    %70 = vector.shape_cast %67 : vector<16x32xf32> to vector<2x8x32xf32>
    %71 = vector.shape_cast %68 : vector<16x32xf32> to vector<2x8x32xf32>
    %72 = vector.shape_cast %69 : vector<16x32xf32> to vector<2x8x32xf32>
    %73 = vector.extract_strided_slice %70 {offsets = [0, 0, 0], sizes = [2, 8, 8], strides = [1, 1, 1]} : vector<2x8x32xf32> to vector<2x8x8xf32>
    %74 = arith.truncf %73 : vector<2x8x8xf32> to vector<2x8x8xbf16>
    %75 = vector.extract_strided_slice %71 {offsets = [0, 0, 0], sizes = [2, 8, 8], strides = [1, 1, 1]} : vector<2x8x32xf32> to vector<2x8x8xf32>
    %76 = arith.truncf %75 : vector<2x8x8xf32> to vector<2x8x8xbf16>
    %77 = vector.extract_strided_slice %72 {offsets = [0, 0, 0], sizes = [2, 8, 8], strides = [1, 1, 1]} : vector<2x8x32xf32> to vector<2x8x8xf32>
    %78 = arith.truncf %77 : vector<2x8x8xf32> to vector<2x8x8xbf16>
    "tpu.trace_start"() <{level = 10 : i32, message = "bqd,bkd->bqk"}> : () -> ()
    %cst_33 = arith.constant dense<0.000000e+00> : vector<2x8x8xf32>
    %79 = tpu.matmul %74, %76, %cst_33 {dimension_numbers = #tpu.dot_dimension_numbers<[2], [2], [1], [1], [0, 0, 0, 1, 1, 1], [0], [0]>} : vector<2x8x8xbf16>, vector<2x8x8xbf16>, vector<2x8x8xf32> -> vector<2x8x8xf32>
    "tpu.trace_stop"() : () -> ()
    %cst_34 = arith.constant 0.353553385 : f32
    %80 = vector.broadcast %cst_34 : f32 to vector<2x8x8xf32>
    %81 = arith.mulf %79, %80 : vector<2x8x8xf32>
    %82 = arith.mulf %81, %49 : vector<2x8x8xf32>
    %83 = arith.addf %82, %53 : vector<2x8x8xf32>
    %cst_35 = arith.constant dense<0xFF800000> : vector<2x8xf32>
    %84 = vector.multi_reduction <maximumf>, %83, %cst_35 [2] : vector<2x8x8xf32> to vector<2x8xf32>
    %85 = vector.shape_cast %84 : vector<2x8xf32> to vector<2x8x1xf32>
    %86 = vector.broadcast %85 : vector<2x8x1xf32> to vector<2x8x8xf32>
    %87 = arith.subf %83, %86 : vector<2x8x8xf32>
    %88 = math.exp %87 : vector<2x8x8xf32>
    %cst_36 = arith.constant dense<0.000000e+00> : vector<2x8xf32>
    %89 = vector.multi_reduction <add>, %88, %cst_36 [2] : vector<2x8x8xf32> to vector<2x8xf32>
    %90 = vector.shape_cast %89 : vector<2x8xf32> to vector<2x8x1xf32>
    %91 = tpu.reciprocal %90 {approx = true} : vector<2x8x1xf32> -> vector<2x8x1xf32>
    %92 = vector.broadcast %91 : vector<2x8x1xf32> to vector<2x8x8xf32>
    %93 = arith.mulf %88, %92 : vector<2x8x8xf32>
    %94 = arith.truncf %93 : vector<2x8x8xf32> to vector<2x8x8xbf16>
    "tpu.trace_start"() <{level = 10 : i32, message = "bqk,bkd->bqd"}> : () -> ()
    %cst_37 = arith.constant dense<0.000000e+00> : vector<2x8x8xf32>
    %95 = tpu.matmul %94, %78, %cst_37 {dimension_numbers = #tpu.dot_dimension_numbers<[2], [1], [1], [2], [0, 0, 0, 1, 1, 2], [0], [0]>} : vector<2x8x8xbf16>, vector<2x8x8xbf16>, vector<2x8x8xf32> -> vector<2x8x8xf32>
    "tpu.trace_stop"() : () -> ()
    %96 = vector.extract_strided_slice %70 {offsets = [0, 0, 8], sizes = [2, 8, 8], strides = [1, 1, 1]} : vector<2x8x32xf32> to vector<2x8x8xf32>
    %97 = arith.truncf %96 : vector<2x8x8xf32> to vector<2x8x8xbf16>
    %98 = vector.extract_strided_slice %71 {offsets = [0, 0, 8], sizes = [2, 8, 8], strides = [1, 1, 1]} : vector<2x8x32xf32> to vector<2x8x8xf32>
    %99 = arith.truncf %98 : vector<2x8x8xf32> to vector<2x8x8xbf16>
    %100 = vector.extract_strided_slice %72 {offsets = [0, 0, 8], sizes = [2, 8, 8], strides = [1, 1, 1]} : vector<2x8x32xf32> to vector<2x8x8xf32>
    %101 = arith.truncf %100 : vector<2x8x8xf32> to vector<2x8x8xbf16>
    "tpu.trace_start"() <{level = 10 : i32, message = "bqd,bkd->bqk"}> : () -> ()
    %cst_38 = arith.constant dense<0.000000e+00> : vector<2x8x8xf32>
    %102 = tpu.matmul %97, %99, %cst_38 {dimension_numbers = #tpu.dot_dimension_numbers<[2], [2], [1], [1], [0, 0, 0, 1, 1, 1], [0], [0]>} : vector<2x8x8xbf16>, vector<2x8x8xbf16>, vector<2x8x8xf32> -> vector<2x8x8xf32>
    "tpu.trace_stop"() : () -> ()
    %cst_39 = arith.constant 0.353553385 : f32
    %103 = vector.broadcast %cst_39 : f32 to vector<2x8x8xf32>
    %104 = arith.mulf %102, %103 : vector<2x8x8xf32>
    %105 = arith.mulf %104, %49 : vector<2x8x8xf32>
    %106 = arith.addf %105, %53 : vector<2x8x8xf32>
    %cst_40 = arith.constant dense<0xFF800000> : vector<2x8xf32>
    %107 = vector.multi_reduction <maximumf>, %106, %cst_40 [2] : vector<2x8x8xf32> to vector<2x8xf32>
    %108 = vector.shape_cast %107 : vector<2x8xf32> to vector<2x8x1xf32>
    %109 = vector.broadcast %108 : vector<2x8x1xf32> to vector<2x8x8xf32>
    %110 = arith.subf %106, %109 : vector<2x8x8xf32>
    %111 = math.exp %110 : vector<2x8x8xf32>
    %cst_41 = arith.constant dense<0.000000e+00> : vector<2x8xf32>
    %112 = vector.multi_reduction <add>, %111, %cst_41 [2] : vector<2x8x8xf32> to vector<2x8xf32>
    %113 = vector.shape_cast %112 : vector<2x8xf32> to vector<2x8x1xf32>
    %114 = tpu.reciprocal %113 {approx = true} : vector<2x8x1xf32> -> vector<2x8x1xf32>
    %115 = vector.broadcast %114 : vector<2x8x1xf32> to vector<2x8x8xf32>
    %116 = arith.mulf %111, %115 : vector<2x8x8xf32>
    %117 = arith.truncf %116 : vector<2x8x8xf32> to vector<2x8x8xbf16>
    "tpu.trace_start"() <{level = 10 : i32, message = "bqk,bkd->bqd"}> : () -> ()
    %cst_42 = arith.constant dense<0.000000e+00> : vector<2x8x8xf32>
    %118 = tpu.matmul %117, %101, %cst_42 {dimension_numbers = #tpu.dot_dimension_numbers<[2], [1], [1], [2], [0, 0, 0, 1, 1, 2], [0], [0]>} : vector<2x8x8xbf16>, vector<2x8x8xbf16>, vector<2x8x8xf32> -> vector<2x8x8xf32>
    "tpu.trace_stop"() : () -> ()
    %119 = vector.extract_strided_slice %70 {offsets = [0, 0, 16], sizes = [2, 8, 8], strides = [1, 1, 1]} : vector<2x8x32xf32> to vector<2x8x8xf32>
    %120 = arith.truncf %119 : vector<2x8x8xf32> to vector<2x8x8xbf16>
    %121 = vector.extract_strided_slice %71 {offsets = [0, 0, 16], sizes = [2, 8, 8], strides = [1, 1, 1]} : vector<2x8x32xf32> to vector<2x8x8xf32>
    %122 = arith.truncf %121 : vector<2x8x8xf32> to vector<2x8x8xbf16>
    %123 = vector.extract_strided_slice %72 {offsets = [0, 0, 16], sizes = [2, 8, 8], strides = [1, 1, 1]} : vector<2x8x32xf32> to vector<2x8x8xf32>
    %124 = arith.truncf %123 : vector<2x8x8xf32> to vector<2x8x8xbf16>
    "tpu.trace_start"() <{level = 10 : i32, message = "bqd,bkd->bqk"}> : () -> ()
    %cst_43 = arith.constant dense<0.000000e+00> : vector<2x8x8xf32>
    %125 = tpu.matmul %120, %122, %cst_43 {dimension_numbers = #tpu.dot_dimension_numbers<[2], [2], [1], [1], [0, 0, 0, 1, 1, 1], [0], [0]>} : vector<2x8x8xbf16>, vector<2x8x8xbf16>, vector<2x8x8xf32> -> vector<2x8x8xf32>
    "tpu.trace_stop"() : () -> ()
    %cst_44 = arith.constant 0.353553385 : f32
    %126 = vector.broadcast %cst_44 : f32 to vector<2x8x8xf32>
    %127 = arith.mulf %125, %126 : vector<2x8x8xf32>
    %128 = arith.mulf %127, %49 : vector<2x8x8xf32>
    %129 = arith.addf %128, %53 : vector<2x8x8xf32>
    %cst_45 = arith.constant dense<0xFF800000> : vector<2x8xf32>
    %130 = vector.multi_reduction <maximumf>, %129, %cst_45 [2] : vector<2x8x8xf32> to vector<2x8xf32>
    %131 = vector.shape_cast %130 : vector<2x8xf32> to vector<2x8x1xf32>
    %132 = vector.broadcast %131 : vector<2x8x1xf32> to vector<2x8x8xf32>
    %133 = arith.subf %129, %132 : vector<2x8x8xf32>
    %134 = math.exp %133 : vector<2x8x8xf32>
    %cst_46 = arith.constant dense<0.000000e+00> : vector<2x8xf32>
    %135 = vector.multi_reduction <add>, %134, %cst_46 [2] : vector<2x8x8xf32> to vector<2x8xf32>
    %136 = vector.shape_cast %135 : vector<2x8xf32> to vector<2x8x1xf32>
    %137 = tpu.reciprocal %136 {approx = true} : vector<2x8x1xf32> -> vector<2x8x1xf32>
    %138 = vector.broadcast %137 : vector<2x8x1xf32> to vector<2x8x8xf32>
    %139 = arith.mulf %134, %138 : vector<2x8x8xf32>
    %140 = arith.truncf %139 : vector<2x8x8xf32> to vector<2x8x8xbf16>
    "tpu.trace_start"() <{level = 10 : i32, message = "bqk,bkd->bqd"}> : () -> ()
    %cst_47 = arith.constant dense<0.000000e+00> : vector<2x8x8xf32>
    %141 = tpu.matmul %140, %124, %cst_47 {dimension_numbers = #tpu.dot_dimension_numbers<[2], [1], [1], [2], [0, 0, 0, 1, 1, 2], [0], [0]>} : vector<2x8x8xbf16>, vector<2x8x8xbf16>, vector<2x8x8xf32> -> vector<2x8x8xf32>
    "tpu.trace_stop"() : () -> ()
    %142 = vector.extract_strided_slice %70 {offsets = [0, 0, 24], sizes = [2, 8, 8], strides = [1, 1, 1]} : vector<2x8x32xf32> to vector<2x8x8xf32>
    %143 = arith.truncf %142 : vector<2x8x8xf32> to vector<2x8x8xbf16>
    %144 = vector.extract_strided_slice %71 {offsets = [0, 0, 24], sizes = [2, 8, 8], strides = [1, 1, 1]} : vector<2x8x32xf32> to vector<2x8x8xf32>
    %145 = arith.truncf %144 : vector<2x8x8xf32> to vector<2x8x8xbf16>
    %146 = vector.extract_strided_slice %72 {offsets = [0, 0, 24], sizes = [2, 8, 8], strides = [1, 1, 1]} : vector<2x8x32xf32> to vector<2x8x8xf32>
    %147 = arith.truncf %146 : vector<2x8x8xf32> to vector<2x8x8xbf16>
    "tpu.trace_start"() <{level = 10 : i32, message = "bqd,bkd->bqk"}> : () -> ()
    %cst_48 = arith.constant dense<0.000000e+00> : vector<2x8x8xf32>
    %148 = tpu.matmul %143, %145, %cst_48 {dimension_numbers = #tpu.dot_dimension_numbers<[2], [2], [1], [1], [0, 0, 0, 1, 1, 1], [0], [0]>} : vector<2x8x8xbf16>, vector<2x8x8xbf16>, vector<2x8x8xf32> -> vector<2x8x8xf32>
    "tpu.trace_stop"() : () -> ()
    %cst_49 = arith.constant 0.353553385 : f32
    %149 = vector.broadcast %cst_49 : f32 to vector<2x8x8xf32>
    %150 = arith.mulf %148, %149 : vector<2x8x8xf32>
    %151 = arith.mulf %150, %49 : vector<2x8x8xf32>
    %152 = arith.addf %151, %53 : vector<2x8x8xf32>
    %cst_50 = arith.constant dense<0xFF800000> : vector<2x8xf32>
    %153 = vector.multi_reduction <maximumf>, %152, %cst_50 [2] : vector<2x8x8xf32> to vector<2x8xf32>
    %154 = vector.shape_cast %153 : vector<2x8xf32> to vector<2x8x1xf32>
    %155 = vector.broadcast %154 : vector<2x8x1xf32> to vector<2x8x8xf32>
    %156 = arith.subf %152, %155 : vector<2x8x8xf32>
    %157 = math.exp %156 : vector<2x8x8xf32>
    %cst_51 = arith.constant dense<0.000000e+00> : vector<2x8xf32>
    %158 = vector.multi_reduction <add>, %157, %cst_51 [2] : vector<2x8x8xf32> to vector<2x8xf32>
    %159 = vector.shape_cast %158 : vector<2x8xf32> to vector<2x8x1xf32>
    %160 = tpu.reciprocal %159 {approx = true} : vector<2x8x1xf32> -> vector<2x8x1xf32>
    %161 = vector.broadcast %160 : vector<2x8x1xf32> to vector<2x8x8xf32>
    %162 = arith.mulf %157, %161 : vector<2x8x8xf32>
    %163 = arith.truncf %162 : vector<2x8x8xf32> to vector<2x8x8xbf16>
    "tpu.trace_start"() <{level = 10 : i32, message = "bqk,bkd->bqd"}> : () -> ()
    %cst_52 = arith.constant dense<0.000000e+00> : vector<2x8x8xf32>
    %164 = tpu.matmul %163, %147, %cst_52 {dimension_numbers = #tpu.dot_dimension_numbers<[2], [1], [1], [2], [0, 0, 0, 1, 1, 2], [0], [0]>} : vector<2x8x8xbf16>, vector<2x8x8xbf16>, vector<2x8x8xf32> -> vector<2x8x8xf32>
    "tpu.trace_stop"() : () -> ()
    %165 = tpu.concatenate %95, %118, %141, %164 in 2 : vector<2x8x8xf32>, vector<2x8x8xf32>, vector<2x8x8xf32>, vector<2x8x8xf32> -> vector<2x8x32xf32>
    %166 = vector.shape_cast %165 : vector<2x8x32xf32> to vector<16x32xf32>
    %167 = arith.truncf %166 : vector<16x32xf32> to vector<16x32xbf16>
    %c0_53 = arith.constant 0 : index
    %c0_54 = arith.constant 0 : index
    %c0_55 = arith.constant 0 : index
    %168 = vector.load %arg8[%c0_53, %c0_54, %c0_55] : memref<4x32x32xbf16, #tpu.memory_space<vmem>>, vector<1x32x32xbf16>
    %169 = vector.shape_cast %168 : vector<1x32x32xbf16> to vector<32x32xbf16>
    %cst_56 = arith.constant dense<0.000000e+00> : vector<16x32xf32>
    %170 = tpu.matmul %167, %169, %cst_56 {dimension_numbers = #tpu.dot_dimension_numbers<[1], [0], [0], [1], [0, 0, 1, 1], [], []>} : vector<16x32xbf16>, vector<32x32xbf16>, vector<16x32xf32> -> vector<16x32xf32>
    %171 = vector.extract_strided_slice %0 {offsets = [2, 0], sizes = [1, 32], strides = [1, 1]} : vector<22x64xf32> to vector<1x32xf32>
    %172 = vector.broadcast %171 : vector<1x32xf32> to vector<16x32xf32>
    %173 = arith.addf %170, %172 : vector<16x32xf32>
    %174 = arith.addf %173, %42 : vector<16x32xf32>
    %175 = vector.extract_strided_slice %0 {offsets = [3, 0], sizes = [1, 32], strides = [1, 1]} : vector<22x64xf32> to vector<1x32xf32>
    %176 = vector.extract_strided_slice %0 {offsets = [4, 0], sizes = [1, 32], strides = [1, 1]} : vector<22x64xf32> to vector<1x32xf32>
    %cst_57 = arith.constant dense<0.000000e+00> : vector<16xf32>
    %177 = vector.multi_reduction <add>, %174, %cst_57 [1] : vector<16x32xf32> to vector<16xf32>
    %178 = vector.shape_cast %177 : vector<16xf32> to vector<16x1xf32>
    %179 = arith.mulf %174, %174 : vector<16x32xf32>
    %cst_58 = arith.constant dense<0.000000e+00> : vector<16xf32>
    %180 = vector.multi_reduction <add>, %179, %cst_58 [1] : vector<16x32xf32> to vector<16xf32>
    %181 = vector.shape_cast %180 : vector<16xf32> to vector<16x1xf32>
    %cst_59 = arith.constant 3.125000e-02 : f32
    %182 = vector.broadcast %cst_59 : f32 to vector<16x1xf32>
    %183 = arith.mulf %178, %182 : vector<16x1xf32>
    %cst_60 = arith.constant 3.125000e-02 : f32
    %184 = vector.broadcast %cst_60 : f32 to vector<16x1xf32>
    %185 = arith.mulf %181, %184 : vector<16x1xf32>
    %186 = arith.mulf %183, %183 : vector<16x1xf32>
    %187 = arith.subf %185, %186 : vector<16x1xf32>
    %188 = vector.broadcast %183 : vector<16x1xf32> to vector<16x32xf32>
    %189 = arith.subf %174, %188 : vector<16x32xf32>
    %cst_61 = arith.constant 9.99999997E-7 : f32
    %190 = vector.broadcast %cst_61 : f32 to vector<16x1xf32>
    %191 = arith.addf %187, %190 : vector<16x1xf32>
    %192 = math.rsqrt %191 : vector<16x1xf32>
    %193 = vector.broadcast %192 : vector<16x1xf32> to vector<16x32xf32>
    %194 = arith.mulf %189, %193 : vector<16x32xf32>
    %195 = vector.broadcast %175 : vector<1x32xf32> to vector<16x32xf32>
    %196 = arith.mulf %194, %195 : vector<16x32xf32>
    %197 = vector.broadcast %176 : vector<1x32xf32> to vector<16x32xf32>
    %198 = arith.addf %196, %197 : vector<16x32xf32>
    %c1 = arith.constant 1 : index
    %c0_62 = arith.constant 0 : index
    %c0_63 = arith.constant 0 : index
    %199 = vector.load %arg7[%c1, %c0_62, %c0_63] : memref<4x32x96xbf16, #tpu.memory_space<vmem>>, vector<1x32x96xbf16>
    %200 = vector.shape_cast %199 : vector<1x32x96xbf16> to vector<32x96xbf16>
    %201 = arith.truncf %198 : vector<16x32xf32> to vector<16x32xbf16>
    %202 = vector.extract_strided_slice %200 {offsets = [0, 0], sizes = [32, 32], strides = [1, 1]} : vector<32x96xbf16> to vector<32x32xbf16>
    %cst_64 = arith.constant dense<0.000000e+00> : vector<16x32xf32>
    %203 = tpu.matmul %201, %202, %cst_64 {dimension_numbers = #tpu.dot_dimension_numbers<[1], [0], [0], [1], [0, 0, 1, 1], [], []>} : vector<16x32xbf16>, vector<32x32xbf16>, vector<16x32xf32> -> vector<16x32xf32>
    %204 = vector.extract_strided_slice %200 {offsets = [0, 32], sizes = [32, 64], strides = [1, 1]} : vector<32x96xbf16> to vector<32x64xbf16>
    %cst_65 = arith.constant dense<0.000000e+00> : vector<16x64xf32>
    %205 = tpu.matmul %44, %204, %cst_65 {dimension_numbers = #tpu.dot_dimension_numbers<[1], [0], [0], [1], [0, 0, 1, 1], [], []>} : vector<16x32xbf16>, vector<32x64xbf16>, vector<16x64xf32> -> vector<16x64xf32>
    %206 = vector.extract_strided_slice %205 {offsets = [0, 0], sizes = [16, 32], strides = [1, 1]} : vector<16x64xf32> to vector<16x32xf32>
    %207 = vector.extract_strided_slice %205 {offsets = [0, 32], sizes = [16, 32], strides = [1, 1]} : vector<16x64xf32> to vector<16x32xf32>
    %208 = vector.shape_cast %203 : vector<16x32xf32> to vector<2x8x32xf32>
    %209 = vector.shape_cast %206 : vector<16x32xf32> to vector<2x8x32xf32>
    %210 = vector.shape_cast %207 : vector<16x32xf32> to vector<2x8x32xf32>
    %211 = vector.extract_strided_slice %208 {offsets = [0, 0, 0], sizes = [2, 8, 8], strides = [1, 1, 1]} : vector<2x8x32xf32> to vector<2x8x8xf32>
    %212 = arith.truncf %211 : vector<2x8x8xf32> to vector<2x8x8xbf16>
    %213 = vector.extract_strided_slice %209 {offsets = [0, 0, 0], sizes = [2, 8, 8], strides = [1, 1, 1]} : vector<2x8x32xf32> to vector<2x8x8xf32>
    %214 = arith.truncf %213 : vector<2x8x8xf32> to vector<2x8x8xbf16>
    %215 = vector.extract_strided_slice %210 {offsets = [0, 0, 0], sizes = [2, 8, 8], strides = [1, 1, 1]} : vector<2x8x32xf32> to vector<2x8x8xf32>
    %216 = arith.truncf %215 : vector<2x8x8xf32> to vector<2x8x8xbf16>
    "tpu.trace_start"() <{level = 10 : i32, message = "bqd,bkd->bqk"}> : () -> ()
    %cst_66 = arith.constant dense<0.000000e+00> : vector<2x8x8xf32>
    %217 = tpu.matmul %212, %214, %cst_66 {dimension_numbers = #tpu.dot_dimension_numbers<[2], [2], [1], [1], [0, 0, 0, 1, 1, 1], [0], [0]>} : vector<2x8x8xbf16>, vector<2x8x8xbf16>, vector<2x8x8xf32> -> vector<2x8x8xf32>
    "tpu.trace_stop"() : () -> ()
    %cst_67 = arith.constant 0.353553385 : f32
    %218 = vector.broadcast %cst_67 : f32 to vector<2x8x8xf32>
    %219 = arith.mulf %217, %218 : vector<2x8x8xf32>
    %220 = arith.mulf %219, %58 : vector<2x8x8xf32>
    %221 = arith.addf %220, %62 : vector<2x8x8xf32>
    %cst_68 = arith.constant dense<0xFF800000> : vector<2x8xf32>
    %222 = vector.multi_reduction <maximumf>, %221, %cst_68 [2] : vector<2x8x8xf32> to vector<2x8xf32>
    %223 = vector.shape_cast %222 : vector<2x8xf32> to vector<2x8x1xf32>
    %224 = vector.broadcast %223 : vector<2x8x1xf32> to vector<2x8x8xf32>
    %225 = arith.subf %221, %224 : vector<2x8x8xf32>
    %226 = math.exp %225 : vector<2x8x8xf32>
    %cst_69 = arith.constant dense<0.000000e+00> : vector<2x8xf32>
    %227 = vector.multi_reduction <add>, %226, %cst_69 [2] : vector<2x8x8xf32> to vector<2x8xf32>
    %228 = vector.shape_cast %227 : vector<2x8xf32> to vector<2x8x1xf32>
    %229 = tpu.reciprocal %228 {approx = true} : vector<2x8x1xf32> -> vector<2x8x1xf32>
    %230 = vector.broadcast %229 : vector<2x8x1xf32> to vector<2x8x8xf32>
    %231 = arith.mulf %226, %230 : vector<2x8x8xf32>
    %232 = arith.truncf %231 : vector<2x8x8xf32> to vector<2x8x8xbf16>
    "tpu.trace_start"() <{level = 10 : i32, message = "bqk,bkd->bqd"}> : () -> ()
    %cst_70 = arith.constant dense<0.000000e+00> : vector<2x8x8xf32>
    %233 = tpu.matmul %232, %216, %cst_70 {dimension_numbers = #tpu.dot_dimension_numbers<[2], [1], [1], [2], [0, 0, 0, 1, 1, 2], [0], [0]>} : vector<2x8x8xbf16>, vector<2x8x8xbf16>, vector<2x8x8xf32> -> vector<2x8x8xf32>
    "tpu.trace_stop"() : () -> ()
    %234 = vector.extract_strided_slice %208 {offsets = [0, 0, 8], sizes = [2, 8, 8], strides = [1, 1, 1]} : vector<2x8x32xf32> to vector<2x8x8xf32>
    %235 = arith.truncf %234 : vector<2x8x8xf32> to vector<2x8x8xbf16>
    %236 = vector.extract_strided_slice %209 {offsets = [0, 0, 8], sizes = [2, 8, 8], strides = [1, 1, 1]} : vector<2x8x32xf32> to vector<2x8x8xf32>
    %237 = arith.truncf %236 : vector<2x8x8xf32> to vector<2x8x8xbf16>
    %238 = vector.extract_strided_slice %210 {offsets = [0, 0, 8], sizes = [2, 8, 8], strides = [1, 1, 1]} : vector<2x8x32xf32> to vector<2x8x8xf32>
    %239 = arith.truncf %238 : vector<2x8x8xf32> to vector<2x8x8xbf16>
    "tpu.trace_start"() <{level = 10 : i32, message = "bqd,bkd->bqk"}> : () -> ()
    %cst_71 = arith.constant dense<0.000000e+00> : vector<2x8x8xf32>
    %240 = tpu.matmul %235, %237, %cst_71 {dimension_numbers = #tpu.dot_dimension_numbers<[2], [2], [1], [1], [0, 0, 0, 1, 1, 1], [0], [0]>} : vector<2x8x8xbf16>, vector<2x8x8xbf16>, vector<2x8x8xf32> -> vector<2x8x8xf32>
    "tpu.trace_stop"() : () -> ()
    %cst_72 = arith.constant 0.353553385 : f32
    %241 = vector.broadcast %cst_72 : f32 to vector<2x8x8xf32>
    %242 = arith.mulf %240, %241 : vector<2x8x8xf32>
    %243 = arith.mulf %242, %58 : vector<2x8x8xf32>
    %244 = arith.addf %243, %62 : vector<2x8x8xf32>
    %cst_73 = arith.constant dense<0xFF800000> : vector<2x8xf32>
    %245 = vector.multi_reduction <maximumf>, %244, %cst_73 [2] : vector<2x8x8xf32> to vector<2x8xf32>
    %246 = vector.shape_cast %245 : vector<2x8xf32> to vector<2x8x1xf32>
    %247 = vector.broadcast %246 : vector<2x8x1xf32> to vector<2x8x8xf32>
    %248 = arith.subf %244, %247 : vector<2x8x8xf32>
    %249 = math.exp %248 : vector<2x8x8xf32>
    %cst_74 = arith.constant dense<0.000000e+00> : vector<2x8xf32>
    %250 = vector.multi_reduction <add>, %249, %cst_74 [2] : vector<2x8x8xf32> to vector<2x8xf32>
    %251 = vector.shape_cast %250 : vector<2x8xf32> to vector<2x8x1xf32>
    %252 = tpu.reciprocal %251 {approx = true} : vector<2x8x1xf32> -> vector<2x8x1xf32>
    %253 = vector.broadcast %252 : vector<2x8x1xf32> to vector<2x8x8xf32>
    %254 = arith.mulf %249, %253 : vector<2x8x8xf32>
    %255 = arith.truncf %254 : vector<2x8x8xf32> to vector<2x8x8xbf16>
    "tpu.trace_start"() <{level = 10 : i32, message = "bqk,bkd->bqd"}> : () -> ()
    %cst_75 = arith.constant dense<0.000000e+00> : vector<2x8x8xf32>
    %256 = tpu.matmul %255, %239, %cst_75 {dimension_numbers = #tpu.dot_dimension_numbers<[2], [1], [1], [2], [0, 0, 0, 1, 1, 2], [0], [0]>} : vector<2x8x8xbf16>, vector<2x8x8xbf16>, vector<2x8x8xf32> -> vector<2x8x8xf32>
    "tpu.trace_stop"() : () -> ()
    %257 = vector.extract_strided_slice %208 {offsets = [0, 0, 16], sizes = [2, 8, 8], strides = [1, 1, 1]} : vector<2x8x32xf32> to vector<2x8x8xf32>
    %258 = arith.truncf %257 : vector<2x8x8xf32> to vector<2x8x8xbf16>
    %259 = vector.extract_strided_slice %209 {offsets = [0, 0, 16], sizes = [2, 8, 8], strides = [1, 1, 1]} : vector<2x8x32xf32> to vector<2x8x8xf32>
    %260 = arith.truncf %259 : vector<2x8x8xf32> to vector<2x8x8xbf16>
    %261 = vector.extract_strided_slice %210 {offsets = [0, 0, 16], sizes = [2, 8, 8], strides = [1, 1, 1]} : vector<2x8x32xf32> to vector<2x8x8xf32>
    %262 = arith.truncf %261 : vector<2x8x8xf32> to vector<2x8x8xbf16>
    "tpu.trace_start"() <{level = 10 : i32, message = "bqd,bkd->bqk"}> : () -> ()
    %cst_76 = arith.constant dense<0.000000e+00> : vector<2x8x8xf32>
    %263 = tpu.matmul %258, %260, %cst_76 {dimension_numbers = #tpu.dot_dimension_numbers<[2], [2], [1], [1], [0, 0, 0, 1, 1, 1], [0], [0]>} : vector<2x8x8xbf16>, vector<2x8x8xbf16>, vector<2x8x8xf32> -> vector<2x8x8xf32>
    "tpu.trace_stop"() : () -> ()
    %cst_77 = arith.constant 0.353553385 : f32
    %264 = vector.broadcast %cst_77 : f32 to vector<2x8x8xf32>
    %265 = arith.mulf %263, %264 : vector<2x8x8xf32>
    %266 = arith.mulf %265, %58 : vector<2x8x8xf32>
    %267 = arith.addf %266, %62 : vector<2x8x8xf32>
    %cst_78 = arith.constant dense<0xFF800000> : vector<2x8xf32>
    %268 = vector.multi_reduction <maximumf>, %267, %cst_78 [2] : vector<2x8x8xf32> to vector<2x8xf32>
    %269 = vector.shape_cast %268 : vector<2x8xf32> to vector<2x8x1xf32>
    %270 = vector.broadcast %269 : vector<2x8x1xf32> to vector<2x8x8xf32>
    %271 = arith.subf %267, %270 : vector<2x8x8xf32>
    %272 = math.exp %271 : vector<2x8x8xf32>
    %cst_79 = arith.constant dense<0.000000e+00> : vector<2x8xf32>
    %273 = vector.multi_reduction <add>, %272, %cst_79 [2] : vector<2x8x8xf32> to vector<2x8xf32>
    %274 = vector.shape_cast %273 : vector<2x8xf32> to vector<2x8x1xf32>
    %275 = tpu.reciprocal %274 {approx = true} : vector<2x8x1xf32> -> vector<2x8x1xf32>
    %276 = vector.broadcast %275 : vector<2x8x1xf32> to vector<2x8x8xf32>
    %277 = arith.mulf %272, %276 : vector<2x8x8xf32>
    %278 = arith.truncf %277 : vector<2x8x8xf32> to vector<2x8x8xbf16>
    "tpu.trace_start"() <{level = 10 : i32, message = "bqk,bkd->bqd"}> : () -> ()
    %cst_80 = arith.constant dense<0.000000e+00> : vector<2x8x8xf32>
    %279 = tpu.matmul %278, %262, %cst_80 {dimension_numbers = #tpu.dot_dimension_numbers<[2], [1], [1], [2], [0, 0, 0, 1, 1, 2], [0], [0]>} : vector<2x8x8xbf16>, vector<2x8x8xbf16>, vector<2x8x8xf32> -> vector<2x8x8xf32>
    "tpu.trace_stop"() : () -> ()
    %280 = vector.extract_strided_slice %208 {offsets = [0, 0, 24], sizes = [2, 8, 8], strides = [1, 1, 1]} : vector<2x8x32xf32> to vector<2x8x8xf32>
    %281 = arith.truncf %280 : vector<2x8x8xf32> to vector<2x8x8xbf16>
    %282 = vector.extract_strided_slice %209 {offsets = [0, 0, 24], sizes = [2, 8, 8], strides = [1, 1, 1]} : vector<2x8x32xf32> to vector<2x8x8xf32>
    %283 = arith.truncf %282 : vector<2x8x8xf32> to vector<2x8x8xbf16>
    %284 = vector.extract_strided_slice %210 {offsets = [0, 0, 24], sizes = [2, 8, 8], strides = [1, 1, 1]} : vector<2x8x32xf32> to vector<2x8x8xf32>
    %285 = arith.truncf %284 : vector<2x8x8xf32> to vector<2x8x8xbf16>
    "tpu.trace_start"() <{level = 10 : i32, message = "bqd,bkd->bqk"}> : () -> ()
    %cst_81 = arith.constant dense<0.000000e+00> : vector<2x8x8xf32>
    %286 = tpu.matmul %281, %283, %cst_81 {dimension_numbers = #tpu.dot_dimension_numbers<[2], [2], [1], [1], [0, 0, 0, 1, 1, 1], [0], [0]>} : vector<2x8x8xbf16>, vector<2x8x8xbf16>, vector<2x8x8xf32> -> vector<2x8x8xf32>
    "tpu.trace_stop"() : () -> ()
    %cst_82 = arith.constant 0.353553385 : f32
    %287 = vector.broadcast %cst_82 : f32 to vector<2x8x8xf32>
    %288 = arith.mulf %286, %287 : vector<2x8x8xf32>
    %289 = arith.mulf %288, %58 : vector<2x8x8xf32>
    %290 = arith.addf %289, %62 : vector<2x8x8xf32>
    %cst_83 = arith.constant dense<0xFF800000> : vector<2x8xf32>
    %291 = vector.multi_reduction <maximumf>, %290, %cst_83 [2] : vector<2x8x8xf32> to vector<2x8xf32>
    %292 = vector.shape_cast %291 : vector<2x8xf32> to vector<2x8x1xf32>
    %293 = vector.broadcast %292 : vector<2x8x1xf32> to vector<2x8x8xf32>
    %294 = arith.subf %290, %293 : vector<2x8x8xf32>
    %295 = math.exp %294 : vector<2x8x8xf32>
    %cst_84 = arith.constant dense<0.000000e+00> : vector<2x8xf32>
    %296 = vector.multi_reduction <add>, %295, %cst_84 [2] : vector<2x8x8xf32> to vector<2x8xf32>
    %297 = vector.shape_cast %296 : vector<2x8xf32> to vector<2x8x1xf32>
    %298 = tpu.reciprocal %297 {approx = true} : vector<2x8x1xf32> -> vector<2x8x1xf32>
    %299 = vector.broadcast %298 : vector<2x8x1xf32> to vector<2x8x8xf32>
    %300 = arith.mulf %295, %299 : vector<2x8x8xf32>
    %301 = arith.truncf %300 : vector<2x8x8xf32> to vector<2x8x8xbf16>
    "tpu.trace_start"() <{level = 10 : i32, message = "bqk,bkd->bqd"}> : () -> ()
    %cst_85 = arith.constant dense<0.000000e+00> : vector<2x8x8xf32>
    %302 = tpu.matmul %301, %285, %cst_85 {dimension_numbers = #tpu.dot_dimension_numbers<[2], [1], [1], [2], [0, 0, 0, 1, 1, 2], [0], [0]>} : vector<2x8x8xbf16>, vector<2x8x8xbf16>, vector<2x8x8xf32> -> vector<2x8x8xf32>
    "tpu.trace_stop"() : () -> ()
    %303 = tpu.concatenate %233, %256, %279, %302 in 2 : vector<2x8x8xf32>, vector<2x8x8xf32>, vector<2x8x8xf32>, vector<2x8x8xf32> -> vector<2x8x32xf32>
    %304 = vector.shape_cast %303 : vector<2x8x32xf32> to vector<16x32xf32>
    %305 = arith.truncf %304 : vector<16x32xf32> to vector<16x32xbf16>
    %c1_86 = arith.constant 1 : index
    %c0_87 = arith.constant 0 : index
    %c0_88 = arith.constant 0 : index
    %306 = vector.load %arg8[%c1_86, %c0_87, %c0_88] : memref<4x32x32xbf16, #tpu.memory_space<vmem>>, vector<1x32x32xbf16>
    %307 = vector.shape_cast %306 : vector<1x32x32xbf16> to vector<32x32xbf16>
    %cst_89 = arith.constant dense<0.000000e+00> : vector<16x32xf32>
    %308 = tpu.matmul %305, %307, %cst_89 {dimension_numbers = #tpu.dot_dimension_numbers<[1], [0], [0], [1], [0, 0, 1, 1], [], []>} : vector<16x32xbf16>, vector<32x32xbf16>, vector<16x32xf32> -> vector<16x32xf32>
    %309 = vector.extract_strided_slice %0 {offsets = [5, 0], sizes = [1, 32], strides = [1, 1]} : vector<22x64xf32> to vector<1x32xf32>
    %310 = vector.broadcast %309 : vector<1x32xf32> to vector<16x32xf32>
    %311 = arith.addf %308, %310 : vector<16x32xf32>
    %312 = arith.addf %311, %198 : vector<16x32xf32>
    %313 = vector.extract_strided_slice %0 {offsets = [6, 0], sizes = [1, 32], strides = [1, 1]} : vector<22x64xf32> to vector<1x32xf32>
    %314 = vector.extract_strided_slice %0 {offsets = [7, 0], sizes = [1, 32], strides = [1, 1]} : vector<22x64xf32> to vector<1x32xf32>
    %cst_90 = arith.constant dense<0.000000e+00> : vector<16xf32>
    %315 = vector.multi_reduction <add>, %312, %cst_90 [1] : vector<16x32xf32> to vector<16xf32>
    %316 = vector.shape_cast %315 : vector<16xf32> to vector<16x1xf32>
    %317 = arith.mulf %312, %312 : vector<16x32xf32>
    %cst_91 = arith.constant dense<0.000000e+00> : vector<16xf32>
    %318 = vector.multi_reduction <add>, %317, %cst_91 [1] : vector<16x32xf32> to vector<16xf32>
    %319 = vector.shape_cast %318 : vector<16xf32> to vector<16x1xf32>
    %cst_92 = arith.constant 3.125000e-02 : f32
    %320 = vector.broadcast %cst_92 : f32 to vector<16x1xf32>
    %321 = arith.mulf %316, %320 : vector<16x1xf32>
    %cst_93 = arith.constant 3.125000e-02 : f32
    %322 = vector.broadcast %cst_93 : f32 to vector<16x1xf32>
    %323 = arith.mulf %319, %322 : vector<16x1xf32>
    %324 = arith.mulf %321, %321 : vector<16x1xf32>
    %325 = arith.subf %323, %324 : vector<16x1xf32>
    %326 = vector.broadcast %321 : vector<16x1xf32> to vector<16x32xf32>
    %327 = arith.subf %312, %326 : vector<16x32xf32>
    %cst_94 = arith.constant 9.99999997E-7 : f32
    %328 = vector.broadcast %cst_94 : f32 to vector<16x1xf32>
    %329 = arith.addf %325, %328 : vector<16x1xf32>
    %330 = math.rsqrt %329 : vector<16x1xf32>
    %331 = vector.broadcast %330 : vector<16x1xf32> to vector<16x32xf32>
    %332 = arith.mulf %327, %331 : vector<16x32xf32>
    %333 = vector.broadcast %313 : vector<1x32xf32> to vector<16x32xf32>
    %334 = arith.mulf %332, %333 : vector<16x32xf32>
    %335 = vector.broadcast %314 : vector<1x32xf32> to vector<16x32xf32>
    %336 = arith.addf %334, %335 : vector<16x32xf32>
    %337 = arith.truncf %336 : vector<16x32xf32> to vector<16x32xbf16>
    %c0_95 = arith.constant 0 : index
    %c0_96 = arith.constant 0 : index
    %c0_97 = arith.constant 0 : index
    %338 = vector.load %arg9[%c0_95, %c0_96, %c0_97] : memref<2x32x64xbf16, #tpu.memory_space<vmem>>, vector<1x32x64xbf16>
    %339 = vector.shape_cast %338 : vector<1x32x64xbf16> to vector<32x64xbf16>
    %cst_98 = arith.constant dense<0.000000e+00> : vector<16x64xf32>
    %340 = tpu.matmul %337, %339, %cst_98 {dimension_numbers = #tpu.dot_dimension_numbers<[1], [0], [0], [1], [0, 0, 1, 1], [], []>} : vector<16x32xbf16>, vector<32x64xbf16>, vector<16x64xf32> -> vector<16x64xf32>
    %341 = vector.extract_strided_slice %0 {offsets = [14, 0], sizes = [1, 64], strides = [1, 1]} : vector<22x64xf32> to vector<1x64xf32>
    %342 = vector.broadcast %341 : vector<1x64xf32> to vector<16x64xf32>
    %343 = arith.addf %340, %342 : vector<16x64xf32>
    %cst_99 = arith.constant 0.000000e+00 : f32
    %344 = vector.broadcast %cst_99 : f32 to vector<16x64xf32>
    %345 = arith.maximumf %343, %344 : vector<16x64xf32>
    %346 = arith.truncf %345 : vector<16x64xf32> to vector<16x64xbf16>
    %c0_100 = arith.constant 0 : index
    %c0_101 = arith.constant 0 : index
    %c0_102 = arith.constant 0 : index
    %347 = vector.load %arg10[%c0_100, %c0_101, %c0_102] : memref<2x64x32xbf16, #tpu.memory_space<vmem>>, vector<1x64x32xbf16>
    %348 = vector.shape_cast %347 : vector<1x64x32xbf16> to vector<64x32xbf16>
    %cst_103 = arith.constant dense<0.000000e+00> : vector<16x32xf32>
    %349 = tpu.matmul %346, %348, %cst_103 {dimension_numbers = #tpu.dot_dimension_numbers<[1], [0], [0], [1], [0, 0, 1, 1], [], []>} : vector<16x64xbf16>, vector<64x32xbf16>, vector<16x32xf32> -> vector<16x32xf32>
    %350 = vector.extract_strided_slice %0 {offsets = [15, 0], sizes = [1, 32], strides = [1, 1]} : vector<22x64xf32> to vector<1x32xf32>
    %351 = vector.broadcast %350 : vector<1x32xf32> to vector<16x32xf32>
    %352 = arith.addf %349, %351 : vector<16x32xf32>
    %353 = arith.addf %352, %336 : vector<16x32xf32>
    %354 = vector.extract_strided_slice %0 {offsets = [16, 0], sizes = [1, 32], strides = [1, 1]} : vector<22x64xf32> to vector<1x32xf32>
    %355 = vector.extract_strided_slice %0 {offsets = [17, 0], sizes = [1, 32], strides = [1, 1]} : vector<22x64xf32> to vector<1x32xf32>
    %cst_104 = arith.constant dense<0.000000e+00> : vector<16xf32>
    %356 = vector.multi_reduction <add>, %353, %cst_104 [1] : vector<16x32xf32> to vector<16xf32>
    %357 = vector.shape_cast %356 : vector<16xf32> to vector<16x1xf32>
    %358 = arith.mulf %353, %353 : vector<16x32xf32>
    %cst_105 = arith.constant dense<0.000000e+00> : vector<16xf32>
    %359 = vector.multi_reduction <add>, %358, %cst_105 [1] : vector<16x32xf32> to vector<16xf32>
    %360 = vector.shape_cast %359 : vector<16xf32> to vector<16x1xf32>
    %cst_106 = arith.constant 3.125000e-02 : f32
    %361 = vector.broadcast %cst_106 : f32 to vector<16x1xf32>
    %362 = arith.mulf %357, %361 : vector<16x1xf32>
    %cst_107 = arith.constant 3.125000e-02 : f32
    %363 = vector.broadcast %cst_107 : f32 to vector<16x1xf32>
    %364 = arith.mulf %360, %363 : vector<16x1xf32>
    %365 = arith.mulf %362, %362 : vector<16x1xf32>
    %366 = arith.subf %364, %365 : vector<16x1xf32>
    %367 = vector.broadcast %362 : vector<16x1xf32> to vector<16x32xf32>
    %368 = arith.subf %353, %367 : vector<16x32xf32>
    %cst_108 = arith.constant 9.99999997E-7 : f32
    %369 = vector.broadcast %cst_108 : f32 to vector<16x1xf32>
    %370 = arith.addf %366, %369 : vector<16x1xf32>
    %371 = math.rsqrt %370 : vector<16x1xf32>
    %372 = vector.broadcast %371 : vector<16x1xf32> to vector<16x32xf32>
    %373 = arith.mulf %368, %372 : vector<16x32xf32>
    %374 = vector.broadcast %354 : vector<1x32xf32> to vector<16x32xf32>
    %375 = arith.mulf %373, %374 : vector<16x32xf32>
    %376 = vector.broadcast %355 : vector<1x32xf32> to vector<16x32xf32>
    %377 = arith.addf %375, %376 : vector<16x32xf32>
    %378 = arith.truncf %377 : vector<16x32xf32> to vector<16x32xbf16>
    %c2 = arith.constant 2 : index
    %c0_109 = arith.constant 0 : index
    %c0_110 = arith.constant 0 : index
    %379 = vector.load %arg7[%c2, %c0_109, %c0_110] : memref<4x32x96xbf16, #tpu.memory_space<vmem>>, vector<1x32x96xbf16>
    %380 = vector.shape_cast %379 : vector<1x32x96xbf16> to vector<32x96xbf16>
    %cst_111 = arith.constant dense<0.000000e+00> : vector<16x96xf32>
    %381 = tpu.matmul %378, %380, %cst_111 {dimension_numbers = #tpu.dot_dimension_numbers<[1], [0], [0], [1], [0, 0, 1, 1], [], []>} : vector<16x32xbf16>, vector<32x96xbf16>, vector<16x96xf32> -> vector<16x96xf32>
    %382 = vector.extract_strided_slice %381 {offsets = [0, 0], sizes = [16, 32], strides = [1, 1]} : vector<16x96xf32> to vector<16x32xf32>
    %383 = vector.extract_strided_slice %381 {offsets = [0, 32], sizes = [16, 32], strides = [1, 1]} : vector<16x96xf32> to vector<16x32xf32>
    %384 = vector.extract_strided_slice %381 {offsets = [0, 64], sizes = [16, 32], strides = [1, 1]} : vector<16x96xf32> to vector<16x32xf32>
    %385 = vector.shape_cast %382 : vector<16x32xf32> to vector<2x8x32xf32>
    %386 = vector.shape_cast %383 : vector<16x32xf32> to vector<2x8x32xf32>
    %387 = vector.shape_cast %384 : vector<16x32xf32> to vector<2x8x32xf32>
    %388 = vector.extract_strided_slice %385 {offsets = [0, 0, 0], sizes = [2, 8, 8], strides = [1, 1, 1]} : vector<2x8x32xf32> to vector<2x8x8xf32>
    %389 = arith.truncf %388 : vector<2x8x8xf32> to vector<2x8x8xbf16>
    %390 = vector.extract_strided_slice %386 {offsets = [0, 0, 0], sizes = [2, 8, 8], strides = [1, 1, 1]} : vector<2x8x32xf32> to vector<2x8x8xf32>
    %391 = arith.truncf %390 : vector<2x8x8xf32> to vector<2x8x8xbf16>
    %392 = vector.extract_strided_slice %387 {offsets = [0, 0, 0], sizes = [2, 8, 8], strides = [1, 1, 1]} : vector<2x8x32xf32> to vector<2x8x8xf32>
    %393 = arith.truncf %392 : vector<2x8x8xf32> to vector<2x8x8xbf16>
    "tpu.trace_start"() <{level = 10 : i32, message = "bqd,bkd->bqk"}> : () -> ()
    %cst_112 = arith.constant dense<0.000000e+00> : vector<2x8x8xf32>
    %394 = tpu.matmul %389, %391, %cst_112 {dimension_numbers = #tpu.dot_dimension_numbers<[2], [2], [1], [1], [0, 0, 0, 1, 1, 1], [0], [0]>} : vector<2x8x8xbf16>, vector<2x8x8xbf16>, vector<2x8x8xf32> -> vector<2x8x8xf32>
    "tpu.trace_stop"() : () -> ()
    %cst_113 = arith.constant 0.353553385 : f32
    %395 = vector.broadcast %cst_113 : f32 to vector<2x8x8xf32>
    %396 = arith.mulf %394, %395 : vector<2x8x8xf32>
    %397 = arith.mulf %396, %49 : vector<2x8x8xf32>
    %398 = arith.addf %397, %53 : vector<2x8x8xf32>
    %cst_114 = arith.constant dense<0xFF800000> : vector<2x8xf32>
    %399 = vector.multi_reduction <maximumf>, %398, %cst_114 [2] : vector<2x8x8xf32> to vector<2x8xf32>
    %400 = vector.shape_cast %399 : vector<2x8xf32> to vector<2x8x1xf32>
    %401 = vector.broadcast %400 : vector<2x8x1xf32> to vector<2x8x8xf32>
    %402 = arith.subf %398, %401 : vector<2x8x8xf32>
    %403 = math.exp %402 : vector<2x8x8xf32>
    %cst_115 = arith.constant dense<0.000000e+00> : vector<2x8xf32>
    %404 = vector.multi_reduction <add>, %403, %cst_115 [2] : vector<2x8x8xf32> to vector<2x8xf32>
    %405 = vector.shape_cast %404 : vector<2x8xf32> to vector<2x8x1xf32>
    %406 = tpu.reciprocal %405 {approx = true} : vector<2x8x1xf32> -> vector<2x8x1xf32>
    %407 = vector.broadcast %406 : vector<2x8x1xf32> to vector<2x8x8xf32>
    %408 = arith.mulf %403, %407 : vector<2x8x8xf32>
    %409 = arith.truncf %408 : vector<2x8x8xf32> to vector<2x8x8xbf16>
    "tpu.trace_start"() <{level = 10 : i32, message = "bqk,bkd->bqd"}> : () -> ()
    %cst_116 = arith.constant dense<0.000000e+00> : vector<2x8x8xf32>
    %410 = tpu.matmul %409, %393, %cst_116 {dimension_numbers = #tpu.dot_dimension_numbers<[2], [1], [1], [2], [0, 0, 0, 1, 1, 2], [0], [0]>} : vector<2x8x8xbf16>, vector<2x8x8xbf16>, vector<2x8x8xf32> -> vector<2x8x8xf32>
    "tpu.trace_stop"() : () -> ()
    %411 = vector.extract_strided_slice %385 {offsets = [0, 0, 8], sizes = [2, 8, 8], strides = [1, 1, 1]} : vector<2x8x32xf32> to vector<2x8x8xf32>
    %412 = arith.truncf %411 : vector<2x8x8xf32> to vector<2x8x8xbf16>
    %413 = vector.extract_strided_slice %386 {offsets = [0, 0, 8], sizes = [2, 8, 8], strides = [1, 1, 1]} : vector<2x8x32xf32> to vector<2x8x8xf32>
    %414 = arith.truncf %413 : vector<2x8x8xf32> to vector<2x8x8xbf16>
    %415 = vector.extract_strided_slice %387 {offsets = [0, 0, 8], sizes = [2, 8, 8], strides = [1, 1, 1]} : vector<2x8x32xf32> to vector<2x8x8xf32>
    %416 = arith.truncf %415 : vector<2x8x8xf32> to vector<2x8x8xbf16>
    "tpu.trace_start"() <{level = 10 : i32, message = "bqd,bkd->bqk"}> : () -> ()
    %cst_117 = arith.constant dense<0.000000e+00> : vector<2x8x8xf32>
    %417 = tpu.matmul %412, %414, %cst_117 {dimension_numbers = #tpu.dot_dimension_numbers<[2], [2], [1], [1], [0, 0, 0, 1, 1, 1], [0], [0]>} : vector<2x8x8xbf16>, vector<2x8x8xbf16>, vector<2x8x8xf32> -> vector<2x8x8xf32>
    "tpu.trace_stop"() : () -> ()
    %cst_118 = arith.constant 0.353553385 : f32
    %418 = vector.broadcast %cst_118 : f32 to vector<2x8x8xf32>
    %419 = arith.mulf %417, %418 : vector<2x8x8xf32>
    %420 = arith.mulf %419, %49 : vector<2x8x8xf32>
    %421 = arith.addf %420, %53 : vector<2x8x8xf32>
    %cst_119 = arith.constant dense<0xFF800000> : vector<2x8xf32>
    %422 = vector.multi_reduction <maximumf>, %421, %cst_119 [2] : vector<2x8x8xf32> to vector<2x8xf32>
    %423 = vector.shape_cast %422 : vector<2x8xf32> to vector<2x8x1xf32>
    %424 = vector.broadcast %423 : vector<2x8x1xf32> to vector<2x8x8xf32>
    %425 = arith.subf %421, %424 : vector<2x8x8xf32>
    %426 = math.exp %425 : vector<2x8x8xf32>
    %cst_120 = arith.constant dense<0.000000e+00> : vector<2x8xf32>
    %427 = vector.multi_reduction <add>, %426, %cst_120 [2] : vector<2x8x8xf32> to vector<2x8xf32>
    %428 = vector.shape_cast %427 : vector<2x8xf32> to vector<2x8x1xf32>
    %429 = tpu.reciprocal %428 {approx = true} : vector<2x8x1xf32> -> vector<2x8x1xf32>
    %430 = vector.broadcast %429 : vector<2x8x1xf32> to vector<2x8x8xf32>
    %431 = arith.mulf %426, %430 : vector<2x8x8xf32>
    %432 = arith.truncf %431 : vector<2x8x8xf32> to vector<2x8x8xbf16>
    "tpu.trace_start"() <{level = 10 : i32, message = "bqk,bkd->bqd"}> : () -> ()
    %cst_121 = arith.constant dense<0.000000e+00> : vector<2x8x8xf32>
    %433 = tpu.matmul %432, %416, %cst_121 {dimension_numbers = #tpu.dot_dimension_numbers<[2], [1], [1], [2], [0, 0, 0, 1, 1, 2], [0], [0]>} : vector<2x8x8xbf16>, vector<2x8x8xbf16>, vector<2x8x8xf32> -> vector<2x8x8xf32>
    "tpu.trace_stop"() : () -> ()
    %434 = vector.extract_strided_slice %385 {offsets = [0, 0, 16], sizes = [2, 8, 8], strides = [1, 1, 1]} : vector<2x8x32xf32> to vector<2x8x8xf32>
    %435 = arith.truncf %434 : vector<2x8x8xf32> to vector<2x8x8xbf16>
    %436 = vector.extract_strided_slice %386 {offsets = [0, 0, 16], sizes = [2, 8, 8], strides = [1, 1, 1]} : vector<2x8x32xf32> to vector<2x8x8xf32>
    %437 = arith.truncf %436 : vector<2x8x8xf32> to vector<2x8x8xbf16>
    %438 = vector.extract_strided_slice %387 {offsets = [0, 0, 16], sizes = [2, 8, 8], strides = [1, 1, 1]} : vector<2x8x32xf32> to vector<2x8x8xf32>
    %439 = arith.truncf %438 : vector<2x8x8xf32> to vector<2x8x8xbf16>
    "tpu.trace_start"() <{level = 10 : i32, message = "bqd,bkd->bqk"}> : () -> ()
    %cst_122 = arith.constant dense<0.000000e+00> : vector<2x8x8xf32>
    %440 = tpu.matmul %435, %437, %cst_122 {dimension_numbers = #tpu.dot_dimension_numbers<[2], [2], [1], [1], [0, 0, 0, 1, 1, 1], [0], [0]>} : vector<2x8x8xbf16>, vector<2x8x8xbf16>, vector<2x8x8xf32> -> vector<2x8x8xf32>
    "tpu.trace_stop"() : () -> ()
    %cst_123 = arith.constant 0.353553385 : f32
    %441 = vector.broadcast %cst_123 : f32 to vector<2x8x8xf32>
    %442 = arith.mulf %440, %441 : vector<2x8x8xf32>
    %443 = arith.mulf %442, %49 : vector<2x8x8xf32>
    %444 = arith.addf %443, %53 : vector<2x8x8xf32>
    %cst_124 = arith.constant dense<0xFF800000> : vector<2x8xf32>
    %445 = vector.multi_reduction <maximumf>, %444, %cst_124 [2] : vector<2x8x8xf32> to vector<2x8xf32>
    %446 = vector.shape_cast %445 : vector<2x8xf32> to vector<2x8x1xf32>
    %447 = vector.broadcast %446 : vector<2x8x1xf32> to vector<2x8x8xf32>
    %448 = arith.subf %444, %447 : vector<2x8x8xf32>
    %449 = math.exp %448 : vector<2x8x8xf32>
    %cst_125 = arith.constant dense<0.000000e+00> : vector<2x8xf32>
    %450 = vector.multi_reduction <add>, %449, %cst_125 [2] : vector<2x8x8xf32> to vector<2x8xf32>
    %451 = vector.shape_cast %450 : vector<2x8xf32> to vector<2x8x1xf32>
    %452 = tpu.reciprocal %451 {approx = true} : vector<2x8x1xf32> -> vector<2x8x1xf32>
    %453 = vector.broadcast %452 : vector<2x8x1xf32> to vector<2x8x8xf32>
    %454 = arith.mulf %449, %453 : vector<2x8x8xf32>
    %455 = arith.truncf %454 : vector<2x8x8xf32> to vector<2x8x8xbf16>
    "tpu.trace_start"() <{level = 10 : i32, message = "bqk,bkd->bqd"}> : () -> ()
    %cst_126 = arith.constant dense<0.000000e+00> : vector<2x8x8xf32>
    %456 = tpu.matmul %455, %439, %cst_126 {dimension_numbers = #tpu.dot_dimension_numbers<[2], [1], [1], [2], [0, 0, 0, 1, 1, 2], [0], [0]>} : vector<2x8x8xbf16>, vector<2x8x8xbf16>, vector<2x8x8xf32> -> vector<2x8x8xf32>
    "tpu.trace_stop"() : () -> ()
    %457 = vector.extract_strided_slice %385 {offsets = [0, 0, 24], sizes = [2, 8, 8], strides = [1, 1, 1]} : vector<2x8x32xf32> to vector<2x8x8xf32>
    %458 = arith.truncf %457 : vector<2x8x8xf32> to vector<2x8x8xbf16>
    %459 = vector.extract_strided_slice %386 {offsets = [0, 0, 24], sizes = [2, 8, 8], strides = [1, 1, 1]} : vector<2x8x32xf32> to vector<2x8x8xf32>
    %460 = arith.truncf %459 : vector<2x8x8xf32> to vector<2x8x8xbf16>
    %461 = vector.extract_strided_slice %387 {offsets = [0, 0, 24], sizes = [2, 8, 8], strides = [1, 1, 1]} : vector<2x8x32xf32> to vector<2x8x8xf32>
    %462 = arith.truncf %461 : vector<2x8x8xf32> to vector<2x8x8xbf16>
    "tpu.trace_start"() <{level = 10 : i32, message = "bqd,bkd->bqk"}> : () -> ()
    %cst_127 = arith.constant dense<0.000000e+00> : vector<2x8x8xf32>
    %463 = tpu.matmul %458, %460, %cst_127 {dimension_numbers = #tpu.dot_dimension_numbers<[2], [2], [1], [1], [0, 0, 0, 1, 1, 1], [0], [0]>} : vector<2x8x8xbf16>, vector<2x8x8xbf16>, vector<2x8x8xf32> -> vector<2x8x8xf32>
    "tpu.trace_stop"() : () -> ()
    %cst_128 = arith.constant 0.353553385 : f32
    %464 = vector.broadcast %cst_128 : f32 to vector<2x8x8xf32>
    %465 = arith.mulf %463, %464 : vector<2x8x8xf32>
    %466 = arith.mulf %465, %49 : vector<2x8x8xf32>
    %467 = arith.addf %466, %53 : vector<2x8x8xf32>
    %cst_129 = arith.constant dense<0xFF800000> : vector<2x8xf32>
    %468 = vector.multi_reduction <maximumf>, %467, %cst_129 [2] : vector<2x8x8xf32> to vector<2x8xf32>
    %469 = vector.shape_cast %468 : vector<2x8xf32> to vector<2x8x1xf32>
    %470 = vector.broadcast %469 : vector<2x8x1xf32> to vector<2x8x8xf32>
    %471 = arith.subf %467, %470 : vector<2x8x8xf32>
    %472 = math.exp %471 : vector<2x8x8xf32>
    %cst_130 = arith.constant dense<0.000000e+00> : vector<2x8xf32>
    %473 = vector.multi_reduction <add>, %472, %cst_130 [2] : vector<2x8x8xf32> to vector<2x8xf32>
    %474 = vector.shape_cast %473 : vector<2x8xf32> to vector<2x8x1xf32>
    %475 = tpu.reciprocal %474 {approx = true} : vector<2x8x1xf32> -> vector<2x8x1xf32>
    %476 = vector.broadcast %475 : vector<2x8x1xf32> to vector<2x8x8xf32>
    %477 = arith.mulf %472, %476 : vector<2x8x8xf32>
    %478 = arith.truncf %477 : vector<2x8x8xf32> to vector<2x8x8xbf16>
    "tpu.trace_start"() <{level = 10 : i32, message = "bqk,bkd->bqd"}> : () -> ()
    %cst_131 = arith.constant dense<0.000000e+00> : vector<2x8x8xf32>
    %479 = tpu.matmul %478, %462, %cst_131 {dimension_numbers = #tpu.dot_dimension_numbers<[2], [1], [1], [2], [0, 0, 0, 1, 1, 2], [0], [0]>} : vector<2x8x8xbf16>, vector<2x8x8xbf16>, vector<2x8x8xf32> -> vector<2x8x8xf32>
    "tpu.trace_stop"() : () -> ()
    %480 = tpu.concatenate %410, %433, %456, %479 in 2 : vector<2x8x8xf32>, vector<2x8x8xf32>, vector<2x8x8xf32>, vector<2x8x8xf32> -> vector<2x8x32xf32>
    %481 = vector.shape_cast %480 : vector<2x8x32xf32> to vector<16x32xf32>
    %482 = arith.truncf %481 : vector<16x32xf32> to vector<16x32xbf16>
    %c2_132 = arith.constant 2 : index
    %c0_133 = arith.constant 0 : index
    %c0_134 = arith.constant 0 : index
    %483 = vector.load %arg8[%c2_132, %c0_133, %c0_134] : memref<4x32x32xbf16, #tpu.memory_space<vmem>>, vector<1x32x32xbf16>
    %484 = vector.shape_cast %483 : vector<1x32x32xbf16> to vector<32x32xbf16>
    %cst_135 = arith.constant dense<0.000000e+00> : vector<16x32xf32>
    %485 = tpu.matmul %482, %484, %cst_135 {dimension_numbers = #tpu.dot_dimension_numbers<[1], [0], [0], [1], [0, 0, 1, 1], [], []>} : vector<16x32xbf16>, vector<32x32xbf16>, vector<16x32xf32> -> vector<16x32xf32>
    %486 = vector.extract_strided_slice %0 {offsets = [8, 0], sizes = [1, 32], strides = [1, 1]} : vector<22x64xf32> to vector<1x32xf32>
    %487 = vector.broadcast %486 : vector<1x32xf32> to vector<16x32xf32>
    %488 = arith.addf %485, %487 : vector<16x32xf32>
    %489 = arith.addf %488, %377 : vector<16x32xf32>
    %490 = vector.extract_strided_slice %0 {offsets = [9, 0], sizes = [1, 32], strides = [1, 1]} : vector<22x64xf32> to vector<1x32xf32>
    %491 = vector.extract_strided_slice %0 {offsets = [10, 0], sizes = [1, 32], strides = [1, 1]} : vector<22x64xf32> to vector<1x32xf32>
    %cst_136 = arith.constant dense<0.000000e+00> : vector<16xf32>
    %492 = vector.multi_reduction <add>, %489, %cst_136 [1] : vector<16x32xf32> to vector<16xf32>
    %493 = vector.shape_cast %492 : vector<16xf32> to vector<16x1xf32>
    %494 = arith.mulf %489, %489 : vector<16x32xf32>
    %cst_137 = arith.constant dense<0.000000e+00> : vector<16xf32>
    %495 = vector.multi_reduction <add>, %494, %cst_137 [1] : vector<16x32xf32> to vector<16xf32>
    %496 = vector.shape_cast %495 : vector<16xf32> to vector<16x1xf32>
    %cst_138 = arith.constant 3.125000e-02 : f32
    %497 = vector.broadcast %cst_138 : f32 to vector<16x1xf32>
    %498 = arith.mulf %493, %497 : vector<16x1xf32>
    %cst_139 = arith.constant 3.125000e-02 : f32
    %499 = vector.broadcast %cst_139 : f32 to vector<16x1xf32>
    %500 = arith.mulf %496, %499 : vector<16x1xf32>
    %501 = arith.mulf %498, %498 : vector<16x1xf32>
    %502 = arith.subf %500, %501 : vector<16x1xf32>
    %503 = vector.broadcast %498 : vector<16x1xf32> to vector<16x32xf32>
    %504 = arith.subf %489, %503 : vector<16x32xf32>
    %cst_140 = arith.constant 9.99999997E-7 : f32
    %505 = vector.broadcast %cst_140 : f32 to vector<16x1xf32>
    %506 = arith.addf %502, %505 : vector<16x1xf32>
    %507 = math.rsqrt %506 : vector<16x1xf32>
    %508 = vector.broadcast %507 : vector<16x1xf32> to vector<16x32xf32>
    %509 = arith.mulf %504, %508 : vector<16x32xf32>
    %510 = vector.broadcast %490 : vector<1x32xf32> to vector<16x32xf32>
    %511 = arith.mulf %509, %510 : vector<16x32xf32>
    %512 = vector.broadcast %491 : vector<1x32xf32> to vector<16x32xf32>
    %513 = arith.addf %511, %512 : vector<16x32xf32>
    %c3 = arith.constant 3 : index
    %c0_141 = arith.constant 0 : index
    %c0_142 = arith.constant 0 : index
    %514 = vector.load %arg7[%c3, %c0_141, %c0_142] : memref<4x32x96xbf16, #tpu.memory_space<vmem>>, vector<1x32x96xbf16>
    %515 = vector.shape_cast %514 : vector<1x32x96xbf16> to vector<32x96xbf16>
    %516 = arith.truncf %513 : vector<16x32xf32> to vector<16x32xbf16>
    %517 = vector.extract_strided_slice %515 {offsets = [0, 0], sizes = [32, 32], strides = [1, 1]} : vector<32x96xbf16> to vector<32x32xbf16>
    %cst_143 = arith.constant dense<0.000000e+00> : vector<16x32xf32>
    %518 = tpu.matmul %516, %517, %cst_143 {dimension_numbers = #tpu.dot_dimension_numbers<[1], [0], [0], [1], [0, 0, 1, 1], [], []>} : vector<16x32xbf16>, vector<32x32xbf16>, vector<16x32xf32> -> vector<16x32xf32>
    %519 = vector.extract_strided_slice %515 {offsets = [0, 32], sizes = [32, 64], strides = [1, 1]} : vector<32x96xbf16> to vector<32x64xbf16>
    %cst_144 = arith.constant dense<0.000000e+00> : vector<16x64xf32>
    %520 = tpu.matmul %44, %519, %cst_144 {dimension_numbers = #tpu.dot_dimension_numbers<[1], [0], [0], [1], [0, 0, 1, 1], [], []>} : vector<16x32xbf16>, vector<32x64xbf16>, vector<16x64xf32> -> vector<16x64xf32>
    %521 = vector.extract_strided_slice %520 {offsets = [0, 0], sizes = [16, 32], strides = [1, 1]} : vector<16x64xf32> to vector<16x32xf32>
    %522 = vector.extract_strided_slice %520 {offsets = [0, 32], sizes = [16, 32], strides = [1, 1]} : vector<16x64xf32> to vector<16x32xf32>
    %523 = vector.shape_cast %518 : vector<16x32xf32> to vector<2x8x32xf32>
    %524 = vector.shape_cast %521 : vector<16x32xf32> to vector<2x8x32xf32>
    %525 = vector.shape_cast %522 : vector<16x32xf32> to vector<2x8x32xf32>
    %526 = vector.extract_strided_slice %523 {offsets = [0, 0, 0], sizes = [2, 8, 8], strides = [1, 1, 1]} : vector<2x8x32xf32> to vector<2x8x8xf32>
    %527 = arith.truncf %526 : vector<2x8x8xf32> to vector<2x8x8xbf16>
    %528 = vector.extract_strided_slice %524 {offsets = [0, 0, 0], sizes = [2, 8, 8], strides = [1, 1, 1]} : vector<2x8x32xf32> to vector<2x8x8xf32>
    %529 = arith.truncf %528 : vector<2x8x8xf32> to vector<2x8x8xbf16>
    %530 = vector.extract_strided_slice %525 {offsets = [0, 0, 0], sizes = [2, 8, 8], strides = [1, 1, 1]} : vector<2x8x32xf32> to vector<2x8x8xf32>
    %531 = arith.truncf %530 : vector<2x8x8xf32> to vector<2x8x8xbf16>
    "tpu.trace_start"() <{level = 10 : i32, message = "bqd,bkd->bqk"}> : () -> ()
    %cst_145 = arith.constant dense<0.000000e+00> : vector<2x8x8xf32>
    %532 = tpu.matmul %527, %529, %cst_145 {dimension_numbers = #tpu.dot_dimension_numbers<[2], [2], [1], [1], [0, 0, 0, 1, 1, 1], [0], [0]>} : vector<2x8x8xbf16>, vector<2x8x8xbf16>, vector<2x8x8xf32> -> vector<2x8x8xf32>
    "tpu.trace_stop"() : () -> ()
    %cst_146 = arith.constant 0.353553385 : f32
    %533 = vector.broadcast %cst_146 : f32 to vector<2x8x8xf32>
    %534 = arith.mulf %532, %533 : vector<2x8x8xf32>
    %535 = arith.mulf %534, %58 : vector<2x8x8xf32>
    %536 = arith.addf %535, %62 : vector<2x8x8xf32>
    %cst_147 = arith.constant dense<0xFF800000> : vector<2x8xf32>
    %537 = vector.multi_reduction <maximumf>, %536, %cst_147 [2] : vector<2x8x8xf32> to vector<2x8xf32>
    %538 = vector.shape_cast %537 : vector<2x8xf32> to vector<2x8x1xf32>
    %539 = vector.broadcast %538 : vector<2x8x1xf32> to vector<2x8x8xf32>
    %540 = arith.subf %536, %539 : vector<2x8x8xf32>
    %541 = math.exp %540 : vector<2x8x8xf32>
    %cst_148 = arith.constant dense<0.000000e+00> : vector<2x8xf32>
    %542 = vector.multi_reduction <add>, %541, %cst_148 [2] : vector<2x8x8xf32> to vector<2x8xf32>
    %543 = vector.shape_cast %542 : vector<2x8xf32> to vector<2x8x1xf32>
    %544 = tpu.reciprocal %543 {approx = true} : vector<2x8x1xf32> -> vector<2x8x1xf32>
    %545 = vector.broadcast %544 : vector<2x8x1xf32> to vector<2x8x8xf32>
    %546 = arith.mulf %541, %545 : vector<2x8x8xf32>
    %547 = arith.truncf %546 : vector<2x8x8xf32> to vector<2x8x8xbf16>
    "tpu.trace_start"() <{level = 10 : i32, message = "bqk,bkd->bqd"}> : () -> ()
    %cst_149 = arith.constant dense<0.000000e+00> : vector<2x8x8xf32>
    %548 = tpu.matmul %547, %531, %cst_149 {dimension_numbers = #tpu.dot_dimension_numbers<[2], [1], [1], [2], [0, 0, 0, 1, 1, 2], [0], [0]>} : vector<2x8x8xbf16>, vector<2x8x8xbf16>, vector<2x8x8xf32> -> vector<2x8x8xf32>
    "tpu.trace_stop"() : () -> ()
    %549 = vector.extract_strided_slice %523 {offsets = [0, 0, 8], sizes = [2, 8, 8], strides = [1, 1, 1]} : vector<2x8x32xf32> to vector<2x8x8xf32>
    %550 = arith.truncf %549 : vector<2x8x8xf32> to vector<2x8x8xbf16>
    %551 = vector.extract_strided_slice %524 {offsets = [0, 0, 8], sizes = [2, 8, 8], strides = [1, 1, 1]} : vector<2x8x32xf32> to vector<2x8x8xf32>
    %552 = arith.truncf %551 : vector<2x8x8xf32> to vector<2x8x8xbf16>
    %553 = vector.extract_strided_slice %525 {offsets = [0, 0, 8], sizes = [2, 8, 8], strides = [1, 1, 1]} : vector<2x8x32xf32> to vector<2x8x8xf32>
    %554 = arith.truncf %553 : vector<2x8x8xf32> to vector<2x8x8xbf16>
    "tpu.trace_start"() <{level = 10 : i32, message = "bqd,bkd->bqk"}> : () -> ()
    %cst_150 = arith.constant dense<0.000000e+00> : vector<2x8x8xf32>
    %555 = tpu.matmul %550, %552, %cst_150 {dimension_numbers = #tpu.dot_dimension_numbers<[2], [2], [1], [1], [0, 0, 0, 1, 1, 1], [0], [0]>} : vector<2x8x8xbf16>, vector<2x8x8xbf16>, vector<2x8x8xf32> -> vector<2x8x8xf32>
    "tpu.trace_stop"() : () -> ()
    %cst_151 = arith.constant 0.353553385 : f32
    %556 = vector.broadcast %cst_151 : f32 to vector<2x8x8xf32>
    %557 = arith.mulf %555, %556 : vector<2x8x8xf32>
    %558 = arith.mulf %557, %58 : vector<2x8x8xf32>
    %559 = arith.addf %558, %62 : vector<2x8x8xf32>
    %cst_152 = arith.constant dense<0xFF800000> : vector<2x8xf32>
    %560 = vector.multi_reduction <maximumf>, %559, %cst_152 [2] : vector<2x8x8xf32> to vector<2x8xf32>
    %561 = vector.shape_cast %560 : vector<2x8xf32> to vector<2x8x1xf32>
    %562 = vector.broadcast %561 : vector<2x8x1xf32> to vector<2x8x8xf32>
    %563 = arith.subf %559, %562 : vector<2x8x8xf32>
    %564 = math.exp %563 : vector<2x8x8xf32>
    %cst_153 = arith.constant dense<0.000000e+00> : vector<2x8xf32>
    %565 = vector.multi_reduction <add>, %564, %cst_153 [2] : vector<2x8x8xf32> to vector<2x8xf32>
    %566 = vector.shape_cast %565 : vector<2x8xf32> to vector<2x8x1xf32>
    %567 = tpu.reciprocal %566 {approx = true} : vector<2x8x1xf32> -> vector<2x8x1xf32>
    %568 = vector.broadcast %567 : vector<2x8x1xf32> to vector<2x8x8xf32>
    %569 = arith.mulf %564, %568 : vector<2x8x8xf32>
    %570 = arith.truncf %569 : vector<2x8x8xf32> to vector<2x8x8xbf16>
    "tpu.trace_start"() <{level = 10 : i32, message = "bqk,bkd->bqd"}> : () -> ()
    %cst_154 = arith.constant dense<0.000000e+00> : vector<2x8x8xf32>
    %571 = tpu.matmul %570, %554, %cst_154 {dimension_numbers = #tpu.dot_dimension_numbers<[2], [1], [1], [2], [0, 0, 0, 1, 1, 2], [0], [0]>} : vector<2x8x8xbf16>, vector<2x8x8xbf16>, vector<2x8x8xf32> -> vector<2x8x8xf32>
    "tpu.trace_stop"() : () -> ()
    %572 = vector.extract_strided_slice %523 {offsets = [0, 0, 16], sizes = [2, 8, 8], strides = [1, 1, 1]} : vector<2x8x32xf32> to vector<2x8x8xf32>
    %573 = arith.truncf %572 : vector<2x8x8xf32> to vector<2x8x8xbf16>
    %574 = vector.extract_strided_slice %524 {offsets = [0, 0, 16], sizes = [2, 8, 8], strides = [1, 1, 1]} : vector<2x8x32xf32> to vector<2x8x8xf32>
    %575 = arith.truncf %574 : vector<2x8x8xf32> to vector<2x8x8xbf16>
    %576 = vector.extract_strided_slice %525 {offsets = [0, 0, 16], sizes = [2, 8, 8], strides = [1, 1, 1]} : vector<2x8x32xf32> to vector<2x8x8xf32>
    %577 = arith.truncf %576 : vector<2x8x8xf32> to vector<2x8x8xbf16>
    "tpu.trace_start"() <{level = 10 : i32, message = "bqd,bkd->bqk"}> : () -> ()
    %cst_155 = arith.constant dense<0.000000e+00> : vector<2x8x8xf32>
    %578 = tpu.matmul %573, %575, %cst_155 {dimension_numbers = #tpu.dot_dimension_numbers<[2], [2], [1], [1], [0, 0, 0, 1, 1, 1], [0], [0]>} : vector<2x8x8xbf16>, vector<2x8x8xbf16>, vector<2x8x8xf32> -> vector<2x8x8xf32>
    "tpu.trace_stop"() : () -> ()
    %cst_156 = arith.constant 0.353553385 : f32
    %579 = vector.broadcast %cst_156 : f32 to vector<2x8x8xf32>
    %580 = arith.mulf %578, %579 : vector<2x8x8xf32>
    %581 = arith.mulf %580, %58 : vector<2x8x8xf32>
    %582 = arith.addf %581, %62 : vector<2x8x8xf32>
    %cst_157 = arith.constant dense<0xFF800000> : vector<2x8xf32>
    %583 = vector.multi_reduction <maximumf>, %582, %cst_157 [2] : vector<2x8x8xf32> to vector<2x8xf32>
    %584 = vector.shape_cast %583 : vector<2x8xf32> to vector<2x8x1xf32>
    %585 = vector.broadcast %584 : vector<2x8x1xf32> to vector<2x8x8xf32>
    %586 = arith.subf %582, %585 : vector<2x8x8xf32>
    %587 = math.exp %586 : vector<2x8x8xf32>
    %cst_158 = arith.constant dense<0.000000e+00> : vector<2x8xf32>
    %588 = vector.multi_reduction <add>, %587, %cst_158 [2] : vector<2x8x8xf32> to vector<2x8xf32>
    %589 = vector.shape_cast %588 : vector<2x8xf32> to vector<2x8x1xf32>
    %590 = tpu.reciprocal %589 {approx = true} : vector<2x8x1xf32> -> vector<2x8x1xf32>
    %591 = vector.broadcast %590 : vector<2x8x1xf32> to vector<2x8x8xf32>
    %592 = arith.mulf %587, %591 : vector<2x8x8xf32>
    %593 = arith.truncf %592 : vector<2x8x8xf32> to vector<2x8x8xbf16>
    "tpu.trace_start"() <{level = 10 : i32, message = "bqk,bkd->bqd"}> : () -> ()
    %cst_159 = arith.constant dense<0.000000e+00> : vector<2x8x8xf32>
    %594 = tpu.matmul %593, %577, %cst_159 {dimension_numbers = #tpu.dot_dimension_numbers<[2], [1], [1], [2], [0, 0, 0, 1, 1, 2], [0], [0]>} : vector<2x8x8xbf16>, vector<2x8x8xbf16>, vector<2x8x8xf32> -> vector<2x8x8xf32>
    "tpu.trace_stop"() : () -> ()
    %595 = vector.extract_strided_slice %523 {offsets = [0, 0, 24], sizes = [2, 8, 8], strides = [1, 1, 1]} : vector<2x8x32xf32> to vector<2x8x8xf32>
    %596 = arith.truncf %595 : vector<2x8x8xf32> to vector<2x8x8xbf16>
    %597 = vector.extract_strided_slice %524 {offsets = [0, 0, 24], sizes = [2, 8, 8], strides = [1, 1, 1]} : vector<2x8x32xf32> to vector<2x8x8xf32>
    %598 = arith.truncf %597 : vector<2x8x8xf32> to vector<2x8x8xbf16>
    %599 = vector.extract_strided_slice %525 {offsets = [0, 0, 24], sizes = [2, 8, 8], strides = [1, 1, 1]} : vector<2x8x32xf32> to vector<2x8x8xf32>
    %600 = arith.truncf %599 : vector<2x8x8xf32> to vector<2x8x8xbf16>
    "tpu.trace_start"() <{level = 10 : i32, message = "bqd,bkd->bqk"}> : () -> ()
    %cst_160 = arith.constant dense<0.000000e+00> : vector<2x8x8xf32>
    %601 = tpu.matmul %596, %598, %cst_160 {dimension_numbers = #tpu.dot_dimension_numbers<[2], [2], [1], [1], [0, 0, 0, 1, 1, 1], [0], [0]>} : vector<2x8x8xbf16>, vector<2x8x8xbf16>, vector<2x8x8xf32> -> vector<2x8x8xf32>
    "tpu.trace_stop"() : () -> ()
    %cst_161 = arith.constant 0.353553385 : f32
    %602 = vector.broadcast %cst_161 : f32 to vector<2x8x8xf32>
    %603 = arith.mulf %601, %602 : vector<2x8x8xf32>
    %604 = arith.mulf %603, %58 : vector<2x8x8xf32>
    %605 = arith.addf %604, %62 : vector<2x8x8xf32>
    %cst_162 = arith.constant dense<0xFF800000> : vector<2x8xf32>
    %606 = vector.multi_reduction <maximumf>, %605, %cst_162 [2] : vector<2x8x8xf32> to vector<2x8xf32>
    %607 = vector.shape_cast %606 : vector<2x8xf32> to vector<2x8x1xf32>
    %608 = vector.broadcast %607 : vector<2x8x1xf32> to vector<2x8x8xf32>
    %609 = arith.subf %605, %608 : vector<2x8x8xf32>
    %610 = math.exp %609 : vector<2x8x8xf32>
    %cst_163 = arith.constant dense<0.000000e+00> : vector<2x8xf32>
    %611 = vector.multi_reduction <add>, %610, %cst_163 [2] : vector<2x8x8xf32> to vector<2x8xf32>
    %612 = vector.shape_cast %611 : vector<2x8xf32> to vector<2x8x1xf32>
    %613 = tpu.reciprocal %612 {approx = true} : vector<2x8x1xf32> -> vector<2x8x1xf32>
    %614 = vector.broadcast %613 : vector<2x8x1xf32> to vector<2x8x8xf32>
    %615 = arith.mulf %610, %614 : vector<2x8x8xf32>
    %616 = arith.truncf %615 : vector<2x8x8xf32> to vector<2x8x8xbf16>
    "tpu.trace_start"() <{level = 10 : i32, message = "bqk,bkd->bqd"}> : () -> ()
    %cst_164 = arith.constant dense<0.000000e+00> : vector<2x8x8xf32>
    %617 = tpu.matmul %616, %600, %cst_164 {dimension_numbers = #tpu.dot_dimension_numbers<[2], [1], [1], [2], [0, 0, 0, 1, 1, 2], [0], [0]>} : vector<2x8x8xbf16>, vector<2x8x8xbf16>, vector<2x8x8xf32> -> vector<2x8x8xf32>
    "tpu.trace_stop"() : () -> ()
    %618 = tpu.concatenate %548, %571, %594, %617 in 2 : vector<2x8x8xf32>, vector<2x8x8xf32>, vector<2x8x8xf32>, vector<2x8x8xf32> -> vector<2x8x32xf32>
    %619 = vector.shape_cast %618 : vector<2x8x32xf32> to vector<16x32xf32>
    %620 = arith.truncf %619 : vector<16x32xf32> to vector<16x32xbf16>
    %c3_165 = arith.constant 3 : index
    %c0_166 = arith.constant 0 : index
    %c0_167 = arith.constant 0 : index
    %621 = vector.load %arg8[%c3_165, %c0_166, %c0_167] : memref<4x32x32xbf16, #tpu.memory_space<vmem>>, vector<1x32x32xbf16>
    %622 = vector.shape_cast %621 : vector<1x32x32xbf16> to vector<32x32xbf16>
    %cst_168 = arith.constant dense<0.000000e+00> : vector<16x32xf32>
    %623 = tpu.matmul %620, %622, %cst_168 {dimension_numbers = #tpu.dot_dimension_numbers<[1], [0], [0], [1], [0, 0, 1, 1], [], []>} : vector<16x32xbf16>, vector<32x32xbf16>, vector<16x32xf32> -> vector<16x32xf32>
    %624 = vector.extract_strided_slice %0 {offsets = [11, 0], sizes = [1, 32], strides = [1, 1]} : vector<22x64xf32> to vector<1x32xf32>
    %625 = vector.broadcast %624 : vector<1x32xf32> to vector<16x32xf32>
    %626 = arith.addf %623, %625 : vector<16x32xf32>
    %627 = arith.addf %626, %513 : vector<16x32xf32>
    %628 = vector.extract_strided_slice %0 {offsets = [12, 0], sizes = [1, 32], strides = [1, 1]} : vector<22x64xf32> to vector<1x32xf32>
    %629 = vector.extract_strided_slice %0 {offsets = [13, 0], sizes = [1, 32], strides = [1, 1]} : vector<22x64xf32> to vector<1x32xf32>
    %cst_169 = arith.constant dense<0.000000e+00> : vector<16xf32>
    %630 = vector.multi_reduction <add>, %627, %cst_169 [1] : vector<16x32xf32> to vector<16xf32>
    %631 = vector.shape_cast %630 : vector<16xf32> to vector<16x1xf32>
    %632 = arith.mulf %627, %627 : vector<16x32xf32>
    %cst_170 = arith.constant dense<0.000000e+00> : vector<16xf32>
    %633 = vector.multi_reduction <add>, %632, %cst_170 [1] : vector<16x32xf32> to vector<16xf32>
    %634 = vector.shape_cast %633 : vector<16xf32> to vector<16x1xf32>
    %cst_171 = arith.constant 3.125000e-02 : f32
    %635 = vector.broadcast %cst_171 : f32 to vector<16x1xf32>
    %636 = arith.mulf %631, %635 : vector<16x1xf32>
    %cst_172 = arith.constant 3.125000e-02 : f32
    %637 = vector.broadcast %cst_172 : f32 to vector<16x1xf32>
    %638 = arith.mulf %634, %637 : vector<16x1xf32>
    %639 = arith.mulf %636, %636 : vector<16x1xf32>
    %640 = arith.subf %638, %639 : vector<16x1xf32>
    %641 = vector.broadcast %636 : vector<16x1xf32> to vector<16x32xf32>
    %642 = arith.subf %627, %641 : vector<16x32xf32>
    %cst_173 = arith.constant 9.99999997E-7 : f32
    %643 = vector.broadcast %cst_173 : f32 to vector<16x1xf32>
    %644 = arith.addf %640, %643 : vector<16x1xf32>
    %645 = math.rsqrt %644 : vector<16x1xf32>
    %646 = vector.broadcast %645 : vector<16x1xf32> to vector<16x32xf32>
    %647 = arith.mulf %642, %646 : vector<16x32xf32>
    %648 = vector.broadcast %628 : vector<1x32xf32> to vector<16x32xf32>
    %649 = arith.mulf %647, %648 : vector<16x32xf32>
    %650 = vector.broadcast %629 : vector<1x32xf32> to vector<16x32xf32>
    %651 = arith.addf %649, %650 : vector<16x32xf32>
    %652 = arith.truncf %651 : vector<16x32xf32> to vector<16x32xbf16>
    %c1_174 = arith.constant 1 : index
    %c0_175 = arith.constant 0 : index
    %c0_176 = arith.constant 0 : index
    %653 = vector.load %arg9[%c1_174, %c0_175, %c0_176] : memref<2x32x64xbf16, #tpu.memory_space<vmem>>, vector<1x32x64xbf16>
    %654 = vector.shape_cast %653 : vector<1x32x64xbf16> to vector<32x64xbf16>
    %cst_177 = arith.constant dense<0.000000e+00> : vector<16x64xf32>
    %655 = tpu.matmul %652, %654, %cst_177 {dimension_numbers = #tpu.dot_dimension_numbers<[1], [0], [0], [1], [0, 0, 1, 1], [], []>} : vector<16x32xbf16>, vector<32x64xbf16>, vector<16x64xf32> -> vector<16x64xf32>
    %656 = vector.extract_strided_slice %0 {offsets = [18, 0], sizes = [1, 64], strides = [1, 1]} : vector<22x64xf32> to vector<1x64xf32>
    %657 = vector.broadcast %656 : vector<1x64xf32> to vector<16x64xf32>
    %658 = arith.addf %655, %657 : vector<16x64xf32>
    %cst_178 = arith.constant 0.000000e+00 : f32
    %659 = vector.broadcast %cst_178 : f32 to vector<16x64xf32>
    %660 = arith.maximumf %658, %659 : vector<16x64xf32>
    %661 = arith.truncf %660 : vector<16x64xf32> to vector<16x64xbf16>
    %c1_179 = arith.constant 1 : index
    %c0_180 = arith.constant 0 : index
    %c0_181 = arith.constant 0 : index
    %662 = vector.load %arg10[%c1_179, %c0_180, %c0_181] : memref<2x64x32xbf16, #tpu.memory_space<vmem>>, vector<1x64x32xbf16>
    %663 = vector.shape_cast %662 : vector<1x64x32xbf16> to vector<64x32xbf16>
    %cst_182 = arith.constant dense<0.000000e+00> : vector<16x32xf32>
    %664 = tpu.matmul %661, %663, %cst_182 {dimension_numbers = #tpu.dot_dimension_numbers<[1], [0], [0], [1], [0, 0, 1, 1], [], []>} : vector<16x64xbf16>, vector<64x32xbf16>, vector<16x32xf32> -> vector<16x32xf32>
    %665 = vector.extract_strided_slice %0 {offsets = [19, 0], sizes = [1, 32], strides = [1, 1]} : vector<22x64xf32> to vector<1x32xf32>
    %666 = vector.broadcast %665 : vector<1x32xf32> to vector<16x32xf32>
    %667 = arith.addf %664, %666 : vector<16x32xf32>
    %668 = arith.addf %667, %651 : vector<16x32xf32>
    %669 = vector.extract_strided_slice %0 {offsets = [20, 0], sizes = [1, 32], strides = [1, 1]} : vector<22x64xf32> to vector<1x32xf32>
    %670 = vector.extract_strided_slice %0 {offsets = [21, 0], sizes = [1, 32], strides = [1, 1]} : vector<22x64xf32> to vector<1x32xf32>
    %cst_183 = arith.constant dense<0.000000e+00> : vector<16xf32>
    %671 = vector.multi_reduction <add>, %668, %cst_183 [1] : vector<16x32xf32> to vector<16xf32>
    %672 = vector.shape_cast %671 : vector<16xf32> to vector<16x1xf32>
    %673 = arith.mulf %668, %668 : vector<16x32xf32>
    %cst_184 = arith.constant dense<0.000000e+00> : vector<16xf32>
    %674 = vector.multi_reduction <add>, %673, %cst_184 [1] : vector<16x32xf32> to vector<16xf32>
    %675 = vector.shape_cast %674 : vector<16xf32> to vector<16x1xf32>
    %cst_185 = arith.constant 3.125000e-02 : f32
    %676 = vector.broadcast %cst_185 : f32 to vector<16x1xf32>
    %677 = arith.mulf %672, %676 : vector<16x1xf32>
    %cst_186 = arith.constant 3.125000e-02 : f32
    %678 = vector.broadcast %cst_186 : f32 to vector<16x1xf32>
    %679 = arith.mulf %675, %678 : vector<16x1xf32>
    %680 = arith.mulf %677, %677 : vector<16x1xf32>
    %681 = arith.subf %679, %680 : vector<16x1xf32>
    %682 = vector.broadcast %677 : vector<16x1xf32> to vector<16x32xf32>
    %683 = arith.subf %668, %682 : vector<16x32xf32>
    %cst_187 = arith.constant 9.99999997E-7 : f32
    %684 = vector.broadcast %cst_187 : f32 to vector<16x1xf32>
    %685 = arith.addf %681, %684 : vector<16x1xf32>
    %686 = math.rsqrt %685 : vector<16x1xf32>
    %687 = vector.broadcast %686 : vector<16x1xf32> to vector<16x32xf32>
    %688 = arith.mulf %683, %687 : vector<16x32xf32>
    %689 = vector.broadcast %669 : vector<1x32xf32> to vector<16x32xf32>
    %690 = arith.mulf %688, %689 : vector<16x32xf32>
    %691 = vector.broadcast %670 : vector<1x32xf32> to vector<16x32xf32>
    %692 = arith.addf %690, %691 : vector<16x32xf32>
    %c0_188 = arith.constant 0 : index
    %c0_189 = arith.constant 0 : index
    %693 = vector.load %arg12[%c0_188, %c0_189] : memref<16x32xf32, #tpu.memory_space<vmem>>, vector<16x32xf32>
    tpu.vector_store %arg12[%c0_188, %c0_189], %692 {strides = array<i32>} : memref<16x32xf32, #tpu.memory_space<vmem>>, vector<16x32xf32>,
    return
  }
}

</mosaic_0001>

<llo_original>
// kernel: decoder_forward.1
$region0: #{decoder_forward.1}
  #allocation0 [shape = 'u32[]', space=smem, size = 0x4, offset = 0x4, fixed_abs, tag = 'smem constant byte address 0x4 - core index']
  #allocation1 [shape = 'u32[144,128]{1,0:T(1,128)}', space=vmem, size = 0x12000, scoped, tag = 'internal scratch']
  %s0 = inlined_call_operand.vmem [shape: f32[16,13], index: 0, kind: input, shape index: {}]
  %s1 = inlined_call_operand.vmem [shape: f32[16,32], index: 1, kind: input, shape index: {}]
  %s2 = inlined_call_operand.vmem [shape: f32[16,32], index: 2, kind: input, shape index: {}]
  %s3 = inlined_call_operand.vmem [shape: f32[2,8,8], index: 3, kind: input, shape index: {}]
  %s4 = inlined_call_operand.vmem [shape: f32[2,8,8], index: 4, kind: input, shape index: {}]
  %s5 = inlined_call_operand.vmem [shape: bf16[26,32], index: 5, kind: input, shape index: {}]
  %s6 = inlined_call_operand.vmem [shape: bf16[12,32], index: 6, kind: input, shape index: {}]
  %s7 = inlined_call_operand.vmem [shape: bf16[4,32,96], index: 7, kind: input, shape index: {}]
  %s8 = inlined_call_operand.vmem [shape: bf16[4,32,32], index: 8, kind: input, shape index: {}]
  %s9 = inlined_call_operand.vmem [shape: bf16[2,32,64], index: 9, kind: input, shape index: {}]
  %s10 = inlined_call_operand.vmem [shape: bf16[2,64,32], index: 10, kind: input, shape index: {}]
  %s11 = inlined_call_operand.vmem [shape: f32[22,64], index: 11, kind: input, shape index: {}]
  %s12 = inlined_call_operand.hbm [shape: f32[16,32], index: 12, kind: output, shape index: {}]
  %s13 = sld [smem:[#allocation0]]
  $region58: #{decoder_forward.1} parent=0
    _
  %s15 = ssub.s32 1, %s13
  %s16 = scalar_select 0, %s15, %s13
  $region1: #{decoder_forward.1} parent=0
    #allocation2 [shape = 'u8[8192]{0}', space=vmem, size = 0x2000, scoped, tag = 'output window, operand 0, single buffered']
    #allocation3 [shape = 's32[1]{0}', space=sflag, size = 0x4, scoped, tag = 'scoped memory for decoder_forward.1']
    %17 = vsyncpa [#allocation3], 0
    // Predicated region
    $region2: #{decoder_forward.1} parent=1 // pred_check
      _
    $region3: #{decoder_forward.1} parent=1 // pred_check_branch
      %19 = sbr.rel (0) target = $region5
    $region4: #{decoder_forward.1} parent=1 // pred_region
      _
    $region5: #{decoder_forward.1} parent=1 // pred_fallthru
      _
    // Predicated region
    $region6: #{decoder_forward.1} parent=1 // pred_check
      _
    $region7: #{decoder_forward.1} parent=1 // pred_check_branch
      %21 = sbr.rel (0) target = $region9
    $region8: #{decoder_forward.1} parent=1 // pred_region
      _
    $region9: #{decoder_forward.1} parent=1 // pred_fallthru
      _
    // Predicated region
    $region10: #{decoder_forward.1} parent=1 // pred_check
      _
    $region11: #{decoder_forward.1} parent=1 // pred_check_branch
      %23 = sbr.rel (0) target = $region13
    $region12: #{decoder_forward.1} parent=1 // pred_region
      _
    $region13: #{decoder_forward.1} parent=1 // pred_fallthru
      _
    // Predicated region
    $region14: #{decoder_forward.1} parent=1 // pred_check
      _
    $region15: #{decoder_forward.1} parent=1 // pred_check_branch
      %25 = sbr.rel (0) target = $region17
    $region16: #{decoder_forward.1} parent=1 // pred_region
      _
    $region17: #{decoder_forward.1} parent=1 // pred_fallthru
      _
    // Predicated region
    $region18: #{decoder_forward.1} parent=1 // pred_check
      _
    $region19: #{decoder_forward.1} parent=1 // pred_check_branch
      %27 = sbr.rel (0) target = $region21
    $region20: #{decoder_forward.1} parent=1 // pred_region
      _
    $region21: #{decoder_forward.1} parent=1 // pred_fallthru
      _
    // Predicated region
    $region22: #{decoder_forward.1} parent=1 // pred_check
      _
    $region23: #{decoder_forward.1} parent=1 // pred_check_branch
      %29 = sbr.rel (0) target = $region25
    $region24: #{decoder_forward.1} parent=1 // pred_region
      _
    $region25: #{decoder_forward.1} parent=1 // pred_fallthru
      _
    // Predicated region
    $region26: #{decoder_forward.1} parent=1 // pred_check
      _
    $region27: #{decoder_forward.1} parent=1 // pred_check_branch
      %31 = sbr.rel (0) target = $region29
    $region28: #{decoder_forward.1} parent=1 // pred_region
      _
    $region29: #{decoder_forward.1} parent=1 // pred_fallthru
      _
    // Predicated region
    $region30: #{decoder_forward.1} parent=1 // pred_check
      _
    $region31: #{decoder_forward.1} parent=1 // pred_check_branch
      %33 = sbr.rel (0) target = $region33
    $region32: #{decoder_forward.1} parent=1 // pred_region
      _
    $region33: #{decoder_forward.1} parent=1 // pred_fallthru
      _
    // Predicated region
    $region34: #{decoder_forward.1} parent=1 // pred_check
      _
    $region35: #{decoder_forward.1} parent=1 // pred_check_branch
      %35 = sbr.rel (0) target = $region37
    $region36: #{decoder_forward.1} parent=1 // pred_region
      _
    $region37: #{decoder_forward.1} parent=1 // pred_fallthru
      _
    // Predicated region
    $region38: #{decoder_forward.1} parent=1 // pred_check
      _
    $region39: #{decoder_forward.1} parent=1 // pred_check_branch
      %37 = sbr.rel (0) target = $region41
    $region40: #{decoder_forward.1} parent=1 // pred_region
      _
    $region41: #{decoder_forward.1} parent=1 // pred_fallthru
      _
    // Predicated region
    $region42: #{decoder_forward.1} parent=1 // pred_check
      _
    $region43: #{decoder_forward.1} parent=1 // pred_check_branch
      %39 = sbr.rel (0) target = $region45
    $region44: #{decoder_forward.1} parent=1 // pred_region
      _
    $region45: #{decoder_forward.1} parent=1 // pred_fallthru
      _
    // Predicated region
    $region46: #{decoder_forward.1} parent=1 // pred_check
      _
    $region47: #{decoder_forward.1} parent=1 // pred_check_branch
      %41 = sbr.rel (0) target = $region49
    $region48: #{decoder_forward.1} parent=1 // pred_region
      _
    $region49: #{decoder_forward.1} parent=1 // pred_fallthru
      _
    %v43 = vld [vmem:[%s11] sm:$0xff]
    %v44 = vld [vmem:[%s11 + $0x8] sm:$0xff]
    %v45 = vld [vmem:[%s11 + $0x10] sm:$0x3f]
    %v46 = vld [vmem:[%s0] sm:$0xff]
    %v47 = vld [vmem:[%s0 + $0x8] sm:$0xff]
    %v48 = vcvt.f32.s32.to.zero.pseudo %v46
    %v49 = vcvt.f32.s32.to.zero.pseudo %v47
    %v50 = vpack.c.bf16 %v47, %v46
    %v51 = vlaneseq
    %v52 = vand.u32 %v51, 127
    %53 = vset.pattern.permute.xlu0 0
    %54 = vperm.xlu0 %53, %v48
    %v55 = vpop.permute.xlu0 %54
    %56 = vset.pattern.permute.xlu0 0
    %57 = vperm.xlu0 %56, %v49
    %v58 = vpop.permute.xlu0 %57
    %vm59 = vcmp.eq.s32.totalorder %v55, %v52
    %vm60 = vcmp.eq.s32.totalorder %v58, %v52
    %v61 = vsel %vm59, 1, 0
    %v62 = vsel %vm60, 1, 0
    %v63 = vcvt.s32.f32 %v61
    %v64 = vcvt.s32.f32 %v62
    %v65 = vpack.c.bf16 %v64, %v63
    %v66 = vld [vmem:[%s5] sm:$0xf]
    %v67 = vld [vmem:[%s5 + $0x4] sm:$0xf]
    %v68 = vld [vmem:[%s5 + $0x8] sm:$0xf]
    %v69 = vld [vmem:[%s5 + $0xc] sm:$0x1]
    %v70 = vld [vmem:[%s6] sm:$0xf]
    %v71 = vld [vmem:[%s6 + $0x4] sm:$0x3]
    %73 = vrot.lane.b32.xlu0 %v50, 127
    %v74 = vpop.permute.xlu0 %73
    %v77 = vunpack.c.l.b16 %v70
    %v78 = vunpack.c.l.b16 %v71
    %v79 = vpack.c.b16 %v78, %v77
    %vm80 = vcmask 97280
    %v82 = vsel %vm80, %v74, 0
    %vm84 = vcmask 1045504
    %v86 = vsel %vm84, %v79, 0
    %88 = vmatprep.subr.bf16.mxu0 0
    %89 = vmatpush1.bf16.msra.mxu0 %v86
    %90 = vmatprep.subr.bf16.mxu0 0
    %91 = vmatpush1.bf16.msra.mxu0 0
    %92 = vmatprep.subr.bf16.mxu0 0
    %93 = vmatpush1.bf16.msra.mxu0 0
    %94 = vmatprep.subr.bf16.mxu0 0
    %95 = vmatpush1.bf16.msra.mxu0 0
    %96 = vmatprep.subr.bf16.mxu0 0
    %97 = vmatpush1.bf16.msra.mxu0 0
    %98 = vmatprep.subr.bf16.mxu0 0
    %99 = vmatpush1.bf16.msra.mxu0 0
    %100 = vmatprep.subr.bf16.mxu0 0
    %101 = vmatpush1.bf16.msra.mxu0 0
    %102 = vmatprep.subr.bf16.mxu0 0
    %103 = vmatpush1.bf16.msra.mxu0 0
    %104 = vmatprep.subr.bf16.mxu0 0
    %105 = vmatpush1.bf16.msra.mxu0 0
    %106 = vmatprep.subr.bf16.mxu0 0
    %107 = vmatpush1.bf16.msra.mxu0 0
    %108 = vmatprep.subr.bf16.mxu0 0
    %109 = vmatpush1.bf16.msra.mxu0 0
    %110 = vmatprep.subr.bf16.mxu0 0
    %111 = vmatpush1.bf16.msra.mxu0 0
    %112 = vmatprep.subr.bf16.mxu0 0
    %113 = vmatpush1.bf16.msra.mxu0 0
    %114 = vmatprep.subr.bf16.mxu0 0
    %115 = vmatpush1.bf16.msra.mxu0 0
    %116 = vmatprep.subr.bf16.mxu0 0
    %117 = vmatpush1.bf16.msra.mxu0 0
    %118 = vmatprep.subr.bf16.mxu0 0
    %119 = vmatpush1.bf16.msra.mxu0 0
    %120 = vmatprep.mubr.bf16.mxu0 0
    %121 = vmatmul.mubr.bf16.gmra.mrb[0].mxu0 %v82
    %v122 = vpop.f32.mrb[0].mxu0
    %v123 = vadd.f32 0.0, %v122
    %v124 = vpop.f32.mrb[0].mxu0
    %v125 = vpop.f32.mrb[0].mxu0
    %v126 = vadd.f32 0.0, %v125
    %v127 = vpop.f32.mrb[0].mxu0
    %128 = vdwg.mxu0
    %v133 = vunpack.c.l.b16 %v66
    %v134 = vunpack.c.l.b16 %v67
    %v135 = vunpack.c.l.b16 %v68
    %v136 = vunpack.c.l.b16 %v69
    %v137 = vpack.c.b16 %v134, %v133
    %v138 = vpack.c.b16 %v136, %v135
    %vm140 = vcmask 211968
    %v142 = vsel %vm140, %v65, 0
    %vm144 = vcmask 1044480
    %v146 = vsel %vm144, %v138, 0
    %148 = vmatprep.subr.bf16.mxu0 0
    %149 = vmatpush1.bf16.msra.mxu0 %v137
    %150 = vmatprep.subr.bf16.mxu0 0
    %151 = vmatpush1.bf16.msra.mxu0 %v146
    %152 = vmatprep.subr.bf16.mxu0 0
    %153 = vmatpush1.bf16.msra.mxu0 0
    %154 = vmatprep.subr.bf16.mxu0 0
    %155 = vmatpush1.bf16.msra.mxu0 0
    %156 = vmatprep.subr.bf16.mxu0 0
    %157 = vmatpush1.bf16.msra.mxu0 0
    %158 = vmatprep.subr.bf16.mxu0 0
    %159 = vmatpush1.bf16.msra.mxu0 0
    %160 = vmatprep.subr.bf16.mxu0 0
    %161 = vmatpush1.bf16.msra.mxu0 0
    %162 = vmatprep.subr.bf16.mxu0 0
    %163 = vmatpush1.bf16.msra.mxu0 0
    %164 = vmatprep.subr.bf16.mxu0 0
    %165 = vmatpush1.bf16.msra.mxu0 0
    %166 = vmatprep.subr.bf16.mxu0 0
    %167 = vmatpush1.bf16.msra.mxu0 0
    %168 = vmatprep.subr.bf16.mxu0 0
    %169 = vmatpush1.bf16.msra.mxu0 0
    %170 = vmatprep.subr.bf16.mxu0 0
    %171 = vmatpush1.bf16.msra.mxu0 0
    %172 = vmatprep.subr.bf16.mxu0 0
    %173 = vmatpush1.bf16.msra.mxu0 0
    %174 = vmatprep.subr.bf16.mxu0 0
    %175 = vmatpush1.bf16.msra.mxu0 0
    %176 = vmatprep.subr.bf16.mxu0 0
    %177 = vmatpush1.bf16.msra.mxu0 0
    %178 = vmatprep.subr.bf16.mxu0 0
    %179 = vmatpush1.bf16.msra.mxu0 0
    %180 = vmatprep.mubr.bf16.mxu0 0
    %181 = vmatmul.mubr.bf16.gmra.mrb[0].mxu0 %v142
    %v182 = vpop.f32.mrb[0].mxu0
    %v183 = vadd.f32 %v123, %v182
    %v184 = vpop.f32.mrb[0].mxu0
    %v185 = vpop.f32.mrb[0].mxu0
    %v186 = vadd.f32 %v126, %v185
    %v187 = vpop.f32.mrb[0].mxu0
    %188 = vdwg.mxu0
    %v189 = vld [vmem:[%s1] sm:$0xff]
    %v190 = vld [vmem:[%s1 + $0x8] sm:$0xff]
    %v191 = vadd.f32 %v183, %v189
    %v192 = vadd.f32 %v186, %v190
    %vm193 = vcmask 261120
    %v194 = vsel %vm193, %v191, 0.0
    %195 = vadd.xlane.f32.xlu0 %v194
    %v196 = vpop.xlane.xlu0 %195
    %v197 = vsel %vm193, %v192, 0.0
    %198 = vadd.xlane.f32.xlu0 %v197
    %v199 = vpop.xlane.xlu0 %198
    %v200 = vmul.f32 %v191, %v191
    %v201 = vmul.f32 %v192, %v192
    %v202 = vsel %vm193, %v200, 0.0
    %203 = vadd.xlane.f32.xlu0 %v202
    %v204 = vpop.xlane.xlu0 %203
    %v205 = vsel %vm193, %v201, 0.0
    %206 = vadd.xlane.f32.xlu0 %v205
    %v207 = vpop.xlane.xlu0 %206
    %v208 = vmul.f32 %v196, 0.03125
    %v209 = vmul.f32 %v199, 0.03125
    %v210 = vmul.f32 %v204, 0.03125
    %v211 = vmul.f32 %v207, 0.03125
    %v212 = vmul.f32 %v208, %v208
    %v213 = vmul.f32 %v209, %v209
    %v214 = vsub.f32 %v210, %v212
    %v215 = vsub.f32 %v211, %v213
    %v216 = vsub.f32 %v191, %v208
    %v217 = vsub.f32 %v192, %v209
    %v218 = vadd.f32 %v214, 1e-06
    %v219 = vadd.f32 %v215, 1e-06
    %v220 = vrsqrt.pop %v218
    %v221 = vrsqrt.pop %v219
    %v222 = vmul.f32 %v216, %v220
    %v223 = vmul.f32 %v217, %v221
    %v224 = vlaneseq
    %v225 = vshrl.u32 %v224, 7
    %v226 = vsub.s32 0, %v225
    %v227 = vrot.slane %v43, %v226
    %v228 = vmul.f32 %v222, %v227
    %v229 = vmul.f32 %v223, %v227
    %v230 = vlaneseq
    %v231 = vshrl.u32 %v230, 7
    %v232 = vsub.s32 1, %v231
    %v233 = vrot.slane %v43, %v232
    %v234 = vadd.f32 %v228, %v233
    %v235 = vadd.f32 %v229, %v233
    %v236 = vld [vmem:[%s2] sm:$0xff]
    %v237 = vld [vmem:[%s2 + $0x8] sm:$0xff]
    %v238 = vpack.c.bf16 %v237, %v236
    %v239 = vld [vmem:[%s3] sm:$0xff]
    %v240 = vld [vmem:[%s3 + $0x8] sm:$0xff]
    %vm241 = vcmp.ne.f32.partialorder %v239, 0.0
    %vm242 = vcmp.ne.f32.partialorder %v240, 0.0
    %v243 = vsel %vm241, 1, 0
    %v244 = vsel %vm242, 1, 0
    %v245 = vcvt.s32.f32 %v243
    %v246 = vcvt.s32.f32 %v244
    %v247 = vsub.f32 1.0, %v245
    %v248 = vsub.f32 1.0, %v246
    %v249 = vmul.f32 %v247, -1e+09
    %v250 = vmul.f32 %v248, -1e+09
    %v251 = vld [vmem:[%s4] sm:$0xff]
    %v252 = vld [vmem:[%s4 + $0x8] sm:$0xff]
    %vm253 = vcmp.ne.f32.partialorder %v251, 0.0
    %vm254 = vcmp.ne.f32.partialorder %v252, 0.0
    %v255 = vsel %vm253, 1, 0
    %v256 = vsel %vm254, 1, 0
    %v257 = vcvt.s32.f32 %v255
    %v258 = vcvt.s32.f32 %v256
    %v259 = vsub.f32 1.0, %v257
    %v260 = vsub.f32 1.0, %v258
    %v261 = vmul.f32 %v259, -1e+09
    %v262 = vmul.f32 %v260, -1e+09
    %v263 = vpack.c.bf16 %v235, %v234
    %v264 = vld [vmem:[%s7] sm:$0xf]
    %v265 = vld [vmem:[%s7 + $0x4] sm:$0xf]
    %v266 = vld [vmem:[%s7 + $0x8] sm:$0xf]
    %v267 = vld [vmem:[%s7 + $0xc] sm:$0xf]
    %v272 = vunpack.c.l.b16 %v264
    %v273 = vunpack.c.l.b16 %v265
    %v274 = vunpack.c.l.b16 %v266
    %v275 = vunpack.c.l.b16 %v267
    %v276 = vpack.c.b16 %v273, %v272
    %v277 = vpack.c.b16 %v275, %v274
    %v281 = vsel %vm193, %v263, 0
    %283 = vmatprep.subr.bf16.mxu0 0
    %284 = vmatpush1.bf16.msra.mxu0 %v276
    %285 = vmatprep.subr.bf16.mxu0 0
    %286 = vmatpush1.bf16.msra.mxu0 %v277
    %287 = vmatprep.subr.bf16.mxu0 0
    %288 = vmatpush1.bf16.msra.mxu0 0
    %289 = vmatprep.subr.bf16.mxu0 0
    %290 = vmatpush1.bf16.msra.mxu0 0
    %291 = vmatprep.subr.bf16.mxu0 0
    %292 = vmatpush1.bf16.msra.mxu0 0
    %293 = vmatprep.subr.bf16.mxu0 0
    %294 = vmatpush1.bf16.msra.mxu0 0
    %295 = vmatprep.subr.bf16.mxu0 0
    %296 = vmatpush1.bf16.msra.mxu0 0
    %297 = vmatprep.subr.bf16.mxu0 0
    %298 = vmatpush1.bf16.msra.mxu0 0
    %299 = vmatprep.subr.bf16.mxu0 0
    %300 = vmatpush1.bf16.msra.mxu0 0
    %301 = vmatprep.subr.bf16.mxu0 0
    %302 = vmatpush1.bf16.msra.mxu0 0
    %303 = vmatprep.subr.bf16.mxu0 0
    %304 = vmatpush1.bf16.msra.mxu0 0
    %305 = vmatprep.subr.bf16.mxu0 0
    %306 = vmatpush1.bf16.msra.mxu0 0
    %307 = vmatprep.subr.bf16.mxu0 0
    %308 = vmatpush1.bf16.msra.mxu0 0
    %309 = vmatprep.subr.bf16.mxu0 0
    %310 = vmatpush1.bf16.msra.mxu0 0
    %311 = vmatprep.subr.bf16.mxu0 0
    %312 = vmatpush1.bf16.msra.mxu0 0
    %313 = vmatprep.subr.bf16.mxu0 0
    %314 = vmatpush1.bf16.msra.mxu0 0
    %315 = vmatprep.mubr.bf16.mxu0 0
    %316 = vmatmul.mubr.bf16.gmra.mrb[0].mxu0 %v281
    %v317 = vpop.f32.mrb[0].mxu0
    %v318 = vadd.f32 0.0, %v317
    %v319 = vpop.f32.mrb[0].mxu0
    %v320 = vpop.f32.mrb[0].mxu0
    %v321 = vadd.f32 0.0, %v320
    %v322 = vpop.f32.mrb[0].mxu0
    %323 = vdwg.mxu0
    %v324 = vpack.c.bf16 %v318, %v318
    %v325 = vpack.c.bf16 %v321, %v321
    %327 = vrot.lane.b32.xlu0 %v324, 96
    %v328 = vpop.permute.xlu0 %327
    %vm329 = vcmask 64512
    %v331 = vsel %vm329, %v324, 0
    %v334 = vsel %vm329, %v328, 0
    %336 = vmatprep.subr.bf16.mxu0 0
    %337 = vmatpush1.bf16.xpose.msra.mxu0 %v334
    %338 = vmatprep.subr.bf16.mxu0 0
    %339 = vmatpush1.bf16.xpose.msra.mxu0 0
    %340 = vmatprep.subr.bf16.mxu0 0
    %341 = vmatpush1.bf16.xpose.msra.mxu0 0
    %342 = vmatprep.subr.bf16.mxu0 0
    %343 = vmatpush1.bf16.xpose.msra.mxu0 0
    %344 = vmatprep.subr.bf16.mxu0 0
    %345 = vmatpush1.bf16.xpose.msra.mxu0 0
    %346 = vmatprep.subr.bf16.mxu0 0
    %347 = vmatpush1.bf16.xpose.msra.mxu0 0
    %348 = vmatprep.subr.bf16.mxu0 0
    %349 = vmatpush1.bf16.xpose.msra.mxu0 0
    %350 = vmatprep.subr.bf16.mxu0 0
    %351 = vmatpush1.bf16.xpose.msra.mxu0 0
    %352 = vmatprep.subr.bf16.mxu0 0
    %353 = vmatpush1.bf16.xpose.msra.mxu0 0
    %354 = vmatprep.subr.bf16.mxu0 0
    %355 = vmatpush1.bf16.xpose.msra.mxu0 0
    %356 = vmatprep.subr.bf16.mxu0 0
    %357 = vmatpush1.bf16.xpose.msra.mxu0 0
    %358 = vmatprep.subr.bf16.mxu0 0
    %359 = vmatpush1.bf16.xpose.msra.mxu0 0
    %360 = vmatprep.subr.bf16.mxu0 0
    %361 = vmatpush1.bf16.xpose.msra.mxu0 0
    %362 = vmatprep.subr.bf16.mxu0 0
    %363 = vmatpush1.bf16.xpose.msra.mxu0 0
    %364 = vmatprep.subr.bf16.mxu0 0
    %365 = vmatpush1.bf16.xpose.msra.mxu0 0
    %366 = vmatprep.subr.bf16.mxu0 0
    %367 = vmatpush1.bf16.xpose.msra.mxu0 0
    %368 = vmatprep.mubr.bf16.mxu0 0
    %369 = vmatmul.mubr.bf16.gmra.mrb[0].mxu0 %v331
    %v370 = vpop.f32.mrb[0].mxu0
    %v371 = vadd.f32 0.0, %v370
    %v372 = vpop.f32.mrb[0].mxu0
    %v373 = vpop.f32.mrb[0].mxu0
    %v374 = vpop.f32.mrb[0].mxu0
    %375 = vdwg.mxu0
    %377 = vrot.lane.b32.xlu0 %v325, 96
    %v378 = vpop.permute.xlu0 %377
    %v380 = vsel %vm329, %v325, 0
    %v383 = vsel %vm329, %v378, 0
    %385 = vmatprep.subr.bf16.mxu0 0
    %386 = vmatpush1.bf16.xpose.msra.mxu0 %v383
    %387 = vmatprep.subr.bf16.mxu0 0
    %388 = vmatpush1.bf16.xpose.msra.mxu0 0
    %389 = vmatprep.subr.bf16.mxu0 0
    %390 = vmatpush1.bf16.xpose.msra.mxu0 0
    %391 = vmatprep.subr.bf16.mxu0 0
    %392 = vmatpush1.bf16.xpose.msra.mxu0 0
    %393 = vmatprep.subr.bf16.mxu0 0
    %394 = vmatpush1.bf16.xpose.msra.mxu0 0
    %395 = vmatprep.subr.bf16.mxu0 0
    %396 = vmatpush1.bf16.xpose.msra.mxu0 0
    %397 = vmatprep.subr.bf16.mxu0 0
    %398 = vmatpush1.bf16.xpose.msra.mxu0 0
    %399 = vmatprep.subr.bf16.mxu0 0
    %400 = vmatpush1.bf16.xpose.msra.mxu0 0
    %401 = vmatprep.subr.bf16.mxu0 0
    %402 = vmatpush1.bf16.xpose.msra.mxu0 0
    %403 = vmatprep.subr.bf16.mxu0 0
    %404 = vmatpush1.bf16.xpose.msra.mxu0 0
    %405 = vmatprep.subr.bf16.mxu0 0
    %406 = vmatpush1.bf16.xpose.msra.mxu0 0
    %407 = vmatprep.subr.bf16.mxu0 0
    %408 = vmatpush1.bf16.xpose.msra.mxu0 0
    %409 = vmatprep.subr.bf16.mxu0 0
    %410 = vmatpush1.bf16.xpose.msra.mxu0 0
    %411 = vmatprep.subr.bf16.mxu0 0
    %412 = vmatpush1.bf16.xpose.msra.mxu0 0
    %413 = vmatprep.subr.bf16.mxu0 0
    %414 = vmatpush1.bf16.xpose.msra.mxu0 0
    %415 = vmatprep.subr.bf16.mxu0 0
    %416 = vmatpush1.bf16.xpose.msra.mxu0 0
    %417 = vmatprep.mubr.bf16.mxu0 0
    %418 = vmatmul.mubr.bf16.gmra.mrb[0].mxu0 %v380
    %v419 = vpop.f32.mrb[0].mxu0
    %v420 = vadd.f32 0.0, %v419
    %v421 = vpop.f32.mrb[0].mxu0
    %v422 = vpop.f32.mrb[0].mxu0
    %v423 = vpop.f32.mrb[0].mxu0
    %424 = vdwg.mxu0
    %v425 = vmul.f32 %v371, 0.35355338
    %v426 = vmul.f32 %v420, 0.35355338
    %v427 = vmul.f32 %v425, %v245
    %v428 = vmul.f32 %v426, %v246
    %v429 = vadd.f32 %v427, %v249
    %v430 = vadd.f32 %v428, %v250
    %v431 = vsel %vm329, %v429, -inf
    %432 = vmax.xlane.f32.xlu0 %v431
    %v433 = vpop.xlane.xlu0 %432
    %v434 = vsel %vm329, %v430, -inf
    %435 = vmax.xlane.f32.xlu0 %v434
    %v436 = vpop.xlane.xlu0 %435
    %v437 = vsub.f32 %v429, %v433
    %v438 = vsub.f32 %v430, %v436
    %v439 = vmul.f32 %v437, 1.442695
    %v440 = vpow.pop %v439
    %v441 = vmul.f32 %v438, 1.442695
    %v442 = vpow.pop %v441
    %v443 = vsel %vm329, %v440, 0.0
    %444 = vadd.xlane.f32.xlu0 %v443
    %v445 = vpop.xlane.xlu0 %444
    %v446 = vsel %vm329, %v442, 0.0
    %447 = vadd.xlane.f32.xlu0 %v446
    %v448 = vpop.xlane.xlu0 %447
    %v449 = vrcp.pop %v445
    %v450 = vrcp.pop %v448
    %v451 = vmul.f32 %v440, %v449
    %v452 = vmul.f32 %v442, %v450
    %v453 = vpack.c.bf16 %v451, %v451
    %v454 = vpack.c.bf16 %v452, %v452
    %455 = vrot.lane.b32.xlu0 %v324, 64
    %v456 = vpop.permute.xlu0 %455
    %v458 = vsel %vm329, %v453, 0
    %vm460 = vcmask 1043456
    %v462 = vsel %vm460, %v456, 0
    %464 = vmatprep.subr.bf16.mxu0 0
    %465 = vmatpush1.bf16.msra.mxu0 %v462
    %466 = vmatprep.subr.bf16.mxu0 0
    %467 = vmatpush1.bf16.msra.mxu0 0
    %468 = vmatprep.subr.bf16.mxu0 0
    %469 = vmatpush1.bf16.msra.mxu0 0
    %470 = vmatprep.subr.bf16.mxu0 0
    %471 = vmatpush1.bf16.msra.mxu0 0
    %472 = vmatprep.subr.bf16.mxu0 0
    %473 = vmatpush1.bf16.msra.mxu0 0
    %474 = vmatprep.subr.bf16.mxu0 0
    %475 = vmatpush1.bf16.msra.mxu0 0
    %476 = vmatprep.subr.bf16.mxu0 0
    %477 = vmatpush1.bf16.msra.mxu0 0
    %478 = vmatprep.subr.bf16.mxu0 0
    %479 = vmatpush1.bf16.msra.mxu0 0
    %480 = vmatprep.subr.bf16.mxu0 0
    %481 = vmatpush1.bf16.msra.mxu0 0
    %482 = vmatprep.subr.bf16.mxu0 0
    %483 = vmatpush1.bf16.msra.mxu0 0
    %484 = vmatprep.subr.bf16.mxu0 0
    %485 = vmatpush1.bf16.msra.mxu0 0
    %486 = vmatprep.subr.bf16.mxu0 0
    %487 = vmatpush1.bf16.msra.mxu0 0
    %488 = vmatprep.subr.bf16.mxu0 0
    %489 = vmatpush1.bf16.msra.mxu0 0
    %490 = vmatprep.subr.bf16.mxu0 0
    %491 = vmatpush1.bf16.msra.mxu0 0
    %492 = vmatprep.subr.bf16.mxu0 0
    %493 = vmatpush1.bf16.msra.mxu0 0
    %494 = vmatprep.subr.bf16.mxu0 0
    %495 = vmatpush1.bf16.msra.mxu0 0
    %496 = vmatprep.mubr.bf16.mxu0 0
    %497 = vmatmul.mubr.bf16.gmra.mrb[0].mxu0 %v458
    %v498 = vpop.f32.mrb[0].mxu0
    %v499 = vadd.f32 0.0, %v498
    %v500 = vpop.f32.mrb[0].mxu0
    %v501 = vpop.f32.mrb[0].mxu0
    %v502 = vpop.f32.mrb[0].mxu0
    %503 = vdwg.mxu0
    %504 = vrot.lane.b32.xlu0 %v325, 64
    %v505 = vpop.permute.xlu0 %504
    %v507 = vsel %vm329, %v454, 0
    %v510 = vsel %vm460, %v505, 0
    %512 = vmatprep.subr.bf16.mxu0 0
    %513 = vmatpush1.bf16.msra.mxu0 %v510
    %514 = vmatprep.subr.bf16.mxu0 0
    %515 = vmatpush1.bf16.msra.mxu0 0
    %516 = vmatprep.subr.bf16.mxu0 0
    %517 = vmatpush1.bf16.msra.mxu0 0
    %518 = vmatprep.subr.bf16.mxu0 0
    %519 = vmatpush1.bf16.msra.mxu0 0
    %520 = vmatprep.subr.bf16.mxu0 0
    %521 = vmatpush1.bf16.msra.mxu0 0
    %522 = vmatprep.subr.bf16.mxu0 0
    %523 = vmatpush1.bf16.msra.mxu0 0
    %524 = vmatprep.subr.bf16.mxu0 0
    %525 = vmatpush1.bf16.msra.mxu0 0
    %526 = vmatprep.subr.bf16.mxu0 0
    %527 = vmatpush1.bf16.msra.mxu0 0
    %528 = vmatprep.subr.bf16.mxu0 0
    %529 = vmatpush1.bf16.msra.mxu0 0
    %530 = vmatprep.subr.bf16.mxu0 0
    %531 = vmatpush1.bf16.msra.mxu0 0
    %532 = vmatprep.subr.bf16.mxu0 0
    %533 = vmatpush1.bf16.msra.mxu0 0
    %534 = vmatprep.subr.bf16.mxu0 0
    %535 = vmatpush1.bf16.msra.mxu0 0
    %536 = vmatprep.subr.bf16.mxu0 0
    %537 = vmatpush1.bf16.msra.mxu0 0
    %538 = vmatprep.subr.bf16.mxu0 0
    %539 = vmatpush1.bf16.msra.mxu0 0
    %540 = vmatprep.subr.bf16.mxu0 0
    %541 = vmatpush1.bf16.msra.mxu0 0
    %542 = vmatprep.subr.bf16.mxu0 0
    %543 = vmatpush1.bf16.msra.mxu0 0
    %544 = vmatprep.mubr.bf16.mxu0 0
    %545 = vmatmul.mubr.bf16.gmra.mrb[0].mxu0 %v507
    %v546 = vpop.f32.mrb[0].mxu0
    %v547 = vadd.f32 0.0, %v546
    %v548 = vpop.f32.mrb[0].mxu0
    %v549 = vpop.f32.mrb[0].mxu0
    %v550 = vpop.f32.mrb[0].mxu0
    %551 = vdwg.mxu0
    %552 = vrot.lane.b32.xlu0 %v324, 120
    %v553 = vpop.permute.xlu0 %552
    %554 = vrot.lane.b32.xlu0 %v324, 88
    %v555 = vpop.permute.xlu0 %554
    %v557 = vsel %vm329, %v553, 0
    %v560 = vsel %vm329, %v555, 0
    %562 = vmatprep.subr.bf16.mxu0 0
    %563 = vmatpush1.bf16.xpose.msra.mxu0 %v560
    %564 = vmatprep.subr.bf16.mxu0 0
    %565 = vmatpush1.bf16.xpose.msra.mxu0 0
    %566 = vmatprep.subr.bf16.mxu0 0
    %567 = vmatpush1.bf16.xpose.msra.mxu0 0
    %568 = vmatprep.subr.bf16.mxu0 0
    %569 = vmatpush1.bf16.xpose.msra.mxu0 0
    %570 = vmatprep.subr.bf16.mxu0 0
    %571 = vmatpush1.bf16.xpose.msra.mxu0 0
    %572 = vmatprep.subr.bf16.mxu0 0
    %573 = vmatpush1.bf16.xpose.msra.mxu0 0
    %574 = vmatprep.subr.bf16.mxu0 0
    %575 = vmatpush1.bf16.xpose.msra.mxu0 0
    %576 = vmatprep.subr.bf16.mxu0 0
    %577 = vmatpush1.bf16.xpose.msra.mxu0 0
    %578 = vmatprep.subr.bf16.mxu0 0
    %579 = vmatpush1.bf16.xpose.msra.mxu0 0
    %580 = vmatprep.subr.bf16.mxu0 0
    %581 = vmatpush1.bf16.xpose.msra.mxu0 0
    %582 = vmatprep.subr.bf16.mxu0 0
    %583 = vmatpush1.bf16.xpose.msra.mxu0 0
    %584 = vmatprep.subr.bf16.mxu0 0
    %585 = vmatpush1.bf16.xpose.msra.mxu0 0
    %586 = vmatprep.subr.bf16.mxu0 0
    %587 = vmatpush1.bf16.xpose.msra.mxu0 0
    %588 = vmatprep.subr.bf16.mxu0 0
    %589 = vmatpush1.bf16.xpose.msra.mxu0 0
    %590 = vmatprep.subr.bf16.mxu0 0
    %591 = vmatpush1.bf16.xpose.msra.mxu0 0
    %592 = vmatprep.subr.bf16.mxu0 0
    %593 = vmatpush1.bf16.xpose.msra.mxu0 0
    %594 = vmatprep.mubr.bf16.mxu0 0
    %595 = vmatmul.mubr.bf16.gmra.mrb[0].mxu0 %v557
    %v596 = vpop.f32.mrb[0].mxu0
    %v597 = vadd.f32 0.0, %v596
    %v598 = vpop.f32.mrb[0].mxu0
    %v599 = vpop.f32.mrb[0].mxu0
    %v600 = vpop.f32.mrb[0].mxu0
    %601 = vdwg.mxu0
    %602 = vrot.lane.b32.xlu0 %v325, 120
    %v603 = vpop.permute.xlu0 %602
    %604 = vrot.lane.b32.xlu0 %v325, 88
    %v605 = vpop.permute.xlu0 %604
    %v607 = vsel %vm329, %v603, 0
    %v610 = vsel %vm329, %v605, 0
    %612 = vmatprep.subr.bf16.mxu0 0
    %613 = vmatpush1.bf16.xpose.msra.mxu0 %v610
    %614 = vmatprep.subr.bf16.mxu0 0
    %615 = vmatpush1.bf16.xpose.msra.mxu0 0
    %616 = vmatprep.subr.bf16.mxu0 0
    %617 = vmatpush1.bf16.xpose.msra.mxu0 0
    %618 = vmatprep.subr.bf16.mxu0 0
    %619 = vmatpush1.bf16.xpose.msra.mxu0 0
    %620 = vmatprep.subr.bf16.mxu0 0
    %621 = vmatpush1.bf16.xpose.msra.mxu0 0
    %622 = vmatprep.subr.bf16.mxu0 0
    %623 = vmatpush1.bf16.xpose.msra.mxu0 0
    %624 = vmatprep.subr.bf16.mxu0 0
    %625 = vmatpush1.bf16.xpose.msra.mxu0 0
    %626 = vmatprep.subr.bf16.mxu0 0
    %627 = vmatpush1.bf16.xpose.msra.mxu0 0
    %628 = vmatprep.subr.bf16.mxu0 0
    %629 = vmatpush1.bf16.xpose.msra.mxu0 0
    %630 = vmatprep.subr.bf16.mxu0 0
    %631 = vmatpush1.bf16.xpose.msra.mxu0 0
    %632 = vmatprep.subr.bf16.mxu0 0
    %633 = vmatpush1.bf16.xpose.msra.mxu0 0
    %634 = vmatprep.subr.bf16.mxu0 0
    %635 = vmatpush1.bf16.xpose.msra.mxu0 0
    %636 = vmatprep.subr.bf16.mxu0 0
    %637 = vmatpush1.bf16.xpose.msra.mxu0 0
    %638 = vmatprep.subr.bf16.mxu0 0
    %639 = vmatpush1.bf16.xpose.msra.mxu0 0
    %640 = vmatprep.subr.bf16.mxu0 0
    %641 = vmatpush1.bf16.xpose.msra.mxu0 0
    %642 = vmatprep.subr.bf16.mxu0 0
    %643 = vmatpush1.bf16.xpose.msra.mxu0 0
    %644 = vmatprep.mubr.bf16.mxu0 0
    %645 = vmatmul.mubr.bf16.gmra.mrb[0].mxu0 %v607
    %v646 = vpop.f32.mrb[0].mxu0
    %v647 = vadd.f32 0.0, %v646
    %v648 = vpop.f32.mrb[0].mxu0
    %v649 = vpop.f32.mrb[0].mxu0
    %v650 = vpop.f32.mrb[0].mxu0
    %651 = vdwg.mxu0
    %v652 = vmul.f32 %v597, 0.35355338
    %v653 = vmul.f32 %v647, 0.35355338
    %v654 = vmul.f32 %v652, %v245
    %v655 = vmul.f32 %v653, %v246
    %v656 = vadd.f32 %v654, %v249
    %v657 = vadd.f32 %v655, %v250
    %v658 = vsel %vm329, %v656, -inf
    %659 = vmax.xlane.f32.xlu0 %v658
    %v660 = vpop.xlane.xlu0 %659
    %v661 = vsel %vm329, %v657, -inf
    %662 = vmax.xlane.f32.xlu0 %v661
    %v663 = vpop.xlane.xlu0 %662
    %v664 = vsub.f32 %v656, %v660
    %v665 = vsub.f32 %v657, %v663
    %v666 = vmul.f32 %v664, 1.442695
    %v667 = vpow.pop %v666
    %v668 = vmul.f32 %v665, 1.442695
    %v669 = vpow.pop %v668
    %v670 = vsel %vm329, %v667, 0.0
    %671 = vadd.xlane.f32.xlu0 %v670
    %v672 = vpop.xlane.xlu0 %671
    %v673 = vsel %vm329, %v669, 0.0
    %674 = vadd.xlane.f32.xlu0 %v673
    %v675 = vpop.xlane.xlu0 %674
    %v676 = vrcp.pop %v672
    %v677 = vrcp.pop %v675
    %v678 = vmul.f32 %v667, %v676
    %v679 = vmul.f32 %v669, %v677
    %v680 = vpack.c.bf16 %v678, %v678
    %v681 = vpack.c.bf16 %v679, %v679
    %682 = vrot.lane.b32.xlu0 %v324, 56
    %v683 = vpop.permute.xlu0 %682
    %v685 = vsel %vm329, %v680, 0
    %v688 = vsel %vm460, %v683, 0
    %690 = vmatprep.subr.bf16.mxu0 0
    %691 = vmatpush1.bf16.msra.mxu0 %v688
    %692 = vmatprep.subr.bf16.mxu0 0
    %693 = vmatpush1.bf16.msra.mxu0 0
    %694 = vmatprep.subr.bf16.mxu0 0
    %695 = vmatpush1.bf16.msra.mxu0 0
    %696 = vmatprep.subr.bf16.mxu0 0
    %697 = vmatpush1.bf16.msra.mxu0 0
    %698 = vmatprep.subr.bf16.mxu0 0
    %699 = vmatpush1.bf16.msra.mxu0 0
    %700 = vmatprep.subr.bf16.mxu0 0
    %701 = vmatpush1.bf16.msra.mxu0 0
    %702 = vmatprep.subr.bf16.mxu0 0
    %703 = vmatpush1.bf16.msra.mxu0 0
    %704 = vmatprep.subr.bf16.mxu0 0
    %705 = vmatpush1.bf16.msra.mxu0 0
    %706 = vmatprep.subr.bf16.mxu0 0
    %707 = vmatpush1.bf16.msra.mxu0 0
    %708 = vmatprep.subr.bf16.mxu0 0
    %709 = vmatpush1.bf16.msra.mxu0 0
    %710 = vmatprep.subr.bf16.mxu0 0
    %711 = vmatpush1.bf16.msra.mxu0 0
    %712 = vmatprep.subr.bf16.mxu0 0
    %713 = vmatpush1.bf16.msra.mxu0 0
    %714 = vmatprep.subr.bf16.mxu0 0
    %715 = vmatpush1.bf16.msra.mxu0 0
    %716 = vmatprep.subr.bf16.mxu0 0
    %717 = vmatpush1.bf16.msra.mxu0 0
    %718 = vmatprep.subr.bf16.mxu0 0
    %719 = vmatpush1.bf16.msra.mxu0 0
    %720 = vmatprep.subr.bf16.mxu0 0
    %721 = vmatpush1.bf16.msra.mxu0 0
    %722 = vmatprep.mubr.bf16.mxu0 0
    %723 = vmatmul.mubr.bf16.gmra.mrb[0].mxu0 %v685
    %v724 = vpop.f32.mrb[0].mxu0
    %v725 = vadd.f32 0.0, %v724
    %v726 = vpop.f32.mrb[0].mxu0
    %v727 = vpop.f32.mrb[0].mxu0
    %v728 = vpop.f32.mrb[0].mxu0
    %729 = vdwg.mxu0
    %730 = vrot.lane.b32.xlu0 %v325, 56
    %v731 = vpop.permute.xlu0 %730
    %v733 = vsel %vm329, %v681, 0
    %v736 = vsel %vm460, %v731, 0
    %738 = vmatprep.subr.bf16.mxu0 0
    %739 = vmatpush1.bf16.msra.mxu0 %v736
    %740 = vmatprep.subr.bf16.mxu0 0
    %741 = vmatpush1.bf16.msra.mxu0 0
    %742 = vmatprep.subr.bf16.mxu0 0
    %743 = vmatpush1.bf16.msra.mxu0 0
    %744 = vmatprep.subr.bf16.mxu0 0
    %745 = vmatpush1.bf16.msra.mxu0 0
    %746 = vmatprep.subr.bf16.mxu0 0
    %747 = vmatpush1.bf16.msra.mxu0 0
    %748 = vmatprep.subr.bf16.mxu0 0
    %749 = vmatpush1.bf16.msra.mxu0 0
    %750 = vmatprep.subr.bf16.mxu0 0
    %751 = vmatpush1.bf16.msra.mxu0 0
    %752 = vmatprep.subr.bf16.mxu0 0
    %753 = vmatpush1.bf16.msra.mxu0 0
    %754 = vmatprep.subr.bf16.mxu0 0
    %755 = vmatpush1.bf16.msra.mxu0 0
    %756 = vmatprep.subr.bf16.mxu0 0
    %757 = vmatpush1.bf16.msra.mxu0 0
    %758 = vmatprep.subr.bf16.mxu0 0
    %759 = vmatpush1.bf16.msra.mxu0 0
    %760 = vmatprep.subr.bf16.mxu0 0
    %761 = vmatpush1.bf16.msra.mxu0 0
    %762 = vmatprep.subr.bf16.mxu0 0
    %763 = vmatpush1.bf16.msra.mxu0 0
    %764 = vmatprep.subr.bf16.mxu0 0
    %765 = vmatpush1.bf16.msra.mxu0 0
    %766 = vmatprep.subr.bf16.mxu0 0
    %767 = vmatpush1.bf16.msra.mxu0 0
    %768 = vmatprep.subr.bf16.mxu0 0
    %769 = vmatpush1.bf16.msra.mxu0 0
    %770 = vmatprep.mubr.bf16.mxu0 0
    %771 = vmatmul.mubr.bf16.gmra.mrb[0].mxu0 %v733
    %v772 = vpop.f32.mrb[0].mxu0
    %v773 = vadd.f32 0.0, %v772
    %v774 = vpop.f32.mrb[0].mxu0
    %v775 = vpop.f32.mrb[0].mxu0
    %v776 = vpop.f32.mrb[0].mxu0
    %777 = vdwg.mxu0
    %778 = vrot.lane.b32.xlu0 %v324, 112
    %v779 = vpop.permute.xlu0 %778
    %780 = vrot.lane.b32.xlu0 %v324, 80
    %v781 = vpop.permute.xlu0 %780
    %v783 = vsel %vm329, %v779, 0
    %v786 = vsel %vm329, %v781, 0
    %788 = vmatprep.subr.bf16.mxu0 0
    %789 = vmatpush1.bf16.xpose.msra.mxu0 %v786
    %790 = vmatprep.subr.bf16.mxu0 0
    %791 = vmatpush1.bf16.xpose.msra.mxu0 0
    %792 = vmatprep.subr.bf16.mxu0 0
    %793 = vmatpush1.bf16.xpose.msra.mxu0 0
    %794 = vmatprep.subr.bf16.mxu0 0
    %795 = vmatpush1.bf16.xpose.msra.mxu0 0
    %796 = vmatprep.subr.bf16.mxu0 0
    %797 = vmatpush1.bf16.xpose.msra.mxu0 0
    %798 = vmatprep.subr.bf16.mxu0 0
    %799 = vmatpush1.bf16.xpose.msra.mxu0 0
    %800 = vmatprep.subr.bf16.mxu0 0
    %801 = vmatpush1.bf16.xpose.msra.mxu0 0
    %802 = vmatprep.subr.bf16.mxu0 0
    %803 = vmatpush1.bf16.xpose.msra.mxu0 0
    %804 = vmatprep.subr.bf16.mxu0 0
    %805 = vmatpush1.bf16.xpose.msra.mxu0 0
    %806 = vmatprep.subr.bf16.mxu0 0
    %807 = vmatpush1.bf16.xpose.msra.mxu0 0
    %808 = vmatprep.subr.bf16.mxu0 0
    %809 = vmatpush1.bf16.xpose.msra.mxu0 0
    %810 = vmatprep.subr.bf16.mxu0 0
    %811 = vmatpush1.bf16.xpose.msra.mxu0 0
    %812 = vmatprep.subr.bf16.mxu0 0
    %813 = vmatpush1.bf16.xpose.msra.mxu0 0
    %814 = vmatprep.subr.bf16.mxu0 0
    %815 = vmatpush1.bf16.xpose.msra.mxu0 0
    %816 = vmatprep.subr.bf16.mxu0 0
    %817 = vmatpush1.bf16.xpose.msra.mxu0 0
    %818 = vmatprep.subr.bf16.mxu0 0
    %819 = vmatpush1.bf16.xpose.msra.mxu0 0
    %820 = vmatprep.mubr.bf16.mxu0 0
    %821 = vmatmul.mubr.bf16.gmra.mrb[0].mxu0 %v783
    %v822 = vpop.f32.mrb[0].mxu0
    %v823 = vadd.f32 0.0, %v822
    %v824 = vpop.f32.mrb[0].mxu0
    %v825 = vpop.f32.mrb[0].mxu0
    %v826 = vpop.f32.mrb[0].mxu0
    %827 = vdwg.mxu0
    %828 = vrot.lane.b32.xlu0 %v325, 112
    %v829 = vpop.permute.xlu0 %828
    %830 = vrot.lane.b32.xlu0 %v325, 80
    %v831 = vpop.permute.xlu0 %830
    %v833 = vsel %vm329, %v829, 0
    %v836 = vsel %vm329, %v831, 0
    %838 = vmatprep.subr.bf16.mxu0 0
    %839 = vmatpush1.bf16.xpose.msra.mxu0 %v836
    %840 = vmatprep.subr.bf16.mxu0 0
    %841 = vmatpush1.bf16.xpose.msra.mxu0 0
    %842 = vmatprep.subr.bf16.mxu0 0
    %843 = vmatpush1.bf16.xpose.msra.mxu0 0
    %844 = vmatprep.subr.bf16.mxu0 0
    %845 = vmatpush1.bf16.xpose.msra.mxu0 0
    %846 = vmatprep.subr.bf16.mxu0 0
    %847 = vmatpush1.bf16.xpose.msra.mxu0 0
    %848 = vmatprep.subr.bf16.mxu0 0
    %849 = vmatpush1.bf16.xpose.msra.mxu0 0
    %850 = vmatprep.subr.bf16.mxu0 0
    %851 = vmatpush1.bf16.xpose.msra.mxu0 0
    %852 = vmatprep.subr.bf16.mxu0 0
    %853 = vmatpush1.bf16.xpose.msra.mxu0 0
    %854 = vmatprep.subr.bf16.mxu0 0
    %855 = vmatpush1.bf16.xpose.msra.mxu0 0
    %856 = vmatprep.subr.bf16.mxu0 0
    %857 = vmatpush1.bf16.xpose.msra.mxu0 0
    %858 = vmatprep.subr.bf16.mxu0 0
    %859 = vmatpush1.bf16.xpose.msra.mxu0 0
    %860 = vmatprep.subr.bf16.mxu0 0
    %861 = vmatpush1.bf16.xpose.msra.mxu0 0
    %862 = vmatprep.subr.bf16.mxu0 0
    %863 = vmatpush1.bf16.xpose.msra.mxu0 0
    %864 = vmatprep.subr.bf16.mxu0 0
    %865 = vmatpush1.bf16.xpose.msra.mxu0 0
    %866 = vmatprep.subr.bf16.mxu0 0
    %867 = vmatpush1.bf16.xpose.msra.mxu0 0
    %868 = vmatprep.subr.bf16.mxu0 0
    %869 = vmatpush1.bf16.xpose.msra.mxu0 0
    %870 = vmatprep.mubr.bf16.mxu0 0
    %871 = vmatmul.mubr.bf16.gmra.mrb[0].mxu0 %v833
    %v872 = vpop.f32.mrb[0].mxu0
    %v873 = vadd.f32 0.0, %v872
    %v874 = vpop.f32.mrb[0].mxu0
    %v875 = vpop.f32.mrb[0].mxu0
    %v876 = vpop.f32.mrb[0].mxu0
    %877 = vdwg.mxu0
    %v878 = vmul.f32 %v823, 0.35355338
    %v879 = vmul.f32 %v873, 0.35355338
    %v880 = vmul.f32 %v878, %v245
    %v881 = vmul.f32 %v879, %v246
    %v882 = vadd.f32 %v880, %v249
    %v883 = vadd.f32 %v881, %v250
    %v884 = vsel %vm329, %v882, -inf
    %885 = vmax.xlane.f32.xlu0 %v884
    %v886 = vpop.xlane.xlu0 %885
    %v887 = vsel %vm329, %v883, -inf
    %888 = vmax.xlane.f32.xlu0 %v887
    %v889 = vpop.xlane.xlu0 %888
    %v890 = vsub.f32 %v882, %v886
    %v891 = vsub.f32 %v883, %v889
    %v892 = vmul.f32 %v890, 1.442695
    %v893 = vpow.pop %v892
    %v894 = vmul.f32 %v891, 1.442695
    %v895 = vpow.pop %v894
    %v896 = vsel %vm329, %v893, 0.0
    %897 = vadd.xlane.f32.xlu0 %v896
    %v898 = vpop.xlane.xlu0 %897
    %v899 = vsel %vm329, %v895, 0.0
    %900 = vadd.xlane.f32.xlu0 %v899
    %v901 = vpop.xlane.xlu0 %900
    %v902 = vrcp.pop %v898
    %v903 = vrcp.pop %v901
    %v904 = vmul.f32 %v893, %v902
    %v905 = vmul.f32 %v895, %v903
    %v906 = vpack.c.bf16 %v904, %v904
    %v907 = vpack.c.bf16 %v905, %v905
    %908 = vrot.lane.b32.xlu0 %v324, 48
    %v909 = vpop.permute.xlu0 %908
    %v911 = vsel %vm329, %v906, 0
    %v914 = vsel %vm460, %v909, 0
    %916 = vmatprep.subr.bf16.mxu0 0
    %917 = vmatpush1.bf16.msra.mxu0 %v914
    %918 = vmatprep.subr.bf16.mxu0 0
    %919 = vmatpush1.bf16.msra.mxu0 0
    %920 = vmatprep.subr.bf16.mxu0 0
    %921 = vmatpush1.bf16.msra.mxu0 0
    %922 = vmatprep.subr.bf16.mxu0 0
    %923 = vmatpush1.bf16.msra.mxu0 0
    %924 = vmatprep.subr.bf16.mxu0 0
    %925 = vmatpush1.bf16.msra.mxu0 0
    %926 = vmatprep.subr.bf16.mxu0 0
    %927 = vmatpush1.bf16.msra.mxu0 0
    %928 = vmatprep.subr.bf16.mxu0 0
    %929 = vmatpush1.bf16.msra.mxu0 0
    %930 = vmatprep.subr.bf16.mxu0 0
    %931 = vmatpush1.bf16.msra.mxu0 0
    %932 = vmatprep.subr.bf16.mxu0 0
    %933 = vmatpush1.bf16.msra.mxu0 0
    %934 = vmatprep.subr.bf16.mxu0 0
    %935 = vmatpush1.bf16.msra.mxu0 0
    %936 = vmatprep.subr.bf16.mxu0 0
    %937 = vmatpush1.bf16.msra.mxu0 0
    %938 = vmatprep.subr.bf16.mxu0 0
    %939 = vmatpush1.bf16.msra.mxu0 0
    %940 = vmatprep.subr.bf16.mxu0 0
    %941 = vmatpush1.bf16.msra.mxu0 0
    %942 = vmatprep.subr.bf16.mxu0 0
    %943 = vmatpush1.bf16.msra.mxu0 0
    %944 = vmatprep.subr.bf16.mxu0 0
    %945 = vmatpush1.bf16.msra.mxu0 0
    %946 = vmatprep.subr.bf16.mxu0 0
    %947 = vmatpush1.bf16.msra.mxu0 0
    %948 = vmatprep.mubr.bf16.mxu0 0
    %949 = vmatmul.mubr.bf16.gmra.mrb[0].mxu0 %v911
    %v950 = vpop.f32.mrb[0].mxu0
    %v951 = vadd.f32 0.0, %v950
    %v952 = vpop.f32.mrb[0].mxu0
    %v953 = vpop.f32.mrb[0].mxu0
    %v954 = vpop.f32.mrb[0].mxu0
    %955 = vdwg.mxu0
    %956 = vrot.lane.b32.xlu0 %v325, 48
    %v957 = vpop.permute.xlu0 %956
    %v959 = vsel %vm329, %v907, 0
    %v962 = vsel %vm460, %v957, 0
    %964 = vmatprep.subr.bf16.mxu0 0
    %965 = vmatpush1.bf16.msra.mxu0 %v962
    %966 = vmatprep.subr.bf16.mxu0 0
    %967 = vmatpush1.bf16.msra.mxu0 0
    %968 = vmatprep.subr.bf16.mxu0 0
    %969 = vmatpush1.bf16.msra.mxu0 0
    %970 = vmatprep.subr.bf16.mxu0 0
    %971 = vmatpush1.bf16.msra.mxu0 0
    %972 = vmatprep.subr.bf16.mxu0 0
    %973 = vmatpush1.bf16.msra.mxu0 0
    %974 = vmatprep.subr.bf16.mxu0 0
    %975 = vmatpush1.bf16.msra.mxu0 0
    %976 = vmatprep.subr.bf16.mxu0 0
    %977 = vmatpush1.bf16.msra.mxu0 0
    %978 = vmatprep.subr.bf16.mxu0 0
    %979 = vmatpush1.bf16.msra.mxu0 0
    %980 = vmatprep.subr.bf16.mxu0 0
    %981 = vmatpush1.bf16.msra.mxu0 0
    %982 = vmatprep.subr.bf16.mxu0 0
    %983 = vmatpush1.bf16.msra.mxu0 0
    %984 = vmatprep.subr.bf16.mxu0 0
    %985 = vmatpush1.bf16.msra.mxu0 0
    %986 = vmatprep.subr.bf16.mxu0 0
    %987 = vmatpush1.bf16.msra.mxu0 0
    %988 = vmatprep.subr.bf16.mxu0 0
    %989 = vmatpush1.bf16.msra.mxu0 0
    %990 = vmatprep.subr.bf16.mxu0 0
    %991 = vmatpush1.bf16.msra.mxu0 0
    %992 = vmatprep.subr.bf16.mxu0 0
    %993 = vmatpush1.bf16.msra.mxu0 0
    %994 = vmatprep.subr.bf16.mxu0 0
    %995 = vmatpush1.bf16.msra.mxu0 0
    %996 = vmatprep.mubr.bf16.mxu0 0
    %997 = vmatmul.mubr.bf16.gmra.mrb[0].mxu0 %v959
    %v998 = vpop.f32.mrb[0].mxu0
    %v999 = vadd.f32 0.0, %v998
    %v1000 = vpop.f32.mrb[0].mxu0
    %v1001 = vpop.f32.mrb[0].mxu0
    %v1002 = vpop.f32.mrb[0].mxu0
    %1003 = vdwg.mxu0
    %1004 = vrot.lane.b32.xlu0 %v324, 104
    %v1005 = vpop.permute.xlu0 %1004
    %1006 = vrot.lane.b32.xlu0 %v324, 72
    %v1007 = vpop.permute.xlu0 %1006
    %v1009 = vsel %vm329, %v1005, 0
    %v1012 = vsel %vm329, %v1007, 0
    %1014 = vmatprep.subr.bf16.mxu0 0
    %1015 = vmatpush1.bf16.xpose.msra.mxu0 %v1012
    %1016 = vmatprep.subr.bf16.mxu0 0
    %1017 = vmatpush1.bf16.xpose.msra.mxu0 0
    %1018 = vmatprep.subr.bf16.mxu0 0
    %1019 = vmatpush1.bf16.xpose.msra.mxu0 0
    %1020 = vmatprep.subr.bf16.mxu0 0
    %1021 = vmatpush1.bf16.xpose.msra.mxu0 0
    %1022 = vmatprep.subr.bf16.mxu0 0
    %1023 = vmatpush1.bf16.xpose.msra.mxu0 0
    %1024 = vmatprep.subr.bf16.mxu0 0
    %1025 = vmatpush1.bf16.xpose.msra.mxu0 0
    %1026 = vmatprep.subr.bf16.mxu0 0
    %1027 = vmatpush1.bf16.xpose.msra.mxu0 0
    %1028 = vmatprep.subr.bf16.mxu0 0
    %1029 = vmatpush1.bf16.xpose.msra.mxu0 0
    %1030 = vmatprep.subr.bf16.mxu0 0
    %1031 = vmatpush1.bf16.xpose.msra.mxu0 0
    %1032 = vmatprep.subr.bf16.mxu0 0
    %1033 = vmatpush1.bf16.xpose.msra.mxu0 0
    %1034 = vmatprep.subr.bf16.mxu0 0
    %1035 = vmatpush1.bf16.xpose.msra.mxu0 0
    %1036 = vmatprep.subr.bf16.mxu0 0
    %1037 = vmatpush1.bf16.xpose.msra.mxu0 0
    %1038 = vmatprep.subr.bf16.mxu0 0
    %1039 = vmatpush1.bf16.xpose.msra.mxu0 0
    %1040 = vmatprep.subr.bf16.mxu0 0
    %1041 = vmatpush1.bf16.xpose.msra.mxu0 0
    %1042 = vmatprep.subr.bf16.mxu0 0
    %1043 = vmatpush1.bf16.xpose.msra.mxu0 0
    %1044 = vmatprep.subr.bf16.mxu0 0
    %1045 = vmatpush1.bf16.xpose.msra.mxu0 0
    %1046 = vmatprep.mubr.bf16.mxu0 0
    %1047 = vmatmul.mubr.bf16.gmra.mrb[0].mxu0 %v1009
    %v1048 = vpop.f32.mrb[0].mxu0
    %v1049 = vadd.f32 0.0, %v1048
    %v1050 = vpop.f32.mrb[0].mxu0
    %v1051 = vpop.f32.mrb[0].mxu0
    %v1052 = vpop.f32.mrb[0].mxu0
    %1053 = vdwg.mxu0
    %1054 = vrot.lane.b32.xlu0 %v325, 104
    %v1055 = vpop.permute.xlu0 %1054
    %1056 = vrot.lane.b32.xlu0 %v325, 72
    %v1057 = vpop.permute.xlu0 %1056
    %v1059 = vsel %vm329, %v1055, 0
    %v1062 = vsel %vm329, %v1057, 0
    %1064 = vmatprep.subr.bf16.mxu0 0
    %1065 = vmatpush1.bf16.xpose.msra.mxu0 %v1062
    %1066 = vmatprep.subr.bf16.mxu0 0
    %1067 = vmatpush1.bf16.xpose.msra.mxu0 0
    %1068 = vmatprep.subr.bf16.mxu0 0
    %1069 = vmatpush1.bf16.xpose.msra.mxu0 0
    %1070 = vmatprep.subr.bf16.mxu0 0
    %1071 = vmatpush1.bf16.xpose.msra.mxu0 0
    %1072 = vmatprep.subr.bf16.mxu0 0
    %1073 = vmatpush1.bf16.xpose.msra.mxu0 0
    %1074 = vmatprep.subr.bf16.mxu0 0
    %1075 = vmatpush1.bf16.xpose.msra.mxu0 0
    %1076 = vmatprep.subr.bf16.mxu0 0
    %1077 = vmatpush1.bf16.xpose.msra.mxu0 0
    %1078 = vmatprep.subr.bf16.mxu0 0
    %1079 = vmatpush1.bf16.xpose.msra.mxu0 0
    %1080 = vmatprep.subr.bf16.mxu0 0
    %1081 = vmatpush1.bf16.xpose.msra.mxu0 0
    %1082 = vmatprep.subr.bf16.mxu0 0
    %1083 = vmatpush1.bf16.xpose.msra.mxu0 0
    %1084 = vmatprep.subr.bf16.mxu0 0
    %1085 = vmatpush1.bf16.xpose.msra.mxu0 0
    %1086 = vmatprep.subr.bf16.mxu0 0
    %1087 = vmatpush1.bf16.xpose.msra.mxu0 0
    %1088 = vmatprep.subr.bf16.mxu0 0
    %1089 = vmatpush1.bf16.xpose.msra.mxu0 0
    %1090 = vmatprep.subr.bf16.mxu0 0
    %1091 = vmatpush1.bf16.xpose.msra.mxu0 0
    %1092 = vmatprep.subr.bf16.mxu0 0
    %1093 = vmatpush1.bf16.xpose.msra.mxu0 0
    %1094 = vmatprep.subr.bf16.mxu0 0
    %1095 = vmatpush1.bf16.xpose.msra.mxu0 0
    %1096 = vmatprep.mubr.bf16.mxu0 0
    %1097 = vmatmul.mubr.bf16.gmra.mrb[0].mxu0 %v1059
    %v1098 = vpop.f32.mrb[0].mxu0
    %v1099 = vadd.f32 0.0, %v1098
    %v1100 = vpop.f32.mrb[0].mxu0
    %v1101 = vpop.f32.mrb[0].mxu0
    %v1102 = vpop.f32.mrb[0].mxu0
    %1103 = vdwg.mxu0
    %v1104 = vmul.f32 %v1049, 0.35355338
    %v1105 = vmul.f32 %v1099, 0.35355338
    %v1106 = vmul.f32 %v1104, %v245
    %v1107 = vmul.f32 %v1105, %v246
    %v1108 = vadd.f32 %v1106, %v249
    %v1109 = vadd.f32 %v1107, %v250
    %v1110 = vsel %vm329, %v1108, -inf
    %1111 = vmax.xlane.f32.xlu0 %v1110
    %v1112 = vpop.xlane.xlu0 %1111
    %v1113 = vsel %vm329, %v1109, -inf
    %1114 = vmax.xlane.f32.xlu0 %v1113
    %v1115 = vpop.xlane.xlu0 %1114
    %v1116 = vsub.f32 %v1108, %v1112
    %v1117 = vsub.f32 %v1109, %v1115
    %v1118 = vmul.f32 %v1116, 1.442695
    %v1119 = vpow.pop %v1118
    %v1120 = vmul.f32 %v1117, 1.442695
    %v1121 = vpow.pop %v1120
    %v1122 = vsel %vm329, %v1119, 0.0
    %1123 = vadd.xlane.f32.xlu0 %v1122
    %v1124 = vpop.xlane.xlu0 %1123
    %v1125 = vsel %vm329, %v1121, 0.0
    %1126 = vadd.xlane.f32.xlu0 %v1125
    %v1127 = vpop.xlane.xlu0 %1126
    %v1128 = vrcp.pop %v1124
    %v1129 = vrcp.pop %v1127
    %v1130 = vmul.f32 %v1119, %v1128
    %v1131 = vmul.f32 %v1121, %v1129
    %v1132 = vpack.c.bf16 %v1130, %v1130
    %v1133 = vpack.c.bf16 %v1131, %v1131
    %1134 = vrot.lane.b32.xlu0 %v324, 40
    %v1135 = vpop.permute.xlu0 %1134
    %v1137 = vsel %vm329, %v1132, 0
    %v1140 = vsel %vm460, %v1135, 0
    %1142 = vmatprep.subr.bf16.mxu0 0
    %1143 = vmatpush1.bf16.msra.mxu0 %v1140
    %1144 = vmatprep.subr.bf16.mxu0 0
    %1145 = vmatpush1.bf16.msra.mxu0 0
    %1146 = vmatprep.subr.bf16.mxu0 0
    %1147 = vmatpush1.bf16.msra.mxu0 0
    %1148 = vmatprep.subr.bf16.mxu0 0
    %1149 = vmatpush1.bf16.msra.mxu0 0
    %1150 = vmatprep.subr.bf16.mxu0 0
    %1151 = vmatpush1.bf16.msra.mxu0 0
    %1152 = vmatprep.subr.bf16.mxu0 0
    %1153 = vmatpush1.bf16.msra.mxu0 0
    %1154 = vmatprep.subr.bf16.mxu0 0
    %1155 = vmatpush1.bf16.msra.mxu0 0
    %1156 = vmatprep.subr.bf16.mxu0 0
    %1157 = vmatpush1.bf16.msra.mxu0 0
    %1158 = vmatprep.subr.bf16.mxu0 0
    %1159 = vmatpush1.bf16.msra.mxu0 0
    %1160 = vmatprep.subr.bf16.mxu0 0
    %1161 = vmatpush1.bf16.msra.mxu0 0
    %1162 = vmatprep.subr.bf16.mxu0 0
    %1163 = vmatpush1.bf16.msra.mxu0 0
    %1164 = vmatprep.subr.bf16.mxu0 0
    %1165 = vmatpush1.bf16.msra.mxu0 0
    %1166 = vmatprep.subr.bf16.mxu0 0
    %1167 = vmatpush1.bf16.msra.mxu0 0
    %1168 = vmatprep.subr.bf16.mxu0 0
    %1169 = vmatpush1.bf16.msra.mxu0 0
    %1170 = vmatprep.subr.bf16.mxu0 0
    %1171 = vmatpush1.bf16.msra.mxu0 0
    %1172 = vmatprep.subr.bf16.mxu0 0
    %1173 = vmatpush1.bf16.msra.mxu0 0
    %1174 = vmatprep.mubr.bf16.mxu0 0
    %1175 = vmatmul.mubr.bf16.gmra.mrb[0].mxu0 %v1137
    %v1176 = vpop.f32.mrb[0].mxu0
    %v1177 = vadd.f32 0.0, %v1176
    %v1178 = vpop.f32.mrb[0].mxu0
    %v1179 = vpop.f32.mrb[0].mxu0
    %v1180 = vpop.f32.mrb[0].mxu0
    %1181 = vdwg.mxu0
    %1182 = vrot.lane.b32.xlu0 %v325, 40
    %v1183 = vpop.permute.xlu0 %1182
    %v1185 = vsel %vm329, %v1133, 0
    %v1188 = vsel %vm460, %v1183, 0
    %1190 = vmatprep.subr.bf16.mxu0 0
    %1191 = vmatpush1.bf16.msra.mxu0 %v1188
    %1192 = vmatprep.subr.bf16.mxu0 0
    %1193 = vmatpush1.bf16.msra.mxu0 0
    %1194 = vmatprep.subr.bf16.mxu0 0
    %1195 = vmatpush1.bf16.msra.mxu0 0
    %1196 = vmatprep.subr.bf16.mxu0 0
    %1197 = vmatpush1.bf16.msra.mxu0 0
    %1198 = vmatprep.subr.bf16.mxu0 0
    %1199 = vmatpush1.bf16.msra.mxu0 0
    %1200 = vmatprep.subr.bf16.mxu0 0
    %1201 = vmatpush1.bf16.msra.mxu0 0
    %1202 = vmatprep.subr.bf16.mxu0 0
    %1203 = vmatpush1.bf16.msra.mxu0 0
    %1204 = vmatprep.subr.bf16.mxu0 0
    %1205 = vmatpush1.bf16.msra.mxu0 0
    %1206 = vmatprep.subr.bf16.mxu0 0
    %1207 = vmatpush1.bf16.msra.mxu0 0
    %1208 = vmatprep.subr.bf16.mxu0 0
    %1209 = vmatpush1.bf16.msra.mxu0 0
    %1210 = vmatprep.subr.bf16.mxu0 0
    %1211 = vmatpush1.bf16.msra.mxu0 0
    %1212 = vmatprep.subr.bf16.mxu0 0
    %1213 = vmatpush1.bf16.msra.mxu0 0
    %1214 = vmatprep.subr.bf16.mxu0 0
    %1215 = vmatpush1.bf16.msra.mxu0 0
    %1216 = vmatprep.subr.bf16.mxu0 0
    %1217 = vmatpush1.bf16.msra.mxu0 0
    %1218 = vmatprep.subr.bf16.mxu0 0
    %1219 = vmatpush1.bf16.msra.mxu0 0
    %1220 = vmatprep.subr.bf16.mxu0 0
    %1221 = vmatpush1.bf16.msra.mxu0 0
    %1222 = vmatprep.mubr.bf16.mxu0 0
    %1223 = vmatmul.mubr.bf16.gmra.mrb[0].mxu0 %v1185
    %v1224 = vpop.f32.mrb[0].mxu0
    %v1225 = vadd.f32 0.0, %v1224
    %v1226 = vpop.f32.mrb[0].mxu0
    %v1227 = vpop.f32.mrb[0].mxu0
    %v1228 = vpop.f32.mrb[0].mxu0
    %1229 = vdwg.mxu0
    %1232 = vrot.lane.b32.xlu0 %v725, 8
    %v1233 = vpop.permute.xlu0 %1232
    %1234 = vrot.lane.b32.xlu0 %v773, 8
    %v1235 = vpop.permute.xlu0 %1234
    %1240 = vrot.lane.b32.xlu0 %v951, 16
    %v1241 = vpop.permute.xlu0 %1240
    %1242 = vrot.lane.b32.xlu0 %v999, 16
    %v1243 = vpop.permute.xlu0 %1242
    %1248 = vrot.lane.b32.xlu0 %v1177, 24
    %v1249 = vpop.permute.xlu0 %1248
    %1250 = vrot.lane.b32.xlu0 %v1225, 24
    %v1251 = vpop.permute.xlu0 %1250
    %v1254 = vsel %vm329, %v499, %v1233
    %v1255 = vsel %vm329, %v547, %v1235
    %vm1256 = vcmask 130048
    %v1257 = vsel %vm1256, %v1254, %v1241
    %v1258 = vsel %vm1256, %v1255, %v1243
    %vm1259 = vcmask 195584
    %v1260 = vsel %vm1259, %v1257, %v1249
    %v1261 = vsel %vm1259, %v1258, %v1251
    %v1262 = vpack.c.bf16 %v1261, %v1260
    %v1263 = vld [vmem:[%s8] sm:$0xf]
    %v1264 = vld [vmem:[%s8 + $0x4] sm:$0xf]
    %v1265 = vld [vmem:[%s8 + $0x8] sm:$0xf]
    %v1266 = vld [vmem:[%s8 + $0xc] sm:$0xf]
    %v1267 = vlaneseq
    %v1268 = vshrl.u32 %v1267, 7
    %v1269 = vsub.s32 2, %v1268
    %v1270 = vrot.slane %v43, %v1269
    %v1275 = vunpack.c.l.b16 %v1263
    %v1276 = vunpack.c.l.b16 %v1264
    %v1277 = vunpack.c.l.b16 %v1265
    %v1278 = vunpack.c.l.b16 %v1266
    %v1279 = vpack.c.b16 %v1276, %v1275
    %v1280 = vpack.c.b16 %v1278, %v1277
    %v1284 = vsel %vm193, %v1262, 0
    %1286 = vmatprep.subr.bf16.mxu0 0
    %1287 = vmatpush1.bf16.msra.mxu0 %v1279
    %1288 = vmatprep.subr.bf16.mxu0 0
    %1289 = vmatpush1.bf16.msra.mxu0 %v1280
    %1290 = vmatprep.subr.bf16.mxu0 0
    %1291 = vmatpush1.bf16.msra.mxu0 0
    %1292 = vmatprep.subr.bf16.mxu0 0
    %1293 = vmatpush1.bf16.msra.mxu0 0
    %1294 = vmatprep.subr.bf16.mxu0 0
    %1295 = vmatpush1.bf16.msra.mxu0 0
    %1296 = vmatprep.subr.bf16.mxu0 0
    %1297 = vmatpush1.bf16.msra.mxu0 0
    %1298 = vmatprep.subr.bf16.mxu0 0
    %1299 = vmatpush1.bf16.msra.mxu0 0
    %1300 = vmatprep.subr.bf16.mxu0 0
    %1301 = vmatpush1.bf16.msra.mxu0 0
    %1302 = vmatprep.subr.bf16.mxu0 0
    %1303 = vmatpush1.bf16.msra.mxu0 0
    %1304 = vmatprep.subr.bf16.mxu0 0
    %1305 = vmatpush1.bf16.msra.mxu0 0
    %1306 = vmatprep.subr.bf16.mxu0 0
    %1307 = vmatpush1.bf16.msra.mxu0 0
    %1308 = vmatprep.subr.bf16.mxu0 0
    %1309 = vmatpush1.bf16.msra.mxu0 0
    %1310 = vmatprep.subr.bf16.mxu0 0
    %1311 = vmatpush1.bf16.msra.mxu0 0
    %1312 = vmatprep.subr.bf16.mxu0 0
    %1313 = vmatpush1.bf16.msra.mxu0 0
    %1314 = vmatprep.subr.bf16.mxu0 0
    %1315 = vmatpush1.bf16.msra.mxu0 0
    %1316 = vmatprep.subr.bf16.mxu0 0
    %1317 = vmatpush1.bf16.msra.mxu0 0
    %1318 = vmatprep.mubr.bf16.mxu0 0
    %1319 = vmatmul.mubr.bf16.gmra.mrb[0].mxu0 %v1284
    %v1320 = vpop.f32.mrb[0].mxu0
    %v1321 = vadd.f32 %v1270, %v1320
    %v1322 = vpop.f32.mrb[0].mxu0
    %v1323 = vpop.f32.mrb[0].mxu0
    %v1324 = vadd.f32 %v1270, %v1323
    %v1325 = vpop.f32.mrb[0].mxu0
    %1326 = vdwg.mxu0
    %v1327 = vadd.f32 %v1321, %v234
    %v1328 = vadd.f32 %v1324, %v235
    %v1329 = vsel %vm193, %v1327, 0.0
    %1330 = vadd.xlane.f32.xlu0 %v1329
    %v1331 = vpop.xlane.xlu0 %1330
    %v1332 = vsel %vm193, %v1328, 0.0
    %1333 = vadd.xlane.f32.xlu0 %v1332
    %v1334 = vpop.xlane.xlu0 %1333
    %v1335 = vmul.f32 %v1327, %v1327
    %v1336 = vmul.f32 %v1328, %v1328
    %v1337 = vsel %vm193, %v1335, 0.0
    %1338 = vadd.xlane.f32.xlu0 %v1337
    %v1339 = vpop.xlane.xlu0 %1338
    %v1340 = vsel %vm193, %v1336, 0.0
    %1341 = vadd.xlane.f32.xlu0 %v1340
    %v1342 = vpop.xlane.xlu0 %1341
    %v1343 = vmul.f32 %v1331, 0.03125
    %v1344 = vmul.f32 %v1334, 0.03125
    %v1345 = vmul.f32 %v1339, 0.03125
    %v1346 = vmul.f32 %v1342, 0.03125
    %v1347 = vmul.f32 %v1343, %v1343
    %v1348 = vmul.f32 %v1344, %v1344
    %v1349 = vsub.f32 %v1345, %v1347
    %v1350 = vsub.f32 %v1346, %v1348
    %v1351 = vsub.f32 %v1327, %v1343
    %v1352 = vsub.f32 %v1328, %v1344
    %v1353 = vadd.f32 %v1349, 1e-06
    %v1354 = vadd.f32 %v1350, 1e-06
    %v1355 = vrsqrt.pop %v1353
    %v1356 = vrsqrt.pop %v1354
    %v1357 = vmul.f32 %v1351, %v1355
    %v1358 = vmul.f32 %v1352, %v1356
    %v1359 = vlaneseq
    %v1360 = vshrl.u32 %v1359, 7
    %v1361 = vsub.s32 3, %v1360
    %v1362 = vrot.slane %v43, %v1361
    %v1363 = vmul.f32 %v1357, %v1362
    %v1364 = vmul.f32 %v1358, %v1362
    %v1365 = vlaneseq
    %v1366 = vshrl.u32 %v1365, 7
    %v1367 = vsub.s32 4, %v1366
    %v1368 = vrot.slane %v43, %v1367
    %v1369 = vadd.f32 %v1363, %v1368
    %v1370 = vadd.f32 %v1364, %v1368
    %s1371 = scalar_lea.vmem %s7, 16
    %v1372 = vld [vmem:[%s1371] sm:$0xf]
    %v1373 = vld [vmem:[%s1371 + $0x4] sm:$0xf]
    %v1374 = vld [vmem:[%s1371 + $0x8] sm:$0xf]
    %v1375 = vld [vmem:[%s1371 + $0xc] sm:$0xf]
    %v1376 = vpack.c.bf16 %v1370, %v1369
    %v1381 = vunpack.c.l.b16 %v1372
    %v1382 = vunpack.c.l.b16 %v1373
    %v1383 = vunpack.c.l.b16 %v1374
    %v1384 = vunpack.c.l.b16 %v1375
    %v1385 = vpack.c.b16 %v1382, %v1381
    %v1386 = vpack.c.b16 %v1384, %v1383
    %v1390 = vsel %vm193, %v1376, 0
    %1392 = vmatprep.subr.bf16.mxu0 0
    %1393 = vmatpush1.bf16.msra.mxu0 %v1385
    %1394 = vmatprep.subr.bf16.mxu0 0
    %1395 = vmatpush1.bf16.msra.mxu0 %v1386
    %1396 = vmatprep.subr.bf16.mxu0 0
    %1397 = vmatpush1.bf16.msra.mxu0 0
    %1398 = vmatprep.subr.bf16.mxu0 0
    %1399 = vmatpush1.bf16.msra.mxu0 0
    %1400 = vmatprep.subr.bf16.mxu0 0
    %1401 = vmatpush1.bf16.msra.mxu0 0
    %1402 = vmatprep.subr.bf16.mxu0 0
    %1403 = vmatpush1.bf16.msra.mxu0 0
    %1404 = vmatprep.subr.bf16.mxu0 0
    %1405 = vmatpush1.bf16.msra.mxu0 0
    %1406 = vmatprep.subr.bf16.mxu0 0
    %1407 = vmatpush1.bf16.msra.mxu0 0
    %1408 = vmatprep.subr.bf16.mxu0 0
    %1409 = vmatpush1.bf16.msra.mxu0 0
    %1410 = vmatprep.subr.bf16.mxu0 0
    %1411 = vmatpush1.bf16.msra.mxu0 0
    %1412 = vmatprep.subr.bf16.mxu0 0
    %1413 = vmatpush1.bf16.msra.mxu0 0
    %1414 = vmatprep.subr.bf16.mxu0 0
    %1415 = vmatpush1.bf16.msra.mxu0 0
    %1416 = vmatprep.subr.bf16.mxu0 0
    %1417 = vmatpush1.bf16.msra.mxu0 0
    %1418 = vmatprep.subr.bf16.mxu0 0
    %1419 = vmatpush1.bf16.msra.mxu0 0
    %1420 = vmatprep.subr.bf16.mxu0 0
    %1421 = vmatpush1.bf16.msra.mxu0 0
    %1422 = vmatprep.subr.bf16.mxu0 0
    %1423 = vmatpush1.bf16.msra.mxu0 0
    %1424 = vmatprep.mubr.bf16.mxu0 0
    %1425 = vmatmul.mubr.bf16.gmra.mrb[0].mxu0 %v1390
    %v1426 = vpop.f32.mrb[0].mxu0
    %v1427 = vadd.f32 0.0, %v1426
    %v1428 = vpop.f32.mrb[0].mxu0
    %v1429 = vpop.f32.mrb[0].mxu0
    %v1430 = vadd.f32 0.0, %v1429
    %v1431 = vpop.f32.mrb[0].mxu0
    %1432 = vdwg.mxu0
    %1433 = vrot.lane.b32.xlu0 %v1385, 96
    %v1434 = vpop.permute.xlu0 %1433
    %1435 = vrot.lane.b32.xlu0 %v1386, 96
    %v1436 = vpop.permute.xlu0 %1435
    %v1440 = vsel %vm193, %v238, 0
    %1442 = vmatprep.subr.bf16.mxu0 0
    %1443 = vmatpush1.bf16.msra.mxu0 %v1434
    %1444 = vmatprep.subr.bf16.mxu0 0
    %1445 = vmatpush1.bf16.msra.mxu0 %v1436
    %1446 = vmatprep.subr.bf16.mxu0 0
    %1447 = vmatpush1.bf16.msra.mxu0 0
    %1448 = vmatprep.subr.bf16.mxu0 0
    %1449 = vmatpush1.bf16.msra.mxu0 0
    %1450 = vmatprep.subr.bf16.mxu0 0
    %1451 = vmatpush1.bf16.msra.mxu0 0
    %1452 = vmatprep.subr.bf16.mxu0 0
    %1453 = vmatpush1.bf16.msra.mxu0 0
    %1454 = vmatprep.subr.bf16.mxu0 0
    %1455 = vmatpush1.bf16.msra.mxu0 0
    %1456 = vmatprep.subr.bf16.mxu0 0
    %1457 = vmatpush1.bf16.msra.mxu0 0
    %1458 = vmatprep.subr.bf16.mxu0 0
    %1459 = vmatpush1.bf16.msra.mxu0 0
    %1460 = vmatprep.subr.bf16.mxu0 0
    %1461 = vmatpush1.bf16.msra.mxu0 0
    %1462 = vmatprep.subr.bf16.mxu0 0
    %1463 = vmatpush1.bf16.msra.mxu0 0
    %1464 = vmatprep.subr.bf16.mxu0 0
    %1465 = vmatpush1.bf16.msra.mxu0 0
    %1466 = vmatprep.subr.bf16.mxu0 0
    %1467 = vmatpush1.bf16.msra.mxu0 0
    %1468 = vmatprep.subr.bf16.mxu0 0
    %1469 = vmatpush1.bf16.msra.mxu0 0
    %1470 = vmatprep.subr.bf16.mxu0 0
    %1471 = vmatpush1.bf16.msra.mxu0 0
    %1472 = vmatprep.subr.bf16.mxu0 0
    %1473 = vmatpush1.bf16.msra.mxu0 0
    %1474 = vmatprep.mubr.bf16.mxu0 0
    %1475 = vmatmul.mubr.bf16.gmra.mrb[0].mxu0 %v1440
    %v1476 = vpop.f32.mrb[0].mxu0
    %v1477 = vadd.f32 0.0, %v1476
    %v1478 = vpop.f32.mrb[0].mxu0
    %v1479 = vpop.f32.mrb[0].mxu0
    %v1480 = vadd.f32 0.0, %v1479
    %v1481 = vpop.f32.mrb[0].mxu0
    %1482 = vdwg.mxu0
    %v1483 = vpack.c.bf16 %v1427, %v1427
    %v1484 = vpack.c.bf16 %v1430, %v1430
    %v1485 = vpack.c.bf16 %v1477, %v1477
    %v1486 = vpack.c.bf16 %v1480, %v1480
    %v1488 = vsel %vm329, %v1483, 0
    %v1491 = vsel %vm329, %v1485, 0
    %1493 = vmatprep.subr.bf16.mxu0 0
    %1494 = vmatpush1.bf16.xpose.msra.mxu0 %v1491
    %1495 = vmatprep.subr.bf16.mxu0 0
    %1496 = vmatpush1.bf16.xpose.msra.mxu0 0
    %1497 = vmatprep.subr.bf16.mxu0 0
    %1498 = vmatpush1.bf16.xpose.msra.mxu0 0
    %1499 = vmatprep.subr.bf16.mxu0 0
    %1500 = vmatpush1.bf16.xpose.msra.mxu0 0
    %1501 = vmatprep.subr.bf16.mxu0 0
    %1502 = vmatpush1.bf16.xpose.msra.mxu0 0
    %1503 = vmatprep.subr.bf16.mxu0 0
    %1504 = vmatpush1.bf16.xpose.msra.mxu0 0
    %1505 = vmatprep.subr.bf16.mxu0 0
    %1506 = vmatpush1.bf16.xpose.msra.mxu0 0
    %1507 = vmatprep.subr.bf16.mxu0 0
    %1508 = vmatpush1.bf16.xpose.msra.mxu0 0
    %1509 = vmatprep.subr.bf16.mxu0 0
    %1510 = vmatpush1.bf16.xpose.msra.mxu0 0
    %1511 = vmatprep.subr.bf16.mxu0 0
    %1512 = vmatpush1.bf16.xpose.msra.mxu0 0
    %1513 = vmatprep.subr.bf16.mxu0 0
    %1514 = vmatpush1.bf16.xpose.msra.mxu0 0
    %1515 = vmatprep.subr.bf16.mxu0 0
    %1516 = vmatpush1.bf16.xpose.msra.mxu0 0
    %1517 = vmatprep.subr.bf16.mxu0 0
    %1518 = vmatpush1.bf16.xpose.msra.mxu0 0
    %1519 = vmatprep.subr.bf16.mxu0 0
    %1520 = vmatpush1.bf16.xpose.msra.mxu0 0
    %1521 = vmatprep.subr.bf16.mxu0 0
    %1522 = vmatpush1.bf16.xpose.msra.mxu0 0
    %1523 = vmatprep.subr.bf16.mxu0 0
    %1524 = vmatpush1.bf16.xpose.msra.mxu0 0
    %1525 = vmatprep.mubr.bf16.mxu0 0
    %1526 = vmatmul.mubr.bf16.gmra.mrb[0].mxu0 %v1488
    %v1527 = vpop.f32.mrb[0].mxu0
    %v1528 = vadd.f32 0.0, %v1527
    %v1529 = vpop.f32.mrb[0].mxu0
    %v1530 = vpop.f32.mrb[0].mxu0
    %v1531 = vpop.f32.mrb[0].mxu0
    %1532 = vdwg.mxu0
    %v1534 = vsel %vm329, %v1484, 0
    %v1537 = vsel %vm329, %v1486, 0
    %1539 = vmatprep.subr.bf16.mxu0 0
    %1540 = vmatpush1.bf16.xpose.msra.mxu0 %v1537
    %1541 = vmatprep.subr.bf16.mxu0 0
    %1542 = vmatpush1.bf16.xpose.msra.mxu0 0
    %1543 = vmatprep.subr.bf16.mxu0 0
    %1544 = vmatpush1.bf16.xpose.msra.mxu0 0
    %1545 = vmatprep.subr.bf16.mxu0 0
    %1546 = vmatpush1.bf16.xpose.msra.mxu0 0
    %1547 = vmatprep.subr.bf16.mxu0 0
    %1548 = vmatpush1.bf16.xpose.msra.mxu0 0
    %1549 = vmatprep.subr.bf16.mxu0 0
    %1550 = vmatpush1.bf16.xpose.msra.mxu0 0
    %1551 = vmatprep.subr.bf16.mxu0 0
    %1552 = vmatpush1.bf16.xpose.msra.mxu0 0
    %1553 = vmatprep.subr.bf16.mxu0 0
    %1554 = vmatpush1.bf16.xpose.msra.mxu0 0
    %1555 = vmatprep.subr.bf16.mxu0 0
    %1556 = vmatpush1.bf16.xpose.msra.mxu0 0
    %1557 = vmatprep.subr.bf16.mxu0 0
    %1558 = vmatpush1.bf16.xpose.msra.mxu0 0
    %1559 = vmatprep.subr.bf16.mxu0 0
    %1560 = vmatpush1.bf16.xpose.msra.mxu0 0
    %1561 = vmatprep.subr.bf16.mxu0 0
    %1562 = vmatpush1.bf16.xpose.msra.mxu0 0
    %1563 = vmatprep.subr.bf16.mxu0 0
    %1564 = vmatpush1.bf16.xpose.msra.mxu0 0
    %1565 = vmatprep.subr.bf16.mxu0 0
    %1566 = vmatpush1.bf16.xpose.msra.mxu0 0
    %1567 = vmatprep.subr.bf16.mxu0 0
    %1568 = vmatpush1.bf16.xpose.msra.mxu0 0
    %1569 = vmatprep.subr.bf16.mxu0 0
    %1570 = vmatpush1.bf16.xpose.msra.mxu0 0
    %1571 = vmatprep.mubr.bf16.mxu0 0
    %1572 = vmatmul.mubr.bf16.gmra.mrb[0].mxu0 %v1534
    %v1573 = vpop.f32.mrb[0].mxu0
    %v1574 = vadd.f32 0.0, %v1573
    %v1575 = vpop.f32.mrb[0].mxu0
    %v1576 = vpop.f32.mrb[0].mxu0
    %v1577 = vpop.f32.mrb[0].mxu0
    %1578 = vdwg.mxu0
    %v1579 = vmul.f32 %v1528, 0.35355338
    %v1580 = vmul.f32 %v1574, 0.35355338
    %v1581 = vmul.f32 %v1579, %v257
    %v1582 = vmul.f32 %v1580, %v258
    %v1583 = vadd.f32 %v1581, %v261
    %v1584 = vadd.f32 %v1582, %v262
    %v1585 = vsel %vm329, %v1583, -inf
    %1586 = vmax.xlane.f32.xlu0 %v1585
    %v1587 = vpop.xlane.xlu0 %1586
    %v1588 = vsel %vm329, %v1584, -inf
    %1589 = vmax.xlane.f32.xlu0 %v1588
    %v1590 = vpop.xlane.xlu0 %1589
    %v1591 = vsub.f32 %v1583, %v1587
    %v1592 = vsub.f32 %v1584, %v1590
    %v1593 = vmul.f32 %v1591, 1.442695
    %v1594 = vpow.pop %v1593
    %v1595 = vmul.f32 %v1592, 1.442695
    %v1596 = vpow.pop %v1595
    %v1597 = vsel %vm329, %v1594, 0.0
    %1598 = vadd.xlane.f32.xlu0 %v1597
    %v1599 = vpop.xlane.xlu0 %1598
    %v1600 = vsel %vm329, %v1596, 0.0
    %1601 = vadd.xlane.f32.xlu0 %v1600
    %v1602 = vpop.xlane.xlu0 %1601
    %v1603 = vrcp.pop %v1599
    %v1604 = vrcp.pop %v1602
    %v1605 = vmul.f32 %v1594, %v1603
    %v1606 = vmul.f32 %v1596, %v1604
    %v1607 = vpack.c.bf16 %v1605, %v1605
    %v1608 = vpack.c.bf16 %v1606, %v1606
    %1610 = vrot.lane.b32.xlu0 %v1485, 96
    %v1611 = vpop.permute.xlu0 %1610
    %v1613 = vsel %vm329, %v1607, 0
    %v1616 = vsel %vm460, %v1611, 0
    %1618 = vmatprep.subr.bf16.mxu0 0
    %1619 = vmatpush1.bf16.msra.mxu0 %v1616
    %1620 = vmatprep.subr.bf16.mxu0 0
    %1621 = vmatpush1.bf16.msra.mxu0 0
    %1622 = vmatprep.subr.bf16.mxu0 0
    %1623 = vmatpush1.bf16.msra.mxu0 0
    %1624 = vmatprep.subr.bf16.mxu0 0
    %1625 = vmatpush1.bf16.msra.mxu0 0
    %1626 = vmatprep.subr.bf16.mxu0 0
    %1627 = vmatpush1.bf16.msra.mxu0 0
    %1628 = vmatprep.subr.bf16.mxu0 0
    %1629 = vmatpush1.bf16.msra.mxu0 0
    %1630 = vmatprep.subr.bf16.mxu0 0
    %1631 = vmatpush1.bf16.msra.mxu0 0
    %1632 = vmatprep.subr.bf16.mxu0 0
    %1633 = vmatpush1.bf16.msra.mxu0 0
    %1634 = vmatprep.subr.bf16.mxu0 0
    %1635 = vmatpush1.bf16.msra.mxu0 0
    %1636 = vmatprep.subr.bf16.mxu0 0
    %1637 = vmatpush1.bf16.msra.mxu0 0
    %1638 = vmatprep.subr.bf16.mxu0 0
    %1639 = vmatpush1.bf16.msra.mxu0 0
    %1640 = vmatprep.subr.bf16.mxu0 0
    %1641 = vmatpush1.bf16.msra.mxu0 0
    %1642 = vmatprep.subr.bf16.mxu0 0
    %1643 = vmatpush1.bf16.msra.mxu0 0
    %1644 = vmatprep.subr.bf16.mxu0 0
    %1645 = vmatpush1.bf16.msra.mxu0 0
    %1646 = vmatprep.subr.bf16.mxu0 0
    %1647 = vmatpush1.bf16.msra.mxu0 0
    %1648 = vmatprep.subr.bf16.mxu0 0
    %1649 = vmatpush1.bf16.msra.mxu0 0
    %1650 = vmatprep.mubr.bf16.mxu0 0
    %1651 = vmatmul.mubr.bf16.gmra.mrb[0].mxu0 %v1613
    %v1652 = vpop.f32.mrb[0].mxu0
    %v1653 = vadd.f32 0.0, %v1652
    %v1654 = vpop.f32.mrb[0].mxu0
    %v1655 = vpop.f32.mrb[0].mxu0
    %v1656 = vpop.f32.mrb[0].mxu0
    %1657 = vdwg.mxu0
    %1659 = vrot.lane.b32.xlu0 %v1486, 96
    %v1660 = vpop.permute.xlu0 %1659
    %v1662 = vsel %vm329, %v1608, 0
    %v1665 = vsel %vm460, %v1660, 0
    %1667 = vmatprep.subr.bf16.mxu0 0
    %1668 = vmatpush1.bf16.msra.mxu0 %v1665
    %1669 = vmatprep.subr.bf16.mxu0 0
    %1670 = vmatpush1.bf16.msra.mxu0 0
    %1671 = vmatprep.subr.bf16.mxu0 0
    %1672 = vmatpush1.bf16.msra.mxu0 0
    %1673 = vmatprep.subr.bf16.mxu0 0
    %1674 = vmatpush1.bf16.msra.mxu0 0
    %1675 = vmatprep.subr.bf16.mxu0 0
    %1676 = vmatpush1.bf16.msra.mxu0 0
    %1677 = vmatprep.subr.bf16.mxu0 0
    %1678 = vmatpush1.bf16.msra.mxu0 0
    %1679 = vmatprep.subr.bf16.mxu0 0
    %1680 = vmatpush1.bf16.msra.mxu0 0
    %1681 = vmatprep.subr.bf16.mxu0 0
    %1682 = vmatpush1.bf16.msra.mxu0 0
    %1683 = vmatprep.subr.bf16.mxu0 0
    %1684 = vmatpush1.bf16.msra.mxu0 0
    %1685 = vmatprep.subr.bf16.mxu0 0
    %1686 = vmatpush1.bf16.msra.mxu0 0
    %1687 = vmatprep.subr.bf16.mxu0 0
    %1688 = vmatpush1.bf16.msra.mxu0 0
    %1689 = vmatprep.subr.bf16.mxu0 0
    %1690 = vmatpush1.bf16.msra.mxu0 0
    %1691 = vmatprep.subr.bf16.mxu0 0
    %1692 = vmatpush1.bf16.msra.mxu0 0
    %1693 = vmatprep.subr.bf16.mxu0 0
    %1694 = vmatpush1.bf16.msra.mxu0 0
    %1695 = vmatprep.subr.bf16.mxu0 0
    %1696 = vmatpush1.bf16.msra.mxu0 0
    %1697 = vmatprep.subr.bf16.mxu0 0
    %1698 = vmatpush1.bf16.msra.mxu0 0
    %1699 = vmatprep.mubr.bf16.mxu0 0
    %1700 = vmatmul.mubr.bf16.gmra.mrb[0].mxu0 %v1662
    %v1701 = vpop.f32.mrb[0].mxu0
    %v1702 = vadd.f32 0.0, %v1701
    %v1703 = vpop.f32.mrb[0].mxu0
    %v1704 = vpop.f32.mrb[0].mxu0
    %v1705 = vpop.f32.mrb[0].mxu0
    %1706 = vdwg.mxu0
    %1708 = vrot.lane.b32.xlu0 %v1483, 120
    %v1709 = vpop.permute.xlu0 %1708
    %1710 = vrot.lane.b32.xlu0 %v1485, 120
    %v1711 = vpop.permute.xlu0 %1710
    %v1713 = vsel %vm329, %v1709, 0
    %v1716 = vsel %vm329, %v1711, 0
    %1718 = vmatprep.subr.bf16.mxu0 0
    %1719 = vmatpush1.bf16.xpose.msra.mxu0 %v1716
    %1720 = vmatprep.subr.bf16.mxu0 0
    %1721 = vmatpush1.bf16.xpose.msra.mxu0 0
    %1722 = vmatprep.subr.bf16.mxu0 0
    %1723 = vmatpush1.bf16.xpose.msra.mxu0 0
    %1724 = vmatprep.subr.bf16.mxu0 0
    %1725 = vmatpush1.bf16.xpose.msra.mxu0 0
    %1726 = vmatprep.subr.bf16.mxu0 0
    %1727 = vmatpush1.bf16.xpose.msra.mxu0 0
    %1728 = vmatprep.subr.bf16.mxu0 0
    %1729 = vmatpush1.bf16.xpose.msra.mxu0 0
    %1730 = vmatprep.subr.bf16.mxu0 0
    %1731 = vmatpush1.bf16.xpose.msra.mxu0 0
    %1732 = vmatprep.subr.bf16.mxu0 0
    %1733 = vmatpush1.bf16.xpose.msra.mxu0 0
    %1734 = vmatprep.subr.bf16.mxu0 0
    %1735 = vmatpush1.bf16.xpose.msra.mxu0 0
    %1736 = vmatprep.subr.bf16.mxu0 0
    %1737 = vmatpush1.bf16.xpose.msra.mxu0 0
    %1738 = vmatprep.subr.bf16.mxu0 0
    %1739 = vmatpush1.bf16.xpose.msra.mxu0 0
    %1740 = vmatprep.subr.bf16.mxu0 0
    %1741 = vmatpush1.bf16.xpose.msra.mxu0 0
    %1742 = vmatprep.subr.bf16.mxu0 0
    %1743 = vmatpush1.bf16.xpose.msra.mxu0 0
    %1744 = vmatprep.subr.bf16.mxu0 0
    %1745 = vmatpush1.bf16.xpose.msra.mxu0 0
    %1746 = vmatprep.subr.bf16.mxu0 0
    %1747 = vmatpush1.bf16.xpose.msra.mxu0 0
    %1748 = vmatprep.subr.bf16.mxu0 0
    %1749 = vmatpush1.bf16.xpose.msra.mxu0 0
    %1750 = vmatprep.mubr.bf16.mxu0 0
    %1751 = vmatmul.mubr.bf16.gmra.mrb[0].mxu0 %v1713
    %v1752 = vpop.f32.mrb[0].mxu0
    %v1753 = vadd.f32 0.0, %v1752
    %v1754 = vpop.f32.mrb[0].mxu0
    %v1755 = vpop.f32.mrb[0].mxu0
    %v1756 = vpop.f32.mrb[0].mxu0
    %1757 = vdwg.mxu0
    %1759 = vrot.lane.b32.xlu0 %v1484, 120
    %v1760 = vpop.permute.xlu0 %1759
    %1761 = vrot.lane.b32.xlu0 %v1486, 120
    %v1762 = vpop.permute.xlu0 %1761
    %v1764 = vsel %vm329, %v1760, 0
    %v1767 = vsel %vm329, %v1762, 0
    %1769 = vmatprep.subr.bf16.mxu0 0
    %1770 = vmatpush1.bf16.xpose.msra.mxu0 %v1767
    %1771 = vmatprep.subr.bf16.mxu0 0
    %1772 = vmatpush1.bf16.xpose.msra.mxu0 0
    %1773 = vmatprep.subr.bf16.mxu0 0
    %1774 = vmatpush1.bf16.xpose.msra.mxu0 0
    %1775 = vmatprep.subr.bf16.mxu0 0
    %1776 = vmatpush1.bf16.xpose.msra.mxu0 0
    %1777 = vmatprep.subr.bf16.mxu0 0
    %1778 = vmatpush1.bf16.xpose.msra.mxu0 0
    %1779 = vmatprep.subr.bf16.mxu0 0
    %1780 = vmatpush1.bf16.xpose.msra.mxu0 0
    %1781 = vmatprep.subr.bf16.mxu0 0
    %1782 = vmatpush1.bf16.xpose.msra.mxu0 0
    %1783 = vmatprep.subr.bf16.mxu0 0
    %1784 = vmatpush1.bf16.xpose.msra.mxu0 0
    %1785 = vmatprep.subr.bf16.mxu0 0
    %1786 = vmatpush1.bf16.xpose.msra.mxu0 0
    %1787 = vmatprep.subr.bf16.mxu0 0
    %1788 = vmatpush1.bf16.xpose.msra.mxu0 0
    %1789 = vmatprep.subr.bf16.mxu0 0
    %1790 = vmatpush1.bf16.xpose.msra.mxu0 0
    %1791 = vmatprep.subr.bf16.mxu0 0
    %1792 = vmatpush1.bf16.xpose.msra.mxu0 0
    %1793 = vmatprep.subr.bf16.mxu0 0
    %1794 = vmatpush1.bf16.xpose.msra.mxu0 0
    %1795 = vmatprep.subr.bf16.mxu0 0
    %1796 = vmatpush1.bf16.xpose.msra.mxu0 0
    %1797 = vmatprep.subr.bf16.mxu0 0
    %1798 = vmatpush1.bf16.xpose.msra.mxu0 0
    %1799 = vmatprep.subr.bf16.mxu0 0
    %1800 = vmatpush1.bf16.xpose.msra.mxu0 0
    %1801 = vmatprep.mubr.bf16.mxu0 0
    %1802 = vmatmul.mubr.bf16.gmra.mrb[0].mxu0 %v1764
    %v1803 = vpop.f32.mrb[0].mxu0
    %v1804 = vadd.f32 0.0, %v1803
    %v1805 = vpop.f32.mrb[0].mxu0
    %v1806 = vpop.f32.mrb[0].mxu0
    %v1807 = vpop.f32.mrb[0].mxu0
    %1808 = vdwg.mxu0
    %v1809 = vmul.f32 %v1753, 0.35355338
    %v1810 = vmul.f32 %v1804, 0.35355338
    %v1811 = vmul.f32 %v1809, %v257
    %v1812 = vmul.f32 %v1810, %v258
    %v1813 = vadd.f32 %v1811, %v261
    %v1814 = vadd.f32 %v1812, %v262
    %v1815 = vsel %vm329, %v1813, -inf
    %1816 = vmax.xlane.f32.xlu0 %v1815
    %v1817 = vpop.xlane.xlu0 %1816
    %v1818 = vsel %vm329, %v1814, -inf
    %1819 = vmax.xlane.f32.xlu0 %v1818
    %v1820 = vpop.xlane.xlu0 %1819
    %v1821 = vsub.f32 %v1813, %v1817
    %v1822 = vsub.f32 %v1814, %v1820
    %v1823 = vmul.f32 %v1821, 1.442695
    %v1824 = vpow.pop %v1823
    %v1825 = vmul.f32 %v1822, 1.442695
    %v1826 = vpow.pop %v1825
    %v1827 = vsel %vm329, %v1824, 0.0
    %1828 = vadd.xlane.f32.xlu0 %v1827
    %v1829 = vpop.xlane.xlu0 %1828
    %v1830 = vsel %vm329, %v1826, 0.0
    %1831 = vadd.xlane.f32.xlu0 %v1830
    %v1832 = vpop.xlane.xlu0 %1831
    %v1833 = vrcp.pop %v1829
    %v1834 = vrcp.pop %v1832
    %v1835 = vmul.f32 %v1824, %v1833
    %v1836 = vmul.f32 %v1826, %v1834
    %v1837 = vpack.c.bf16 %v1835, %v1835
    %v1838 = vpack.c.bf16 %v1836, %v1836
    %1839 = vrot.lane.b32.xlu0 %v1485, 88
    %v1840 = vpop.permute.xlu0 %1839
    %v1842 = vsel %vm329, %v1837, 0
    %v1845 = vsel %vm460, %v1840, 0
    %1847 = vmatprep.subr.bf16.mxu0 0
    %1848 = vmatpush1.bf16.msra.mxu0 %v1845
    %1849 = vmatprep.subr.bf16.mxu0 0
    %1850 = vmatpush1.bf16.msra.mxu0 0
    %1851 = vmatprep.subr.bf16.mxu0 0
    %1852 = vmatpush1.bf16.msra.mxu0 0
    %1853 = vmatprep.subr.bf16.mxu0 0
    %1854 = vmatpush1.bf16.msra.mxu0 0
    %1855 = vmatprep.subr.bf16.mxu0 0
    %1856 = vmatpush1.bf16.msra.mxu0 0
    %1857 = vmatprep.subr.bf16.mxu0 0
    %1858 = vmatpush1.bf16.msra.mxu0 0
    %1859 = vmatprep.subr.bf16.mxu0 0
    %1860 = vmatpush1.bf16.msra.mxu0 0
    %1861 = vmatprep.subr.bf16.mxu0 0
    %1862 = vmatpush1.bf16.msra.mxu0 0
    %1863 = vmatprep.subr.bf16.mxu0 0
    %1864 = vmatpush1.bf16.msra.mxu0 0
    %1865 = vmatprep.subr.bf16.mxu0 0
    %1866 = vmatpush1.bf16.msra.mxu0 0
    %1867 = vmatprep.subr.bf16.mxu0 0
    %1868 = vmatpush1.bf16.msra.mxu0 0
    %1869 = vmatprep.subr.bf16.mxu0 0
    %1870 = vmatpush1.bf16.msra.mxu0 0
    %1871 = vmatprep.subr.bf16.mxu0 0
    %1872 = vmatpush1.bf16.msra.mxu0 0
    %1873 = vmatprep.subr.bf16.mxu0 0
    %1874 = vmatpush1.bf16.msra.mxu0 0
    %1875 = vmatprep.subr.bf16.mxu0 0
    %1876 = vmatpush1.bf16.msra.mxu0 0
    %1877 = vmatprep.subr.bf16.mxu0 0
    %1878 = vmatpush1.bf16.msra.mxu0 0
    %1879 = vmatprep.mubr.bf16.mxu0 0
    %1880 = vmatmul.mubr.bf16.gmra.mrb[0].mxu0 %v1842
    %v1881 = vpop.f32.mrb[0].mxu0
    %v1882 = vadd.f32 0.0, %v1881
    %v1883 = vpop.f32.mrb[0].mxu0
    %v1884 = vpop.f32.mrb[0].mxu0
    %v1885 = vpop.f32.mrb[0].mxu0
    %1886 = vdwg.mxu0
    %1887 = vrot.lane.b32.xlu0 %v1486, 88
    %v1888 = vpop.permute.xlu0 %1887
    %v1890 = vsel %vm329, %v1838, 0
    %v1893 = vsel %vm460, %v1888, 0
    %1895 = vmatprep.subr.bf16.mxu0 0
    %1896 = vmatpush1.bf16.msra.mxu0 %v1893
    %1897 = vmatprep.subr.bf16.mxu0 0
    %1898 = vmatpush1.bf16.msra.mxu0 0
    %1899 = vmatprep.subr.bf16.mxu0 0
    %1900 = vmatpush1.bf16.msra.mxu0 0
    %1901 = vmatprep.subr.bf16.mxu0 0
    %1902 = vmatpush1.bf16.msra.mxu0 0
    %1903 = vmatprep.subr.bf16.mxu0 0
    %1904 = vmatpush1.bf16.msra.mxu0 0
    %1905 = vmatprep.subr.bf16.mxu0 0
    %1906 = vmatpush1.bf16.msra.mxu0 0
    %1907 = vmatprep.subr.bf16.mxu0 0
    %1908 = vmatpush1.bf16.msra.mxu0 0
    %1909 = vmatprep.subr.bf16.mxu0 0
    %1910 = vmatpush1.bf16.msra.mxu0 0
    %1911 = vmatprep.subr.bf16.mxu0 0
    %1912 = vmatpush1.bf16.msra.mxu0 0
    %1913 = vmatprep.subr.bf16.mxu0 0
    %1914 = vmatpush1.bf16.msra.mxu0 0
    %1915 = vmatprep.subr.bf16.mxu0 0
    %1916 = vmatpush1.bf16.msra.mxu0 0
    %1917 = vmatprep.subr.bf16.mxu0 0
    %1918 = vmatpush1.bf16.msra.mxu0 0
    %1919 = vmatprep.subr.bf16.mxu0 0
    %1920 = vmatpush1.bf16.msra.mxu0 0
    %1921 = vmatprep.subr.bf16.mxu0 0
    %1922 = vmatpush1.bf16.msra.mxu0 0
    %1923 = vmatprep.subr.bf16.mxu0 0
    %1924 = vmatpush1.bf16.msra.mxu0 0
    %1925 = vmatprep.subr.bf16.mxu0 0
    %1926 = vmatpush1.bf16.msra.mxu0 0
    %1927 = vmatprep.mubr.bf16.mxu0 0
    %1928 = vmatmul.mubr.bf16.gmra.mrb[0].mxu0 %v1890
    %v1929 = vpop.f32.mrb[0].mxu0
    %v1930 = vadd.f32 0.0, %v1929
    %v1931 = vpop.f32.mrb[0].mxu0
    %v1932 = vpop.f32.mrb[0].mxu0
    %v1933 = vpop.f32.mrb[0].mxu0
    %1934 = vdwg.mxu0
    %1935 = vrot.lane.b32.xlu0 %v1483, 112
    %v1936 = vpop.permute.xlu0 %1935
    %1937 = vrot.lane.b32.xlu0 %v1485, 112
    %v1938 = vpop.permute.xlu0 %1937
    %v1940 = vsel %vm329, %v1936, 0
    %v1943 = vsel %vm329, %v1938, 0
    %1945 = vmatprep.subr.bf16.mxu0 0
    %1946 = vmatpush1.bf16.xpose.msra.mxu0 %v1943
    %1947 = vmatprep.subr.bf16.mxu0 0
    %1948 = vmatpush1.bf16.xpose.msra.mxu0 0
    %1949 = vmatprep.subr.bf16.mxu0 0
    %1950 = vmatpush1.bf16.xpose.msra.mxu0 0
    %1951 = vmatprep.subr.bf16.mxu0 0
    %1952 = vmatpush1.bf16.xpose.msra.mxu0 0
    %1953 = vmatprep.subr.bf16.mxu0 0
    %1954 = vmatpush1.bf16.xpose.msra.mxu0 0
    %1955 = vmatprep.subr.bf16.mxu0 0
    %1956 = vmatpush1.bf16.xpose.msra.mxu0 0
    %1957 = vmatprep.subr.bf16.mxu0 0
    %1958 = vmatpush1.bf16.xpose.msra.mxu0 0
    %1959 = vmatprep.subr.bf16.mxu0 0
    %1960 = vmatpush1.bf16.xpose.msra.mxu0 0
    %1961 = vmatprep.subr.bf16.mxu0 0
    %1962 = vmatpush1.bf16.xpose.msra.mxu0 0
    %1963 = vmatprep.subr.bf16.mxu0 0
    %1964 = vmatpush1.bf16.xpose.msra.mxu0 0
    %1965 = vmatprep.subr.bf16.mxu0 0
    %1966 = vmatpush1.bf16.xpose.msra.mxu0 0
    %1967 = vmatprep.subr.bf16.mxu0 0
    %1968 = vmatpush1.bf16.xpose.msra.mxu0 0
    %1969 = vmatprep.subr.bf16.mxu0 0
    %1970 = vmatpush1.bf16.xpose.msra.mxu0 0
    %1971 = vmatprep.subr.bf16.mxu0 0
    %1972 = vmatpush1.bf16.xpose.msra.mxu0 0
    %1973 = vmatprep.subr.bf16.mxu0 0
    %1974 = vmatpush1.bf16.xpose.msra.mxu0 0
    %1975 = vmatprep.subr.bf16.mxu0 0
    %1976 = vmatpush1.bf16.xpose.msra.mxu0 0
    %1977 = vmatprep.mubr.bf16.mxu0 0
    %1978 = vmatmul.mubr.bf16.gmra.mrb[0].mxu0 %v1940
    %v1979 = vpop.f32.mrb[0].mxu0
    %v1980 = vadd.f32 0.0, %v1979
    %v1981 = vpop.f32.mrb[0].mxu0
    %v1982 = vpop.f32.mrb[0].mxu0
    %v1983 = vpop.f32.mrb[0].mxu0
    %1984 = vdwg.mxu0
    %1985 = vrot.lane.b32.xlu0 %v1484, 112
    %v1986 = vpop.permute.xlu0 %1985
    %1987 = vrot.lane.b32.xlu0 %v1486, 112
    %v1988 = vpop.permute.xlu0 %1987
    %v1990 = vsel %vm329, %v1986, 0
    %v1993 = vsel %vm329, %v1988, 0
    %1995 = vmatprep.subr.bf16.mxu0 0
    %1996 = vmatpush1.bf16.xpose.msra.mxu0 %v1993
    %1997 = vmatprep.subr.bf16.mxu0 0
    %1998 = vmatpush1.bf16.xpose.msra.mxu0 0
    %1999 = vmatprep.subr.bf16.mxu0 0
    %2000 = vmatpush1.bf16.xpose.msra.mxu0 0
    %2001 = vmatprep.subr.bf16.mxu0 0
    %2002 = vmatpush1.bf16.xpose.msra.mxu0 0
    %2003 = vmatprep.subr.bf16.mxu0 0
    %2004 = vmatpush1.bf16.xpose.msra.mxu0 0
    %2005 = vmatprep.subr.bf16.mxu0 0
    %2006 = vmatpush1.bf16.xpose.msra.mxu0 0
    %2007 = vmatprep.subr.bf16.mxu0 0
    %2008 = vmatpush1.bf16.xpose.msra.mxu0 0
    %2009 = vmatprep.subr.bf16.mxu0 0
    %2010 = vmatpush1.bf16.xpose.msra.mxu0 0
    %2011 = vmatprep.subr.bf16.mxu0 0
    %2012 = vmatpush1.bf16.xpose.msra.mxu0 0
    %2013 = vmatprep.subr.bf16.mxu0 0
    %2014 = vmatpush1.bf16.xpose.msra.mxu0 0
    %2015 = vmatprep.subr.bf16.mxu0 0
    %2016 = vmatpush1.bf16.xpose.msra.mxu0 0
    %2017 = vmatprep.subr.bf16.mxu0 0
    %2018 = vmatpush1.bf16.xpose.msra.mxu0 0
    %2019 = vmatprep.subr.bf16.mxu0 0
    %2020 = vmatpush1.bf16.xpose.msra.mxu0 0
    %2021 = vmatprep.subr.bf16.mxu0 0
    %2022 = vmatpush1.bf16.xpose.msra.mxu0 0
    %2023 = vmatprep.subr.bf16.mxu0 0
    %2024 = vmatpush1.bf16.xpose.msra.mxu0 0
    %2025 = vmatprep.subr.bf16.mxu0 0
    %2026 = vmatpush1.bf16.xpose.msra.mxu0 0
    %2027 = vmatprep.mubr.bf16.mxu0 0
    %2028 = vmatmul.mubr.bf16.gmra.mrb[0].mxu0 %v1990
    %v2029 = vpop.f32.mrb[0].mxu0
    %v2030 = vadd.f32 0.0, %v2029
    %v2031 = vpop.f32.mrb[0].mxu0
    %v2032 = vpop.f32.mrb[0].mxu0
    %v2033 = vpop.f32.mrb[0].mxu0
    %2034 = vdwg.mxu0
    %v2035 = vmul.f32 %v1980, 0.35355338
    %v2036 = vmul.f32 %v2030, 0.35355338
    %v2037 = vmul.f32 %v2035, %v257
    %v2038 = vmul.f32 %v2036, %v258
    %v2039 = vadd.f32 %v2037, %v261
    %v2040 = vadd.f32 %v2038, %v262
    %v2041 = vsel %vm329, %v2039, -inf
    %2042 = vmax.xlane.f32.xlu0 %v2041
    %v2043 = vpop.xlane.xlu0 %2042
    %v2044 = vsel %vm329, %v2040, -inf
    %2045 = vmax.xlane.f32.xlu0 %v2044
    %v2046 = vpop.xlane.xlu0 %2045
    %v2047 = vsub.f32 %v2039, %v2043
    %v2048 = vsub.f32 %v2040, %v2046
    %v2049 = vmul.f32 %v2047, 1.442695
    %v2050 = vpow.pop %v2049
    %v2051 = vmul.f32 %v2048, 1.442695
    %v2052 = vpow.pop %v2051
    %v2053 = vsel %vm329, %v2050, 0.0
    %2054 = vadd.xlane.f32.xlu0 %v2053
    %v2055 = vpop.xlane.xlu0 %2054
    %v2056 = vsel %vm329, %v2052, 0.0
    %2057 = vadd.xlane.f32.xlu0 %v2056
    %v2058 = vpop.xlane.xlu0 %2057
    %v2059 = vrcp.pop %v2055
    %v2060 = vrcp.pop %v2058
    %v2061 = vmul.f32 %v2050, %v2059
    %v2062 = vmul.f32 %v2052, %v2060
    %v2063 = vpack.c.bf16 %v2061, %v2061
    %v2064 = vpack.c.bf16 %v2062, %v2062
    %2065 = vrot.lane.b32.xlu0 %v1485, 80
    %v2066 = vpop.permute.xlu0 %2065
    %v2068 = vsel %vm329, %v2063, 0
    %v2071 = vsel %vm460, %v2066, 0
    %2073 = vmatprep.subr.bf16.mxu0 0
    %2074 = vmatpush1.bf16.msra.mxu0 %v2071
    %2075 = vmatprep.subr.bf16.mxu0 0
    %2076 = vmatpush1.bf16.msra.mxu0 0
    %2077 = vmatprep.subr.bf16.mxu0 0
    %2078 = vmatpush1.bf16.msra.mxu0 0
    %2079 = vmatprep.subr.bf16.mxu0 0
    %2080 = vmatpush1.bf16.msra.mxu0 0
    %2081 = vmatprep.subr.bf16.mxu0 0
    %2082 = vmatpush1.bf16.msra.mxu0 0
    %2083 = vmatprep.subr.bf16.mxu0 0
    %2084 = vmatpush1.bf16.msra.mxu0 0
    %2085 = vmatprep.subr.bf16.mxu0 0
    %2086 = vmatpush1.bf16.msra.mxu0 0
    %2087 = vmatprep.subr.bf16.mxu0 0
    %2088 = vmatpush1.bf16.msra.mxu0 0
    %2089 = vmatprep.subr.bf16.mxu0 0
    %2090 = vmatpush1.bf16.msra.mxu0 0
    %2091 = vmatprep.subr.bf16.mxu0 0
    %2092 = vmatpush1.bf16.msra.mxu0 0
    %2093 = vmatprep.subr.bf16.mxu0 0
    %2094 = vmatpush1.bf16.msra.mxu0 0
    %2095 = vmatprep.subr.bf16.mxu0 0
    %2096 = vmatpush1.bf16.msra.mxu0 0
    %2097 = vmatprep.subr.bf16.mxu0 0
    %2098 = vmatpush1.bf16.msra.mxu0 0
    %2099 = vmatprep.subr.bf16.mxu0 0
    %2100 = vmatpush1.bf16.msra.mxu0 0
    %2101 = vmatprep.subr.bf16.mxu0 0
    %2102 = vmatpush1.bf16.msra.mxu0 0
    %2103 = vmatprep.subr.bf16.mxu0 0
    %2104 = vmatpush1.bf16.msra.mxu0 0
    %2105 = vmatprep.mubr.bf16.mxu0 0
    %2106 = vmatmul.mubr.bf16.gmra.mrb[0].mxu0 %v2068
    %v2107 = vpop.f32.mrb[0].mxu0
    %v2108 = vadd.f32 0.0, %v2107
    %v2109 = vpop.f32.mrb[0].mxu0
    %v2110 = vpop.f32.mrb[0].mxu0
    %v2111 = vpop.f32.mrb[0].mxu0
    %2112 = vdwg.mxu0
    %2113 = vrot.lane.b32.xlu0 %v1486, 80
    %v2114 = vpop.permute.xlu0 %2113
    %v2116 = vsel %vm329, %v2064, 0
    %v2119 = vsel %vm460, %v2114, 0
    %2121 = vmatprep.subr.bf16.mxu0 0
    %2122 = vmatpush1.bf16.msra.mxu0 %v2119
    %2123 = vmatprep.subr.bf16.mxu0 0
    %2124 = vmatpush1.bf16.msra.mxu0 0
    %2125 = vmatprep.subr.bf16.mxu0 0
    %2126 = vmatpush1.bf16.msra.mxu0 0
    %2127 = vmatprep.subr.bf16.mxu0 0
    %2128 = vmatpush1.bf16.msra.mxu0 0
    %2129 = vmatprep.subr.bf16.mxu0 0
    %2130 = vmatpush1.bf16.msra.mxu0 0
    %2131 = vmatprep.subr.bf16.mxu0 0
    %2132 = vmatpush1.bf16.msra.mxu0 0
    %2133 = vmatprep.subr.bf16.mxu0 0
    %2134 = vmatpush1.bf16.msra.mxu0 0
    %2135 = vmatprep.subr.bf16.mxu0 0
    %2136 = vmatpush1.bf16.msra.mxu0 0
    %2137 = vmatprep.subr.bf16.mxu0 0
    %2138 = vmatpush1.bf16.msra.mxu0 0
    %2139 = vmatprep.subr.bf16.mxu0 0
    %2140 = vmatpush1.bf16.msra.mxu0 0
    %2141 = vmatprep.subr.bf16.mxu0 0
    %2142 = vmatpush1.bf16.msra.mxu0 0
    %2143 = vmatprep.subr.bf16.mxu0 0
    %2144 = vmatpush1.bf16.msra.mxu0 0
    %2145 = vmatprep.subr.bf16.mxu0 0
    %2146 = vmatpush1.bf16.msra.mxu0 0
    %2147 = vmatprep.subr.bf16.mxu0 0
    %2148 = vmatpush1.bf16.msra.mxu0 0
    %2149 = vmatprep.subr.bf16.mxu0 0
    %2150 = vmatpush1.bf16.msra.mxu0 0
    %2151 = vmatprep.subr.bf16.mxu0 0
    %2152 = vmatpush1.bf16.msra.mxu0 0
    %2153 = vmatprep.mubr.bf16.mxu0 0
    %2154 = vmatmul.mubr.bf16.gmra.mrb[0].mxu0 %v2116
    %v2155 = vpop.f32.mrb[0].mxu0
    %v2156 = vadd.f32 0.0, %v2155
    %v2157 = vpop.f32.mrb[0].mxu0
    %v2158 = vpop.f32.mrb[0].mxu0
    %v2159 = vpop.f32.mrb[0].mxu0
    %2160 = vdwg.mxu0
    %2161 = vrot.lane.b32.xlu0 %v1483, 104
    %v2162 = vpop.permute.xlu0 %2161
    %2163 = vrot.lane.b32.xlu0 %v1485, 104
    %v2164 = vpop.permute.xlu0 %2163
    %v2166 = vsel %vm329, %v2162, 0
    %v2169 = vsel %vm329, %v2164, 0
    %2171 = vmatprep.subr.bf16.mxu0 0
    %2172 = vmatpush1.bf16.xpose.msra.mxu0 %v2169
    %2173 = vmatprep.subr.bf16.mxu0 0
    %2174 = vmatpush1.bf16.xpose.msra.mxu0 0
    %2175 = vmatprep.subr.bf16.mxu0 0
    %2176 = vmatpush1.bf16.xpose.msra.mxu0 0
    %2177 = vmatprep.subr.bf16.mxu0 0
    %2178 = vmatpush1.bf16.xpose.msra.mxu0 0
    %2179 = vmatprep.subr.bf16.mxu0 0
    %2180 = vmatpush1.bf16.xpose.msra.mxu0 0
    %2181 = vmatprep.subr.bf16.mxu0 0
    %2182 = vmatpush1.bf16.xpose.msra.mxu0 0
    %2183 = vmatprep.subr.bf16.mxu0 0
    %2184 = vmatpush1.bf16.xpose.msra.mxu0 0
    %2185 = vmatprep.subr.bf16.mxu0 0
    %2186 = vmatpush1.bf16.xpose.msra.mxu0 0
    %2187 = vmatprep.subr.bf16.mxu0 0
    %2188 = vmatpush1.bf16.xpose.msra.mxu0 0
    %2189 = vmatprep.subr.bf16.mxu0 0
    %2190 = vmatpush1.bf16.xpose.msra.mxu0 0
    %2191 = vmatprep.subr.bf16.mxu0 0
    %2192 = vmatpush1.bf16.xpose.msra.mxu0 0
    %2193 = vmatprep.subr.bf16.mxu0 0
    %2194 = vmatpush1.bf16.xpose.msra.mxu0 0
    %2195 = vmatprep.subr.bf16.mxu0 0
    %2196 = vmatpush1.bf16.xpose.msra.mxu0 0
    %2197 = vmatprep.subr.bf16.mxu0 0
    %2198 = vmatpush1.bf16.xpose.msra.mxu0 0
    %2199 = vmatprep.subr.bf16.mxu0 0
    %2200 = vmatpush1.bf16.xpose.msra.mxu0 0
    %2201 = vmatprep.subr.bf16.mxu0 0
    %2202 = vmatpush1.bf16.xpose.msra.mxu0 0
    %2203 = vmatprep.mubr.bf16.mxu0 0
    %2204 = vmatmul.mubr.bf16.gmra.mrb[0].mxu0 %v2166
    %v2205 = vpop.f32.mrb[0].mxu0
    %v2206 = vadd.f32 0.0, %v2205
    %v2207 = vpop.f32.mrb[0].mxu0
    %v2208 = vpop.f32.mrb[0].mxu0
    %v2209 = vpop.f32.mrb[0].mxu0
    %2210 = vdwg.mxu0
    %2211 = vrot.lane.b32.xlu0 %v1484, 104
    %v2212 = vpop.permute.xlu0 %2211
    %2213 = vrot.lane.b32.xlu0 %v1486, 104
    %v2214 = vpop.permute.xlu0 %2213
    %v2216 = vsel %vm329, %v2212, 0
    %v2219 = vsel %vm329, %v2214, 0
    %2221 = vmatprep.subr.bf16.mxu0 0
    %2222 = vmatpush1.bf16.xpose.msra.mxu0 %v2219
    %2223 = vmatprep.subr.bf16.mxu0 0
    %2224 = vmatpush1.bf16.xpose.msra.mxu0 0
    %2225 = vmatprep.subr.bf16.mxu0 0
    %2226 = vmatpush1.bf16.xpose.msra.mxu0 0
    %2227 = vmatprep.subr.bf16.mxu0 0
    %2228 = vmatpush1.bf16.xpose.msra.mxu0 0
    %2229 = vmatprep.subr.bf16.mxu0 0
    %2230 = vmatpush1.bf16.xpose.msra.mxu0 0
    %2231 = vmatprep.subr.bf16.mxu0 0
    %2232 = vmatpush1.bf16.xpose.msra.mxu0 0
    %2233 = vmatprep.subr.bf16.mxu0 0
    %2234 = vmatpush1.bf16.xpose.msra.mxu0 0
    %2235 = vmatprep.subr.bf16.mxu0 0
    %2236 = vmatpush1.bf16.xpose.msra.mxu0 0
    %2237 = vmatprep.subr.bf16.mxu0 0
    %2238 = vmatpush1.bf16.xpose.msra.mxu0 0
    %2239 = vmatprep.subr.bf16.mxu0 0
    %2240 = vmatpush1.bf16.xpose.msra.mxu0 0
    %2241 = vmatprep.subr.bf16.mxu0 0
    %2242 = vmatpush1.bf16.xpose.msra.mxu0 0
    %2243 = vmatprep.subr.bf16.mxu0 0
    %2244 = vmatpush1.bf16.xpose.msra.mxu0 0
    %2245 = vmatprep.subr.bf16.mxu0 0
    %2246 = vmatpush1.bf16.xpose.msra.mxu0 0
    %2247 = vmatprep.subr.bf16.mxu0 0
    %2248 = vmatpush1.bf16.xpose.msra.mxu0 0
    %2249 = vmatprep.subr.bf16.mxu0 0
    %2250 = vmatpush1.bf16.xpose.msra.mxu0 0
    %2251 = vmatprep.subr.bf16.mxu0 0
    %2252 = vmatpush1.bf16.xpose.msra.mxu0 0
    %2253 = vmatprep.mubr.bf16.mxu0 0
    %2254 = vmatmul.mubr.bf16.gmra.mrb[0].mxu0 %v2216
    %v2255 = vpop.f32.mrb[0].mxu0
    %v2256 = vadd.f32 0.0, %v2255
    %v2257 = vpop.f32.mrb[0].mxu0
    %v2258 = vpop.f32.mrb[0].mxu0
    %v2259 = vpop.f32.mrb[0].mxu0
    %2260 = vdwg.mxu0
    %v2261 = vmul.f32 %v2206, 0.35355338
    %v2262 = vmul.f32 %v2256, 0.35355338
    %v2263 = vmul.f32 %v2261, %v257
    %v2264 = vmul.f32 %v2262, %v258
    %v2265 = vadd.f32 %v2263, %v261
    %v2266 = vadd.f32 %v2264, %v262
    %v2267 = vsel %vm329, %v2265, -inf
    %2268 = vmax.xlane.f32.xlu0 %v2267
    %v2269 = vpop.xlane.xlu0 %2268
    %v2270 = vsel %vm329, %v2266, -inf
    %2271 = vmax.xlane.f32.xlu0 %v2270
    %v2272 = vpop.xlane.xlu0 %2271
    %v2273 = vsub.f32 %v2265, %v2269
    %v2274 = vsub.f32 %v2266, %v2272
    %v2275 = vmul.f32 %v2273, 1.442695
    %v2276 = vpow.pop %v2275
    %v2277 = vmul.f32 %v2274, 1.442695
    %v2278 = vpow.pop %v2277
    %v2279 = vsel %vm329, %v2276, 0.0
    %2280 = vadd.xlane.f32.xlu0 %v2279
    %v2281 = vpop.xlane.xlu0 %2280
    %v2282 = vsel %vm329, %v2278, 0.0
    %2283 = vadd.xlane.f32.xlu0 %v2282
    %v2284 = vpop.xlane.xlu0 %2283
    %v2285 = vrcp.pop %v2281
    %v2286 = vrcp.pop %v2284
    %v2287 = vmul.f32 %v2276, %v2285
    %v2288 = vmul.f32 %v2278, %v2286
    %v2289 = vpack.c.bf16 %v2287, %v2287
    %v2290 = vpack.c.bf16 %v2288, %v2288
    %2291 = vrot.lane.b32.xlu0 %v1485, 72
    %v2292 = vpop.permute.xlu0 %2291
    %v2294 = vsel %vm329, %v2289, 0
    %v2297 = vsel %vm460, %v2292, 0
    %2299 = vmatprep.subr.bf16.mxu0 0
    %2300 = vmatpush1.bf16.msra.mxu0 %v2297
    %2301 = vmatprep.subr.bf16.mxu0 0
    %2302 = vmatpush1.bf16.msra.mxu0 0
    %2303 = vmatprep.subr.bf16.mxu0 0
    %2304 = vmatpush1.bf16.msra.mxu0 0
    %2305 = vmatprep.subr.bf16.mxu0 0
    %2306 = vmatpush1.bf16.msra.mxu0 0
    %2307 = vmatprep.subr.bf16.mxu0 0
    %2308 = vmatpush1.bf16.msra.mxu0 0
    %2309 = vmatprep.subr.bf16.mxu0 0
    %2310 = vmatpush1.bf16.msra.mxu0 0
    %2311 = vmatprep.subr.bf16.mxu0 0
    %2312 = vmatpush1.bf16.msra.mxu0 0
    %2313 = vmatprep.subr.bf16.mxu0 0
    %2314 = vmatpush1.bf16.msra.mxu0 0
    %2315 = vmatprep.subr.bf16.mxu0 0
    %2316 = vmatpush1.bf16.msra.mxu0 0
    %2317 = vmatprep.subr.bf16.mxu0 0
    %2318 = vmatpush1.bf16.msra.mxu0 0
    %2319 = vmatprep.subr.bf16.mxu0 0
    %2320 = vmatpush1.bf16.msra.mxu0 0
    %2321 = vmatprep.subr.bf16.mxu0 0
    %2322 = vmatpush1.bf16.msra.mxu0 0
    %2323 = vmatprep.subr.bf16.mxu0 0
    %2324 = vmatpush1.bf16.msra.mxu0 0
    %2325 = vmatprep.subr.bf16.mxu0 0
    %2326 = vmatpush1.bf16.msra.mxu0 0
    %2327 = vmatprep.subr.bf16.mxu0 0
    %2328 = vmatpush1.bf16.msra.mxu0 0
    %2329 = vmatprep.subr.bf16.mxu0 0
    %2330 = vmatpush1.bf16.msra.mxu0 0
    %2331 = vmatprep.mubr.bf16.mxu0 0
    %2332 = vmatmul.mubr.bf16.gmra.mrb[0].mxu0 %v2294
    %v2333 = vpop.f32.mrb[0].mxu0
    %v2334 = vadd.f32 0.0, %v2333
    %v2335 = vpop.f32.mrb[0].mxu0
    %v2336 = vpop.f32.mrb[0].mxu0
    %v2337 = vpop.f32.mrb[0].mxu0
    %2338 = vdwg.mxu0
    %2339 = vrot.lane.b32.xlu0 %v1486, 72
    %v2340 = vpop.permute.xlu0 %2339
    %v2342 = vsel %vm329, %v2290, 0
    %v2345 = vsel %vm460, %v2340, 0
    %2347 = vmatprep.subr.bf16.mxu0 0
    %2348 = vmatpush1.bf16.msra.mxu0 %v2345
    %2349 = vmatprep.subr.bf16.mxu0 0
    %2350 = vmatpush1.bf16.msra.mxu0 0
    %2351 = vmatprep.subr.bf16.mxu0 0
    %2352 = vmatpush1.bf16.msra.mxu0 0
    %2353 = vmatprep.subr.bf16.mxu0 0
    %2354 = vmatpush1.bf16.msra.mxu0 0
    %2355 = vmatprep.subr.bf16.mxu0 0
    %2356 = vmatpush1.bf16.msra.mxu0 0
    %2357 = vmatprep.subr.bf16.mxu0 0
    %2358 = vmatpush1.bf16.msra.mxu0 0
    %2359 = vmatprep.subr.bf16.mxu0 0
    %2360 = vmatpush1.bf16.msra.mxu0 0
    %2361 = vmatprep.subr.bf16.mxu0 0
    %2362 = vmatpush1.bf16.msra.mxu0 0
    %2363 = vmatprep.subr.bf16.mxu0 0
    %2364 = vmatpush1.bf16.msra.mxu0 0
    %2365 = vmatprep.subr.bf16.mxu0 0
    %2366 = vmatpush1.bf16.msra.mxu0 0
    %2367 = vmatprep.subr.bf16.mxu0 0
    %2368 = vmatpush1.bf16.msra.mxu0 0
    %2369 = vmatprep.subr.bf16.mxu0 0
    %2370 = vmatpush1.bf16.msra.mxu0 0
    %2371 = vmatprep.subr.bf16.mxu0 0
    %2372 = vmatpush1.bf16.msra.mxu0 0
    %2373 = vmatprep.subr.bf16.mxu0 0
    %2374 = vmatpush1.bf16.msra.mxu0 0
    %2375 = vmatprep.subr.bf16.mxu0 0
    %2376 = vmatpush1.bf16.msra.mxu0 0
    %2377 = vmatprep.subr.bf16.mxu0 0
    %2378 = vmatpush1.bf16.msra.mxu0 0
    %2379 = vmatprep.mubr.bf16.mxu0 0
    %2380 = vmatmul.mubr.bf16.gmra.mrb[0].mxu0 %v2342
    %v2381 = vpop.f32.mrb[0].mxu0
    %v2382 = vadd.f32 0.0, %v2381
    %v2383 = vpop.f32.mrb[0].mxu0
    %v2384 = vpop.f32.mrb[0].mxu0
    %v2385 = vpop.f32.mrb[0].mxu0
    %2386 = vdwg.mxu0
    %2389 = vrot.lane.b32.xlu0 %v1882, 8
    %v2390 = vpop.permute.xlu0 %2389
    %2391 = vrot.lane.b32.xlu0 %v1930, 8
    %v2392 = vpop.permute.xlu0 %2391
    %2397 = vrot.lane.b32.xlu0 %v2108, 16
    %v2398 = vpop.permute.xlu0 %2397
    %2399 = vrot.lane.b32.xlu0 %v2156, 16
    %v2400 = vpop.permute.xlu0 %2399
    %2405 = vrot.lane.b32.xlu0 %v2334, 24
    %v2406 = vpop.permute.xlu0 %2405
    %2407 = vrot.lane.b32.xlu0 %v2382, 24
    %v2408 = vpop.permute.xlu0 %2407
    %v2411 = vsel %vm329, %v1653, %v2390
    %v2412 = vsel %vm329, %v1702, %v2392
    %v2413 = vsel %vm1256, %v2411, %v2398
    %v2414 = vsel %vm1256, %v2412, %v2400
    %v2415 = vsel %vm1259, %v2413, %v2406
    %v2416 = vsel %vm1259, %v2414, %v2408
    %v2417 = vpack.c.bf16 %v2416, %v2415
    %s2418 = scalar_lea.vmem %s8, 16
    %v2419 = vld [vmem:[%s2418] sm:$0xf]
    %v2420 = vld [vmem:[%s2418 + $0x4] sm:$0xf]
    %v2421 = vld [vmem:[%s2418 + $0x8] sm:$0xf]
    %v2422 = vld [vmem:[%s2418 + $0xc] sm:$0xf]
    %v2423 = vlaneseq
    %v2424 = vshrl.u32 %v2423, 7
    %v2425 = vsub.s32 5, %v2424
    %v2426 = vrot.slane %v43, %v2425
    %v2431 = vunpack.c.l.b16 %v2419
    %v2432 = vunpack.c.l.b16 %v2420
    %v2433 = vunpack.c.l.b16 %v2421
    %v2434 = vunpack.c.l.b16 %v2422
    %v2435 = vpack.c.b16 %v2432, %v2431
    %v2436 = vpack.c.b16 %v2434, %v2433
    %v2440 = vsel %vm193, %v2417, 0
    %2442 = vmatprep.subr.bf16.mxu0 0
    %2443 = vmatpush1.bf16.msra.mxu0 %v2435
    %2444 = vmatprep.subr.bf16.mxu0 0
    %2445 = vmatpush1.bf16.msra.mxu0 %v2436
    %2446 = vmatprep.subr.bf16.mxu0 0
    %2447 = vmatpush1.bf16.msra.mxu0 0
    %2448 = vmatprep.subr.bf16.mxu0 0
    %2449 = vmatpush1.bf16.msra.mxu0 0
    %2450 = vmatprep.subr.bf16.mxu0 0
    %2451 = vmatpush1.bf16.msra.mxu0 0
    %2452 = vmatprep.subr.bf16.mxu0 0
    %2453 = vmatpush1.bf16.msra.mxu0 0
    %2454 = vmatprep.subr.bf16.mxu0 0
    %2455 = vmatpush1.bf16.msra.mxu0 0
    %2456 = vmatprep.subr.bf16.mxu0 0
    %2457 = vmatpush1.bf16.msra.mxu0 0
    %2458 = vmatprep.subr.bf16.mxu0 0
    %2459 = vmatpush1.bf16.msra.mxu0 0
    %2460 = vmatprep.subr.bf16.mxu0 0
    %2461 = vmatpush1.bf16.msra.mxu0 0
    %2462 = vmatprep.subr.bf16.mxu0 0
    %2463 = vmatpush1.bf16.msra.mxu0 0
    %2464 = vmatprep.subr.bf16.mxu0 0
    %2465 = vmatpush1.bf16.msra.mxu0 0
    %2466 = vmatprep.subr.bf16.mxu0 0
    %2467 = vmatpush1.bf16.msra.mxu0 0
    %2468 = vmatprep.subr.bf16.mxu0 0
    %2469 = vmatpush1.bf16.msra.mxu0 0
    %2470 = vmatprep.subr.bf16.mxu0 0
    %2471 = vmatpush1.bf16.msra.mxu0 0
    %2472 = vmatprep.subr.bf16.mxu0 0
    %2473 = vmatpush1.bf16.msra.mxu0 0
    %2474 = vmatprep.mubr.bf16.mxu0 0
    %2475 = vmatmul.mubr.bf16.gmra.mrb[0].mxu0 %v2440
    %v2476 = vpop.f32.mrb[0].mxu0
    %v2477 = vadd.f32 %v2426, %v2476
    %v2478 = vpop.f32.mrb[0].mxu0
    %v2479 = vpop.f32.mrb[0].mxu0
    %v2480 = vadd.f32 %v2426, %v2479
    %v2481 = vpop.f32.mrb[0].mxu0
    %2482 = vdwg.mxu0
    %v2483 = vadd.f32 %v2477, %v1369
    %v2484 = vadd.f32 %v2480, %v1370
    %v2485 = vsel %vm193, %v2483, 0.0
    %2486 = vadd.xlane.f32.xlu0 %v2485
    %v2487 = vpop.xlane.xlu0 %2486
    %v2488 = vsel %vm193, %v2484, 0.0
    %2489 = vadd.xlane.f32.xlu0 %v2488
    %v2490 = vpop.xlane.xlu0 %2489
    %v2491 = vmul.f32 %v2483, %v2483
    %v2492 = vmul.f32 %v2484, %v2484
    %v2493 = vsel %vm193, %v2491, 0.0
    %2494 = vadd.xlane.f32.xlu0 %v2493
    %v2495 = vpop.xlane.xlu0 %2494
    %v2496 = vsel %vm193, %v2492, 0.0
    %2497 = vadd.xlane.f32.xlu0 %v2496
    %v2498 = vpop.xlane.xlu0 %2497
    %v2499 = vmul.f32 %v2487, 0.03125
    %v2500 = vmul.f32 %v2490, 0.03125
    %v2501 = vmul.f32 %v2495, 0.03125
    %v2502 = vmul.f32 %v2498, 0.03125
    %v2503 = vmul.f32 %v2499, %v2499
    %v2504 = vmul.f32 %v2500, %v2500
    %v2505 = vsub.f32 %v2501, %v2503
    %v2506 = vsub.f32 %v2502, %v2504
    %v2507 = vsub.f32 %v2483, %v2499
    %v2508 = vsub.f32 %v2484, %v2500
    %v2509 = vadd.f32 %v2505, 1e-06
    %v2510 = vadd.f32 %v2506, 1e-06
    %v2511 = vrsqrt.pop %v2509
    %v2512 = vrsqrt.pop %v2510
    %v2513 = vmul.f32 %v2507, %v2511
    %v2514 = vmul.f32 %v2508, %v2512
    %v2515 = vlaneseq
    %v2516 = vshrl.u32 %v2515, 7
    %v2517 = vsub.s32 6, %v2516
    %v2518 = vrot.slane %v43, %v2517
    %v2519 = vmul.f32 %v2513, %v2518
    %v2520 = vmul.f32 %v2514, %v2518
    %v2521 = vlaneseq
    %v2522 = vshrl.u32 %v2521, 7
    %v2523 = vsub.s32 7, %v2522
    %v2524 = vrot.slane %v43, %v2523
    %v2525 = vadd.f32 %v2519, %v2524
    %v2526 = vadd.f32 %v2520, %v2524
    %v2527 = vpack.c.bf16 %v2526, %v2525
    %v2528 = vld [vmem:[%s9] sm:$0xf]
    %v2529 = vld [vmem:[%s9 + $0x4] sm:$0xf]
    %v2530 = vld [vmem:[%s9 + $0x8] sm:$0xf]
    %v2531 = vld [vmem:[%s9 + $0xc] sm:$0xf]
    %v2532 = vlaneseq
    %v2533 = vshrl.u32 %v2532, 7
    %v2534 = vsub.s32 6, %v2533
    %v2535 = vrot.slane %v44, %v2534
    %v2540 = vunpack.c.l.b16 %v2528
    %v2541 = vunpack.c.l.b16 %v2529
    %v2542 = vunpack.c.l.b16 %v2530
    %v2543 = vunpack.c.l.b16 %v2531
    %v2544 = vpack.c.b16 %v2541, %v2540
    %v2545 = vpack.c.b16 %v2543, %v2542
    %v2549 = vsel %vm193, %v2527, 0
    %2551 = vmatprep.subr.bf16.mxu0 0
    %2552 = vmatpush1.bf16.msra.mxu0 %v2544
    %2553 = vmatprep.subr.bf16.mxu0 0
    %2554 = vmatpush1.bf16.msra.mxu0 %v2545
    %2555 = vmatprep.subr.bf16.mxu0 0
    %2556 = vmatpush1.bf16.msra.mxu0 0
    %2557 = vmatprep.subr.bf16.mxu0 0
    %2558 = vmatpush1.bf16.msra.mxu0 0
    %2559 = vmatprep.subr.bf16.mxu0 0
    %2560 = vmatpush1.bf16.msra.mxu0 0
    %2561 = vmatprep.subr.bf16.mxu0 0
    %2562 = vmatpush1.bf16.msra.mxu0 0
    %2563 = vmatprep.subr.bf16.mxu0 0
    %2564 = vmatpush1.bf16.msra.mxu0 0
    %2565 = vmatprep.subr.bf16.mxu0 0
    %2566 = vmatpush1.bf16.msra.mxu0 0
    %2567 = vmatprep.subr.bf16.mxu0 0
    %2568 = vmatpush1.bf16.msra.mxu0 0
    %2569 = vmatprep.subr.bf16.mxu0 0
    %2570 = vmatpush1.bf16.msra.mxu0 0
    %2571 = vmatprep.subr.bf16.mxu0 0
    %2572 = vmatpush1.bf16.msra.mxu0 0
    %2573 = vmatprep.subr.bf16.mxu0 0
    %2574 = vmatpush1.bf16.msra.mxu0 0
    %2575 = vmatprep.subr.bf16.mxu0 0
    %2576 = vmatpush1.bf16.msra.mxu0 0
    %2577 = vmatprep.subr.bf16.mxu0 0
    %2578 = vmatpush1.bf16.msra.mxu0 0
    %2579 = vmatprep.subr.bf16.mxu0 0
    %2580 = vmatpush1.bf16.msra.mxu0 0
    %2581 = vmatprep.subr.bf16.mxu0 0
    %2582 = vmatpush1.bf16.msra.mxu0 0
    %2583 = vmatprep.mubr.bf16.mxu0 0
    %2584 = vmatmul.mubr.bf16.gmra.mrb[0].mxu0 %v2549
    %v2585 = vpop.f32.mrb[0].mxu0
    %v2586 = vadd.f32 %v2535, %v2585
    %v2587 = vpop.f32.mrb[0].mxu0
    %v2588 = vpop.f32.mrb[0].mxu0
    %v2589 = vadd.f32 %v2535, %v2588
    %v2590 = vpop.f32.mrb[0].mxu0
    %2591 = vdwg.mxu0
    %v2592 = vmax.f32 %v2586, 0.0
    %v2593 = vmax.f32 %v2589, 0.0
    %v2594 = vpack.c.bf16 %v2593, %v2592
    %v2595 = vld [vmem:[%s10] sm:$0xf]
    %v2596 = vld [vmem:[%s10 + $0x4] sm:$0xf]
    %v2597 = vld [vmem:[%s10 + $0x8] sm:$0xf]
    %v2598 = vld [vmem:[%s10 + $0xc] sm:$0xf]
    %v2599 = vld [vmem:[%s10 + $0x10] sm:$0xf]
    %v2600 = vld [vmem:[%s10 + $0x14] sm:$0xf]
    %v2601 = vld [vmem:[%s10 + $0x18] sm:$0xf]
    %v2602 = vld [vmem:[%s10 + $0x1c] sm:$0xf]
    %v2603 = vlaneseq
    %v2604 = vshrl.u32 %v2603, 7
    %v2605 = vsub.s32 7, %v2604
    %v2606 = vrot.slane %v44, %v2605
    %v2615 = vunpack.c.l.b16 %v2595
    %v2616 = vunpack.c.l.b16 %v2596
    %v2617 = vunpack.c.l.b16 %v2597
    %v2618 = vunpack.c.l.b16 %v2598
    %v2619 = vunpack.c.l.b16 %v2599
    %v2620 = vunpack.c.l.b16 %v2600
    %v2621 = vunpack.c.l.b16 %v2601
    %v2622 = vunpack.c.l.b16 %v2602
    %v2623 = vpack.c.b16 %v2616, %v2615
    %v2624 = vpack.c.b16 %v2618, %v2617
    %v2625 = vpack.c.b16 %v2620, %v2619
    %v2626 = vpack.c.b16 %v2622, %v2621
    %vm2631 = vcmask 523264
    %v2633 = vsel %vm2631, %v2594, 0
    %2635 = vmatprep.subr.bf16.mxu0 0
    %2636 = vmatpush1.bf16.msra.mxu0 %v2623
    %2637 = vmatprep.subr.bf16.mxu0 0
    %2638 = vmatpush1.bf16.msra.mxu0 %v2624
    %2639 = vmatprep.subr.bf16.mxu0 0
    %2640 = vmatpush1.bf16.msra.mxu0 %v2625
    %2641 = vmatprep.subr.bf16.mxu0 0
    %2642 = vmatpush1.bf16.msra.mxu0 %v2626
    %2643 = vmatprep.subr.bf16.mxu0 0
    %2644 = vmatpush1.bf16.msra.mxu0 0
    %2645 = vmatprep.subr.bf16.mxu0 0
    %2646 = vmatpush1.bf16.msra.mxu0 0
    %2647 = vmatprep.subr.bf16.mxu0 0
    %2648 = vmatpush1.bf16.msra.mxu0 0
    %2649 = vmatprep.subr.bf16.mxu0 0
    %2650 = vmatpush1.bf16.msra.mxu0 0
    %2651 = vmatprep.subr.bf16.mxu0 0
    %2652 = vmatpush1.bf16.msra.mxu0 0
    %2653 = vmatprep.subr.bf16.mxu0 0
    %2654 = vmatpush1.bf16.msra.mxu0 0
    %2655 = vmatprep.subr.bf16.mxu0 0
    %2656 = vmatpush1.bf16.msra.mxu0 0
    %2657 = vmatprep.subr.bf16.mxu0 0
    %2658 = vmatpush1.bf16.msra.mxu0 0
    %2659 = vmatprep.subr.bf16.mxu0 0
    %2660 = vmatpush1.bf16.msra.mxu0 0
    %2661 = vmatprep.subr.bf16.mxu0 0
    %2662 = vmatpush1.bf16.msra.mxu0 0
    %2663 = vmatprep.subr.bf16.mxu0 0
    %2664 = vmatpush1.bf16.msra.mxu0 0
    %2665 = vmatprep.subr.bf16.mxu0 0
    %2666 = vmatpush1.bf16.msra.mxu0 0
    %2667 = vmatprep.mubr.bf16.mxu0 0
    %2668 = vmatmul.mubr.bf16.gmra.mrb[0].mxu0 %v2633
    %v2669 = vpop.f32.mrb[0].mxu0
    %v2670 = vadd.f32 %v2606, %v2669
    %v2671 = vpop.f32.mrb[0].mxu0
    %v2672 = vpop.f32.mrb[0].mxu0
    %v2673 = vadd.f32 %v2606, %v2672
    %v2674 = vpop.f32.mrb[0].mxu0
    %2675 = vdwg.mxu0
    %v2676 = vadd.f32 %v2670, %v2525
    %v2677 = vadd.f32 %v2673, %v2526
    %v2678 = vsel %vm193, %v2676, 0.0
    %2679 = vadd.xlane.f32.xlu0 %v2678
    %v2680 = vpop.xlane.xlu0 %2679
    %v2681 = vsel %vm193, %v2677, 0.0
    %2682 = vadd.xlane.f32.xlu0 %v2681
    %v2683 = vpop.xlane.xlu0 %2682
    %v2684 = vmul.f32 %v2676, %v2676
    %v2685 = vmul.f32 %v2677, %v2677
    %v2686 = vsel %vm193, %v2684, 0.0
    %2687 = vadd.xlane.f32.xlu0 %v2686
    %v2688 = vpop.xlane.xlu0 %2687
    %v2689 = vsel %vm193, %v2685, 0.0
    %2690 = vadd.xlane.f32.xlu0 %v2689
    %v2691 = vpop.xlane.xlu0 %2690
    %v2692 = vmul.f32 %v2680, 0.03125
    %v2693 = vmul.f32 %v2683, 0.03125
    %v2694 = vmul.f32 %v2688, 0.03125
    %v2695 = vmul.f32 %v2691, 0.03125
    %v2696 = vmul.f32 %v2692, %v2692
    %v2697 = vmul.f32 %v2693, %v2693
    %v2698 = vsub.f32 %v2694, %v2696
    %v2699 = vsub.f32 %v2695, %v2697
    %v2700 = vsub.f32 %v2676, %v2692
    %v2701 = vsub.f32 %v2677, %v2693
    %v2702 = vadd.f32 %v2698, 1e-06
    %v2703 = vadd.f32 %v2699, 1e-06
    %v2704 = vrsqrt.pop %v2702
    %v2705 = vrsqrt.pop %v2703
    %v2706 = vmul.f32 %v2700, %v2704
    %v2707 = vmul.f32 %v2701, %v2705
    %v2708 = vlaneseq
    %v2709 = vshrl.u32 %v2708, 7
    %v2710 = vsub.s32 0, %v2709
    %v2711 = vrot.slane %v45, %v2710
    %v2712 = vmul.f32 %v2706, %v2711
    %v2713 = vmul.f32 %v2707, %v2711
    %v2714 = vlaneseq
    %v2715 = vshrl.u32 %v2714, 7
    %v2716 = vsub.s32 1, %v2715
    %v2717 = vrot.slane %v45, %v2716
    %v2718 = vadd.f32 %v2712, %v2717
    %v2719 = vadd.f32 %v2713, %v2717
    %v2720 = vpack.c.bf16 %v2719, %v2718
    %s2721 = scalar_lea.vmem %s7, 32
    %v2722 = vld [vmem:[%s2721] sm:$0xf]
    %v2723 = vld [vmem:[%s2721 + $0x4] sm:$0xf]
    %v2724 = vld [vmem:[%s2721 + $0x8] sm:$0xf]
    %v2725 = vld [vmem:[%s2721 + $0xc] sm:$0xf]
    %v2730 = vunpack.c.l.b16 %v2722
    %v2731 = vunpack.c.l.b16 %v2723
    %v2732 = vunpack.c.l.b16 %v2724
    %v2733 = vunpack.c.l.b16 %v2725
    %v2734 = vpack.c.b16 %v2731, %v2730
    %v2735 = vpack.c.b16 %v2733, %v2732
    %v2739 = vsel %vm193, %v2720, 0
    %2741 = vmatprep.subr.bf16.mxu0 0
    %2742 = vmatpush1.bf16.msra.mxu0 %v2734
    %2743 = vmatprep.subr.bf16.mxu0 0
    %2744 = vmatpush1.bf16.msra.mxu0 %v2735
    %2745 = vmatprep.subr.bf16.mxu0 0
    %2746 = vmatpush1.bf16.msra.mxu0 0
    %2747 = vmatprep.subr.bf16.mxu0 0
    %2748 = vmatpush1.bf16.msra.mxu0 0
    %2749 = vmatprep.subr.bf16.mxu0 0
    %2750 = vmatpush1.bf16.msra.mxu0 0
    %2751 = vmatprep.subr.bf16.mxu0 0
    %2752 = vmatpush1.bf16.msra.mxu0 0
    %2753 = vmatprep.subr.bf16.mxu0 0
    %2754 = vmatpush1.bf16.msra.mxu0 0
    %2755 = vmatprep.subr.bf16.mxu0 0
    %2756 = vmatpush1.bf16.msra.mxu0 0
    %2757 = vmatprep.subr.bf16.mxu0 0
    %2758 = vmatpush1.bf16.msra.mxu0 0
    %2759 = vmatprep.subr.bf16.mxu0 0
    %2760 = vmatpush1.bf16.msra.mxu0 0
    %2761 = vmatprep.subr.bf16.mxu0 0
    %2762 = vmatpush1.bf16.msra.mxu0 0
    %2763 = vmatprep.subr.bf16.mxu0 0
    %2764 = vmatpush1.bf16.msra.mxu0 0
    %2765 = vmatprep.subr.bf16.mxu0 0
    %2766 = vmatpush1.bf16.msra.mxu0 0
    %2767 = vmatprep.subr.bf16.mxu0 0
    %2768 = vmatpush1.bf16.msra.mxu0 0
    %2769 = vmatprep.subr.bf16.mxu0 0
    %2770 = vmatpush1.bf16.msra.mxu0 0
    %2771 = vmatprep.subr.bf16.mxu0 0
    %2772 = vmatpush1.bf16.msra.mxu0 0
    %2773 = vmatprep.mubr.bf16.mxu0 0
    %2774 = vmatmul.mubr.bf16.gmra.mrb[0].mxu0 %v2739
    %v2775 = vpop.f32.mrb[0].mxu0
    %v2776 = vadd.f32 0.0, %v2775
    %v2777 = vpop.f32.mrb[0].mxu0
    %v2778 = vpop.f32.mrb[0].mxu0
    %v2779 = vadd.f32 0.0, %v2778
    %v2780 = vpop.f32.mrb[0].mxu0
    %2781 = vdwg.mxu0
    %v2782 = vpack.c.bf16 %v2776, %v2776
    %v2783 = vpack.c.bf16 %v2779, %v2779
    %2785 = vrot.lane.b32.xlu0 %v2782, 96
    %v2786 = vpop.permute.xlu0 %2785
    %v2788 = vsel %vm329, %v2782, 0
    %v2791 = vsel %vm329, %v2786, 0
    %2793 = vmatprep.subr.bf16.mxu0 0
    %2794 = vmatpush1.bf16.xpose.msra.mxu0 %v2791
    %2795 = vmatprep.subr.bf16.mxu0 0
    %2796 = vmatpush1.bf16.xpose.msra.mxu0 0
    %2797 = vmatprep.subr.bf16.mxu0 0
    %2798 = vmatpush1.bf16.xpose.msra.mxu0 0
    %2799 = vmatprep.subr.bf16.mxu0 0
    %2800 = vmatpush1.bf16.xpose.msra.mxu0 0
    %2801 = vmatprep.subr.bf16.mxu0 0
    %2802 = vmatpush1.bf16.xpose.msra.mxu0 0
    %2803 = vmatprep.subr.bf16.mxu0 0
    %2804 = vmatpush1.bf16.xpose.msra.mxu0 0
    %2805 = vmatprep.subr.bf16.mxu0 0
    %2806 = vmatpush1.bf16.xpose.msra.mxu0 0
    %2807 = vmatprep.subr.bf16.mxu0 0
    %2808 = vmatpush1.bf16.xpose.msra.mxu0 0
    %2809 = vmatprep.subr.bf16.mxu0 0
    %2810 = vmatpush1.bf16.xpose.msra.mxu0 0
    %2811 = vmatprep.subr.bf16.mxu0 0
    %2812 = vmatpush1.bf16.xpose.msra.mxu0 0
    %2813 = vmatprep.subr.bf16.mxu0 0
    %2814 = vmatpush1.bf16.xpose.msra.mxu0 0
    %2815 = vmatprep.subr.bf16.mxu0 0
    %2816 = vmatpush1.bf16.xpose.msra.mxu0 0
    %2817 = vmatprep.subr.bf16.mxu0 0
    %2818 = vmatpush1.bf16.xpose.msra.mxu0 0
    %2819 = vmatprep.subr.bf16.mxu0 0
    %2820 = vmatpush1.bf16.xpose.msra.mxu0 0
    %2821 = vmatprep.subr.bf16.mxu0 0
    %2822 = vmatpush1.bf16.xpose.msra.mxu0 0
    %2823 = vmatprep.subr.bf16.mxu0 0
    %2824 = vmatpush1.bf16.xpose.msra.mxu0 0
    %2825 = vmatprep.mubr.bf16.mxu0 0
    %2826 = vmatmul.mubr.bf16.gmra.mrb[0].mxu0 %v2788
    %v2827 = vpop.f32.mrb[0].mxu0
    %v2828 = vadd.f32 0.0, %v2827
    %v2829 = vpop.f32.mrb[0].mxu0
    %v2830 = vpop.f32.mrb[0].mxu0
    %v2831 = vpop.f32.mrb[0].mxu0
    %2832 = vdwg.mxu0
    %2834 = vrot.lane.b32.xlu0 %v2783, 96
    %v2835 = vpop.permute.xlu0 %2834
    %v2837 = vsel %vm329, %v2783, 0
    %v2840 = vsel %vm329, %v2835, 0
    %2842 = vmatprep.subr.bf16.mxu0 0
    %2843 = vmatpush1.bf16.xpose.msra.mxu0 %v2840
    %2844 = vmatprep.subr.bf16.mxu0 0
    %2845 = vmatpush1.bf16.xpose.msra.mxu0 0
    %2846 = vmatprep.subr.bf16.mxu0 0
    %2847 = vmatpush1.bf16.xpose.msra.mxu0 0
    %2848 = vmatprep.subr.bf16.mxu0 0
    %2849 = vmatpush1.bf16.xpose.msra.mxu0 0
    %2850 = vmatprep.subr.bf16.mxu0 0
    %2851 = vmatpush1.bf16.xpose.msra.mxu0 0
    %2852 = vmatprep.subr.bf16.mxu0 0
    %2853 = vmatpush1.bf16.xpose.msra.mxu0 0
    %2854 = vmatprep.subr.bf16.mxu0 0
    %2855 = vmatpush1.bf16.xpose.msra.mxu0 0
    %2856 = vmatprep.subr.bf16.mxu0 0
    %2857 = vmatpush1.bf16.xpose.msra.mxu0 0
    %2858 = vmatprep.subr.bf16.mxu0 0
    %2859 = vmatpush1.bf16.xpose.msra.mxu0 0
    %2860 = vmatprep.subr.bf16.mxu0 0
    %2861 = vmatpush1.bf16.xpose.msra.mxu0 0
    %2862 = vmatprep.subr.bf16.mxu0 0
    %2863 = vmatpush1.bf16.xpose.msra.mxu0 0
    %2864 = vmatprep.subr.bf16.mxu0 0
    %2865 = vmatpush1.bf16.xpose.msra.mxu0 0
    %2866 = vmatprep.subr.bf16.mxu0 0
    %2867 = vmatpush1.bf16.xpose.msra.mxu0 0
    %2868 = vmatprep.subr.bf16.mxu0 0
    %2869 = vmatpush1.bf16.xpose.msra.mxu0 0
    %2870 = vmatprep.subr.bf16.mxu0 0
    %2871 = vmatpush1.bf16.xpose.msra.mxu0 0
    %2872 = vmatprep.subr.bf16.mxu0 0
    %2873 = vmatpush1.bf16.xpose.msra.mxu0 0
    %2874 = vmatprep.mubr.bf16.mxu0 0
    %2875 = vmatmul.mubr.bf16.gmra.mrb[0].mxu0 %v2837
    %v2876 = vpop.f32.mrb[0].mxu0
    %v2877 = vadd.f32 0.0, %v2876
    %v2878 = vpop.f32.mrb[0].mxu0
    %v2879 = vpop.f32.mrb[0].mxu0
    %v2880 = vpop.f32.mrb[0].mxu0
    %2881 = vdwg.mxu0
    %v2882 = vmul.f32 %v2828, 0.35355338
    %v2883 = vmul.f32 %v2877, 0.35355338
    %v2884 = vmul.f32 %v2882, %v245
    %v2885 = vmul.f32 %v2883, %v246
    %v2886 = vadd.f32 %v2884, %v249
    %v2887 = vadd.f32 %v2885, %v250
    %v2888 = vsel %vm329, %v2886, -inf
    %2889 = vmax.xlane.f32.xlu0 %v2888
    %v2890 = vpop.xlane.xlu0 %2889
    %v2891 = vsel %vm329, %v2887, -inf
    %2892 = vmax.xlane.f32.xlu0 %v2891
    %v2893 = vpop.xlane.xlu0 %2892
    %v2894 = vsub.f32 %v2886, %v2890
    %v2895 = vsub.f32 %v2887, %v2893
    %v2896 = vmul.f32 %v2894, 1.442695
    %v2897 = vpow.pop %v2896
    %v2898 = vmul.f32 %v2895, 1.442695
    %v2899 = vpow.pop %v2898
    %v2900 = vsel %vm329, %v2897, 0.0
    %2901 = vadd.xlane.f32.xlu0 %v2900
    %v2902 = vpop.xlane.xlu0 %2901
    %v2903 = vsel %vm329, %v2899, 0.0
    %2904 = vadd.xlane.f32.xlu0 %v2903
    %v2905 = vpop.xlane.xlu0 %2904
    %v2906 = vrcp.pop %v2902
    %v2907 = vrcp.pop %v2905
    %v2908 = vmul.f32 %v2897, %v2906
    %v2909 = vmul.f32 %v2899, %v2907
    %v2910 = vpack.c.bf16 %v2908, %v2908
    %v2911 = vpack.c.bf16 %v2909, %v2909
    %2912 = vrot.lane.b32.xlu0 %v2782, 64
    %v2913 = vpop.permute.xlu0 %2912
    %v2915 = vsel %vm329, %v2910, 0
    %v2918 = vsel %vm460, %v2913, 0
    %2920 = vmatprep.subr.bf16.mxu0 0
    %2921 = vmatpush1.bf16.msra.mxu0 %v2918
    %2922 = vmatprep.subr.bf16.mxu0 0
    %2923 = vmatpush1.bf16.msra.mxu0 0
    %2924 = vmatprep.subr.bf16.mxu0 0
    %2925 = vmatpush1.bf16.msra.mxu0 0
    %2926 = vmatprep.subr.bf16.mxu0 0
    %2927 = vmatpush1.bf16.msra.mxu0 0
    %2928 = vmatprep.subr.bf16.mxu0 0
    %2929 = vmatpush1.bf16.msra.mxu0 0
    %2930 = vmatprep.subr.bf16.mxu0 0
    %2931 = vmatpush1.bf16.msra.mxu0 0
    %2932 = vmatprep.subr.bf16.mxu0 0
    %2933 = vmatpush1.bf16.msra.mxu0 0
    %2934 = vmatprep.subr.bf16.mxu0 0
    %2935 = vmatpush1.bf16.msra.mxu0 0
    %2936 = vmatprep.subr.bf16.mxu0 0
    %2937 = vmatpush1.bf16.msra.mxu0 0
    %2938 = vmatprep.subr.bf16.mxu0 0
    %2939 = vmatpush1.bf16.msra.mxu0 0
    %2940 = vmatprep.subr.bf16.mxu0 0
    %2941 = vmatpush1.bf16.msra.mxu0 0
    %2942 = vmatprep.subr.bf16.mxu0 0
    %2943 = vmatpush1.bf16.msra.mxu0 0
    %2944 = vmatprep.subr.bf16.mxu0 0
    %2945 = vmatpush1.bf16.msra.mxu0 0
    %2946 = vmatprep.subr.bf16.mxu0 0
    %2947 = vmatpush1.bf16.msra.mxu0 0
    %2948 = vmatprep.subr.bf16.mxu0 0
    %2949 = vmatpush1.bf16.msra.mxu0 0
    %2950 = vmatprep.subr.bf16.mxu0 0
    %2951 = vmatpush1.bf16.msra.mxu0 0
    %2952 = vmatprep.mubr.bf16.mxu0 0
    %2953 = vmatmul.mubr.bf16.gmra.mrb[0].mxu0 %v2915
    %v2954 = vpop.f32.mrb[0].mxu0
    %v2955 = vadd.f32 0.0, %v2954
    %v2956 = vpop.f32.mrb[0].mxu0
    %v2957 = vpop.f32.mrb[0].mxu0
    %v2958 = vpop.f32.mrb[0].mxu0
    %2959 = vdwg.mxu0
    %2960 = vrot.lane.b32.xlu0 %v2783, 64
    %v2961 = vpop.permute.xlu0 %2960
    %v2963 = vsel %vm329, %v2911, 0
    %v2966 = vsel %vm460, %v2961, 0
    %2968 = vmatprep.subr.bf16.mxu0 0
    %2969 = vmatpush1.bf16.msra.mxu0 %v2966
    %2970 = vmatprep.subr.bf16.mxu0 0
    %2971 = vmatpush1.bf16.msra.mxu0 0
    %2972 = vmatprep.subr.bf16.mxu0 0
    %2973 = vmatpush1.bf16.msra.mxu0 0
    %2974 = vmatprep.subr.bf16.mxu0 0
    %2975 = vmatpush1.bf16.msra.mxu0 0
    %2976 = vmatprep.subr.bf16.mxu0 0
    %2977 = vmatpush1.bf16.msra.mxu0 0
    %2978 = vmatprep.subr.bf16.mxu0 0
    %2979 = vmatpush1.bf16.msra.mxu0 0
    %2980 = vmatprep.subr.bf16.mxu0 0
    %2981 = vmatpush1.bf16.msra.mxu0 0
    %2982 = vmatprep.subr.bf16.mxu0 0
    %2983 = vmatpush1.bf16.msra.mxu0 0
    %2984 = vmatprep.subr.bf16.mxu0 0
    %2985 = vmatpush1.bf16.msra.mxu0 0
    %2986 = vmatprep.subr.bf16.mxu0 0
    %2987 = vmatpush1.bf16.msra.mxu0 0
    %2988 = vmatprep.subr.bf16.mxu0 0
    %2989 = vmatpush1.bf16.msra.mxu0 0
    %2990 = vmatprep.subr.bf16.mxu0 0
    %2991 = vmatpush1.bf16.msra.mxu0 0
    %2992 = vmatprep.subr.bf16.mxu0 0
    %2993 = vmatpush1.bf16.msra.mxu0 0
    %2994 = vmatprep.subr.bf16.mxu0 0
    %2995 = vmatpush1.bf16.msra.mxu0 0
    %2996 = vmatprep.subr.bf16.mxu0 0
    %2997 = vmatpush1.bf16.msra.mxu0 0
    %2998 = vmatprep.subr.bf16.mxu0 0
    %2999 = vmatpush1.bf16.msra.mxu0 0
    %3000 = vmatprep.mubr.bf16.mxu0 0
    %3001 = vmatmul.mubr.bf16.gmra.mrb[0].mxu0 %v2963
    %v3002 = vpop.f32.mrb[0].mxu0
    %v3003 = vadd.f32 0.0, %v3002
    %v3004 = vpop.f32.mrb[0].mxu0
    %v3005 = vpop.f32.mrb[0].mxu0
    %v3006 = vpop.f32.mrb[0].mxu0
    %3007 = vdwg.mxu0
    %3008 = vrot.lane.b32.xlu0 %v2782, 120
    %v3009 = vpop.permute.xlu0 %3008
    %3010 = vrot.lane.b32.xlu0 %v2782, 88
    %v3011 = vpop.permute.xlu0 %3010
    %v3013 = vsel %vm329, %v3009, 0
    %v3016 = vsel %vm329, %v3011, 0
    %3018 = vmatprep.subr.bf16.mxu0 0
    %3019 = vmatpush1.bf16.xpose.msra.mxu0 %v3016
    %3020 = vmatprep.subr.bf16.mxu0 0
    %3021 = vmatpush1.bf16.xpose.msra.mxu0 0
    %3022 = vmatprep.subr.bf16.mxu0 0
    %3023 = vmatpush1.bf16.xpose.msra.mxu0 0
    %3024 = vmatprep.subr.bf16.mxu0 0
    %3025 = vmatpush1.bf16.xpose.msra.mxu0 0
    %3026 = vmatprep.subr.bf16.mxu0 0
    %3027 = vmatpush1.bf16.xpose.msra.mxu0 0
    %3028 = vmatprep.subr.bf16.mxu0 0
    %3029 = vmatpush1.bf16.xpose.msra.mxu0 0
    %3030 = vmatprep.subr.bf16.mxu0 0
    %3031 = vmatpush1.bf16.xpose.msra.mxu0 0
    %3032 = vmatprep.subr.bf16.mxu0 0
    %3033 = vmatpush1.bf16.xpose.msra.mxu0 0
    %3034 = vmatprep.subr.bf16.mxu0 0
    %3035 = vmatpush1.bf16.xpose.msra.mxu0 0
    %3036 = vmatprep.subr.bf16.mxu0 0
    %3037 = vmatpush1.bf16.xpose.msra.mxu0 0
    %3038 = vmatprep.subr.bf16.mxu0 0
    %3039 = vmatpush1.bf16.xpose.msra.mxu0 0
    %3040 = vmatprep.subr.bf16.mxu0 0
    %3041 = vmatpush1.bf16.xpose.msra.mxu0 0
    %3042 = vmatprep.subr.bf16.mxu0 0
    %3043 = vmatpush1.bf16.xpose.msra.mxu0 0
    %3044 = vmatprep.subr.bf16.mxu0 0
    %3045 = vmatpush1.bf16.xpose.msra.mxu0 0
    %3046 = vmatprep.subr.bf16.mxu0 0
    %3047 = vmatpush1.bf16.xpose.msra.mxu0 0
    %3048 = vmatprep.subr.bf16.mxu0 0
    %3049 = vmatpush1.bf16.xpose.msra.mxu0 0
    %3050 = vmatprep.mubr.bf16.mxu0 0
    %3051 = vmatmul.mubr.bf16.gmra.mrb[0].mxu0 %v3013
    %v3052 = vpop.f32.mrb[0].mxu0
    %v3053 = vadd.f32 0.0, %v3052
    %v3054 = vpop.f32.mrb[0].mxu0
    %v3055 = vpop.f32.mrb[0].mxu0
    %v3056 = vpop.f32.mrb[0].mxu0
    %3057 = vdwg.mxu0
    %3058 = vrot.lane.b32.xlu0 %v2783, 120
    %v3059 = vpop.permute.xlu0 %3058
    %3060 = vrot.lane.b32.xlu0 %v2783, 88
    %v3061 = vpop.permute.xlu0 %3060
    %v3063 = vsel %vm329, %v3059, 0
    %v3066 = vsel %vm329, %v3061, 0
    %3068 = vmatprep.subr.bf16.mxu0 0
    %3069 = vmatpush1.bf16.xpose.msra.mxu0 %v3066
    %3070 = vmatprep.subr.bf16.mxu0 0
    %3071 = vmatpush1.bf16.xpose.msra.mxu0 0
    %3072 = vmatprep.subr.bf16.mxu0 0
    %3073 = vmatpush1.bf16.xpose.msra.mxu0 0
    %3074 = vmatprep.subr.bf16.mxu0 0
    %3075 = vmatpush1.bf16.xpose.msra.mxu0 0
    %3076 = vmatprep.subr.bf16.mxu0 0
    %3077 = vmatpush1.bf16.xpose.msra.mxu0 0
    %3078 = vmatprep.subr.bf16.mxu0 0
    %3079 = vmatpush1.bf16.xpose.msra.mxu0 0
    %3080 = vmatprep.subr.bf16.mxu0 0
    %3081 = vmatpush1.bf16.xpose.msra.mxu0 0
    %3082 = vmatprep.subr.bf16.mxu0 0
    %3083 = vmatpush1.bf16.xpose.msra.mxu0 0
    %3084 = vmatprep.subr.bf16.mxu0 0
    %3085 = vmatpush1.bf16.xpose.msra.mxu0 0
    %3086 = vmatprep.subr.bf16.mxu0 0
    %3087 = vmatpush1.bf16.xpose.msra.mxu0 0
    %3088 = vmatprep.subr.bf16.mxu0 0
    %3089 = vmatpush1.bf16.xpose.msra.mxu0 0
    %3090 = vmatprep.subr.bf16.mxu0 0
    %3091 = vmatpush1.bf16.xpose.msra.mxu0 0
    %3092 = vmatprep.subr.bf16.mxu0 0
    %3093 = vmatpush1.bf16.xpose.msra.mxu0 0
    %3094 = vmatprep.subr.bf16.mxu0 0
    %3095 = vmatpush1.bf16.xpose.msra.mxu0 0
    %3096 = vmatprep.subr.bf16.mxu0 0
    %3097 = vmatpush1.bf16.xpose.msra.mxu0 0
    %3098 = vmatprep.subr.bf16.mxu0 0
    %3099 = vmatpush1.bf16.xpose.msra.mxu0 0
    %3100 = vmatprep.mubr.bf16.mxu0 0
    %3101 = vmatmul.mubr.bf16.gmra.mrb[0].mxu0 %v3063
    %v3102 = vpop.f32.mrb[0].mxu0
    %v3103 = vadd.f32 0.0, %v3102
    %v3104 = vpop.f32.mrb[0].mxu0
    %v3105 = vpop.f32.mrb[0].mxu0
    %v3106 = vpop.f32.mrb[0].mxu0
    %3107 = vdwg.mxu0
    %v3108 = vmul.f32 %v3053, 0.35355338
    %v3109 = vmul.f32 %v3103, 0.35355338
    %v3110 = vmul.f32 %v3108, %v245
    %v3111 = vmul.f32 %v3109, %v246
    %v3112 = vadd.f32 %v3110, %v249
    %v3113 = vadd.f32 %v3111, %v250
    %v3114 = vsel %vm329, %v3112, -inf
    %3115 = vmax.xlane.f32.xlu0 %v3114
    %v3116 = vpop.xlane.xlu0 %3115
    %v3117 = vsel %vm329, %v3113, -inf
    %3118 = vmax.xlane.f32.xlu0 %v3117
    %v3119 = vpop.xlane.xlu0 %3118
    %v3120 = vsub.f32 %v3112, %v3116
    %v3121 = vsub.f32 %v3113, %v3119
    %v3122 = vmul.f32 %v3120, 1.442695
    %v3123 = vpow.pop %v3122
    %v3124 = vmul.f32 %v3121, 1.442695
    %v3125 = vpow.pop %v3124
    %v3126 = vsel %vm329, %v3123, 0.0
    %3127 = vadd.xlane.f32.xlu0 %v3126
    %v3128 = vpop.xlane.xlu0 %3127
    %v3129 = vsel %vm329, %v3125, 0.0
    %3130 = vadd.xlane.f32.xlu0 %v3129
    %v3131 = vpop.xlane.xlu0 %3130
    %v3132 = vrcp.pop %v3128
    %v3133 = vrcp.pop %v3131
    %v3134 = vmul.f32 %v3123, %v3132
    %v3135 = vmul.f32 %v3125, %v3133
    %v3136 = vpack.c.bf16 %v3134, %v3134
    %v3137 = vpack.c.bf16 %v3135, %v3135
    %3138 = vrot.lane.b32.xlu0 %v2782, 56
    %v3139 = vpop.permute.xlu0 %3138
    %v3141 = vsel %vm329, %v3136, 0
    %v3144 = vsel %vm460, %v3139, 0
    %3146 = vmatprep.subr.bf16.mxu0 0
    %3147 = vmatpush1.bf16.msra.mxu0 %v3144
    %3148 = vmatprep.subr.bf16.mxu0 0
    %3149 = vmatpush1.bf16.msra.mxu0 0
    %3150 = vmatprep.subr.bf16.mxu0 0
    %3151 = vmatpush1.bf16.msra.mxu0 0
    %3152 = vmatprep.subr.bf16.mxu0 0
    %3153 = vmatpush1.bf16.msra.mxu0 0
    %3154 = vmatprep.subr.bf16.mxu0 0
    %3155 = vmatpush1.bf16.msra.mxu0 0
    %3156 = vmatprep.subr.bf16.mxu0 0
    %3157 = vmatpush1.bf16.msra.mxu0 0
    %3158 = vmatprep.subr.bf16.mxu0 0
    %3159 = vmatpush1.bf16.msra.mxu0 0
    %3160 = vmatprep.subr.bf16.mxu0 0
    %3161 = vmatpush1.bf16.msra.mxu0 0
    %3162 = vmatprep.subr.bf16.mxu0 0
    %3163 = vmatpush1.bf16.msra.mxu0 0
    %3164 = vmatprep.subr.bf16.mxu0 0
    %3165 = vmatpush1.bf16.msra.mxu0 0
    %3166 = vmatprep.subr.bf16.mxu0 0
    %3167 = vmatpush1.bf16.msra.mxu0 0
    %3168 = vmatprep.subr.bf16.mxu0 0
    %3169 = vmatpush1.bf16.msra.mxu0 0
    %3170 = vmatprep.subr.bf16.mxu0 0
    %3171 = vmatpush1.bf16.msra.mxu0 0
    %3172 = vmatprep.subr.bf16.mxu0 0
    %3173 = vmatpush1.bf16.msra.mxu0 0
    %3174 = vmatprep.subr.bf16.mxu0 0
    %3175 = vmatpush1.bf16.msra.mxu0 0
    %3176 = vmatprep.subr.bf16.mxu0 0
    %3177 = vmatpush1.bf16.msra.mxu0 0
    %3178 = vmatprep.mubr.bf16.mxu0 0
    %3179 = vmatmul.mubr.bf16.gmra.mrb[0].mxu0 %v3141
    %v3180 = vpop.f32.mrb[0].mxu0
    %v3181 = vadd.f32 0.0, %v3180
    %v3182 = vpop.f32.mrb[0].mxu0
    %v3183 = vpop.f32.mrb[0].mxu0
    %v3184 = vpop.f32.mrb[0].mxu0
    %3185 = vdwg.mxu0
    %3186 = vrot.lane.b32.xlu0 %v2783, 56
    %v3187 = vpop.permute.xlu0 %3186
    %v3189 = vsel %vm329, %v3137, 0
    %v3192 = vsel %vm460, %v3187, 0
    %3194 = vmatprep.subr.bf16.mxu0 0
    %3195 = vmatpush1.bf16.msra.mxu0 %v3192
    %3196 = vmatprep.subr.bf16.mxu0 0
    %3197 = vmatpush1.bf16.msra.mxu0 0
    %3198 = vmatprep.subr.bf16.mxu0 0
    %3199 = vmatpush1.bf16.msra.mxu0 0
    %3200 = vmatprep.subr.bf16.mxu0 0
    %3201 = vmatpush1.bf16.msra.mxu0 0
    %3202 = vmatprep.subr.bf16.mxu0 0
    %3203 = vmatpush1.bf16.msra.mxu0 0
    %3204 = vmatprep.subr.bf16.mxu0 0
    %3205 = vmatpush1.bf16.msra.mxu0 0
    %3206 = vmatprep.subr.bf16.mxu0 0
    %3207 = vmatpush1.bf16.msra.mxu0 0
    %3208 = vmatprep.subr.bf16.mxu0 0
    %3209 = vmatpush1.bf16.msra.mxu0 0
    %3210 = vmatprep.subr.bf16.mxu0 0
    %3211 = vmatpush1.bf16.msra.mxu0 0
    %3212 = vmatprep.subr.bf16.mxu0 0
    %3213 = vmatpush1.bf16.msra.mxu0 0
    %3214 = vmatprep.subr.bf16.mxu0 0
    %3215 = vmatpush1.bf16.msra.mxu0 0
    %3216 = vmatprep.subr.bf16.mxu0 0
    %3217 = vmatpush1.bf16.msra.mxu0 0
    %3218 = vmatprep.subr.bf16.mxu0 0
    %3219 = vmatpush1.bf16.msra.mxu0 0
    %3220 = vmatprep.subr.bf16.mxu0 0
    %3221 = vmatpush1.bf16.msra.mxu0 0
    %3222 = vmatprep.subr.bf16.mxu0 0
    %3223 = vmatpush1.bf16.msra.mxu0 0
    %3224 = vmatprep.subr.bf16.mxu0 0
    %3225 = vmatpush1.bf16.msra.mxu0 0
    %3226 = vmatprep.mubr.bf16.mxu0 0
    %3227 = vmatmul.mubr.bf16.gmra.mrb[0].mxu0 %v3189
    %v3228 = vpop.f32.mrb[0].mxu0
    %v3229 = vadd.f32 0.0, %v3228
    %v3230 = vpop.f32.mrb[0].mxu0
    %v3231 = vpop.f32.mrb[0].mxu0
    %v3232 = vpop.f32.mrb[0].mxu0
    %3233 = vdwg.mxu0
    %3234 = vrot.lane.b32.xlu0 %v2782, 112
    %v3235 = vpop.permute.xlu0 %3234
    %3236 = vrot.lane.b32.xlu0 %v2782, 80
    %v3237 = vpop.permute.xlu0 %3236
    %v3239 = vsel %vm329, %v3235, 0
    %v3242 = vsel %vm329, %v3237, 0
    %3244 = vmatprep.subr.bf16.mxu0 0
    %3245 = vmatpush1.bf16.xpose.msra.mxu0 %v3242
    %3246 = vmatprep.subr.bf16.mxu0 0
    %3247 = vmatpush1.bf16.xpose.msra.mxu0 0
    %3248 = vmatprep.subr.bf16.mxu0 0
    %3249 = vmatpush1.bf16.xpose.msra.mxu0 0
    %3250 = vmatprep.subr.bf16.mxu0 0
    %3251 = vmatpush1.bf16.xpose.msra.mxu0 0
    %3252 = vmatprep.subr.bf16.mxu0 0
    %3253 = vmatpush1.bf16.xpose.msra.mxu0 0
    %3254 = vmatprep.subr.bf16.mxu0 0
    %3255 = vmatpush1.bf16.xpose.msra.mxu0 0
    %3256 = vmatprep.subr.bf16.mxu0 0
    %3257 = vmatpush1.bf16.xpose.msra.mxu0 0
    %3258 = vmatprep.subr.bf16.mxu0 0
    %3259 = vmatpush1.bf16.xpose.msra.mxu0 0
    %3260 = vmatprep.subr.bf16.mxu0 0
    %3261 = vmatpush1.bf16.xpose.msra.mxu0 0
    %3262 = vmatprep.subr.bf16.mxu0 0
    %3263 = vmatpush1.bf16.xpose.msra.mxu0 0
    %3264 = vmatprep.subr.bf16.mxu0 0
    %3265 = vmatpush1.bf16.xpose.msra.mxu0 0
    %3266 = vmatprep.subr.bf16.mxu0 0
    %3267 = vmatpush1.bf16.xpose.msra.mxu0 0
    %3268 = vmatprep.subr.bf16.mxu0 0
    %3269 = vmatpush1.bf16.xpose.msra.mxu0 0
    %3270 = vmatprep.subr.bf16.mxu0 0
    %3271 = vmatpush1.bf16.xpose.msra.mxu0 0
    %3272 = vmatprep.subr.bf16.mxu0 0
    %3273 = vmatpush1.bf16.xpose.msra.mxu0 0
    %3274 = vmatprep.subr.bf16.mxu0 0
    %3275 = vmatpush1.bf16.xpose.msra.mxu0 0
    %3276 = vmatprep.mubr.bf16.mxu0 0
    %3277 = vmatmul.mubr.bf16.gmra.mrb[0].mxu0 %v3239
    %v3278 = vpop.f32.mrb[0].mxu0
    %v3279 = vadd.f32 0.0, %v3278
    %v3280 = vpop.f32.mrb[0].mxu0
    %v3281 = vpop.f32.mrb[0].mxu0
    %v3282 = vpop.f32.mrb[0].mxu0
    %3283 = vdwg.mxu0
    %3284 = vrot.lane.b32.xlu0 %v2783, 112
    %v3285 = vpop.permute.xlu0 %3284
    %3286 = vrot.lane.b32.xlu0 %v2783, 80
    %v3287 = vpop.permute.xlu0 %3286
    %v3289 = vsel %vm329, %v3285, 0
    %v3292 = vsel %vm329, %v3287, 0
    %3294 = vmatprep.subr.bf16.mxu0 0
    %3295 = vmatpush1.bf16.xpose.msra.mxu0 %v3292
    %3296 = vmatprep.subr.bf16.mxu0 0
    %3297 = vmatpush1.bf16.xpose.msra.mxu0 0
    %3298 = vmatprep.subr.bf16.mxu0 0
    %3299 = vmatpush1.bf16.xpose.msra.mxu0 0
    %3300 = vmatprep.subr.bf16.mxu0 0
    %3301 = vmatpush1.bf16.xpose.msra.mxu0 0
    %3302 = vmatprep.subr.bf16.mxu0 0
    %3303 = vmatpush1.bf16.xpose.msra.mxu0 0
    %3304 = vmatprep.subr.bf16.mxu0 0
    %3305 = vmatpush1.bf16.xpose.msra.mxu0 0
    %3306 = vmatprep.subr.bf16.mxu0 0
    %3307 = vmatpush1.bf16.xpose.msra.mxu0 0
    %3308 = vmatprep.subr.bf16.mxu0 0
    %3309 = vmatpush1.bf16.xpose.msra.mxu0 0
    %3310 = vmatprep.subr.bf16.mxu0 0
    %3311 = vmatpush1.bf16.xpose.msra.mxu0 0
    %3312 = vmatprep.subr.bf16.mxu0 0
    %3313 = vmatpush1.bf16.xpose.msra.mxu0 0
    %3314 = vmatprep.subr.bf16.mxu0 0
    %3315 = vmatpush1.bf16.xpose.msra.mxu0 0
    %3316 = vmatprep.subr.bf16.mxu0 0
    %3317 = vmatpush1.bf16.xpose.msra.mxu0 0
    %3318 = vmatprep.subr.bf16.mxu0 0
    %3319 = vmatpush1.bf16.xpose.msra.mxu0 0
    %3320 = vmatprep.subr.bf16.mxu0 0
    %3321 = vmatpush1.bf16.xpose.msra.mxu0 0
    %3322 = vmatprep.subr.bf16.mxu0 0
    %3323 = vmatpush1.bf16.xpose.msra.mxu0 0
    %3324 = vmatprep.subr.bf16.mxu0 0
    %3325 = vmatpush1.bf16.xpose.msra.mxu0 0
    %3326 = vmatprep.mubr.bf16.mxu0 0
    %3327 = vmatmul.mubr.bf16.gmra.mrb[0].mxu0 %v3289
    %v3328 = vpop.f32.mrb[0].mxu0
    %v3329 = vadd.f32 0.0, %v3328
    %v3330 = vpop.f32.mrb[0].mxu0
    %v3331 = vpop.f32.mrb[0].mxu0
    %v3332 = vpop.f32.mrb[0].mxu0
    %3333 = vdwg.mxu0
    %v3334 = vmul.f32 %v3279, 0.35355338
    %v3335 = vmul.f32 %v3329, 0.35355338
    %v3336 = vmul.f32 %v3334, %v245
    %v3337 = vmul.f32 %v3335, %v246
    %v3338 = vadd.f32 %v3336, %v249
    %v3339 = vadd.f32 %v3337, %v250
    %v3340 = vsel %vm329, %v3338, -inf
    %3341 = vmax.xlane.f32.xlu0 %v3340
    %v3342 = vpop.xlane.xlu0 %3341
    %v3343 = vsel %vm329, %v3339, -inf
    %3344 = vmax.xlane.f32.xlu0 %v3343
    %v3345 = vpop.xlane.xlu0 %3344
    %v3346 = vsub.f32 %v3338, %v3342
    %v3347 = vsub.f32 %v3339, %v3345
    %v3348 = vmul.f32 %v3346, 1.442695
    %v3349 = vpow.pop %v3348
    %v3350 = vmul.f32 %v3347, 1.442695
    %v3351 = vpow.pop %v3350
    %v3352 = vsel %vm329, %v3349, 0.0
    %3353 = vadd.xlane.f32.xlu0 %v3352
    %v3354 = vpop.xlane.xlu0 %3353
    %v3355 = vsel %vm329, %v3351, 0.0
    %3356 = vadd.xlane.f32.xlu0 %v3355
    %v3357 = vpop.xlane.xlu0 %3356
    %v3358 = vrcp.pop %v3354
    %v3359 = vrcp.pop %v3357
    %v3360 = vmul.f32 %v3349, %v3358
    %v3361 = vmul.f32 %v3351, %v3359
    %v3362 = vpack.c.bf16 %v3360, %v3360
    %v3363 = vpack.c.bf16 %v3361, %v3361
    %3364 = vrot.lane.b32.xlu0 %v2782, 48
    %v3365 = vpop.permute.xlu0 %3364
    %v3367 = vsel %vm329, %v3362, 0
    %v3370 = vsel %vm460, %v3365, 0
    %3372 = vmatprep.subr.bf16.mxu0 0
    %3373 = vmatpush1.bf16.msra.mxu0 %v3370
    %3374 = vmatprep.subr.bf16.mxu0 0
    %3375 = vmatpush1.bf16.msra.mxu0 0
    %3376 = vmatprep.subr.bf16.mxu0 0
    %3377 = vmatpush1.bf16.msra.mxu0 0
    %3378 = vmatprep.subr.bf16.mxu0 0
    %3379 = vmatpush1.bf16.msra.mxu0 0
    %3380 = vmatprep.subr.bf16.mxu0 0
    %3381 = vmatpush1.bf16.msra.mxu0 0
    %3382 = vmatprep.subr.bf16.mxu0 0
    %3383 = vmatpush1.bf16.msra.mxu0 0
    %3384 = vmatprep.subr.bf16.mxu0 0
    %3385 = vmatpush1.bf16.msra.mxu0 0
    %3386 = vmatprep.subr.bf16.mxu0 0
    %3387 = vmatpush1.bf16.msra.mxu0 0
    %3388 = vmatprep.subr.bf16.mxu0 0
    %3389 = vmatpush1.bf16.msra.mxu0 0
    %3390 = vmatprep.subr.bf16.mxu0 0
    %3391 = vmatpush1.bf16.msra.mxu0 0
    %3392 = vmatprep.subr.bf16.mxu0 0
    %3393 = vmatpush1.bf16.msra.mxu0 0
    %3394 = vmatprep.subr.bf16.mxu0 0
    %3395 = vmatpush1.bf16.msra.mxu0 0
    %3396 = vmatprep.subr.bf16.mxu0 0
    %3397 = vmatpush1.bf16.msra.mxu0 0
    %3398 = vmatprep.subr.bf16.mxu0 0
    %3399 = vmatpush1.bf16.msra.mxu0 0
    %3400 = vmatprep.subr.bf16.mxu0 0
    %3401 = vmatpush1.bf16.msra.mxu0 0
    %3402 = vmatprep.subr.bf16.mxu0 0
    %3403 = vmatpush1.bf16.msra.mxu0 0
    %3404 = vmatprep.mubr.bf16.mxu0 0
    %3405 = vmatmul.mubr.bf16.gmra.mrb[0].mxu0 %v3367
    %v3406 = vpop.f32.mrb[0].mxu0
    %v3407 = vadd.f32 0.0, %v3406
    %v3408 = vpop.f32.mrb[0].mxu0
    %v3409 = vpop.f32.mrb[0].mxu0
    %v3410 = vpop.f32.mrb[0].mxu0
    %3411 = vdwg.mxu0
    %3412 = vrot.lane.b32.xlu0 %v2783, 48
    %v3413 = vpop.permute.xlu0 %3412
    %v3415 = vsel %vm329, %v3363, 0
    %v3418 = vsel %vm460, %v3413, 0
    %3420 = vmatprep.subr.bf16.mxu0 0
    %3421 = vmatpush1.bf16.msra.mxu0 %v3418
    %3422 = vmatprep.subr.bf16.mxu0 0
    %3423 = vmatpush1.bf16.msra.mxu0 0
    %3424 = vmatprep.subr.bf16.mxu0 0
    %3425 = vmatpush1.bf16.msra.mxu0 0
    %3426 = vmatprep.subr.bf16.mxu0 0
    %3427 = vmatpush1.bf16.msra.mxu0 0
    %3428 = vmatprep.subr.bf16.mxu0 0
    %3429 = vmatpush1.bf16.msra.mxu0 0
    %3430 = vmatprep.subr.bf16.mxu0 0
    %3431 = vmatpush1.bf16.msra.mxu0 0
    %3432 = vmatprep.subr.bf16.mxu0 0
    %3433 = vmatpush1.bf16.msra.mxu0 0
    %3434 = vmatprep.subr.bf16.mxu0 0
    %3435 = vmatpush1.bf16.msra.mxu0 0
    %3436 = vmatprep.subr.bf16.mxu0 0
    %3437 = vmatpush1.bf16.msra.mxu0 0
    %3438 = vmatprep.subr.bf16.mxu0 0
    %3439 = vmatpush1.bf16.msra.mxu0 0
    %3440 = vmatprep.subr.bf16.mxu0 0
    %3441 = vmatpush1.bf16.msra.mxu0 0
    %3442 = vmatprep.subr.bf16.mxu0 0
    %3443 = vmatpush1.bf16.msra.mxu0 0
    %3444 = vmatprep.subr.bf16.mxu0 0
    %3445 = vmatpush1.bf16.msra.mxu0 0
    %3446 = vmatprep.subr.bf16.mxu0 0
    %3447 = vmatpush1.bf16.msra.mxu0 0
    %3448 = vmatprep.subr.bf16.mxu0 0
    %3449 = vmatpush1.bf16.msra.mxu0 0
    %3450 = vmatprep.subr.bf16.mxu0 0
    %3451 = vmatpush1.bf16.msra.mxu0 0
    %3452 = vmatprep.mubr.bf16.mxu0 0
    %3453 = vmatmul.mubr.bf16.gmra.mrb[0].mxu0 %v3415
    %v3454 = vpop.f32.mrb[0].mxu0
    %v3455 = vadd.f32 0.0, %v3454
    %v3456 = vpop.f32.mrb[0].mxu0
    %v3457 = vpop.f32.mrb[0].mxu0
    %v3458 = vpop.f32.mrb[0].mxu0
    %3459 = vdwg.mxu0
    %3460 = vrot.lane.b32.xlu0 %v2782, 104
    %v3461 = vpop.permute.xlu0 %3460
    %3462 = vrot.lane.b32.xlu0 %v2782, 72
    %v3463 = vpop.permute.xlu0 %3462
    %v3465 = vsel %vm329, %v3461, 0
    %v3468 = vsel %vm329, %v3463, 0
    %3470 = vmatprep.subr.bf16.mxu0 0
    %3471 = vmatpush1.bf16.xpose.msra.mxu0 %v3468
    %3472 = vmatprep.subr.bf16.mxu0 0
    %3473 = vmatpush1.bf16.xpose.msra.mxu0 0
    %3474 = vmatprep.subr.bf16.mxu0 0
    %3475 = vmatpush1.bf16.xpose.msra.mxu0 0
    %3476 = vmatprep.subr.bf16.mxu0 0
    %3477 = vmatpush1.bf16.xpose.msra.mxu0 0
    %3478 = vmatprep.subr.bf16.mxu0 0
    %3479 = vmatpush1.bf16.xpose.msra.mxu0 0
    %3480 = vmatprep.subr.bf16.mxu0 0
    %3481 = vmatpush1.bf16.xpose.msra.mxu0 0
    %3482 = vmatprep.subr.bf16.mxu0 0
    %3483 = vmatpush1.bf16.xpose.msra.mxu0 0
    %3484 = vmatprep.subr.bf16.mxu0 0
    %3485 = vmatpush1.bf16.xpose.msra.mxu0 0
    %3486 = vmatprep.subr.bf16.mxu0 0
    %3487 = vmatpush1.bf16.xpose.msra.mxu0 0
    %3488 = vmatprep.subr.bf16.mxu0 0
    %3489 = vmatpush1.bf16.xpose.msra.mxu0 0
    %3490 = vmatprep.subr.bf16.mxu0 0
    %3491 = vmatpush1.bf16.xpose.msra.mxu0 0
    %3492 = vmatprep.subr.bf16.mxu0 0
    %3493 = vmatpush1.bf16.xpose.msra.mxu0 0
    %3494 = vmatprep.subr.bf16.mxu0 0
    %3495 = vmatpush1.bf16.xpose.msra.mxu0 0
    %3496 = vmatprep.subr.bf16.mxu0 0
    %3497 = vmatpush1.bf16.xpose.msra.mxu0 0
    %3498 = vmatprep.subr.bf16.mxu0 0
    %3499 = vmatpush1.bf16.xpose.msra.mxu0 0
    %3500 = vmatprep.subr.bf16.mxu0 0
    %3501 = vmatpush1.bf16.xpose.msra.mxu0 0
    %3502 = vmatprep.mubr.bf16.mxu0 0
    %3503 = vmatmul.mubr.bf16.gmra.mrb[0].mxu0 %v3465
    %v3504 = vpop.f32.mrb[0].mxu0
    %v3505 = vadd.f32 0.0, %v3504
    %v3506 = vpop.f32.mrb[0].mxu0
    %v3507 = vpop.f32.mrb[0].mxu0
    %v3508 = vpop.f32.mrb[0].mxu0
    %3509 = vdwg.mxu0
    %3510 = vrot.lane.b32.xlu0 %v2783, 104
    %v3511 = vpop.permute.xlu0 %3510
    %3512 = vrot.lane.b32.xlu0 %v2783, 72
    %v3513 = vpop.permute.xlu0 %3512
    %v3515 = vsel %vm329, %v3511, 0
    %v3518 = vsel %vm329, %v3513, 0
    %3520 = vmatprep.subr.bf16.mxu0 0
    %3521 = vmatpush1.bf16.xpose.msra.mxu0 %v3518
    %3522 = vmatprep.subr.bf16.mxu0 0
    %3523 = vmatpush1.bf16.xpose.msra.mxu0 0
    %3524 = vmatprep.subr.bf16.mxu0 0
    %3525 = vmatpush1.bf16.xpose.msra.mxu0 0
    %3526 = vmatprep.subr.bf16.mxu0 0
    %3527 = vmatpush1.bf16.xpose.msra.mxu0 0
    %3528 = vmatprep.subr.bf16.mxu0 0
    %3529 = vmatpush1.bf16.xpose.msra.mxu0 0
    %3530 = vmatprep.subr.bf16.mxu0 0
    %3531 = vmatpush1.bf16.xpose.msra.mxu0 0
    %3532 = vmatprep.subr.bf16.mxu0 0
    %3533 = vmatpush1.bf16.xpose.msra.mxu0 0
    %3534 = vmatprep.subr.bf16.mxu0 0
    %3535 = vmatpush1.bf16.xpose.msra.mxu0 0
    %3536 = vmatprep.subr.bf16.mxu0 0
    %3537 = vmatpush1.bf16.xpose.msra.mxu0 0
    %3538 = vmatprep.subr.bf16.mxu0 0
    %3539 = vmatpush1.bf16.xpose.msra.mxu0 0
    %3540 = vmatprep.subr.bf16.mxu0 0
    %3541 = vmatpush1.bf16.xpose.msra.mxu0 0
    %3542 = vmatprep.subr.bf16.mxu0 0
    %3543 = vmatpush1.bf16.xpose.msra.mxu0 0
    %3544 = vmatprep.subr.bf16.mxu0 0
    %3545 = vmatpush1.bf16.xpose.msra.mxu0 0
    %3546 = vmatprep.subr.bf16.mxu0 0
    %3547 = vmatpush1.bf16.xpose.msra.mxu0 0
    %3548 = vmatprep.subr.bf16.mxu0 0
    %3549 = vmatpush1.bf16.xpose.msra.mxu0 0
    %3550 = vmatprep.subr.bf16.mxu0 0
    %3551 = vmatpush1.bf16.xpose.msra.mxu0 0
    %3552 = vmatprep.mubr.bf16.mxu0 0
    %3553 = vmatmul.mubr.bf16.gmra.mrb[0].mxu0 %v3515
    %v3554 = vpop.f32.mrb[0].mxu0
    %v3555 = vadd.f32 0.0, %v3554
    %v3556 = vpop.f32.mrb[0].mxu0
    %v3557 = vpop.f32.mrb[0].mxu0
    %v3558 = vpop.f32.mrb[0].mxu0
    %3559 = vdwg.mxu0
    %v3560 = vmul.f32 %v3505, 0.35355338
    %v3561 = vmul.f32 %v3555, 0.35355338
    %v3562 = vmul.f32 %v3560, %v245
    %v3563 = vmul.f32 %v3561, %v246
    %v3564 = vadd.f32 %v3562, %v249
    %v3565 = vadd.f32 %v3563, %v250
    %v3566 = vsel %vm329, %v3564, -inf
    %3567 = vmax.xlane.f32.xlu0 %v3566
    %v3568 = vpop.xlane.xlu0 %3567
    %v3569 = vsel %vm329, %v3565, -inf
    %3570 = vmax.xlane.f32.xlu0 %v3569
    %v3571 = vpop.xlane.xlu0 %3570
    %v3572 = vsub.f32 %v3564, %v3568
    %v3573 = vsub.f32 %v3565, %v3571
    %v3574 = vmul.f32 %v3572, 1.442695
    %v3575 = vpow.pop %v3574
    %v3576 = vmul.f32 %v3573, 1.442695
    %v3577 = vpow.pop %v3576
    %v3578 = vsel %vm329, %v3575, 0.0
    %3579 = vadd.xlane.f32.xlu0 %v3578
    %v3580 = vpop.xlane.xlu0 %3579
    %v3581 = vsel %vm329, %v3577, 0.0
    %3582 = vadd.xlane.f32.xlu0 %v3581
    %v3583 = vpop.xlane.xlu0 %3582
    %v3584 = vrcp.pop %v3580
    %v3585 = vrcp.pop %v3583
    %v3586 = vmul.f32 %v3575, %v3584
    %v3587 = vmul.f32 %v3577, %v3585
    %v3588 = vpack.c.bf16 %v3586, %v3586
    %v3589 = vpack.c.bf16 %v3587, %v3587
    %3590 = vrot.lane.b32.xlu0 %v2782, 40
    %v3591 = vpop.permute.xlu0 %3590
    %v3593 = vsel %vm329, %v3588, 0
    %v3596 = vsel %vm460, %v3591, 0
    %3598 = vmatprep.subr.bf16.mxu0 0
    %3599 = vmatpush1.bf16.msra.mxu0 %v3596
    %3600 = vmatprep.subr.bf16.mxu0 0
    %3601 = vmatpush1.bf16.msra.mxu0 0
    %3602 = vmatprep.subr.bf16.mxu0 0
    %3603 = vmatpush1.bf16.msra.mxu0 0
    %3604 = vmatprep.subr.bf16.mxu0 0
    %3605 = vmatpush1.bf16.msra.mxu0 0
    %3606 = vmatprep.subr.bf16.mxu0 0
    %3607 = vmatpush1.bf16.msra.mxu0 0
    %3608 = vmatprep.subr.bf16.mxu0 0
    %3609 = vmatpush1.bf16.msra.mxu0 0
    %3610 = vmatprep.subr.bf16.mxu0 0
    %3611 = vmatpush1.bf16.msra.mxu0 0
    %3612 = vmatprep.subr.bf16.mxu0 0
    %3613 = vmatpush1.bf16.msra.mxu0 0
    %3614 = vmatprep.subr.bf16.mxu0 0
    %3615 = vmatpush1.bf16.msra.mxu0 0
    %3616 = vmatprep.subr.bf16.mxu0 0
    %3617 = vmatpush1.bf16.msra.mxu0 0
    %3618 = vmatprep.subr.bf16.mxu0 0
    %3619 = vmatpush1.bf16.msra.mxu0 0
    %3620 = vmatprep.subr.bf16.mxu0 0
    %3621 = vmatpush1.bf16.msra.mxu0 0
    %3622 = vmatprep.subr.bf16.mxu0 0
    %3623 = vmatpush1.bf16.msra.mxu0 0
    %3624 = vmatprep.subr.bf16.mxu0 0
    %3625 = vmatpush1.bf16.msra.mxu0 0
    %3626 = vmatprep.subr.bf16.mxu0 0
    %3627 = vmatpush1.bf16.msra.mxu0 0
    %3628 = vmatprep.subr.bf16.mxu0 0
    %3629 = vmatpush1.bf16.msra.mxu0 0
    %3630 = vmatprep.mubr.bf16.mxu0 0
    %3631 = vmatmul.mubr.bf16.gmra.mrb[0].mxu0 %v3593
    %v3632 = vpop.f32.mrb[0].mxu0
    %v3633 = vadd.f32 0.0, %v3632
    %v3634 = vpop.f32.mrb[0].mxu0
    %v3635 = vpop.f32.mrb[0].mxu0
    %v3636 = vpop.f32.mrb[0].mxu0
    %3637 = vdwg.mxu0
    %3638 = vrot.lane.b32.xlu0 %v2783, 40
    %v3639 = vpop.permute.xlu0 %3638
    %v3641 = vsel %vm329, %v3589, 0
    %v3644 = vsel %vm460, %v3639, 0
    %3646 = vmatprep.subr.bf16.mxu0 0
    %3647 = vmatpush1.bf16.msra.mxu0 %v3644
    %3648 = vmatprep.subr.bf16.mxu0 0
    %3649 = vmatpush1.bf16.msra.mxu0 0
    %3650 = vmatprep.subr.bf16.mxu0 0
    %3651 = vmatpush1.bf16.msra.mxu0 0
    %3652 = vmatprep.subr.bf16.mxu0 0
    %3653 = vmatpush1.bf16.msra.mxu0 0
    %3654 = vmatprep.subr.bf16.mxu0 0
    %3655 = vmatpush1.bf16.msra.mxu0 0
    %3656 = vmatprep.subr.bf16.mxu0 0
    %3657 = vmatpush1.bf16.msra.mxu0 0
    %3658 = vmatprep.subr.bf16.mxu0 0
    %3659 = vmatpush1.bf16.msra.mxu0 0
    %3660 = vmatprep.subr.bf16.mxu0 0
    %3661 = vmatpush1.bf16.msra.mxu0 0
    %3662 = vmatprep.subr.bf16.mxu0 0
    %3663 = vmatpush1.bf16.msra.mxu0 0
    %3664 = vmatprep.subr.bf16.mxu0 0
    %3665 = vmatpush1.bf16.msra.mxu0 0
    %3666 = vmatprep.subr.bf16.mxu0 0
    %3667 = vmatpush1.bf16.msra.mxu0 0
    %3668 = vmatprep.subr.bf16.mxu0 0
    %3669 = vmatpush1.bf16.msra.mxu0 0
    %3670 = vmatprep.subr.bf16.mxu0 0
    %3671 = vmatpush1.bf16.msra.mxu0 0
    %3672 = vmatprep.subr.bf16.mxu0 0
    %3673 = vmatpush1.bf16.msra.mxu0 0
    %3674 = vmatprep.subr.bf16.mxu0 0
    %3675 = vmatpush1.bf16.msra.mxu0 0
    %3676 = vmatprep.subr.bf16.mxu0 0
    %3677 = vmatpush1.bf16.msra.mxu0 0
    %3678 = vmatprep.mubr.bf16.mxu0 0
    %3679 = vmatmul.mubr.bf16.gmra.mrb[0].mxu0 %v3641
    %v3680 = vpop.f32.mrb[0].mxu0
    %v3681 = vadd.f32 0.0, %v3680
    %v3682 = vpop.f32.mrb[0].mxu0
    %v3683 = vpop.f32.mrb[0].mxu0
    %v3684 = vpop.f32.mrb[0].mxu0
    %3685 = vdwg.mxu0
    %3688 = vrot.lane.b32.xlu0 %v3181, 8
    %v3689 = vpop.permute.xlu0 %3688
    %3690 = vrot.lane.b32.xlu0 %v3229, 8
    %v3691 = vpop.permute.xlu0 %3690
    %3696 = vrot.lane.b32.xlu0 %v3407, 16
    %v3697 = vpop.permute.xlu0 %3696
    %3698 = vrot.lane.b32.xlu0 %v3455, 16
    %v3699 = vpop.permute.xlu0 %3698
    %3704 = vrot.lane.b32.xlu0 %v3633, 24
    %v3705 = vpop.permute.xlu0 %3704
    %3706 = vrot.lane.b32.xlu0 %v3681, 24
    %v3707 = vpop.permute.xlu0 %3706
    %v3710 = vsel %vm329, %v2955, %v3689
    %v3711 = vsel %vm329, %v3003, %v3691
    %v3712 = vsel %vm1256, %v3710, %v3697
    %v3713 = vsel %vm1256, %v3711, %v3699
    %v3714 = vsel %vm1259, %v3712, %v3705
    %v3715 = vsel %vm1259, %v3713, %v3707
    %v3716 = vpack.c.bf16 %v3715, %v3714
    %s3717 = scalar_lea.vmem %s8, 32
    %v3718 = vld [vmem:[%s3717] sm:$0xf]
    %v3719 = vld [vmem:[%s3717 + $0x4] sm:$0xf]
    %v3720 = vld [vmem:[%s3717 + $0x8] sm:$0xf]
    %v3721 = vld [vmem:[%s3717 + $0xc] sm:$0xf]
    %v3722 = vlaneseq
    %v3723 = vshrl.u32 %v3722, 7
    %v3724 = vsub.s32 0, %v3723
    %v3725 = vrot.slane %v44, %v3724
    %v3730 = vunpack.c.l.b16 %v3718
    %v3731 = vunpack.c.l.b16 %v3719
    %v3732 = vunpack.c.l.b16 %v3720
    %v3733 = vunpack.c.l.b16 %v3721
    %v3734 = vpack.c.b16 %v3731, %v3730
    %v3735 = vpack.c.b16 %v3733, %v3732
    %v3739 = vsel %vm193, %v3716, 0
    %3741 = vmatprep.subr.bf16.mxu0 0
    %3742 = vmatpush1.bf16.msra.mxu0 %v3734
    %3743 = vmatprep.subr.bf16.mxu0 0
    %3744 = vmatpush1.bf16.msra.mxu0 %v3735
    %3745 = vmatprep.subr.bf16.mxu0 0
    %3746 = vmatpush1.bf16.msra.mxu0 0
    %3747 = vmatprep.subr.bf16.mxu0 0
    %3748 = vmatpush1.bf16.msra.mxu0 0
    %3749 = vmatprep.subr.bf16.mxu0 0
    %3750 = vmatpush1.bf16.msra.mxu0 0
    %3751 = vmatprep.subr.bf16.mxu0 0
    %3752 = vmatpush1.bf16.msra.mxu0 0
    %3753 = vmatprep.subr.bf16.mxu0 0
    %3754 = vmatpush1.bf16.msra.mxu0 0
    %3755 = vmatprep.subr.bf16.mxu0 0
    %3756 = vmatpush1.bf16.msra.mxu0 0
    %3757 = vmatprep.subr.bf16.mxu0 0
    %3758 = vmatpush1.bf16.msra.mxu0 0
    %3759 = vmatprep.subr.bf16.mxu0 0
    %3760 = vmatpush1.bf16.msra.mxu0 0
    %3761 = vmatprep.subr.bf16.mxu0 0
    %3762 = vmatpush1.bf16.msra.mxu0 0
    %3763 = vmatprep.subr.bf16.mxu0 0
    %3764 = vmatpush1.bf16.msra.mxu0 0
    %3765 = vmatprep.subr.bf16.mxu0 0
    %3766 = vmatpush1.bf16.msra.mxu0 0
    %3767 = vmatprep.subr.bf16.mxu0 0
    %3768 = vmatpush1.bf16.msra.mxu0 0
    %3769 = vmatprep.subr.bf16.mxu0 0
    %3770 = vmatpush1.bf16.msra.mxu0 0
    %3771 = vmatprep.subr.bf16.mxu0 0
    %3772 = vmatpush1.bf16.msra.mxu0 0
    %3773 = vmatprep.mubr.bf16.mxu0 0
    %3774 = vmatmul.mubr.bf16.gmra.mrb[0].mxu0 %v3739
    %v3775 = vpop.f32.mrb[0].mxu0
    %v3776 = vadd.f32 %v3725, %v3775
    %v3777 = vpop.f32.mrb[0].mxu0
    %v3778 = vpop.f32.mrb[0].mxu0
    %v3779 = vadd.f32 %v3725, %v3778
    %v3780 = vpop.f32.mrb[0].mxu0
    %3781 = vdwg.mxu0
    %v3782 = vadd.f32 %v3776, %v2718
    %v3783 = vadd.f32 %v3779, %v2719
    %v3784 = vsel %vm193, %v3782, 0.0
    %3785 = vadd.xlane.f32.xlu0 %v3784
    %v3786 = vpop.xlane.xlu0 %3785
    %v3787 = vsel %vm193, %v3783, 0.0
    %3788 = vadd.xlane.f32.xlu0 %v3787
    %v3789 = vpop.xlane.xlu0 %3788
    %v3790 = vmul.f32 %v3782, %v3782
    %v3791 = vmul.f32 %v3783, %v3783
    %v3792 = vsel %vm193, %v3790, 0.0
    %3793 = vadd.xlane.f32.xlu0 %v3792
    %v3794 = vpop.xlane.xlu0 %3793
    %v3795 = vsel %vm193, %v3791, 0.0
    %3796 = vadd.xlane.f32.xlu0 %v3795
    %v3797 = vpop.xlane.xlu0 %3796
    %v3798 = vmul.f32 %v3786, 0.03125
    %v3799 = vmul.f32 %v3789, 0.03125
    %v3800 = vmul.f32 %v3794, 0.03125
    %v3801 = vmul.f32 %v3797, 0.03125
    %v3802 = vmul.f32 %v3798, %v3798
    %v3803 = vmul.f32 %v3799, %v3799
    %v3804 = vsub.f32 %v3800, %v3802
    %v3805 = vsub.f32 %v3801, %v3803
    %v3806 = vsub.f32 %v3782, %v3798
    %v3807 = vsub.f32 %v3783, %v3799
    %v3808 = vadd.f32 %v3804, 1e-06
    %v3809 = vadd.f32 %v3805, 1e-06
    %v3810 = vrsqrt.pop %v3808
    %v3811 = vrsqrt.pop %v3809
    %v3812 = vmul.f32 %v3806, %v3810
    %v3813 = vmul.f32 %v3807, %v3811
    %v3814 = vlaneseq
    %v3815 = vshrl.u32 %v3814, 7
    %v3816 = vsub.s32 1, %v3815
    %v3817 = vrot.slane %v44, %v3816
    %v3818 = vmul.f32 %v3812, %v3817
    %v3819 = vmul.f32 %v3813, %v3817
    %v3820 = vlaneseq
    %v3821 = vshrl.u32 %v3820, 7
    %v3822 = vsub.s32 2, %v3821
    %v3823 = vrot.slane %v44, %v3822
    %v3824 = vadd.f32 %v3818, %v3823
    %v3825 = vadd.f32 %v3819, %v3823
    %s3826 = scalar_lea.vmem %s7, 48
    %v3827 = vld [vmem:[%s3826] sm:$0xf]
    %v3828 = vld [vmem:[%s3826 + $0x4] sm:$0xf]
    %v3829 = vld [vmem:[%s3826 + $0x8] sm:$0xf]
    %v3830 = vld [vmem:[%s3826 + $0xc] sm:$0xf]
    %v3831 = vpack.c.bf16 %v3825, %v3824
    %v3836 = vunpack.c.l.b16 %v3827
    %v3837 = vunpack.c.l.b16 %v3828
    %v3838 = vunpack.c.l.b16 %v3829
    %v3839 = vunpack.c.l.b16 %v3830
    %v3840 = vpack.c.b16 %v3837, %v3836
    %v3841 = vpack.c.b16 %v3839, %v3838
    %v3845 = vsel %vm193, %v3831, 0
    %3847 = vmatprep.subr.bf16.mxu0 0
    %3848 = vmatpush1.bf16.msra.mxu0 %v3840
    %3849 = vmatprep.subr.bf16.mxu0 0
    %3850 = vmatpush1.bf16.msra.mxu0 %v3841
    %3851 = vmatprep.subr.bf16.mxu0 0
    %3852 = vmatpush1.bf16.msra.mxu0 0
    %3853 = vmatprep.subr.bf16.mxu0 0
    %3854 = vmatpush1.bf16.msra.mxu0 0
    %3855 = vmatprep.subr.bf16.mxu0 0
    %3856 = vmatpush1.bf16.msra.mxu0 0
    %3857 = vmatprep.subr.bf16.mxu0 0
    %3858 = vmatpush1.bf16.msra.mxu0 0
    %3859 = vmatprep.subr.bf16.mxu0 0
    %3860 = vmatpush1.bf16.msra.mxu0 0
    %3861 = vmatprep.subr.bf16.mxu0 0
    %3862 = vmatpush1.bf16.msra.mxu0 0
    %3863 = vmatprep.subr.bf16.mxu0 0
    %3864 = vmatpush1.bf16.msra.mxu0 0
    %3865 = vmatprep.subr.bf16.mxu0 0
    %3866 = vmatpush1.bf16.msra.mxu0 0
    %3867 = vmatprep.subr.bf16.mxu0 0
    %3868 = vmatpush1.bf16.msra.mxu0 0
    %3869 = vmatprep.subr.bf16.mxu0 0
    %3870 = vmatpush1.bf16.msra.mxu0 0
    %3871 = vmatprep.subr.bf16.mxu0 0
    %3872 = vmatpush1.bf16.msra.mxu0 0
    %3873 = vmatprep.subr.bf16.mxu0 0
    %3874 = vmatpush1.bf16.msra.mxu0 0
    %3875 = vmatprep.subr.bf16.mxu0 0
    %3876 = vmatpush1.bf16.msra.mxu0 0
    %3877 = vmatprep.subr.bf16.mxu0 0
    %3878 = vmatpush1.bf16.msra.mxu0 0
    %3879 = vmatprep.mubr.bf16.mxu0 0
    %3880 = vmatmul.mubr.bf16.gmra.mrb[0].mxu0 %v3845
    %v3881 = vpop.f32.mrb[0].mxu0
    %v3882 = vadd.f32 0.0, %v3881
    %v3883 = vpop.f32.mrb[0].mxu0
    %v3884 = vpop.f32.mrb[0].mxu0
    %v3885 = vadd.f32 0.0, %v3884
    %v3886 = vpop.f32.mrb[0].mxu0
    %3887 = vdwg.mxu0
    %3888 = vrot.lane.b32.xlu0 %v3840, 96
    %v3889 = vpop.permute.xlu0 %3888
    %3890 = vrot.lane.b32.xlu0 %v3841, 96
    %v3891 = vpop.permute.xlu0 %3890
    %3894 = vmatprep.subr.bf16.mxu0 0
    %3895 = vmatpush1.bf16.msra.mxu0 %v3889
    %3896 = vmatprep.subr.bf16.mxu0 0
    %3897 = vmatpush1.bf16.msra.mxu0 %v3891
    %3898 = vmatprep.subr.bf16.mxu0 0
    %3899 = vmatpush1.bf16.msra.mxu0 0
    %3900 = vmatprep.subr.bf16.mxu0 0
    %3901 = vmatpush1.bf16.msra.mxu0 0
    %3902 = vmatprep.subr.bf16.mxu0 0
    %3903 = vmatpush1.bf16.msra.mxu0 0
    %3904 = vmatprep.subr.bf16.mxu0 0
    %3905 = vmatpush1.bf16.msra.mxu0 0
    %3906 = vmatprep.subr.bf16.mxu0 0
    %3907 = vmatpush1.bf16.msra.mxu0 0
    %3908 = vmatprep.subr.bf16.mxu0 0
    %3909 = vmatpush1.bf16.msra.mxu0 0
    %3910 = vmatprep.subr.bf16.mxu0 0
    %3911 = vmatpush1.bf16.msra.mxu0 0
    %3912 = vmatprep.subr.bf16.mxu0 0
    %3913 = vmatpush1.bf16.msra.mxu0 0
    %3914 = vmatprep.subr.bf16.mxu0 0
    %3915 = vmatpush1.bf16.msra.mxu0 0
    %3916 = vmatprep.subr.bf16.mxu0 0
    %3917 = vmatpush1.bf16.msra.mxu0 0
    %3918 = vmatprep.subr.bf16.mxu0 0
    %3919 = vmatpush1.bf16.msra.mxu0 0
    %3920 = vmatprep.subr.bf16.mxu0 0
    %3921 = vmatpush1.bf16.msra.mxu0 0
    %3922 = vmatprep.subr.bf16.mxu0 0
    %3923 = vmatpush1.bf16.msra.mxu0 0
    %3924 = vmatprep.subr.bf16.mxu0 0
    %3925 = vmatpush1.bf16.msra.mxu0 0
    %3926 = vmatprep.mubr.bf16.mxu0 0
    %3927 = vmatmul.mubr.bf16.gmra.mrb[0].mxu0 %v1440
    %v3928 = vpop.f32.mrb[0].mxu0
    %v3929 = vadd.f32 0.0, %v3928
    %v3930 = vpop.f32.mrb[0].mxu0
    %v3931 = vpop.f32.mrb[0].mxu0
    %v3932 = vadd.f32 0.0, %v3931
    %v3933 = vpop.f32.mrb[0].mxu0
    %3934 = vdwg.mxu0
    %v3935 = vpack.c.bf16 %v3882, %v3882
    %v3936 = vpack.c.bf16 %v3885, %v3885
    %v3937 = vpack.c.bf16 %v3929, %v3929
    %v3938 = vpack.c.bf16 %v3932, %v3932
    %v3940 = vsel %vm329, %v3935, 0
    %v3943 = vsel %vm329, %v3937, 0
    %3945 = vmatprep.subr.bf16.mxu0 0
    %3946 = vmatpush1.bf16.xpose.msra.mxu0 %v3943
    %3947 = vmatprep.subr.bf16.mxu0 0
    %3948 = vmatpush1.bf16.xpose.msra.mxu0 0
    %3949 = vmatprep.subr.bf16.mxu0 0
    %3950 = vmatpush1.bf16.xpose.msra.mxu0 0
    %3951 = vmatprep.subr.bf16.mxu0 0
    %3952 = vmatpush1.bf16.xpose.msra.mxu0 0
    %3953 = vmatprep.subr.bf16.mxu0 0
    %3954 = vmatpush1.bf16.xpose.msra.mxu0 0
    %3955 = vmatprep.subr.bf16.mxu0 0
    %3956 = vmatpush1.bf16.xpose.msra.mxu0 0
    %3957 = vmatprep.subr.bf16.mxu0 0
    %3958 = vmatpush1.bf16.xpose.msra.mxu0 0
    %3959 = vmatprep.subr.bf16.mxu0 0
    %3960 = vmatpush1.bf16.xpose.msra.mxu0 0
    %3961 = vmatprep.subr.bf16.mxu0 0
    %3962 = vmatpush1.bf16.xpose.msra.mxu0 0
    %3963 = vmatprep.subr.bf16.mxu0 0
    %3964 = vmatpush1.bf16.xpose.msra.mxu0 0
    %3965 = vmatprep.subr.bf16.mxu0 0
    %3966 = vmatpush1.bf16.xpose.msra.mxu0 0
    %3967 = vmatprep.subr.bf16.mxu0 0
    %3968 = vmatpush1.bf16.xpose.msra.mxu0 0
    %3969 = vmatprep.subr.bf16.mxu0 0
    %3970 = vmatpush1.bf16.xpose.msra.mxu0 0
    %3971 = vmatprep.subr.bf16.mxu0 0
    %3972 = vmatpush1.bf16.xpose.msra.mxu0 0
    %3973 = vmatprep.subr.bf16.mxu0 0
    %3974 = vmatpush1.bf16.xpose.msra.mxu0 0
    %3975 = vmatprep.subr.bf16.mxu0 0
    %3976 = vmatpush1.bf16.xpose.msra.mxu0 0
    %3977 = vmatprep.mubr.bf16.mxu0 0
    %3978 = vmatmul.mubr.bf16.gmra.mrb[0].mxu0 %v3940
    %v3979 = vpop.f32.mrb[0].mxu0
    %v3980 = vadd.f32 0.0, %v3979
    %v3981 = vpop.f32.mrb[0].mxu0
    %v3982 = vpop.f32.mrb[0].mxu0
    %v3983 = vpop.f32.mrb[0].mxu0
    %3984 = vdwg.mxu0
    %v3986 = vsel %vm329, %v3936, 0
    %v3989 = vsel %vm329, %v3938, 0
    %3991 = vmatprep.subr.bf16.mxu0 0
    %3992 = vmatpush1.bf16.xpose.msra.mxu0 %v3989
    %3993 = vmatprep.subr.bf16.mxu0 0
    %3994 = vmatpush1.bf16.xpose.msra.mxu0 0
    %3995 = vmatprep.subr.bf16.mxu0 0
    %3996 = vmatpush1.bf16.xpose.msra.mxu0 0
    %3997 = vmatprep.subr.bf16.mxu0 0
    %3998 = vmatpush1.bf16.xpose.msra.mxu0 0
    %3999 = vmatprep.subr.bf16.mxu0 0
    %4000 = vmatpush1.bf16.xpose.msra.mxu0 0
    %4001 = vmatprep.subr.bf16.mxu0 0
    %4002 = vmatpush1.bf16.xpose.msra.mxu0 0
    %4003 = vmatprep.subr.bf16.mxu0 0
    %4004 = vmatpush1.bf16.xpose.msra.mxu0 0
    %4005 = vmatprep.subr.bf16.mxu0 0
    %4006 = vmatpush1.bf16.xpose.msra.mxu0 0
    %4007 = vmatprep.subr.bf16.mxu0 0
    %4008 = vmatpush1.bf16.xpose.msra.mxu0 0
    %4009 = vmatprep.subr.bf16.mxu0 0
    %4010 = vmatpush1.bf16.xpose.msra.mxu0 0
    %4011 = vmatprep.subr.bf16.mxu0 0
    %4012 = vmatpush1.bf16.xpose.msra.mxu0 0
    %4013 = vmatprep.subr.bf16.mxu0 0
    %4014 = vmatpush1.bf16.xpose.msra.mxu0 0
    %4015 = vmatprep.subr.bf16.mxu0 0
    %4016 = vmatpush1.bf16.xpose.msra.mxu0 0
    %4017 = vmatprep.subr.bf16.mxu0 0
    %4018 = vmatpush1.bf16.xpose.msra.mxu0 0
    %4019 = vmatprep.subr.bf16.mxu0 0
    %4020 = vmatpush1.bf16.xpose.msra.mxu0 0
    %4021 = vmatprep.subr.bf16.mxu0 0
    %4022 = vmatpush1.bf16.xpose.msra.mxu0 0
    %4023 = vmatprep.mubr.bf16.mxu0 0
    %4024 = vmatmul.mubr.bf16.gmra.mrb[0].mxu0 %v3986
    %v4025 = vpop.f32.mrb[0].mxu0
    %v4026 = vadd.f32 0.0, %v4025
    %v4027 = vpop.f32.mrb[0].mxu0
    %v4028 = vpop.f32.mrb[0].mxu0
    %v4029 = vpop.f32.mrb[0].mxu0
    %4030 = vdwg.mxu0
    %v4031 = vmul.f32 %v3980, 0.35355338
    %v4032 = vmul.f32 %v4026, 0.35355338
    %v4033 = vmul.f32 %v4031, %v257
    %v4034 = vmul.f32 %v4032, %v258
    %v4035 = vadd.f32 %v4033, %v261
    %v4036 = vadd.f32 %v4034, %v262
    %v4037 = vsel %vm329, %v4035, -inf
    %4038 = vmax.xlane.f32.xlu0 %v4037
    %v4039 = vpop.xlane.xlu0 %4038
    %v4040 = vsel %vm329, %v4036, -inf
    %4041 = vmax.xlane.f32.xlu0 %v4040
    %v4042 = vpop.xlane.xlu0 %4041
    %v4043 = vsub.f32 %v4035, %v4039
    %v4044 = vsub.f32 %v4036, %v4042
    %v4045 = vmul.f32 %v4043, 1.442695
    %v4046 = vpow.pop %v4045
    %v4047 = vmul.f32 %v4044, 1.442695
    %v4048 = vpow.pop %v4047
    %v4049 = vsel %vm329, %v4046, 0.0
    %4050 = vadd.xlane.f32.xlu0 %v4049
    %v4051 = vpop.xlane.xlu0 %4050
    %v4052 = vsel %vm329, %v4048, 0.0
    %4053 = vadd.xlane.f32.xlu0 %v4052
    %v4054 = vpop.xlane.xlu0 %4053
    %v4055 = vrcp.pop %v4051
    %v4056 = vrcp.pop %v4054
    %v4057 = vmul.f32 %v4046, %v4055
    %v4058 = vmul.f32 %v4048, %v4056
    %v4059 = vpack.c.bf16 %v4057, %v4057
    %v4060 = vpack.c.bf16 %v4058, %v4058
    %4062 = vrot.lane.b32.xlu0 %v3937, 96
    %v4063 = vpop.permute.xlu0 %4062
    %v4065 = vsel %vm329, %v4059, 0
    %v4068 = vsel %vm460, %v4063, 0
    %4070 = vmatprep.subr.bf16.mxu0 0
    %4071 = vmatpush1.bf16.msra.mxu0 %v4068
    %4072 = vmatprep.subr.bf16.mxu0 0
    %4073 = vmatpush1.bf16.msra.mxu0 0
    %4074 = vmatprep.subr.bf16.mxu0 0
    %4075 = vmatpush1.bf16.msra.mxu0 0
    %4076 = vmatprep.subr.bf16.mxu0 0
    %4077 = vmatpush1.bf16.msra.mxu0 0
    %4078 = vmatprep.subr.bf16.mxu0 0
    %4079 = vmatpush1.bf16.msra.mxu0 0
    %4080 = vmatprep.subr.bf16.mxu0 0
    %4081 = vmatpush1.bf16.msra.mxu0 0
    %4082 = vmatprep.subr.bf16.mxu0 0
    %4083 = vmatpush1.bf16.msra.mxu0 0
    %4084 = vmatprep.subr.bf16.mxu0 0
    %4085 = vmatpush1.bf16.msra.mxu0 0
    %4086 = vmatprep.subr.bf16.mxu0 0
    %4087 = vmatpush1.bf16.msra.mxu0 0
    %4088 = vmatprep.subr.bf16.mxu0 0
    %4089 = vmatpush1.bf16.msra.mxu0 0
    %4090 = vmatprep.subr.bf16.mxu0 0
    %4091 = vmatpush1.bf16.msra.mxu0 0
    %4092 = vmatprep.subr.bf16.mxu0 0
    %4093 = vmatpush1.bf16.msra.mxu0 0
    %4094 = vmatprep.subr.bf16.mxu0 0
    %4095 = vmatpush1.bf16.msra.mxu0 0
    %4096 = vmatprep.subr.bf16.mxu0 0
    %4097 = vmatpush1.bf16.msra.mxu0 0
    %4098 = vmatprep.subr.bf16.mxu0 0
    %4099 = vmatpush1.bf16.msra.mxu0 0
    %4100 = vmatprep.subr.bf16.mxu0 0
    %4101 = vmatpush1.bf16.msra.mxu0 0
    %4102 = vmatprep.mubr.bf16.mxu0 0
    %4103 = vmatmul.mubr.bf16.gmra.mrb[0].mxu0 %v4065
    %v4104 = vpop.f32.mrb[0].mxu0
    %v4105 = vadd.f32 0.0, %v4104
    %v4106 = vpop.f32.mrb[0].mxu0
    %v4107 = vpop.f32.mrb[0].mxu0
    %v4108 = vpop.f32.mrb[0].mxu0
    %4109 = vdwg.mxu0
    %4111 = vrot.lane.b32.xlu0 %v3938, 96
    %v4112 = vpop.permute.xlu0 %4111
    %v4114 = vsel %vm329, %v4060, 0
    %v4117 = vsel %vm460, %v4112, 0
    %4119 = vmatprep.subr.bf16.mxu0 0
    %4120 = vmatpush1.bf16.msra.mxu0 %v4117
    %4121 = vmatprep.subr.bf16.mxu0 0
    %4122 = vmatpush1.bf16.msra.mxu0 0
    %4123 = vmatprep.subr.bf16.mxu0 0
    %4124 = vmatpush1.bf16.msra.mxu0 0
    %4125 = vmatprep.subr.bf16.mxu0 0
    %4126 = vmatpush1.bf16.msra.mxu0 0
    %4127 = vmatprep.subr.bf16.mxu0 0
    %4128 = vmatpush1.bf16.msra.mxu0 0
    %4129 = vmatprep.subr.bf16.mxu0 0
    %4130 = vmatpush1.bf16.msra.mxu0 0
    %4131 = vmatprep.subr.bf16.mxu0 0
    %4132 = vmatpush1.bf16.msra.mxu0 0
    %4133 = vmatprep.subr.bf16.mxu0 0
    %4134 = vmatpush1.bf16.msra.mxu0 0
    %4135 = vmatprep.subr.bf16.mxu0 0
    %4136 = vmatpush1.bf16.msra.mxu0 0
    %4137 = vmatprep.subr.bf16.mxu0 0
    %4138 = vmatpush1.bf16.msra.mxu0 0
    %4139 = vmatprep.subr.bf16.mxu0 0
    %4140 = vmatpush1.bf16.msra.mxu0 0
    %4141 = vmatprep.subr.bf16.mxu0 0
    %4142 = vmatpush1.bf16.msra.mxu0 0
    %4143 = vmatprep.subr.bf16.mxu0 0
    %4144 = vmatpush1.bf16.msra.mxu0 0
    %4145 = vmatprep.subr.bf16.mxu0 0
    %4146 = vmatpush1.bf16.msra.mxu0 0
    %4147 = vmatprep.subr.bf16.mxu0 0
    %4148 = vmatpush1.bf16.msra.mxu0 0
    %4149 = vmatprep.subr.bf16.mxu0 0
    %4150 = vmatpush1.bf16.msra.mxu0 0
    %4151 = vmatprep.mubr.bf16.mxu0 0
    %4152 = vmatmul.mubr.bf16.gmra.mrb[0].mxu0 %v4114
    %v4153 = vpop.f32.mrb[0].mxu0
    %v4154 = vadd.f32 0.0, %v4153
    %v4155 = vpop.f32.mrb[0].mxu0
    %v4156 = vpop.f32.mrb[0].mxu0
    %v4157 = vpop.f32.mrb[0].mxu0
    %4158 = vdwg.mxu0
    %4160 = vrot.lane.b32.xlu0 %v3935, 120
    %v4161 = vpop.permute.xlu0 %4160
    %4162 = vrot.lane.b32.xlu0 %v3937, 120
    %v4163 = vpop.permute.xlu0 %4162
    %v4165 = vsel %vm329, %v4161, 0
    %v4168 = vsel %vm329, %v4163, 0
    %4170 = vmatprep.subr.bf16.mxu0 0
    %4171 = vmatpush1.bf16.xpose.msra.mxu0 %v4168
    %4172 = vmatprep.subr.bf16.mxu0 0
    %4173 = vmatpush1.bf16.xpose.msra.mxu0 0
    %4174 = vmatprep.subr.bf16.mxu0 0
    %4175 = vmatpush1.bf16.xpose.msra.mxu0 0
    %4176 = vmatprep.subr.bf16.mxu0 0
    %4177 = vmatpush1.bf16.xpose.msra.mxu0 0
    %4178 = vmatprep.subr.bf16.mxu0 0
    %4179 = vmatpush1.bf16.xpose.msra.mxu0 0
    %4180 = vmatprep.subr.bf16.mxu0 0
    %4181 = vmatpush1.bf16.xpose.msra.mxu0 0
    %4182 = vmatprep.subr.bf16.mxu0 0
    %4183 = vmatpush1.bf16.xpose.msra.mxu0 0
    %4184 = vmatprep.subr.bf16.mxu0 0
    %4185 = vmatpush1.bf16.xpose.msra.mxu0 0
    %4186 = vmatprep.subr.bf16.mxu0 0
    %4187 = vmatpush1.bf16.xpose.msra.mxu0 0
    %4188 = vmatprep.subr.bf16.mxu0 0
    %4189 = vmatpush1.bf16.xpose.msra.mxu0 0
    %4190 = vmatprep.subr.bf16.mxu0 0
    %4191 = vmatpush1.bf16.xpose.msra.mxu0 0
    %4192 = vmatprep.subr.bf16.mxu0 0
    %4193 = vmatpush1.bf16.xpose.msra.mxu0 0
    %4194 = vmatprep.subr.bf16.mxu0 0
    %4195 = vmatpush1.bf16.xpose.msra.mxu0 0
    %4196 = vmatprep.subr.bf16.mxu0 0
    %4197 = vmatpush1.bf16.xpose.msra.mxu0 0
    %4198 = vmatprep.subr.bf16.mxu0 0
    %4199 = vmatpush1.bf16.xpose.msra.mxu0 0
    %4200 = vmatprep.subr.bf16.mxu0 0
    %4201 = vmatpush1.bf16.xpose.msra.mxu0 0
    %4202 = vmatprep.mubr.bf16.mxu0 0
    %4203 = vmatmul.mubr.bf16.gmra.mrb[0].mxu0 %v4165
    %v4204 = vpop.f32.mrb[0].mxu0
    %v4205 = vadd.f32 0.0, %v4204
    %v4206 = vpop.f32.mrb[0].mxu0
    %v4207 = vpop.f32.mrb[0].mxu0
    %v4208 = vpop.f32.mrb[0].mxu0
    %4209 = vdwg.mxu0
    %4211 = vrot.lane.b32.xlu0 %v3936, 120
    %v4212 = vpop.permute.xlu0 %4211
    %4213 = vrot.lane.b32.xlu0 %v3938, 120
    %v4214 = vpop.permute.xlu0 %4213
    %v4216 = vsel %vm329, %v4212, 0
    %v4219 = vsel %vm329, %v4214, 0
    %4221 = vmatprep.subr.bf16.mxu0 0
    %4222 = vmatpush1.bf16.xpose.msra.mxu0 %v4219
    %4223 = vmatprep.subr.bf16.mxu0 0
    %4224 = vmatpush1.bf16.xpose.msra.mxu0 0
    %4225 = vmatprep.subr.bf16.mxu0 0
    %4226 = vmatpush1.bf16.xpose.msra.mxu0 0
    %4227 = vmatprep.subr.bf16.mxu0 0
    %4228 = vmatpush1.bf16.xpose.msra.mxu0 0
    %4229 = vmatprep.subr.bf16.mxu0 0
    %4230 = vmatpush1.bf16.xpose.msra.mxu0 0
    %4231 = vmatprep.subr.bf16.mxu0 0
    %4232 = vmatpush1.bf16.xpose.msra.mxu0 0
    %4233 = vmatprep.subr.bf16.mxu0 0
    %4234 = vmatpush1.bf16.xpose.msra.mxu0 0
    %4235 = vmatprep.subr.bf16.mxu0 0
    %4236 = vmatpush1.bf16.xpose.msra.mxu0 0
    %4237 = vmatprep.subr.bf16.mxu0 0
    %4238 = vmatpush1.bf16.xpose.msra.mxu0 0
    %4239 = vmatprep.subr.bf16.mxu0 0
    %4240 = vmatpush1.bf16.xpose.msra.mxu0 0
    %4241 = vmatprep.subr.bf16.mxu0 0
    %4242 = vmatpush1.bf16.xpose.msra.mxu0 0
    %4243 = vmatprep.subr.bf16.mxu0 0
    %4244 = vmatpush1.bf16.xpose.msra.mxu0 0
    %4245 = vmatprep.subr.bf16.mxu0 0
    %4246 = vmatpush1.bf16.xpose.msra.mxu0 0
    %4247 = vmatprep.subr.bf16.mxu0 0
    %4248 = vmatpush1.bf16.xpose.msra.mxu0 0
    %4249 = vmatprep.subr.bf16.mxu0 0
    %4250 = vmatpush1.bf16.xpose.msra.mxu0 0
    %4251 = vmatprep.subr.bf16.mxu0 0
    %4252 = vmatpush1.bf16.xpose.msra.mxu0 0
    %4253 = vmatprep.mubr.bf16.mxu0 0
    %4254 = vmatmul.mubr.bf16.gmra.mrb[0].mxu0 %v4216
    %v4255 = vpop.f32.mrb[0].mxu0
    %v4256 = vadd.f32 0.0, %v4255
    %v4257 = vpop.f32.mrb[0].mxu0
    %v4258 = vpop.f32.mrb[0].mxu0
    %v4259 = vpop.f32.mrb[0].mxu0
    %4260 = vdwg.mxu0
    %v4261 = vmul.f32 %v4205, 0.35355338
    %v4262 = vmul.f32 %v4256, 0.35355338
    %v4263 = vmul.f32 %v4261, %v257
    %v4264 = vmul.f32 %v4262, %v258
    %v4265 = vadd.f32 %v4263, %v261
    %v4266 = vadd.f32 %v4264, %v262
    %v4267 = vsel %vm329, %v4265, -inf
    %4268 = vmax.xlane.f32.xlu0 %v4267
    %v4269 = vpop.xlane.xlu0 %4268
    %v4270 = vsel %vm329, %v4266, -inf
    %4271 = vmax.xlane.f32.xlu0 %v4270
    %v4272 = vpop.xlane.xlu0 %4271
    %v4273 = vsub.f32 %v4265, %v4269
    %v4274 = vsub.f32 %v4266, %v4272
    %v4275 = vmul.f32 %v4273, 1.442695
    %v4276 = vpow.pop %v4275
    %v4277 = vmul.f32 %v4274, 1.442695
    %v4278 = vpow.pop %v4277
    %v4279 = vsel %vm329, %v4276, 0.0
    %4280 = vadd.xlane.f32.xlu0 %v4279
    %v4281 = vpop.xlane.xlu0 %4280
    %v4282 = vsel %vm329, %v4278, 0.0
    %4283 = vadd.xlane.f32.xlu0 %v4282
    %v4284 = vpop.xlane.xlu0 %4283
    %v4285 = vrcp.pop %v4281
    %v4286 = vrcp.pop %v4284
    %v4287 = vmul.f32 %v4276, %v4285
    %v4288 = vmul.f32 %v4278, %v4286
    %v4289 = vpack.c.bf16 %v4287, %v4287
    %v4290 = vpack.c.bf16 %v4288, %v4288
    %4291 = vrot.lane.b32.xlu0 %v3937, 88
    %v4292 = vpop.permute.xlu0 %4291
    %v4294 = vsel %vm329, %v4289, 0
    %v4297 = vsel %vm460, %v4292, 0
    %4299 = vmatprep.subr.bf16.mxu0 0
    %4300 = vmatpush1.bf16.msra.mxu0 %v4297
    %4301 = vmatprep.subr.bf16.mxu0 0
    %4302 = vmatpush1.bf16.msra.mxu0 0
    %4303 = vmatprep.subr.bf16.mxu0 0
    %4304 = vmatpush1.bf16.msra.mxu0 0
    %4305 = vmatprep.subr.bf16.mxu0 0
    %4306 = vmatpush1.bf16.msra.mxu0 0
    %4307 = vmatprep.subr.bf16.mxu0 0
    %4308 = vmatpush1.bf16.msra.mxu0 0
    %4309 = vmatprep.subr.bf16.mxu0 0
    %4310 = vmatpush1.bf16.msra.mxu0 0
    %4311 = vmatprep.subr.bf16.mxu0 0
    %4312 = vmatpush1.bf16.msra.mxu0 0
    %4313 = vmatprep.subr.bf16.mxu0 0
    %4314 = vmatpush1.bf16.msra.mxu0 0
    %4315 = vmatprep.subr.bf16.mxu0 0
    %4316 = vmatpush1.bf16.msra.mxu0 0
    %4317 = vmatprep.subr.bf16.mxu0 0
    %4318 = vmatpush1.bf16.msra.mxu0 0
    %4319 = vmatprep.subr.bf16.mxu0 0
    %4320 = vmatpush1.bf16.msra.mxu0 0
    %4321 = vmatprep.subr.bf16.mxu0 0
    %4322 = vmatpush1.bf16.msra.mxu0 0
    %4323 = vmatprep.subr.bf16.mxu0 0
    %4324 = vmatpush1.bf16.msra.mxu0 0
    %4325 = vmatprep.subr.bf16.mxu0 0
    %4326 = vmatpush1.bf16.msra.mxu0 0
    %4327 = vmatprep.subr.bf16.mxu0 0
    %4328 = vmatpush1.bf16.msra.mxu0 0
    %4329 = vmatprep.subr.bf16.mxu0 0
    %4330 = vmatpush1.bf16.msra.mxu0 0
    %4331 = vmatprep.mubr.bf16.mxu0 0
    %4332 = vmatmul.mubr.bf16.gmra.mrb[0].mxu0 %v4294
    %v4333 = vpop.f32.mrb[0].mxu0
    %v4334 = vadd.f32 0.0, %v4333
    %v4335 = vpop.f32.mrb[0].mxu0
    %v4336 = vpop.f32.mrb[0].mxu0
    %v4337 = vpop.f32.mrb[0].mxu0
    %4338 = vdwg.mxu0
    %4339 = vrot.lane.b32.xlu0 %v3938, 88
    %v4340 = vpop.permute.xlu0 %4339
    %v4342 = vsel %vm329, %v4290, 0
    %v4345 = vsel %vm460, %v4340, 0
    %4347 = vmatprep.subr.bf16.mxu0 0
    %4348 = vmatpush1.bf16.msra.mxu0 %v4345
    %4349 = vmatprep.subr.bf16.mxu0 0
    %4350 = vmatpush1.bf16.msra.mxu0 0
    %4351 = vmatprep.subr.bf16.mxu0 0
    %4352 = vmatpush1.bf16.msra.mxu0 0
    %4353 = vmatprep.subr.bf16.mxu0 0
    %4354 = vmatpush1.bf16.msra.mxu0 0
    %4355 = vmatprep.subr.bf16.mxu0 0
    %4356 = vmatpush1.bf16.msra.mxu0 0
    %4357 = vmatprep.subr.bf16.mxu0 0
    %4358 = vmatpush1.bf16.msra.mxu0 0
    %4359 = vmatprep.subr.bf16.mxu0 0
    %4360 = vmatpush1.bf16.msra.mxu0 0
    %4361 = vmatprep.subr.bf16.mxu0 0
    %4362 = vmatpush1.bf16.msra.mxu0 0
    %4363 = vmatprep.subr.bf16.mxu0 0
    %4364 = vmatpush1.bf16.msra.mxu0 0
    %4365 = vmatprep.subr.bf16.mxu0 0
    %4366 = vmatpush1.bf16.msra.mxu0 0
    %4367 = vmatprep.subr.bf16.mxu0 0
    %4368 = vmatpush1.bf16.msra.mxu0 0
    %4369 = vmatprep.subr.bf16.mxu0 0
    %4370 = vmatpush1.bf16.msra.mxu0 0
    %4371 = vmatprep.subr.bf16.mxu0 0
    %4372 = vmatpush1.bf16.msra.mxu0 0
    %4373 = vmatprep.subr.bf16.mxu0 0
    %4374 = vmatpush1.bf16.msra.mxu0 0
    %4375 = vmatprep.subr.bf16.mxu0 0
    %4376 = vmatpush1.bf16.msra.mxu0 0
    %4377 = vmatprep.subr.bf16.mxu0 0
    %4378 = vmatpush1.bf16.msra.mxu0 0
    %4379 = vmatprep.mubr.bf16.mxu0 0
    %4380 = vmatmul.mubr.bf16.gmra.mrb[0].mxu0 %v4342
    %v4381 = vpop.f32.mrb[0].mxu0
    %v4382 = vadd.f32 0.0, %v4381
    %v4383 = vpop.f32.mrb[0].mxu0
    %v4384 = vpop.f32.mrb[0].mxu0
    %v4385 = vpop.f32.mrb[0].mxu0
    %4386 = vdwg.mxu0
    %4387 = vrot.lane.b32.xlu0 %v3935, 112
    %v4388 = vpop.permute.xlu0 %4387
    %4389 = vrot.lane.b32.xlu0 %v3937, 112
    %v4390 = vpop.permute.xlu0 %4389
    %v4392 = vsel %vm329, %v4388, 0
    %v4395 = vsel %vm329, %v4390, 0
    %4397 = vmatprep.subr.bf16.mxu0 0
    %4398 = vmatpush1.bf16.xpose.msra.mxu0 %v4395
    %4399 = vmatprep.subr.bf16.mxu0 0
    %4400 = vmatpush1.bf16.xpose.msra.mxu0 0
    %4401 = vmatprep.subr.bf16.mxu0 0
    %4402 = vmatpush1.bf16.xpose.msra.mxu0 0
    %4403 = vmatprep.subr.bf16.mxu0 0
    %4404 = vmatpush1.bf16.xpose.msra.mxu0 0
    %4405 = vmatprep.subr.bf16.mxu0 0
    %4406 = vmatpush1.bf16.xpose.msra.mxu0 0
    %4407 = vmatprep.subr.bf16.mxu0 0
    %4408 = vmatpush1.bf16.xpose.msra.mxu0 0
    %4409 = vmatprep.subr.bf16.mxu0 0
    %4410 = vmatpush1.bf16.xpose.msra.mxu0 0
    %4411 = vmatprep.subr.bf16.mxu0 0
    %4412 = vmatpush1.bf16.xpose.msra.mxu0 0
    %4413 = vmatprep.subr.bf16.mxu0 0
    %4414 = vmatpush1.bf16.xpose.msra.mxu0 0
    %4415 = vmatprep.subr.bf16.mxu0 0
    %4416 = vmatpush1.bf16.xpose.msra.mxu0 0
    %4417 = vmatprep.subr.bf16.mxu0 0
    %4418 = vmatpush1.bf16.xpose.msra.mxu0 0
    %4419 = vmatprep.subr.bf16.mxu0 0
    %4420 = vmatpush1.bf16.xpose.msra.mxu0 0
    %4421 = vmatprep.subr.bf16.mxu0 0
    %4422 = vmatpush1.bf16.xpose.msra.mxu0 0
    %4423 = vmatprep.subr.bf16.mxu0 0
    %4424 = vmatpush1.bf16.xpose.msra.mxu0 0
    %4425 = vmatprep.subr.bf16.mxu0 0
    %4426 = vmatpush1.bf16.xpose.msra.mxu0 0
    %4427 = vmatprep.subr.bf16.mxu0 0
    %4428 = vmatpush1.bf16.xpose.msra.mxu0 0
    %4429 = vmatprep.mubr.bf16.mxu0 0
    %4430 = vmatmul.mubr.bf16.gmra.mrb[0].mxu0 %v4392
    %v4431 = vpop.f32.mrb[0].mxu0
    %v4432 = vadd.f32 0.0, %v4431
    %v4433 = vpop.f32.mrb[0].mxu0
    %v4434 = vpop.f32.mrb[0].mxu0
    %v4435 = vpop.f32.mrb[0].mxu0
    %4436 = vdwg.mxu0
    %4437 = vrot.lane.b32.xlu0 %v3936, 112
    %v4438 = vpop.permute.xlu0 %4437
    %4439 = vrot.lane.b32.xlu0 %v3938, 112
    %v4440 = vpop.permute.xlu0 %4439
    %v4442 = vsel %vm329, %v4438, 0
    %v4445 = vsel %vm329, %v4440, 0
    %4447 = vmatprep.subr.bf16.mxu0 0
    %4448 = vmatpush1.bf16.xpose.msra.mxu0 %v4445
    %4449 = vmatprep.subr.bf16.mxu0 0
    %4450 = vmatpush1.bf16.xpose.msra.mxu0 0
    %4451 = vmatprep.subr.bf16.mxu0 0
    %4452 = vmatpush1.bf16.xpose.msra.mxu0 0
    %4453 = vmatprep.subr.bf16.mxu0 0
    %4454 = vmatpush1.bf16.xpose.msra.mxu0 0
    %4455 = vmatprep.subr.bf16.mxu0 0
    %4456 = vmatpush1.bf16.xpose.msra.mxu0 0
    %4457 = vmatprep.subr.bf16.mxu0 0
    %4458 = vmatpush1.bf16.xpose.msra.mxu0 0
    %4459 = vmatprep.subr.bf16.mxu0 0
    %4460 = vmatpush1.bf16.xpose.msra.mxu0 0
    %4461 = vmatprep.subr.bf16.mxu0 0
    %4462 = vmatpush1.bf16.xpose.msra.mxu0 0
    %4463 = vmatprep.subr.bf16.mxu0 0
    %4464 = vmatpush1.bf16.xpose.msra.mxu0 0
    %4465 = vmatprep.subr.bf16.mxu0 0
    %4466 = vmatpush1.bf16.xpose.msra.mxu0 0
    %4467 = vmatprep.subr.bf16.mxu0 0
    %4468 = vmatpush1.bf16.xpose.msra.mxu0 0
    %4469 = vmatprep.subr.bf16.mxu0 0
    %4470 = vmatpush1.bf16.xpose.msra.mxu0 0
    %4471 = vmatprep.subr.bf16.mxu0 0
    %4472 = vmatpush1.bf16.xpose.msra.mxu0 0
    %4473 = vmatprep.subr.bf16.mxu0 0
    %4474 = vmatpush1.bf16.xpose.msra.mxu0 0
    %4475 = vmatprep.subr.bf16.mxu0 0
    %4476 = vmatpush1.bf16.xpose.msra.mxu0 0
    %4477 = vmatprep.subr.bf16.mxu0 0
    %4478 = vmatpush1.bf16.xpose.msra.mxu0 0
    %4479 = vmatprep.mubr.bf16.mxu0 0
    %4480 = vmatmul.mubr.bf16.gmra.mrb[0].mxu0 %v4442
    %v4481 = vpop.f32.mrb[0].mxu0
    %v4482 = vadd.f32 0.0, %v4481
    %v4483 = vpop.f32.mrb[0].mxu0
    %v4484 = vpop.f32.mrb[0].mxu0
    %v4485 = vpop.f32.mrb[0].mxu0
    %4486 = vdwg.mxu0
    %v4487 = vmul.f32 %v4432, 0.35355338
    %v4488 = vmul.f32 %v4482, 0.35355338
    %v4489 = vmul.f32 %v4487, %v257
    %v4490 = vmul.f32 %v4488, %v258
    %v4491 = vadd.f32 %v4489, %v261
    %v4492 = vadd.f32 %v4490, %v262
    %v4493 = vsel %vm329, %v4491, -inf
    %4494 = vmax.xlane.f32.xlu0 %v4493
    %v4495 = vpop.xlane.xlu0 %4494
    %v4496 = vsel %vm329, %v4492, -inf
    %4497 = vmax.xlane.f32.xlu0 %v4496
    %v4498 = vpop.xlane.xlu0 %4497
    %v4499 = vsub.f32 %v4491, %v4495
    %v4500 = vsub.f32 %v4492, %v4498
    %v4501 = vmul.f32 %v4499, 1.442695
    %v4502 = vpow.pop %v4501
    %v4503 = vmul.f32 %v4500, 1.442695
    %v4504 = vpow.pop %v4503
    %v4505 = vsel %vm329, %v4502, 0.0
    %4506 = vadd.xlane.f32.xlu0 %v4505
    %v4507 = vpop.xlane.xlu0 %4506
    %v4508 = vsel %vm329, %v4504, 0.0
    %4509 = vadd.xlane.f32.xlu0 %v4508
    %v4510 = vpop.xlane.xlu0 %4509
    %v4511 = vrcp.pop %v4507
    %v4512 = vrcp.pop %v4510
    %v4513 = vmul.f32 %v4502, %v4511
    %v4514 = vmul.f32 %v4504, %v4512
    %v4515 = vpack.c.bf16 %v4513, %v4513
    %v4516 = vpack.c.bf16 %v4514, %v4514
    %4517 = vrot.lane.b32.xlu0 %v3937, 80
    %v4518 = vpop.permute.xlu0 %4517
    %v4520 = vsel %vm329, %v4515, 0
    %v4523 = vsel %vm460, %v4518, 0
    %4525 = vmatprep.subr.bf16.mxu0 0
    %4526 = vmatpush1.bf16.msra.mxu0 %v4523
    %4527 = vmatprep.subr.bf16.mxu0 0
    %4528 = vmatpush1.bf16.msra.mxu0 0
    %4529 = vmatprep.subr.bf16.mxu0 0
    %4530 = vmatpush1.bf16.msra.mxu0 0
    %4531 = vmatprep.subr.bf16.mxu0 0
    %4532 = vmatpush1.bf16.msra.mxu0 0
    %4533 = vmatprep.subr.bf16.mxu0 0
    %4534 = vmatpush1.bf16.msra.mxu0 0
    %4535 = vmatprep.subr.bf16.mxu0 0
    %4536 = vmatpush1.bf16.msra.mxu0 0
    %4537 = vmatprep.subr.bf16.mxu0 0
    %4538 = vmatpush1.bf16.msra.mxu0 0
    %4539 = vmatprep.subr.bf16.mxu0 0
    %4540 = vmatpush1.bf16.msra.mxu0 0
    %4541 = vmatprep.subr.bf16.mxu0 0
    %4542 = vmatpush1.bf16.msra.mxu0 0
    %4543 = vmatprep.subr.bf16.mxu0 0
    %4544 = vmatpush1.bf16.msra.mxu0 0
    %4545 = vmatprep.subr.bf16.mxu0 0
    %4546 = vmatpush1.bf16.msra.mxu0 0
    %4547 = vmatprep.subr.bf16.mxu0 0
    %4548 = vmatpush1.bf16.msra.mxu0 0
    %4549 = vmatprep.subr.bf16.mxu0 0
    %4550 = vmatpush1.bf16.msra.mxu0 0
    %4551 = vmatprep.subr.bf16.mxu0 0
    %4552 = vmatpush1.bf16.msra.mxu0 0
    %4553 = vmatprep.subr.bf16.mxu0 0
    %4554 = vmatpush1.bf16.msra.mxu0 0
    %4555 = vmatprep.subr.bf16.mxu0 0
    %4556 = vmatpush1.bf16.msra.mxu0 0
    %4557 = vmatprep.mubr.bf16.mxu0 0
    %4558 = vmatmul.mubr.bf16.gmra.mrb[0].mxu0 %v4520
    %v4559 = vpop.f32.mrb[0].mxu0
    %v4560 = vadd.f32 0.0, %v4559
    %v4561 = vpop.f32.mrb[0].mxu0
    %v4562 = vpop.f32.mrb[0].mxu0
    %v4563 = vpop.f32.mrb[0].mxu0
    %4564 = vdwg.mxu0
    %4565 = vrot.lane.b32.xlu0 %v3938, 80
    %v4566 = vpop.permute.xlu0 %4565
    %v4568 = vsel %vm329, %v4516, 0
    %v4571 = vsel %vm460, %v4566, 0
    %4573 = vmatprep.subr.bf16.mxu0 0
    %4574 = vmatpush1.bf16.msra.mxu0 %v4571
    %4575 = vmatprep.subr.bf16.mxu0 0
    %4576 = vmatpush1.bf16.msra.mxu0 0
    %4577 = vmatprep.subr.bf16.mxu0 0
    %4578 = vmatpush1.bf16.msra.mxu0 0
    %4579 = vmatprep.subr.bf16.mxu0 0
    %4580 = vmatpush1.bf16.msra.mxu0 0
    %4581 = vmatprep.subr.bf16.mxu0 0
    %4582 = vmatpush1.bf16.msra.mxu0 0
    %4583 = vmatprep.subr.bf16.mxu0 0
    %4584 = vmatpush1.bf16.msra.mxu0 0
    %4585 = vmatprep.subr.bf16.mxu0 0
    %4586 = vmatpush1.bf16.msra.mxu0 0
    %4587 = vmatprep.subr.bf16.mxu0 0
    %4588 = vmatpush1.bf16.msra.mxu0 0
    %4589 = vmatprep.subr.bf16.mxu0 0
    %4590 = vmatpush1.bf16.msra.mxu0 0
    %4591 = vmatprep.subr.bf16.mxu0 0
    %4592 = vmatpush1.bf16.msra.mxu0 0
    %4593 = vmatprep.subr.bf16.mxu0 0
    %4594 = vmatpush1.bf16.msra.mxu0 0
    %4595 = vmatprep.subr.bf16.mxu0 0
    %4596 = vmatpush1.bf16.msra.mxu0 0
    %4597 = vmatprep.subr.bf16.mxu0 0
    %4598 = vmatpush1.bf16.msra.mxu0 0
    %4599 = vmatprep.subr.bf16.mxu0 0
    %4600 = vmatpush1.bf16.msra.mxu0 0
    %4601 = vmatprep.subr.bf16.mxu0 0
    %4602 = vmatpush1.bf16.msra.mxu0 0
    %4603 = vmatprep.subr.bf16.mxu0 0
    %4604 = vmatpush1.bf16.msra.mxu0 0
    %4605 = vmatprep.mubr.bf16.mxu0 0
    %4606 = vmatmul.mubr.bf16.gmra.mrb[0].mxu0 %v4568
    %v4607 = vpop.f32.mrb[0].mxu0
    %v4608 = vadd.f32 0.0, %v4607
    %v4609 = vpop.f32.mrb[0].mxu0
    %v4610 = vpop.f32.mrb[0].mxu0
    %v4611 = vpop.f32.mrb[0].mxu0
    %4612 = vdwg.mxu0
    %4613 = vrot.lane.b32.xlu0 %v3935, 104
    %v4614 = vpop.permute.xlu0 %4613
    %4615 = vrot.lane.b32.xlu0 %v3937, 104
    %v4616 = vpop.permute.xlu0 %4615
    %v4618 = vsel %vm329, %v4614, 0
    %v4621 = vsel %vm329, %v4616, 0
    %4623 = vmatprep.subr.bf16.mxu0 0
    %4624 = vmatpush1.bf16.xpose.msra.mxu0 %v4621
    %4625 = vmatprep.subr.bf16.mxu0 0
    %4626 = vmatpush1.bf16.xpose.msra.mxu0 0
    %4627 = vmatprep.subr.bf16.mxu0 0
    %4628 = vmatpush1.bf16.xpose.msra.mxu0 0
    %4629 = vmatprep.subr.bf16.mxu0 0
    %4630 = vmatpush1.bf16.xpose.msra.mxu0 0
    %4631 = vmatprep.subr.bf16.mxu0 0
    %4632 = vmatpush1.bf16.xpose.msra.mxu0 0
    %4633 = vmatprep.subr.bf16.mxu0 0
    %4634 = vmatpush1.bf16.xpose.msra.mxu0 0
    %4635 = vmatprep.subr.bf16.mxu0 0
    %4636 = vmatpush1.bf16.xpose.msra.mxu0 0
    %4637 = vmatprep.subr.bf16.mxu0 0
    %4638 = vmatpush1.bf16.xpose.msra.mxu0 0
    %4639 = vmatprep.subr.bf16.mxu0 0
    %4640 = vmatpush1.bf16.xpose.msra.mxu0 0
    %4641 = vmatprep.subr.bf16.mxu0 0
    %4642 = vmatpush1.bf16.xpose.msra.mxu0 0
    %4643 = vmatprep.subr.bf16.mxu0 0
    %4644 = vmatpush1.bf16.xpose.msra.mxu0 0
    %4645 = vmatprep.subr.bf16.mxu0 0
    %4646 = vmatpush1.bf16.xpose.msra.mxu0 0
    %4647 = vmatprep.subr.bf16.mxu0 0
    %4648 = vmatpush1.bf16.xpose.msra.mxu0 0
    %4649 = vmatprep.subr.bf16.mxu0 0
    %4650 = vmatpush1.bf16.xpose.msra.mxu0 0
    %4651 = vmatprep.subr.bf16.mxu0 0
    %4652 = vmatpush1.bf16.xpose.msra.mxu0 0
    %4653 = vmatprep.subr.bf16.mxu0 0
    %4654 = vmatpush1.bf16.xpose.msra.mxu0 0
    %4655 = vmatprep.mubr.bf16.mxu0 0
    %4656 = vmatmul.mubr.bf16.gmra.mrb[0].mxu0 %v4618
    %v4657 = vpop.f32.mrb[0].mxu0
    %v4658 = vadd.f32 0.0, %v4657
    %v4659 = vpop.f32.mrb[0].mxu0
    %v4660 = vpop.f32.mrb[0].mxu0
    %v4661 = vpop.f32.mrb[0].mxu0
    %4662 = vdwg.mxu0
    %4663 = vrot.lane.b32.xlu0 %v3936, 104
    %v4664 = vpop.permute.xlu0 %4663
    %4665 = vrot.lane.b32.xlu0 %v3938, 104
    %v4666 = vpop.permute.xlu0 %4665
    %v4668 = vsel %vm329, %v4664, 0
    %v4671 = vsel %vm329, %v4666, 0
    %4673 = vmatprep.subr.bf16.mxu0 0
    %4674 = vmatpush1.bf16.xpose.msra.mxu0 %v4671
    %4675 = vmatprep.subr.bf16.mxu0 0
    %4676 = vmatpush1.bf16.xpose.msra.mxu0 0
    %4677 = vmatprep.subr.bf16.mxu0 0
    %4678 = vmatpush1.bf16.xpose.msra.mxu0 0
    %4679 = vmatprep.subr.bf16.mxu0 0
    %4680 = vmatpush1.bf16.xpose.msra.mxu0 0
    %4681 = vmatprep.subr.bf16.mxu0 0
    %4682 = vmatpush1.bf16.xpose.msra.mxu0 0
    %4683 = vmatprep.subr.bf16.mxu0 0
    %4684 = vmatpush1.bf16.xpose.msra.mxu0 0
    %4685 = vmatprep.subr.bf16.mxu0 0
    %4686 = vmatpush1.bf16.xpose.msra.mxu0 0
    %4687 = vmatprep.subr.bf16.mxu0 0
    %4688 = vmatpush1.bf16.xpose.msra.mxu0 0
    %4689 = vmatprep.subr.bf16.mxu0 0
    %4690 = vmatpush1.bf16.xpose.msra.mxu0 0
    %4691 = vmatprep.subr.bf16.mxu0 0
    %4692 = vmatpush1.bf16.xpose.msra.mxu0 0
    %4693 = vmatprep.subr.bf16.mxu0 0
    %4694 = vmatpush1.bf16.xpose.msra.mxu0 0
    %4695 = vmatprep.subr.bf16.mxu0 0
    %4696 = vmatpush1.bf16.xpose.msra.mxu0 0
    %4697 = vmatprep.subr.bf16.mxu0 0
    %4698 = vmatpush1.bf16.xpose.msra.mxu0 0
    %4699 = vmatprep.subr.bf16.mxu0 0
    %4700 = vmatpush1.bf16.xpose.msra.mxu0 0
    %4701 = vmatprep.subr.bf16.mxu0 0
    %4702 = vmatpush1.bf16.xpose.msra.mxu0 0
    %4703 = vmatprep.subr.bf16.mxu0 0
    %4704 = vmatpush1.bf16.xpose.msra.mxu0 0
    %4705 = vmatprep.mubr.bf16.mxu0 0
    %4706 = vmatmul.mubr.bf16.gmra.mrb[0].mxu0 %v4668
    %v4707 = vpop.f32.mrb[0].mxu0
    %v4708 = vadd.f32 0.0, %v4707
    %v4709 = vpop.f32.mrb[0].mxu0
    %v4710 = vpop.f32.mrb[0].mxu0
    %v4711 = vpop.f32.mrb[0].mxu0
    %4712 = vdwg.mxu0
    %v4713 = vmul.f32 %v4658, 0.35355338
    %v4714 = vmul.f32 %v4708, 0.35355338
    %v4715 = vmul.f32 %v4713, %v257
    %v4716 = vmul.f32 %v4714, %v258
    %v4717 = vadd.f32 %v4715, %v261
    %v4718 = vadd.f32 %v4716, %v262
    %v4719 = vsel %vm329, %v4717, -inf
    %4720 = vmax.xlane.f32.xlu0 %v4719
    %v4721 = vpop.xlane.xlu0 %4720
    %v4722 = vsel %vm329, %v4718, -inf
    %4723 = vmax.xlane.f32.xlu0 %v4722
    %v4724 = vpop.xlane.xlu0 %4723
    %v4725 = vsub.f32 %v4717, %v4721
    %v4726 = vsub.f32 %v4718, %v4724
    %v4727 = vmul.f32 %v4725, 1.442695
    %v4728 = vpow.pop %v4727
    %v4729 = vmul.f32 %v4726, 1.442695
    %v4730 = vpow.pop %v4729
    %v4731 = vsel %vm329, %v4728, 0.0
    %4732 = vadd.xlane.f32.xlu0 %v4731
    %v4733 = vpop.xlane.xlu0 %4732
    %v4734 = vsel %vm329, %v4730, 0.0
    %4735 = vadd.xlane.f32.xlu0 %v4734
    %v4736 = vpop.xlane.xlu0 %4735
    %v4737 = vrcp.pop %v4733
    %v4738 = vrcp.pop %v4736
    %v4739 = vmul.f32 %v4728, %v4737
    %v4740 = vmul.f32 %v4730, %v4738
    %v4741 = vpack.c.bf16 %v4739, %v4739
    %v4742 = vpack.c.bf16 %v4740, %v4740
    %4743 = vrot.lane.b32.xlu0 %v3937, 72
    %v4744 = vpop.permute.xlu0 %4743
    %v4746 = vsel %vm329, %v4741, 0
    %v4749 = vsel %vm460, %v4744, 0
    %4751 = vmatprep.subr.bf16.mxu0 0
    %4752 = vmatpush1.bf16.msra.mxu0 %v4749
    %4753 = vmatprep.subr.bf16.mxu0 0
    %4754 = vmatpush1.bf16.msra.mxu0 0
    %4755 = vmatprep.subr.bf16.mxu0 0
    %4756 = vmatpush1.bf16.msra.mxu0 0
    %4757 = vmatprep.subr.bf16.mxu0 0
    %4758 = vmatpush1.bf16.msra.mxu0 0
    %4759 = vmatprep.subr.bf16.mxu0 0
    %4760 = vmatpush1.bf16.msra.mxu0 0
    %4761 = vmatprep.subr.bf16.mxu0 0
    %4762 = vmatpush1.bf16.msra.mxu0 0
    %4763 = vmatprep.subr.bf16.mxu0 0
    %4764 = vmatpush1.bf16.msra.mxu0 0
    %4765 = vmatprep.subr.bf16.mxu0 0
    %4766 = vmatpush1.bf16.msra.mxu0 0
    %4767 = vmatprep.subr.bf16.mxu0 0
    %4768 = vmatpush1.bf16.msra.mxu0 0
    %4769 = vmatprep.subr.bf16.mxu0 0
    %4770 = vmatpush1.bf16.msra.mxu0 0
    %4771 = vmatprep.subr.bf16.mxu0 0
    %4772 = vmatpush1.bf16.msra.mxu0 0
    %4773 = vmatprep.subr.bf16.mxu0 0
    %4774 = vmatpush1.bf16.msra.mxu0 0
    %4775 = vmatprep.subr.bf16.mxu0 0
    %4776 = vmatpush1.bf16.msra.mxu0 0
    %4777 = vmatprep.subr.bf16.mxu0 0
    %4778 = vmatpush1.bf16.msra.mxu0 0
    %4779 = vmatprep.subr.bf16.mxu0 0
    %4780 = vmatpush1.bf16.msra.mxu0 0
    %4781 = vmatprep.subr.bf16.mxu0 0
    %4782 = vmatpush1.bf16.msra.mxu0 0
    %4783 = vmatprep.mubr.bf16.mxu0 0
    %4784 = vmatmul.mubr.bf16.gmra.mrb[0].mxu0 %v4746
    %v4785 = vpop.f32.mrb[0].mxu0
    %v4786 = vadd.f32 0.0, %v4785
    %v4787 = vpop.f32.mrb[0].mxu0
    %v4788 = vpop.f32.mrb[0].mxu0
    %v4789 = vpop.f32.mrb[0].mxu0
    %4790 = vdwg.mxu0
    %4791 = vrot.lane.b32.xlu0 %v3938, 72
    %v4792 = vpop.permute.xlu0 %4791
    %v4794 = vsel %vm329, %v4742, 0
    %v4797 = vsel %vm460, %v4792, 0
    %4799 = vmatprep.subr.bf16.mxu0 0
    %4800 = vmatpush1.bf16.msra.mxu0 %v4797
    %4801 = vmatprep.subr.bf16.mxu0 0
    %4802 = vmatpush1.bf16.msra.mxu0 0
    %4803 = vmatprep.subr.bf16.mxu0 0
    %4804 = vmatpush1.bf16.msra.mxu0 0
    %4805 = vmatprep.subr.bf16.mxu0 0
    %4806 = vmatpush1.bf16.msra.mxu0 0
    %4807 = vmatprep.subr.bf16.mxu0 0
    %4808 = vmatpush1.bf16.msra.mxu0 0
    %4809 = vmatprep.subr.bf16.mxu0 0
    %4810 = vmatpush1.bf16.msra.mxu0 0
    %4811 = vmatprep.subr.bf16.mxu0 0
    %4812 = vmatpush1.bf16.msra.mxu0 0
    %4813 = vmatprep.subr.bf16.mxu0 0
    %4814 = vmatpush1.bf16.msra.mxu0 0
    %4815 = vmatprep.subr.bf16.mxu0 0
    %4816 = vmatpush1.bf16.msra.mxu0 0
    %4817 = vmatprep.subr.bf16.mxu0 0
    %4818 = vmatpush1.bf16.msra.mxu0 0
    %4819 = vmatprep.subr.bf16.mxu0 0
    %4820 = vmatpush1.bf16.msra.mxu0 0
    %4821 = vmatprep.subr.bf16.mxu0 0
    %4822 = vmatpush1.bf16.msra.mxu0 0
    %4823 = vmatprep.subr.bf16.mxu0 0
    %4824 = vmatpush1.bf16.msra.mxu0 0
    %4825 = vmatprep.subr.bf16.mxu0 0
    %4826 = vmatpush1.bf16.msra.mxu0 0
    %4827 = vmatprep.subr.bf16.mxu0 0
    %4828 = vmatpush1.bf16.msra.mxu0 0
    %4829 = vmatprep.subr.bf16.mxu0 0
    %4830 = vmatpush1.bf16.msra.mxu0 0
    %4831 = vmatprep.mubr.bf16.mxu0 0
    %4832 = vmatmul.mubr.bf16.gmra.mrb[0].mxu0 %v4794
    %v4833 = vpop.f32.mrb[0].mxu0
    %v4834 = vadd.f32 0.0, %v4833
    %v4835 = vpop.f32.mrb[0].mxu0
    %v4836 = vpop.f32.mrb[0].mxu0
    %v4837 = vpop.f32.mrb[0].mxu0
    %4838 = vdwg.mxu0
    %4841 = vrot.lane.b32.xlu0 %v4334, 8
    %v4842 = vpop.permute.xlu0 %4841
    %4843 = vrot.lane.b32.xlu0 %v4382, 8
    %v4844 = vpop.permute.xlu0 %4843
    %4849 = vrot.lane.b32.xlu0 %v4560, 16
    %v4850 = vpop.permute.xlu0 %4849
    %4851 = vrot.lane.b32.xlu0 %v4608, 16
    %v4852 = vpop.permute.xlu0 %4851
    %4857 = vrot.lane.b32.xlu0 %v4786, 24
    %v4858 = vpop.permute.xlu0 %4857
    %4859 = vrot.lane.b32.xlu0 %v4834, 24
    %v4860 = vpop.permute.xlu0 %4859
    %v4863 = vsel %vm329, %v4105, %v4842
    %v4864 = vsel %vm329, %v4154, %v4844
    %v4865 = vsel %vm1256, %v4863, %v4850
    %v4866 = vsel %vm1256, %v4864, %v4852
    %v4867 = vsel %vm1259, %v4865, %v4858
    %v4868 = vsel %vm1259, %v4866, %v4860
    %v4869 = vpack.c.bf16 %v4868, %v4867
    %s4870 = scalar_lea.vmem %s8, 48
    %v4871 = vld [vmem:[%s4870] sm:$0xf]
    %v4872 = vld [vmem:[%s4870 + $0x4] sm:$0xf]
    %v4873 = vld [vmem:[%s4870 + $0x8] sm:$0xf]
    %v4874 = vld [vmem:[%s4870 + $0xc] sm:$0xf]
    %v4875 = vlaneseq
    %v4876 = vshrl.u32 %v4875, 7
    %v4877 = vsub.s32 3, %v4876
    %v4878 = vrot.slane %v44, %v4877
    %v4883 = vunpack.c.l.b16 %v4871
    %v4884 = vunpack.c.l.b16 %v4872
    %v4885 = vunpack.c.l.b16 %v4873
    %v4886 = vunpack.c.l.b16 %v4874
    %v4887 = vpack.c.b16 %v4884, %v4883
    %v4888 = vpack.c.b16 %v4886, %v4885
    %v4892 = vsel %vm193, %v4869, 0
    %4894 = vmatprep.subr.bf16.mxu0 0
    %4895 = vmatpush1.bf16.msra.mxu0 %v4887
    %4896 = vmatprep.subr.bf16.mxu0 0
    %4897 = vmatpush1.bf16.msra.mxu0 %v4888
    %4898 = vmatprep.subr.bf16.mxu0 0
    %4899 = vmatpush1.bf16.msra.mxu0 0
    %4900 = vmatprep.subr.bf16.mxu0 0
    %4901 = vmatpush1.bf16.msra.mxu0 0
    %4902 = vmatprep.subr.bf16.mxu0 0
    %4903 = vmatpush1.bf16.msra.mxu0 0
    %4904 = vmatprep.subr.bf16.mxu0 0
    %4905 = vmatpush1.bf16.msra.mxu0 0
    %4906 = vmatprep.subr.bf16.mxu0 0
    %4907 = vmatpush1.bf16.msra.mxu0 0
    %4908 = vmatprep.subr.bf16.mxu0 0
    %4909 = vmatpush1.bf16.msra.mxu0 0
    %4910 = vmatprep.subr.bf16.mxu0 0
    %4911 = vmatpush1.bf16.msra.mxu0 0
    %4912 = vmatprep.subr.bf16.mxu0 0
    %4913 = vmatpush1.bf16.msra.mxu0 0
    %4914 = vmatprep.subr.bf16.mxu0 0
    %4915 = vmatpush1.bf16.msra.mxu0 0
    %4916 = vmatprep.subr.bf16.mxu0 0
    %4917 = vmatpush1.bf16.msra.mxu0 0
    %4918 = vmatprep.subr.bf16.mxu0 0
    %4919 = vmatpush1.bf16.msra.mxu0 0
    %4920 = vmatprep.subr.bf16.mxu0 0
    %4921 = vmatpush1.bf16.msra.mxu0 0
    %4922 = vmatprep.subr.bf16.mxu0 0
    %4923 = vmatpush1.bf16.msra.mxu0 0
    %4924 = vmatprep.subr.bf16.mxu0 0
    %4925 = vmatpush1.bf16.msra.mxu0 0
    %4926 = vmatprep.mubr.bf16.mxu0 0
    %4927 = vmatmul.mubr.bf16.gmra.mrb[0].mxu0 %v4892
    %v4928 = vpop.f32.mrb[0].mxu0
    %v4929 = vadd.f32 %v4878, %v4928
    %v4930 = vpop.f32.mrb[0].mxu0
    %v4931 = vpop.f32.mrb[0].mxu0
    %v4932 = vadd.f32 %v4878, %v4931
    %v4933 = vpop.f32.mrb[0].mxu0
    %4934 = vdwg.mxu0
    %v4935 = vadd.f32 %v4929, %v3824
    %v4936 = vadd.f32 %v4932, %v3825
    %v4937 = vsel %vm193, %v4935, 0.0
    %4938 = vadd.xlane.f32.xlu0 %v4937
    %v4939 = vpop.xlane.xlu0 %4938
    %v4940 = vsel %vm193, %v4936, 0.0
    %4941 = vadd.xlane.f32.xlu0 %v4940
    %v4942 = vpop.xlane.xlu0 %4941
    %v4943 = vmul.f32 %v4935, %v4935
    %v4944 = vmul.f32 %v4936, %v4936
    %v4945 = vsel %vm193, %v4943, 0.0
    %4946 = vadd.xlane.f32.xlu0 %v4945
    %v4947 = vpop.xlane.xlu0 %4946
    %v4948 = vsel %vm193, %v4944, 0.0
    %4949 = vadd.xlane.f32.xlu0 %v4948
    %v4950 = vpop.xlane.xlu0 %4949
    %v4951 = vmul.f32 %v4939, 0.03125
    %v4952 = vmul.f32 %v4942, 0.03125
    %v4953 = vmul.f32 %v4947, 0.03125
    %v4954 = vmul.f32 %v4950, 0.03125
    %v4955 = vmul.f32 %v4951, %v4951
    %v4956 = vmul.f32 %v4952, %v4952
    %v4957 = vsub.f32 %v4953, %v4955
    %v4958 = vsub.f32 %v4954, %v4956
    %v4959 = vsub.f32 %v4935, %v4951
    %v4960 = vsub.f32 %v4936, %v4952
    %v4961 = vadd.f32 %v4957, 1e-06
    %v4962 = vadd.f32 %v4958, 1e-06
    %v4963 = vrsqrt.pop %v4961
    %v4964 = vrsqrt.pop %v4962
    %v4965 = vmul.f32 %v4959, %v4963
    %v4966 = vmul.f32 %v4960, %v4964
    %v4967 = vlaneseq
    %v4968 = vshrl.u32 %v4967, 7
    %v4969 = vsub.s32 4, %v4968
    %v4970 = vrot.slane %v44, %v4969
    %v4971 = vmul.f32 %v4965, %v4970
    %v4972 = vmul.f32 %v4966, %v4970
    %v4973 = vlaneseq
    %v4974 = vshrl.u32 %v4973, 7
    %v4975 = vsub.s32 5, %v4974
    %v4976 = vrot.slane %v44, %v4975
    %v4977 = vadd.f32 %v4971, %v4976
    %v4978 = vadd.f32 %v4972, %v4976
    %v4979 = vpack.c.bf16 %v4978, %v4977
    %s4980 = scalar_lea.vmem %s9, 16
    %v4981 = vld [vmem:[%s4980] sm:$0xf]
    %v4982 = vld [vmem:[%s4980 + $0x4] sm:$0xf]
    %v4983 = vld [vmem:[%s4980 + $0x8] sm:$0xf]
    %v4984 = vld [vmem:[%s4980 + $0xc] sm:$0xf]
    %v4985 = vlaneseq
    %v4986 = vshrl.u32 %v4985, 7
    %v4987 = vsub.s32 2, %v4986
    %v4988 = vrot.slane %v45, %v4987
    %v4993 = vunpack.c.l.b16 %v4981
    %v4994 = vunpack.c.l.b16 %v4982
    %v4995 = vunpack.c.l.b16 %v4983
    %v4996 = vunpack.c.l.b16 %v4984
    %v4997 = vpack.c.b16 %v4994, %v4993
    %v4998 = vpack.c.b16 %v4996, %v4995
    %v5002 = vsel %vm193, %v4979, 0
    %5004 = vmatprep.subr.bf16.mxu0 0
    %5005 = vmatpush1.bf16.msra.mxu0 %v4997
    %5006 = vmatprep.subr.bf16.mxu0 0
    %5007 = vmatpush1.bf16.msra.mxu0 %v4998
    %5008 = vmatprep.subr.bf16.mxu0 0
    %5009 = vmatpush1.bf16.msra.mxu0 0
    %5010 = vmatprep.subr.bf16.mxu0 0
    %5011 = vmatpush1.bf16.msra.mxu0 0
    %5012 = vmatprep.subr.bf16.mxu0 0
    %5013 = vmatpush1.bf16.msra.mxu0 0
    %5014 = vmatprep.subr.bf16.mxu0 0
    %5015 = vmatpush1.bf16.msra.mxu0 0
    %5016 = vmatprep.subr.bf16.mxu0 0
    %5017 = vmatpush1.bf16.msra.mxu0 0
    %5018 = vmatprep.subr.bf16.mxu0 0
    %5019 = vmatpush1.bf16.msra.mxu0 0
    %5020 = vmatprep.subr.bf16.mxu0 0
    %5021 = vmatpush1.bf16.msra.mxu0 0
    %5022 = vmatprep.subr.bf16.mxu0 0
    %5023 = vmatpush1.bf16.msra.mxu0 0
    %5024 = vmatprep.subr.bf16.mxu0 0
    %5025 = vmatpush1.bf16.msra.mxu0 0
    %5026 = vmatprep.subr.bf16.mxu0 0
    %5027 = vmatpush1.bf16.msra.mxu0 0
    %5028 = vmatprep.subr.bf16.mxu0 0
    %5029 = vmatpush1.bf16.msra.mxu0 0
    %5030 = vmatprep.subr.bf16.mxu0 0
    %5031 = vmatpush1.bf16.msra.mxu0 0
    %5032 = vmatprep.subr.bf16.mxu0 0
    %5033 = vmatpush1.bf16.msra.mxu0 0
    %5034 = vmatprep.subr.bf16.mxu0 0
    %5035 = vmatpush1.bf16.msra.mxu0 0
    %5036 = vmatprep.mubr.bf16.mxu0 0
    %5037 = vmatmul.mubr.bf16.gmra.mrb[0].mxu0 %v5002
    %v5038 = vpop.f32.mrb[0].mxu0
    %v5039 = vadd.f32 %v4988, %v5038
    %v5040 = vpop.f32.mrb[0].mxu0
    %v5041 = vpop.f32.mrb[0].mxu0
    %v5042 = vadd.f32 %v4988, %v5041
    %v5043 = vpop.f32.mrb[0].mxu0
    %5044 = vdwg.mxu0
    %v5045 = vmax.f32 %v5039, 0.0
    %v5046 = vmax.f32 %v5042, 0.0
    %v5047 = vpack.c.bf16 %v5046, %v5045
    %s5048 = scalar_lea.vmem %s10, 32
    %v5049 = vld [vmem:[%s5048] sm:$0xf]
    %v5050 = vld [vmem:[%s5048 + $0x4] sm:$0xf]
    %v5051 = vld [vmem:[%s5048 + $0x8] sm:$0xf]
    %v5052 = vld [vmem:[%s5048 + $0xc] sm:$0xf]
    %v5053 = vld [vmem:[%s5048 + $0x10] sm:$0xf]
    %v5054 = vld [vmem:[%s5048 + $0x14] sm:$0xf]
    %v5055 = vld [vmem:[%s5048 + $0x18] sm:$0xf]
    %v5056 = vld [vmem:[%s5048 + $0x1c] sm:$0xf]
    %v5057 = vlaneseq
    %v5058 = vshrl.u32 %v5057, 7
    %v5059 = vsub.s32 3, %v5058
    %v5060 = vrot.slane %v45, %v5059
    %v5069 = vunpack.c.l.b16 %v5049
    %v5070 = vunpack.c.l.b16 %v5050
    %v5071 = vunpack.c.l.b16 %v5051
    %v5072 = vunpack.c.l.b16 %v5052
    %v5073 = vunpack.c.l.b16 %v5053
    %v5074 = vunpack.c.l.b16 %v5054
    %v5075 = vunpack.c.l.b16 %v5055
    %v5076 = vunpack.c.l.b16 %v5056
    %v5077 = vpack.c.b16 %v5070, %v5069
    %v5078 = vpack.c.b16 %v5072, %v5071
    %v5079 = vpack.c.b16 %v5074, %v5073
    %v5080 = vpack.c.b16 %v5076, %v5075
    %v5086 = vsel %vm2631, %v5047, 0
    %5088 = vmatprep.subr.bf16.mxu0 0
    %5089 = vmatpush1.bf16.msra.mxu0 %v5077
    %5090 = vmatprep.subr.bf16.mxu0 0
    %5091 = vmatpush1.bf16.msra.mxu0 %v5078
    %5092 = vmatprep.subr.bf16.mxu0 0
    %5093 = vmatpush1.bf16.msra.mxu0 %v5079
    %5094 = vmatprep.subr.bf16.mxu0 0
    %5095 = vmatpush1.bf16.msra.mxu0 %v5080
    %5096 = vmatprep.subr.bf16.mxu0 0
    %5097 = vmatpush1.bf16.msra.mxu0 0
    %5098 = vmatprep.subr.bf16.mxu0 0
    %5099 = vmatpush1.bf16.msra.mxu0 0
    %5100 = vmatprep.subr.bf16.mxu0 0
    %5101 = vmatpush1.bf16.msra.mxu0 0
    %5102 = vmatprep.subr.bf16.mxu0 0
    %5103 = vmatpush1.bf16.msra.mxu0 0
    %5104 = vmatprep.subr.bf16.mxu0 0
    %5105 = vmatpush1.bf16.msra.mxu0 0
    %5106 = vmatprep.subr.bf16.mxu0 0
    %5107 = vmatpush1.bf16.msra.mxu0 0
    %5108 = vmatprep.subr.bf16.mxu0 0
    %5109 = vmatpush1.bf16.msra.mxu0 0
    %5110 = vmatprep.subr.bf16.mxu0 0
    %5111 = vmatpush1.bf16.msra.mxu0 0
    %5112 = vmatprep.subr.bf16.mxu0 0
    %5113 = vmatpush1.bf16.msra.mxu0 0
    %5114 = vmatprep.subr.bf16.mxu0 0
    %5115 = vmatpush1.bf16.msra.mxu0 0
    %5116 = vmatprep.subr.bf16.mxu0 0
    %5117 = vmatpush1.bf16.msra.mxu0 0
    %5118 = vmatprep.subr.bf16.mxu0 0
    %5119 = vmatpush1.bf16.msra.mxu0 0
    %5120 = vmatprep.mubr.bf16.mxu0 0
    %5121 = vmatmul.mubr.bf16.gmra.mrb[0].mxu0 %v5086
    %v5122 = vpop.f32.mrb[0].mxu0
    %v5123 = vadd.f32 %v5060, %v5122
    %v5124 = vpop.f32.mrb[0].mxu0
    %v5125 = vpop.f32.mrb[0].mxu0
    %v5126 = vadd.f32 %v5060, %v5125
    %v5127 = vpop.f32.mrb[0].mxu0
    %5128 = vdwg.mxu0
    %v5129 = vadd.f32 %v5123, %v4977
    %v5130 = vadd.f32 %v5126, %v4978
    %v5131 = vsel %vm193, %v5129, 0.0
    %5132 = vadd.xlane.f32.xlu0 %v5131
    %v5133 = vpop.xlane.xlu0 %5132
    %v5134 = vsel %vm193, %v5130, 0.0
    %5135 = vadd.xlane.f32.xlu0 %v5134
    %v5136 = vpop.xlane.xlu0 %5135
    %v5137 = vmul.f32 %v5129, %v5129
    %v5138 = vmul.f32 %v5130, %v5130
    %v5139 = vsel %vm193, %v5137, 0.0
    %5140 = vadd.xlane.f32.xlu0 %v5139
    %v5141 = vpop.xlane.xlu0 %5140
    %v5142 = vsel %vm193, %v5138, 0.0
    %5143 = vadd.xlane.f32.xlu0 %v5142
    %v5144 = vpop.xlane.xlu0 %5143
    %v5145 = vmul.f32 %v5133, 0.03125
    %v5146 = vmul.f32 %v5136, 0.03125
    %v5147 = vmul.f32 %v5141, 0.03125
    %v5148 = vmul.f32 %v5144, 0.03125
    %v5149 = vmul.f32 %v5145, %v5145
    %v5150 = vmul.f32 %v5146, %v5146
    %v5151 = vsub.f32 %v5147, %v5149
    %v5152 = vsub.f32 %v5148, %v5150
    %v5153 = vsub.f32 %v5129, %v5145
    %v5154 = vsub.f32 %v5130, %v5146
    %v5155 = vadd.f32 %v5151, 1e-06
    %v5156 = vadd.f32 %v5152, 1e-06
    %v5157 = vrsqrt.pop %v5155
    %v5158 = vrsqrt.pop %v5156
    %v5159 = vmul.f32 %v5153, %v5157
    %v5160 = vmul.f32 %v5154, %v5158
    %v5161 = vlaneseq
    %v5162 = vshrl.u32 %v5161, 7
    %v5163 = vsub.s32 4, %v5162
    %v5164 = vrot.slane %v45, %v5163
    %v5165 = vmul.f32 %v5159, %v5164
    %v5166 = vmul.f32 %v5160, %v5164
    %v5167 = vlaneseq
    %v5168 = vshrl.u32 %v5167, 7
    %v5169 = vsub.s32 5, %v5168
    %v5170 = vrot.slane %v45, %v5169
    %v5171 = vadd.f32 %v5165, %v5170
    %v5172 = vadd.f32 %v5166, %v5170
    %5173 = vst.msk [vmem:[#allocation2] sm:$0xff] %vm193, %v5171
    %5174 = vst.msk [vmem:[#allocation2 + $0x8] sm:$0xff] %vm193, %v5172
    // Predicated region
    $region50: #{decoder_forward.1} parent=1 // pred_check
      _
    $region51: #{decoder_forward.1} parent=1 // pred_check_branch
      %5176 = sbr.rel (0) target = $region53
    $region52: #{decoder_forward.1} parent=1 // pred_region
      %s5178 = ssub.s32 256, 256
      %5179 = vsyncadd [#allocation3], %s5178
      %s5180 = sshll.u32 [#allocation2], 4
      %s5181 = int_to_ptr.vmem [resolvable:$true] %s5180
      %5186 = dma.vmem_to_hbm [thread:$0]  %s5181, 256, %s12, [#allocation3], 128, 128, 8
    $region53: #{decoder_forward.1} parent=1 // pred_fallthru
      _
    // Predicated region
    $region54: #{decoder_forward.1} parent=1 // pred_check
      _
    $region55: #{decoder_forward.1} parent=1 // pred_check_branch
      %5188 = sbr.rel (0) target = $region57
    $region56: #{decoder_forward.1} parent=1 // pred_region
      %5189 = dma.done [#allocation3], 256
    $region57: #{decoder_forward.1} parent=1 // pred_fallthru
      _
    %5190 = vsyncpa [#allocation3], 1

</llo_original>
